<compile_context>
chip_gen: v7x
topology: tpu7x:2x2x1
jax: 0.10.0
libtpu: 0.0.40
codegen_flags: <defaults>
</compile_context>

<pallas_src>
import functools

import jax
import jax.numpy as jnp
from jax.experimental import pallas as pl
from jax.experimental.pallas import tpu as pltpu

SIZE_IN, SIZE_HID, SIZE_ATT, N_CLASSES = 1024, 512, 384, 2
TILE_N = 256  # instance-axis tile (full MXU M-tile on v6e/v7x, 2x on v5e)


def clam_kernel(x_ref, w1_ref, b1_ref, wab_ref, bab_ref, wc_ref, bc_ref,
                wcls_ref, bcls_ref, out_ref, m_ref, l_ref, acc_ref, *, n_rows):
    i = pl.program_id(0)

    @pl.when(i == 0)
    def _init():
        m_ref[...] = jnp.full_like(m_ref, -jnp.inf)
        l_ref[...] = jnp.zeros_like(l_ref)
        acc_ref[...] = jnp.zeros_like(acc_ref)

    # Validity mask for the (possibly partial) last tile.
    row = i * TILE_N + jax.lax.broadcasted_iota(jnp.int32, (TILE_N, 1), 0)
    valid = row < n_rows                                               # [TN, 1]

    # fc: Linear(1024, 512) + ReLU  (Dropout is identity in eval mode)
    h = jnp.dot(x_ref[...], w1_ref[...],
                preferred_element_type=jnp.float32) + b1_ref[...]
    h = jnp.maximum(h, 0.0)
    h = jnp.where(valid, h, 0.0)                                       # [TN, 512] f32

    # Fused attention_a / attention_b projection: h @ [Wa | Wb]  -> [TN, 768]
    ab = jnp.dot(h.astype(jnp.bfloat16), wab_ref[...],
                 preferred_element_type=jnp.float32) + bab_ref[...]
    a = jnp.tanh(ab[:, :SIZE_ATT])                                     # [TN, 384]
    b = pl.reciprocal(1.0 + jnp.exp(-ab[:, SIZE_ATT:]), approx=True)   # sigmoid

    # attention_c: Linear(384, 1) as VPU multiply + lane reduce (keeps MXU free)
    s = jnp.sum((a * b) * wc_ref[...], axis=-1, keepdims=True) + bc_ref[0]  # [TN, 1]
    s = jnp.where(valid, s, -1e30)

    # Online softmax over the instance axis (dim=0), streamed across tiles.
    m_old = m_ref[...]                                                 # [1, 1]
    m_new = jnp.maximum(m_old, jnp.max(s, axis=0, keepdims=True))
    alpha = jnp.exp(m_old - m_new)
    p = jnp.exp(s - m_new)                                             # [TN, 1]
    l_ref[...] = alpha * l_ref[...] + jnp.sum(p, axis=0, keepdims=True)
    acc_ref[...] = alpha * acc_ref[...] + jnp.sum(p * h, axis=0, keepdims=True)
    m_ref[...] = m_new

    @pl.when(i == pl.num_programs(0) - 1)
    def _finalize():
        pooled = acc_ref[...] * pl.reciprocal(l_ref[...], approx=True)  # [1, 512]
        out_ref[...] = (jnp.dot(pooled, wcls_ref[...],
                                preferred_element_type=jnp.float32) + bcls_ref[...])


def clam_forward(x, params):
    (w1, b1, wa, ba, wb, bb, wc, bc, wcls, bcls) = params
    n = x.shape[0]
    n_tiles = pl.cdiv(n, TILE_N)

    # bf16 for the HBM-heavy operands; small/accumulation-side tensors stay f32.
    x_bf = x.astype(jnp.bfloat16)
    w1_bf = w1.astype(jnp.bfloat16)
    wab_bf = jnp.concatenate([wa, wb], axis=1).astype(jnp.bfloat16)    # [512, 768]
    bab = jnp.concatenate([ba, bb], axis=1)                            # [1, 768]
    wc_row = wc.T                                                      # [1, 384] f32
    bc_s = bc.reshape((1,))                                            # SMEM scalar

    const = lambda i: (0, 0)  # weights / biases: resident across the N-reduction

    flops = (2 * n * (SIZE_IN * SIZE_HID + SIZE_HID * 2 * SIZE_ATT)
             + n * (3 * SIZE_ATT + 2 * SIZE_HID) + 2 * SIZE_HID * N_CLASSES)
    transcendentals = n * (2 * SIZE_ATT + 2)
    bytes_accessed = (n * SIZE_IN * 2 + SIZE_IN * SIZE_HID * 2
                      + SIZE_HID * 2 * SIZE_ATT * 2
                      + 4 * (SIZE_HID + 2 * SIZE_ATT + SIZE_ATT + 1
                             + SIZE_HID * N_CLASSES + N_CLASSES)
                      + 4 * N_CLASSES)

    grid_spec = pltpu.PrefetchScalarGridSpec(
        num_scalar_prefetch=0,
        grid=(n_tiles,),
        in_specs=[
            pl.BlockSpec((TILE_N, SIZE_IN), lambda i: (i, 0)),         # x (bf16, tiled)
            pl.BlockSpec((SIZE_IN, SIZE_HID), const),                  # W1 (bf16)
            pl.BlockSpec((1, SIZE_HID), const),                        # b1
            pl.BlockSpec((SIZE_HID, 2 * SIZE_ATT), const),             # [Wa|Wb] (bf16)
            pl.BlockSpec((1, 2 * SIZE_ATT), const),                    # [ba|bb]
            pl.BlockSpec((1, SIZE_ATT), const),                        # Wc as a row
            pl.BlockSpec(memory_space=pltpu.MemorySpace.SMEM),         # bc scalar
            pl.BlockSpec((SIZE_HID, N_CLASSES), const),                # Wcls
            pl.BlockSpec((1, N_CLASSES), const),                       # bcls
        ],
        out_specs=pl.BlockSpec((1, N_CLASSES), lambda i: (0, 0)),
        scratch_shapes=[
            pltpu.VMEM((1, 1), jnp.float32),          # running max m
            pltpu.VMEM((1, 1), jnp.float32),          # running sum l
            pltpu.VMEM((1, SIZE_HID), jnp.float32),   # running weighted-h acc
        ],
    )

    return pl.pallas_call(
        functools.partial(clam_kernel, n_rows=n),
        out_shape=jax.ShapeDtypeStruct((1, N_CLASSES), jnp.float32),
        grid_spec=grid_spec,
        compiler_params=pltpu.CompilerParams(dimension_semantics=("arbitrary",)),
        cost_estimate=pl.CostEstimate(flops=flops, transcendentals=transcendentals,
                                      bytes_accessed=bytes_accessed),
    )(x_bf, w1_bf, b1, wab_bf, bab, wc_row, bc_s, wcls, bcls)


def xavier_normal(key, fan_in, fan_out):
    # PyTorch nn.init.xavier_normal_ on a (out, in) weight; stored as (in, out).
    std = (2.0 / (fan_in + fan_out)) ** 0.5
    return std * jax.random.normal(key, (fan_in, fan_out), dtype=jnp.float32)


def init_params(key):
    k1, k2, k3, k4, k5 = jax.random.split(key, 5)
    w1 = xavier_normal(k1, SIZE_IN, SIZE_HID)
    b1 = jnp.zeros((1, SIZE_HID), jnp.float32)
    wa = xavier_normal(k2, SIZE_HID, SIZE_ATT)
    ba = jnp.zeros((1, SIZE_ATT), jnp.float32)
    wb = xavier_normal(k3, SIZE_HID, SIZE_ATT)
    bb = jnp.zeros((1, SIZE_ATT), jnp.float32)
    wc = xavier_normal(k4, SIZE_ATT, 1)
    bc = jnp.zeros((1, 1), jnp.float32)
    wcls = xavier_normal(k5, SIZE_HID, N_CLASSES)
    bcls = jnp.zeros((1, N_CLASSES), jnp.float32)
    return (w1, b1, wa, ba, wb, bb, wc, bc, wcls, bcls)


def clam_reference(x, params):
    """Pure-JAX reference mirroring the kernel's bf16 quantization (f32 math)."""
    (w1, b1, wa, ba, wb, bb, wc, bc, wcls, bcls) = params
    q = lambda t: t.astype(jnp.bfloat16).astype(jnp.float32)
    h = jnp.maximum(q(x) @ q(w1) + b1, 0.0)
    a = jnp.tanh(q(h) @ q(wa) + ba)
    b = jax.nn.sigmoid(q(h) @ q(wb) + bb)
    logits = (a * b) @ wc + bc
    att = jax.nn.softmax(logits, axis=0)
    pooled = att.T @ h
    return pooled @ wcls + bcls


if __name__ == "__main__":
    key = jax.random.PRNGKey(0)
    k_param, k_x = jax.random.split(key)
    params = init_params(k_param)

    # TODO(synk): Dropout(0.25) layers are identity in eval mode (no Pallas op emitted).
    N = 300  # bag size: exercises two instance tiles + masked partial last tile
    x = jax.random.normal(k_x, (N, SIZE_IN), dtype=jnp.float32)

    out = clam_forward(x, params)
    jax.block_until_ready(out)

    ref = clam_reference(x, params)
    assert out.shape == (1, N_CLASSES)
    assert jnp.allclose(out, ref, atol=2e-2, rtol=2e-2), (out, ref)

    print("KERNEL_OK")
</pallas_src>

<mosaic_0001>
module attributes {stable_mosaic.version = 11 : i64} {
  func.func @clam_kernel(%arg0: i32, %arg1: memref<256x1024xbf16, #tpu.memory_space<vmem>>, %arg2: memref<1024x512xbf16, #tpu.memory_space<vmem>>, %arg3: memref<1x512xf32, #tpu.memory_space<vmem>>, %arg4: memref<512x768xbf16, #tpu.memory_space<vmem>>, %arg5: memref<1x768xf32, #tpu.memory_space<vmem>>, %arg6: memref<1x384xf32, #tpu.memory_space<vmem>>, %arg7: memref<1xf32, #tpu.memory_space<smem>>, %arg8: memref<512x2xf32, #tpu.memory_space<vmem>>, %arg9: memref<1x2xf32, #tpu.memory_space<vmem>>, %arg10: memref<1x2xf32, #tpu.memory_space<vmem>>, %arg11: memref<1x1xf32, #tpu.memory_space<vmem>>, %arg12: memref<1x1xf32, #tpu.memory_space<vmem>>, %arg13: memref<1x512xf32, #tpu.memory_space<vmem>>) attributes {dimension_semantics = [#tpu.dimension_semantics<arbitrary>], iteration_bounds = array<i64: 2>, scalar_prefetch = 0 : i64, scratch_operands = 3 : i64, tpu.core_type = #tpu.core_type<tc>, window_params = [{transform_indices = @transform_0, window_bounds = array<i64: 256, 1024>}, {pipeline_mode = #tpu.pipeline_mode<synchronous>, transform_indices = @transform_1, window_bounds = array<i64: 1024, 512>}, {pipeline_mode = #tpu.pipeline_mode<synchronous>, transform_indices = @transform_2, window_bounds = array<i64: 1, 512>}, {pipeline_mode = #tpu.pipeline_mode<synchronous>, transform_indices = @transform_3, window_bounds = array<i64: 512, 768>}, {pipeline_mode = #tpu.pipeline_mode<synchronous>, transform_indices = @transform_4, window_bounds = array<i64: 1, 768>}, {pipeline_mode = #tpu.pipeline_mode<synchronous>, transform_indices = @transform_5, window_bounds = array<i64: 1, 384>}, {transform_indices = @transform_6, window_bounds = array<i64: 1>}, {pipeline_mode = #tpu.pipeline_mode<synchronous>, transform_indices = @transform_7, window_bounds = array<i64: 512, 2>}, {pipeline_mode = #tpu.pipeline_mode<synchronous>, transform_indices = @transform_8, window_bounds = array<i64: 1, 2>}, {pipeline_mode = #tpu.pipeline_mode<synchronous>, transform_indices = @transform_9, window_bounds = array<i64: 1, 2>}]} {
    %c0_i32 = arith.constant 0 : i32
    %0 = arith.cmpi eq, %arg0, %c0_i32 : i32
    %1 = arith.extui %0 : i1 to i32
    %c0_i32_0 = arith.constant 0 : i32
    %2 = arith.cmpi ne, %1, %c0_i32_0 : i32
    scf.if %2 {
      %cst_36 = arith.constant 0xFF800000 : f32
      %75 = vector.broadcast %cst_36 : f32 to vector<1x1xf32>
      %c0_37 = arith.constant 0 : index
      %c0_38 = arith.constant 0 : index
      %76 = vector.load %arg11[%c0_37, %c0_38] : memref<1x1xf32, #tpu.memory_space<vmem>>, vector<1x1xf32>
      tpu.vector_store %arg11[%c0_37, %c0_38], %75 {strides = array<i32>} : memref<1x1xf32, #tpu.memory_space<vmem>>, vector<1x1xf32>,
      %cst_39 = arith.constant 0.000000e+00 : f32
      %77 = vector.broadcast %cst_39 : f32 to vector<1x1xf32>
      %c0_40 = arith.constant 0 : index
      %c0_41 = arith.constant 0 : index
      %78 = vector.load %arg12[%c0_40, %c0_41] : memref<1x1xf32, #tpu.memory_space<vmem>>, vector<1x1xf32>
      tpu.vector_store %arg12[%c0_40, %c0_41], %77 {strides = array<i32>} : memref<1x1xf32, #tpu.memory_space<vmem>>, vector<1x1xf32>,
      %cst_42 = arith.constant 0.000000e+00 : f32
      %79 = vector.broadcast %cst_42 : f32 to vector<1x512xf32>
      %c0_43 = arith.constant 0 : index
      %c0_44 = arith.constant 0 : index
      %80 = vector.load %arg13[%c0_43, %c0_44] : memref<1x512xf32, #tpu.memory_space<vmem>>, vector<1x512xf32>
      tpu.vector_store %arg13[%c0_43, %c0_44], %79 {strides = array<i32>} : memref<1x512xf32, #tpu.memory_space<vmem>>, vector<1x512xf32>,
    } else {
    }
    %c256_i32 = arith.constant 256 : i32
    %3 = arith.muli %arg0, %c256_i32 : i32
    %4 = tpu.iota {dimensions = array<i32: 0>} : vector<256x1xi32>
    %5 = vector.broadcast %3 : i32 to vector<256x1xi32>
    %6 = arith.addi %5, %4 : vector<256x1xi32>
    %c300_i32 = arith.constant 300 : i32
    %7 = vector.broadcast %c300_i32 : i32 to vector<256x1xi32>
    %8 = arith.cmpi slt, %6, %7 : vector<256x1xi32>
    %c0 = arith.constant 0 : index
    %c0_1 = arith.constant 0 : index
    %9 = vector.load %arg1[%c0, %c0_1] : memref<256x1024xbf16, #tpu.memory_space<vmem>>, vector<256x1024xbf16>
    %c0_2 = arith.constant 0 : index
    %c0_3 = arith.constant 0 : index
    %10 = vector.load %arg2[%c0_2, %c0_3] : memref<1024x512xbf16, #tpu.memory_space<vmem>>, vector<1024x512xbf16>
    %cst = arith.constant dense<0.000000e+00> : vector<256x512xf32>
    %11 = tpu.matmul %9, %10, %cst {dimension_numbers = #tpu.dot_dimension_numbers<[1], [0], [0], [1], [0, 0, 1, 1], [], []>} : vector<256x1024xbf16>, vector<1024x512xbf16>, vector<256x512xf32> -> vector<256x512xf32>
    %c0_4 = arith.constant 0 : index
    %c0_5 = arith.constant 0 : index
    %12 = vector.load %arg3[%c0_4, %c0_5] : memref<1x512xf32, #tpu.memory_space<vmem>>, vector<1x512xf32>
    %13 = vector.broadcast %12 : vector<1x512xf32> to vector<256x512xf32>
    %14 = arith.addf %11, %13 : vector<256x512xf32>
    %cst_6 = arith.constant 0.000000e+00 : f32
    %15 = vector.broadcast %cst_6 : f32 to vector<256x512xf32>
    %16 = arith.maximumf %14, %15 : vector<256x512xf32>
    %cst_7 = arith.constant 0.000000e+00 : f32
    %17 = vector.shape_cast %8 : vector<256x1xi1> to vector<256x1xi1>
    %18 = vector.broadcast %17 : vector<256x1xi1> to vector<256x512xi1>
    %19 = vector.broadcast %cst_7 : f32 to vector<256x512xf32>
    %20 = arith.select %18, %16, %19 : vector<256x512xi1>, vector<256x512xf32>
    %21 = arith.truncf %20 : vector<256x512xf32> to vector<256x512xbf16>
    %c0_8 = arith.constant 0 : index
    %c0_9 = arith.constant 0 : index
    %22 = vector.load %arg4[%c0_8, %c0_9] : memref<512x768xbf16, #tpu.memory_space<vmem>>, vector<512x768xbf16>
    %cst_10 = arith.constant dense<0.000000e+00> : vector<256x768xf32>
    %23 = tpu.matmul %21, %22, %cst_10 {dimension_numbers = #tpu.dot_dimension_numbers<[1], [0], [0], [1], [0, 0, 1, 1], [], []>} : vector<256x512xbf16>, vector<512x768xbf16>, vector<256x768xf32> -> vector<256x768xf32>
    %c0_11 = arith.constant 0 : index
    %c0_12 = arith.constant 0 : index
    %24 = vector.load %arg5[%c0_11, %c0_12] : memref<1x768xf32, #tpu.memory_space<vmem>>, vector<1x768xf32>
    %25 = vector.broadcast %24 : vector<1x768xf32> to vector<256x768xf32>
    %26 = arith.addf %23, %25 : vector<256x768xf32>
    %27 = vector.extract_strided_slice %26 {offsets = [0, 0], sizes = [256, 384], strides = [1, 1]} : vector<256x768xf32> to vector<256x384xf32>
    %28 = math.tanh %27 : vector<256x384xf32>
    %29 = vector.extract_strided_slice %26 {offsets = [0, 384], sizes = [256, 384], strides = [1, 1]} : vector<256x768xf32> to vector<256x384xf32>
    %cst_13 = arith.constant 0.000000e+00 : f32
    %30 = vector.broadcast %cst_13 : f32 to vector<256x384xf32>
    %31 = arith.subf %30, %29 : vector<256x384xf32>
    %32 = math.exp %31 : vector<256x384xf32>
    %cst_14 = arith.constant 1.000000e+00 : f32
    %33 = vector.broadcast %cst_14 : f32 to vector<256x384xf32>
    %34 = arith.addf %33, %32 : vector<256x384xf32>
    %35 = tpu.reciprocal %34 {approx = true} : vector<256x384xf32> -> vector<256x384xf32>
    %36 = arith.mulf %28, %35 : vector<256x384xf32>
    %c0_15 = arith.constant 0 : index
    %c0_16 = arith.constant 0 : index
    %37 = vector.load %arg6[%c0_15, %c0_16] : memref<1x384xf32, #tpu.memory_space<vmem>>, vector<1x384xf32>
    %38 = vector.broadcast %37 : vector<1x384xf32> to vector<256x384xf32>
    %39 = arith.mulf %36, %38 : vector<256x384xf32>
    %cst_17 = arith.constant dense<0.000000e+00> : vector<256xf32>
    %40 = vector.multi_reduction <add>, %39, %cst_17 [1] : vector<256x384xf32> to vector<256xf32>
    %41 = vector.shape_cast %40 : vector<256xf32> to vector<256x1xf32>
    %c0_18 = arith.constant 0 : index
    %42 = memref.load %arg7[%c0_18] : memref<1xf32, #tpu.memory_space<smem>>
    %43 = vector.broadcast %42 : f32 to vector<256x1xf32>
    %44 = arith.addf %41, %43 : vector<256x1xf32>
    %cst_19 = arith.constant -1.000000e+30 : f32
    %45 = vector.broadcast %cst_19 : f32 to vector<256x1xf32>
    %46 = arith.select %8, %44, %45 : vector<256x1xi1>, vector<256x1xf32>
    %c0_20 = arith.constant 0 : index
    %c0_21 = arith.constant 0 : index
    %47 = vector.load %arg11[%c0_20, %c0_21] : memref<1x1xf32, #tpu.memory_space<vmem>>, vector<1x1xf32>
    %cst_22 = arith.constant dense<0xFF800000> : vector<1xf32>
    %48 = vector.multi_reduction <maximumf>, %46, %cst_22 [0] : vector<256x1xf32> to vector<1xf32>
    %49 = vector.shape_cast %48 : vector<1xf32> to vector<1x1xf32>
    %50 = arith.maximumf %47, %49 : vector<1x1xf32>
    %51 = arith.subf %47, %50 : vector<1x1xf32>
    %52 = math.exp %51 : vector<1x1xf32>
    %53 = vector.broadcast %50 : vector<1x1xf32> to vector<256x1xf32>
    %54 = arith.subf %46, %53 : vector<256x1xf32>
    %55 = math.exp %54 : vector<256x1xf32>
    %c0_23 = arith.constant 0 : index
    %c0_24 = arith.constant 0 : index
    %56 = vector.load %arg12[%c0_23, %c0_24] : memref<1x1xf32, #tpu.memory_space<vmem>>, vector<1x1xf32>
    %57 = arith.mulf %52, %56 : vector<1x1xf32>
    %cst_25 = arith.constant dense<0.000000e+00> : vector<1xf32>
    %58 = vector.multi_reduction <add>, %55, %cst_25 [0] : vector<256x1xf32> to vector<1xf32>
    %59 = vector.shape_cast %58 : vector<1xf32> to vector<1x1xf32>
    %60 = arith.addf %57, %59 : vector<1x1xf32>
    %c0_26 = arith.constant 0 : index
    %c0_27 = arith.constant 0 : index
    %61 = vector.load %arg12[%c0_26, %c0_27] : memref<1x1xf32, #tpu.memory_space<vmem>>, vector<1x1xf32>
    tpu.vector_store %arg12[%c0_26, %c0_27], %60 {strides = array<i32>} : memref<1x1xf32, #tpu.memory_space<vmem>>, vector<1x1xf32>,
    %c0_28 = arith.constant 0 : index
    %c0_29 = arith.constant 0 : index
    %62 = vector.load %arg13[%c0_28, %c0_29] : memref<1x512xf32, #tpu.memory_space<vmem>>, vector<1x512xf32>
    %63 = vector.broadcast %52 : vector<1x1xf32> to vector<1x512xf32>
    %64 = arith.mulf %63, %62 : vector<1x512xf32>
    %65 = vector.broadcast %55 : vector<256x1xf32> to vector<256x512xf32>
    %66 = arith.mulf %65, %20 : vector<256x512xf32>
    %cst_30 = arith.constant dense<0.000000e+00> : vector<512xf32>
    %67 = vector.multi_reduction <add>, %66, %cst_30 [0] : vector<256x512xf32> to vector<512xf32>
    %68 = vector.shape_cast %67 : vector<512xf32> to vector<1x512xf32>
    %69 = arith.addf %64, %68 : vector<1x512xf32>
    %c0_31 = arith.constant 0 : index
    %c0_32 = arith.constant 0 : index
    %70 = vector.load %arg13[%c0_31, %c0_32] : memref<1x512xf32, #tpu.memory_space<vmem>>, vector<1x512xf32>
    tpu.vector_store %arg13[%c0_31, %c0_32], %69 {strides = array<i32>} : memref<1x512xf32, #tpu.memory_space<vmem>>, vector<1x512xf32>,
    %c0_33 = arith.constant 0 : index
    %c0_34 = arith.constant 0 : index
    %71 = vector.load %arg11[%c0_33, %c0_34] : memref<1x1xf32, #tpu.memory_space<vmem>>, vector<1x1xf32>
    tpu.vector_store %arg11[%c0_33, %c0_34], %50 {strides = array<i32>} : memref<1x1xf32, #tpu.memory_space<vmem>>, vector<1x1xf32>,
    %c1_i32 = arith.constant 1 : i32
    %72 = arith.cmpi eq, %arg0, %c1_i32 : i32
    %73 = arith.extui %72 : i1 to i32
    %c0_i32_35 = arith.constant 0 : i32
    %74 = arith.cmpi ne, %73, %c0_i32_35 : i32
    scf.if %74 {
      %c0_36 = arith.constant 0 : index
      %c0_37 = arith.constant 0 : index
      %75 = vector.load %arg13[%c0_36, %c0_37] : memref<1x512xf32, #tpu.memory_space<vmem>>, vector<1x512xf32>
      %c0_38 = arith.constant 0 : index
      %c0_39 = arith.constant 0 : index
      %76 = vector.load %arg12[%c0_38, %c0_39] : memref<1x1xf32, #tpu.memory_space<vmem>>, vector<1x1xf32>
      %77 = tpu.reciprocal %76 {approx = true} : vector<1x1xf32> -> vector<1x1xf32>
      %78 = vector.broadcast %77 : vector<1x1xf32> to vector<1x512xf32>
      %79 = arith.mulf %75, %78 : vector<1x512xf32>
      %c0_40 = arith.constant 0 : index
      %c0_41 = arith.constant 0 : index
      %80 = vector.load %arg8[%c0_40, %c0_41] : memref<512x2xf32, #tpu.memory_space<vmem>>, vector<512x2xf32>
      %cst_42 = arith.constant dense<0.000000e+00> : vector<1x2xf32>
      %81 = tpu.matmul %79, %80, %cst_42 {dimension_numbers = #tpu.dot_dimension_numbers<[1], [0], [0], [1], [0, 0, 1, 1], [], []>} : vector<1x512xf32>, vector<512x2xf32>, vector<1x2xf32> -> vector<1x2xf32>
      %c0_43 = arith.constant 0 : index
      %c0_44 = arith.constant 0 : index
      %82 = vector.load %arg9[%c0_43, %c0_44] : memref<1x2xf32, #tpu.memory_space<vmem>>, vector<1x2xf32>
      %83 = arith.addf %81, %82 : vector<1x2xf32>
      %c0_45 = arith.constant 0 : index
      %c0_46 = arith.constant 0 : index
      %84 = vector.load %arg10[%c0_45, %c0_46] : memref<1x2xf32, #tpu.memory_space<vmem>>, vector<1x2xf32>
      tpu.vector_store %arg10[%c0_45, %c0_46], %83 {strides = array<i32>} : memref<1x2xf32, #tpu.memory_space<vmem>>, vector<1x2xf32>,
    } else {
    }
    return
  }
  func.func @transform_0(%arg0: i32) -> (i32, i32) {
    %c0_i32 = arith.constant 0 : i32
    %c0_i32_0 = arith.constant 0 : i32
    return %arg0, %c0_i32 : i32, i32
  }
  func.func @transform_1(%arg0: i32) -> (i32, i32) {
    %c0_i32 = arith.constant 0 : i32
    %c0_i32_0 = arith.constant 0 : i32
    %c0_i32_1 = arith.constant 0 : i32
    return %c0_i32, %c0_i32_0 : i32, i32
  }
  func.func @transform_2(%arg0: i32) -> (i32, i32) {
    %c0_i32 = arith.constant 0 : i32
    %c0_i32_0 = arith.constant 0 : i32
    %c0_i32_1 = arith.constant 0 : i32
    return %c0_i32, %c0_i32_0 : i32, i32
  }
  func.func @transform_3(%arg0: i32) -> (i32, i32) {
    %c0_i32 = arith.constant 0 : i32
    %c0_i32_0 = arith.constant 0 : i32
    %c0_i32_1 = arith.constant 0 : i32
    return %c0_i32, %c0_i32_0 : i32, i32
  }
  func.func @transform_4(%arg0: i32) -> (i32, i32) {
    %c0_i32 = arith.constant 0 : i32
    %c0_i32_0 = arith.constant 0 : i32
    %c0_i32_1 = arith.constant 0 : i32
    return %c0_i32, %c0_i32_0 : i32, i32
  }
  func.func @transform_5(%arg0: i32) -> (i32, i32) {
    %c0_i32 = arith.constant 0 : i32
    %c0_i32_0 = arith.constant 0 : i32
    %c0_i32_1 = arith.constant 0 : i32
    return %c0_i32, %c0_i32_0 : i32, i32
  }
  func.func @transform_6(%arg0: i32) -> i32 {
    %c0_i32 = arith.constant 0 : i32
    %c0_i32_0 = arith.constant 0 : i32
    return %c0_i32 : i32
  }
  func.func @transform_7(%arg0: i32) -> (i32, i32) {
    %c0_i32 = arith.constant 0 : i32
    %c0_i32_0 = arith.constant 0 : i32
    %c0_i32_1 = arith.constant 0 : i32
    return %c0_i32, %c0_i32_0 : i32, i32
  }
  func.func @transform_8(%arg0: i32) -> (i32, i32) {
    %c0_i32 = arith.constant 0 : i32
    %c0_i32_0 = arith.constant 0 : i32
    %c0_i32_1 = arith.constant 0 : i32
    return %c0_i32, %c0_i32_0 : i32, i32
  }
  func.func @transform_9(%arg0: i32) -> (i32, i32) {
    %c0_i32 = arith.constant 0 : i32
    %c0_i32_0 = arith.constant 0 : i32
    %c0_i32_1 = arith.constant 0 : i32
    return %c0_i32, %c0_i32_0 : i32, i32
  }
}

</mosaic_0001>

<llo_original>
// kernel: tpu_custom_call.1
$region0: #{tpu_custom_call.1}
  #allocation0 [shape = 'u32[]', space=smem, size = 0x4, offset = 0x4, fixed_abs, tag = 'smem constant byte address 0x4 - core index']
  #allocation1 [shape = 'u32[144,128]{1,0:T(1,128)}', space=vmem, size = 0x12000, scoped, tag = 'internal scratch']
  #allocation2 [shape = 'f32[1,1]{1,0:T(1,128)}', space=vmem, size = 0x200, scoped, tag = 'scratch operand']
  #allocation3 [shape = 'f32[1,1]{1,0:T(1,128)}', space=vmem, size = 0x200, scoped, tag = 'scratch operand']
  #allocation4 [shape = 'f32[1,512]{1,0:T(1,128)}', space=vmem, size = 0x800, scoped, tag = 'scratch operand']
  #allocation5 [shape = 'f32[1]{0:T(128)S(6)}', space=smem, size = 0x200, scoped, tag = 'scoped memory for tpu_custom_call.1']
  %s0 = inlined_call_operand.hbm [shape: bf16[300,1024], index: 0, kind: input, shape index: {}]
  %s1 = inlined_call_operand.hbm [shape: bf16[1024,512], index: 1, kind: input, shape index: {}]
  %s2 = inlined_call_operand.vmem [shape: f32[1,512], index: 2, kind: input, shape index: {}]
  %s3 = inlined_call_operand.hbm [shape: bf16[512,768], index: 3, kind: input, shape index: {}]
  %s4 = inlined_call_operand.vmem [shape: f32[1,768], index: 4, kind: input, shape index: {}]
  %s5 = inlined_call_operand.vmem [shape: f32[1,384], index: 5, kind: input, shape index: {}]
  %s6 = inlined_call_operand.<no memory space> [shape: f32[1], index: 6, kind: input, shape index: {}]
  %s7 = inlined_call_operand.vmem [shape: f32[512,2], index: 7, kind: input, shape index: {}]
  %s8 = inlined_call_operand.vmem [shape: f32[1,2], index: 8, kind: input, shape index: {}]
  %s9 = inlined_call_operand.hbm [shape: f32[1,2], index: 9, kind: output, shape index: {}]
  %s10 = sld [smem:[#allocation0]]
  $region89: #{tpu_custom_call.1} parent=0
    _
  %s12 = ssub.s32 1, %s10
  %s13 = scalar_select 0, %s12, %s10
  %14 = sst [smem:[#allocation5]] %s6
  $region1: #{tpu_custom_call.1} parent=0
    #allocation6 [shape = 'u8[1048576]{0}', space=vmem, size = 0x100000, scoped, tag = 'input window, operand 0']
    #allocation7 [shape = 's32[2]{0}', space=sflag, size = 0x8, scoped, tag = 'scoped memory for tpu_custom_call.1']
    #allocation8 [shape = 's32[2]{0}', space=sflag, size = 0x8, scoped, tag = 'scoped memory for tpu_custom_call.1']
    #allocation9 [shape = 'u8[1048576]{0}', space=vmem, size = 0x100000, scoped, tag = 'input window, operand 1, single buffered']
    #allocation10 [shape = 's32[1]{0}', space=sflag, size = 0x4, scoped, tag = 'scoped memory for tpu_custom_call.1']
    #allocation11 [shape = 'u8[786432]{0}', space=vmem, size = 0xc0000, scoped, tag = 'input window, operand 3, single buffered']
    #allocation12 [shape = 'u8[512]{0}', space=vmem, size = 0x400, scoped, tag = 'output window, operand 0, single buffered']
    %15 = vsyncpa [#allocation7], 0
    %s16 = scalar_lea.sflag [#allocation7], 1
    %17 = vsyncpa %s16, 0
    %18 = vsyncpa [#allocation10], 0
    %19 = vsyncpa [#allocation8], 0
    loop: start=0, step=1, limit=4
    $region2: #{tpu_custom_call.1} parent=1 // loop_pre_header
      _
    $region3: #{tpu_custom_call.1} parent=1 // loop_header
      %s21 = sphi 0, %s25
      %p22 = scmp.ge.s32.totalorder %s21, 4
      %s31 = sphi 0, %s33
      %s34 = sphi 0, %s31
      %s35 = sphi 0, %s34
      %s51 = sphi 0, %s35
      %s55 = sphi 0, %s55
      %s57 = sphi 0, %s55
      %s58 = sphi 0, %s57
      %s72 = sphi 0, %s58
      %s76 = sphi 0, %s76
      %s78 = sphi 0, %s76
      %s79 = sphi 0, %s78
      %s93 = sphi 0, %s79
      %s97 = sphi 0, %s97
      %s99 = sphi 0, %s97
      %s100 = sphi 0, %s99
      %s114 = sphi 0, %s100
      %s118 = sphi 0, %s118
      %s120 = sphi 0, %s118
      %s121 = sphi 0, %s120
      %s135 = sphi 0, %s121
      %s139 = sphi 0, %s139
      %s141 = sphi 0, %s139
      %s142 = sphi 0, %s141
      %s156 = sphi 0, %s142
      %s160 = sphi 0, %s160
      %s162 = sphi 0, %s160
      %s163 = sphi 0, %s162
      %s177 = sphi 0, %s163
      %s181 = sphi 0, %s181
      %s183 = sphi 0, %s181
      %s184 = sphi 0, %s183
      %s198 = sphi 0, %s184
      %s202 = sphi 0, %s202
      %s204 = sphi 0, %s202
      %s205 = sphi 0, %s204
      %s219 = sphi 0, %s205
      %s223 = sphi 0, %s223
      %s225 = sphi 0, %s223
      %s226 = sphi 0, %s225
      %s240 = sphi 0, %s226
    $region4: #{tpu_custom_call.1} parent=1 // loop_header_branch
      %24 = sbr.rel (%p22) target = $region8
    $region5: #{tpu_custom_call.1} parent=1 // loop_body
      %s26 = ssub.s32 %s21, 1
      %s27 = ssub.s32 %s21, 2
      %s28 = sadd.s32 %s21, 1
      %s29 = ssub.s32 %s21, %s28
      %p30 = scmp.eq.s32.totalorder %s29, 0
      %s32 = sadd.s32 %s31, 1
      %s33 = scalar_select %p30, %s31, %s32
      %p36 = pneg %p30
      %p37 = scmp.eq.s32.totalorder %s21, 1
      %p38 = por %p36, %p37
      %p39 = scmp.ne.s32.totalorder %s31, %s34
      %p40 = scmp.eq.s32.totalorder %s21, 0
      %p41 = por %p39, %p40
      %p42 = scmp.ne.s32.totalorder %s31, %s34
      %p43 = scmp.eq.s32.totalorder %s26, 1
      %p44 = por %p42, %p43
      %p45 = scmp.ne.s32.totalorder %s34, %s35
      %p46 = scmp.eq.s32.totalorder %s26, 0
      %p47 = por %p45, %p46
      %p48 = scmp.ne.s32.totalorder %s34, %s35
      %p49 = scmp.eq.s32.totalorder %s27, 1
      %p50 = por %p48, %p49
      %p52 = scmp.ne.s32.totalorder %s35, %s51
      %p53 = scmp.eq.s32.totalorder %s27, 0
      %p54 = por %p52, %p53
      %s56 = sadd.s32 %s55, 1
      %p59 = scmp.eq.s32.totalorder %s21, 1
      %p60 = scmp.ne.s32.totalorder %s55, %s57
      %p61 = scmp.eq.s32.totalorder %s21, 0
      %p62 = por %p60, %p61
      %p63 = scmp.ne.s32.totalorder %s55, %s57
      %p64 = scmp.eq.s32.totalorder %s26, 1
      %p65 = por %p63, %p64
      %p66 = scmp.ne.s32.totalorder %s57, %s58
      %p67 = scmp.eq.s32.totalorder %s26, 0
      %p68 = por %p66, %p67
      %p69 = scmp.ne.s32.totalorder %s57, %s58
      %p70 = scmp.eq.s32.totalorder %s27, 1
      %p71 = por %p69, %p70
      %p73 = scmp.ne.s32.totalorder %s58, %s72
      %p74 = scmp.eq.s32.totalorder %s27, 0
      %p75 = por %p73, %p74
      %s77 = sadd.s32 %s76, 1
      %p80 = scmp.eq.s32.totalorder %s21, 1
      %p81 = scmp.ne.s32.totalorder %s76, %s78
      %p82 = scmp.eq.s32.totalorder %s21, 0
      %p83 = por %p81, %p82
      %p84 = scmp.ne.s32.totalorder %s76, %s78
      %p85 = scmp.eq.s32.totalorder %s26, 1
      %p86 = por %p84, %p85
      %p87 = scmp.ne.s32.totalorder %s78, %s79
      %p88 = scmp.eq.s32.totalorder %s26, 0
      %p89 = por %p87, %p88
      %p90 = scmp.ne.s32.totalorder %s78, %s79
      %p91 = scmp.eq.s32.totalorder %s27, 1
      %p92 = por %p90, %p91
      %p94 = scmp.ne.s32.totalorder %s79, %s93
      %p95 = scmp.eq.s32.totalorder %s27, 0
      %p96 = por %p94, %p95
      %s98 = sadd.s32 %s97, 1
      %p101 = scmp.eq.s32.totalorder %s21, 1
      %p102 = scmp.ne.s32.totalorder %s97, %s99
      %p103 = scmp.eq.s32.totalorder %s21, 0
      %p104 = por %p102, %p103
      %p105 = scmp.ne.s32.totalorder %s97, %s99
      %p106 = scmp.eq.s32.totalorder %s26, 1
      %p107 = por %p105, %p106
      %p108 = scmp.ne.s32.totalorder %s99, %s100
      %p109 = scmp.eq.s32.totalorder %s26, 0
      %p110 = por %p108, %p109
      %p111 = scmp.ne.s32.totalorder %s99, %s100
      %p112 = scmp.eq.s32.totalorder %s27, 1
      %p113 = por %p111, %p112
      %p115 = scmp.ne.s32.totalorder %s100, %s114
      %p116 = scmp.eq.s32.totalorder %s27, 0
      %p117 = por %p115, %p116
      %s119 = sadd.s32 %s118, 1
      %p122 = scmp.eq.s32.totalorder %s21, 1
      %p123 = scmp.ne.s32.totalorder %s118, %s120
      %p124 = scmp.eq.s32.totalorder %s21, 0
      %p125 = por %p123, %p124
      %p126 = scmp.ne.s32.totalorder %s118, %s120
      %p127 = scmp.eq.s32.totalorder %s26, 1
      %p128 = por %p126, %p127
      %p129 = scmp.ne.s32.totalorder %s120, %s121
      %p130 = scmp.eq.s32.totalorder %s26, 0
      %p131 = por %p129, %p130
      %p132 = scmp.ne.s32.totalorder %s120, %s121
      %p133 = scmp.eq.s32.totalorder %s27, 1
      %p134 = por %p132, %p133
      %p136 = scmp.ne.s32.totalorder %s121, %s135
      %p137 = scmp.eq.s32.totalorder %s27, 0
      %p138 = por %p136, %p137
      %s140 = sadd.s32 %s139, 1
      %p143 = scmp.eq.s32.totalorder %s21, 1
      %p144 = scmp.ne.s32.totalorder %s139, %s141
      %p145 = scmp.eq.s32.totalorder %s21, 0
      %p146 = por %p144, %p145
      %p147 = scmp.ne.s32.totalorder %s139, %s141
      %p148 = scmp.eq.s32.totalorder %s26, 1
      %p149 = por %p147, %p148
      %p150 = scmp.ne.s32.totalorder %s141, %s142
      %p151 = scmp.eq.s32.totalorder %s26, 0
      %p152 = por %p150, %p151
      %p153 = scmp.ne.s32.totalorder %s141, %s142
      %p154 = scmp.eq.s32.totalorder %s27, 1
      %p155 = por %p153, %p154
      %p157 = scmp.ne.s32.totalorder %s142, %s156
      %p158 = scmp.eq.s32.totalorder %s27, 0
      %p159 = por %p157, %p158
      %s161 = sadd.s32 %s160, 1
      %p164 = scmp.eq.s32.totalorder %s21, 1
      %p165 = scmp.ne.s32.totalorder %s160, %s162
      %p166 = scmp.eq.s32.totalorder %s21, 0
      %p167 = por %p165, %p166
      %p168 = scmp.ne.s32.totalorder %s160, %s162
      %p169 = scmp.eq.s32.totalorder %s26, 1
      %p170 = por %p168, %p169
      %p171 = scmp.ne.s32.totalorder %s162, %s163
      %p172 = scmp.eq.s32.totalorder %s26, 0
      %p173 = por %p171, %p172
      %p174 = scmp.ne.s32.totalorder %s162, %s163
      %p175 = scmp.eq.s32.totalorder %s27, 1
      %p176 = por %p174, %p175
      %p178 = scmp.ne.s32.totalorder %s163, %s177
      %p179 = scmp.eq.s32.totalorder %s27, 0
      %p180 = por %p178, %p179
      %s182 = sadd.s32 %s181, 1
      %p185 = scmp.eq.s32.totalorder %s21, 1
      %p186 = scmp.ne.s32.totalorder %s181, %s183
      %p187 = scmp.eq.s32.totalorder %s21, 0
      %p188 = por %p186, %p187
      %p189 = scmp.ne.s32.totalorder %s181, %s183
      %p190 = scmp.eq.s32.totalorder %s26, 1
      %p191 = por %p189, %p190
      %p192 = scmp.ne.s32.totalorder %s183, %s184
      %p193 = scmp.eq.s32.totalorder %s26, 0
      %p194 = por %p192, %p193
      %p195 = scmp.ne.s32.totalorder %s183, %s184
      %p196 = scmp.eq.s32.totalorder %s27, 1
      %p197 = por %p195, %p196
      %p199 = scmp.ne.s32.totalorder %s184, %s198
      %p200 = scmp.eq.s32.totalorder %s27, 0
      %p201 = por %p199, %p200
      %s203 = sadd.s32 %s202, 1
      %p206 = scmp.eq.s32.totalorder %s21, 1
      %p207 = scmp.ne.s32.totalorder %s202, %s204
      %p208 = scmp.eq.s32.totalorder %s21, 0
      %p209 = por %p207, %p208
      %p210 = scmp.ne.s32.totalorder %s202, %s204
      %p211 = scmp.eq.s32.totalorder %s26, 1
      %p212 = por %p210, %p211
      %p213 = scmp.ne.s32.totalorder %s204, %s205
      %p214 = scmp.eq.s32.totalorder %s26, 0
      %p215 = por %p213, %p214
      %p216 = scmp.ne.s32.totalorder %s204, %s205
      %p217 = scmp.eq.s32.totalorder %s27, 1
      %p218 = por %p216, %p217
      %p220 = scmp.ne.s32.totalorder %s205, %s219
      %p221 = scmp.eq.s32.totalorder %s27, 0
      %p222 = por %p220, %p221
      %s224 = sadd.s32 %s223, 1
      %p227 = scmp.eq.s32.totalorder %s21, 1
      %p228 = scmp.ne.s32.totalorder %s223, %s225
      %p229 = scmp.eq.s32.totalorder %s21, 0
      %p230 = por %p228, %p229
      %p231 = scmp.ne.s32.totalorder %s223, %s225
      %p232 = scmp.eq.s32.totalorder %s26, 1
      %p233 = por %p231, %p232
      %p234 = scmp.ne.s32.totalorder %s225, %s226
      %p235 = scmp.eq.s32.totalorder %s26, 0
      %p236 = por %p234, %p235
      %p237 = scmp.ne.s32.totalorder %s225, %s226
      %p238 = scmp.eq.s32.totalorder %s27, 1
      %p239 = por %p237, %p238
      %p241 = scmp.ne.s32.totalorder %s226, %s240
      %p242 = scmp.eq.s32.totalorder %s27, 0
      %p243 = por %p241, %p242
      %p244 = scmp.le.s32.totalorder 1, %s21
      %p245 = scmp.lt.s32.totalorder %s21, 3
      %p246 = pnand %p244, %p245
      %p247 = pneg %p246
      // Predicated region
      $region9: #{tpu_custom_call.1} parent=5 // pred_check
        _
      $region10: #{tpu_custom_call.1} parent=5 // pred_check_branch
        %249 = sbr.rel (%p246) target = $region12
      $region11: #{tpu_custom_call.1} parent=5 // pred_region
        %s250 = ssub.s32 %s21, 1
        // Predicated region
        $region13: #{tpu_custom_call.1} parent=11 // pred_check
          %p251 = pneg %p68
        $region14: #{tpu_custom_call.1} parent=11 // pred_check_branch
          %253 = sbr.rel (%p251) target = $region16
        $region15: #{tpu_custom_call.1} parent=11 // pred_region
          %s255 = ssub.s32 32768, 32768
          %256 = vsyncadd [#allocation10], %s255
          %s257 = sshll.u32 [#allocation9], 4
          %s258 = int_to_ptr.vmem [resolvable:$true] %s257
          %263 = dma.hbm_to_vmem [thread:$0]  %s1, 32768, %s258, [#allocation10], 256, 256, 16
        $region16: #{tpu_custom_call.1} parent=11 // pred_fallthru
          _
        // Predicated region
        $region17: #{tpu_custom_call.1} parent=11 // pred_check
          %p264 = pneg %p89
        $region18: #{tpu_custom_call.1} parent=11 // pred_check_branch
          %266 = sbr.rel (%p264) target = $region20
        $region19: #{tpu_custom_call.1} parent=11 // pred_region
          _
        $region20: #{tpu_custom_call.1} parent=11 // pred_fallthru
          _
        // Predicated region
        $region21: #{tpu_custom_call.1} parent=11 // pred_check
          %p267 = pneg %p110
        $region22: #{tpu_custom_call.1} parent=11 // pred_check_branch
          %269 = sbr.rel (%p267) target = $region24
        $region23: #{tpu_custom_call.1} parent=11 // pred_region
          %s271 = ssub.s32 24576, 24576
          %272 = vsyncadd [#allocation10], %s271
          %s273 = sshll.u32 [#allocation11], 4
          %s274 = int_to_ptr.vmem [resolvable:$true] %s273
          %279 = dma.hbm_to_vmem [thread:$0]  %s3, 24576, %s274, [#allocation10], 384, 384, 24
        $region24: #{tpu_custom_call.1} parent=11 // pred_fallthru
          _
        // Predicated region
        $region25: #{tpu_custom_call.1} parent=11 // pred_check
          %p280 = pneg %p131
        $region26: #{tpu_custom_call.1} parent=11 // pred_check_branch
          %282 = sbr.rel (%p280) target = $region28
        $region27: #{tpu_custom_call.1} parent=11 // pred_region
          _
        $region28: #{tpu_custom_call.1} parent=11 // pred_fallthru
          _
        // Predicated region
        $region29: #{tpu_custom_call.1} parent=11 // pred_check
          %p283 = pneg %p152
        $region30: #{tpu_custom_call.1} parent=11 // pred_check_branch
          %285 = sbr.rel (%p283) target = $region32
        $region31: #{tpu_custom_call.1} parent=11 // pred_region
          _
        $region32: #{tpu_custom_call.1} parent=11 // pred_fallthru
          _
        // Predicated region
        $region33: #{tpu_custom_call.1} parent=11 // pred_check
          %p286 = pneg %p173
        $region34: #{tpu_custom_call.1} parent=11 // pred_check_branch
          %288 = sbr.rel (%p286) target = $region36
        $region35: #{tpu_custom_call.1} parent=11 // pred_region
          _
        $region36: #{tpu_custom_call.1} parent=11 // pred_fallthru
          _
        // Predicated region
        $region37: #{tpu_custom_call.1} parent=11 // pred_check
          %p289 = pneg %p194
        $region38: #{tpu_custom_call.1} parent=11 // pred_check_branch
          %291 = sbr.rel (%p289) target = $region40
        $region39: #{tpu_custom_call.1} parent=11 // pred_region
          _
        $region40: #{tpu_custom_call.1} parent=11 // pred_fallthru
          _
        // Predicated region
        $region41: #{tpu_custom_call.1} parent=11 // pred_check
          %p292 = pneg %p215
        $region42: #{tpu_custom_call.1} parent=11 // pred_check_branch
          %294 = sbr.rel (%p292) target = $region44
        $region43: #{tpu_custom_call.1} parent=11 // pred_region
          _
        $region44: #{tpu_custom_call.1} parent=11 // pred_fallthru
          _
      $region12: #{tpu_custom_call.1} parent=5 // pred_fallthru
        _
      %p295 = scmp.lt.s32.totalorder %s21, 2
      // Predicated region
      $region45: #{tpu_custom_call.1} parent=5 // pred_check
        %p296 = pneg %p295
      $region46: #{tpu_custom_call.1} parent=5 // pred_check_branch
        %298 = sbr.rel (%p296) target = $region48
      $region47: #{tpu_custom_call.1} parent=5 // pred_region
        // Predicated region
        $region49: #{tpu_custom_call.1} parent=47 // pred_check
          %p299 = pneg %p41
        $region50: #{tpu_custom_call.1} parent=47 // pred_check_branch
          %301 = sbr.rel (%p299) target = $region52
        $region51: #{tpu_custom_call.1} parent=47 // pred_region
          %s302 = sand.u32 %s31, 1
          %s303 = scalar_lea.sflag [#allocation7], %s302
          %s304 = sand.u32 %s31, 1
          %s305 = smul.addr %s304, 1024
          %s306 = scalar_lea.vmem [#allocation6], %s305
          %s307 = smul.u32 32, %s21
          %s308 = ssub.s32 38, %s307
          %p309 = scmp.lt.s32.totalorder %s308, 32
          %s310 = scalar_select %p309, %s308, 32
          %s311 = smul.u32 64, %s310
          %s312 = smul.u32 %s311, 8
          %s314 = ssub.s32 16384, %s312
          %315 = vsyncadd %s303, %s314
          %p316 = scmp.ne.s32.totalorder 0, %s312
          %s317 = smul.addr %s307, 8
          %s318 = smul.addr %s317, 64
          %s319 = scalar_lea.hbm %s0, %s318
          %s320 = smul.u32 32, %s310
          %s321 = sshll.u32 %s306, 4
          %s322 = int_to_ptr.vmem [resolvable:$true] %s321
          %s323 = sshll.u32 %s320, 4
          %327 = dma.hbm_to_vmem [thread:$0]  (%p316), %s319, %s323, %s322, %s303, 512, 512, 32
        $region52: #{tpu_custom_call.1} parent=47 // pred_fallthru
          _
      $region48: #{tpu_custom_call.1} parent=5 // pred_fallthru
        _
      %p328 = scmp.le.s32.totalorder 1, %s21
      %p329 = scmp.lt.s32.totalorder %s21, 3
      %p330 = pnand %p328, %p329
      %p331 = pneg %p330
      // Predicated region
      $region53: #{tpu_custom_call.1} parent=5 // pred_check
        _
      $region54: #{tpu_custom_call.1} parent=5 // pred_check_branch
        %333 = sbr.rel (%p330) target = $region56
      $region55: #{tpu_custom_call.1} parent=5 // pred_region
        %s334 = ssub.s32 %s21, 1
        %s335 = sand.u32 %s34, 1
        %s336 = scalar_lea.sflag [#allocation7], %s335
        %s337 = sand.u32 %s34, 1
        %s338 = smul.addr %s337, 1024
        %s339 = scalar_lea.vmem [#allocation6], %s338
        // Predicated region
        $region57: #{tpu_custom_call.1} parent=55 // pred_check
          %p340 = pneg %p47
        $region58: #{tpu_custom_call.1} parent=55 // pred_check_branch
          %342 = sbr.rel (%p340) target = $region60
        $region59: #{tpu_custom_call.1} parent=55 // pred_region
          %343 = dma.done %s336, 16384
        $region60: #{tpu_custom_call.1} parent=55 // pred_fallthru
          _
        // Predicated region
        $region61: #{tpu_custom_call.1} parent=55 // pred_check
          %p344 = pneg %p68
        $region62: #{tpu_custom_call.1} parent=55 // pred_check_branch
          %346 = sbr.rel (%p344) target = $region64
        $region63: #{tpu_custom_call.1} parent=55 // pred_region
          %347 = dma.done [#allocation10], 32768
        $region64: #{tpu_custom_call.1} parent=55 // pred_fallthru
          _
        // Predicated region
        $region65: #{tpu_custom_call.1} parent=55 // pred_check
          %p348 = pneg %p110
        $region66: #{tpu_custom_call.1} parent=55 // pred_check_branch
          %350 = sbr.rel (%p348) target = $region68
        $region67: #{tpu_custom_call.1} parent=55 // pred_region
          %351 = dma.done [#allocation10], 24576
        $region68: #{tpu_custom_call.1} parent=55 // pred_fallthru
          _
        %s352 = sand.u32 %s34, 1
        %s353 = scalar_lea.sflag [#allocation7], %s352
        %s354 = sand.u32 %s34, 1
        %s355 = smul.addr %s354, 1024
        %s356 = scalar_lea.vmem [#allocation6], %s355
        %p357 = pneg %p47
        %p358 = pneg %p44
        %p359 = pneg %p68
        %p360 = pneg %p65
        %p361 = pneg %p89
        %p362 = pneg %p86
        %p363 = pneg %p110
        %p364 = pneg %p107
        %p365 = pneg %p131
        %p366 = pneg %p128
        %p367 = pneg %p152
        %p368 = pneg %p149
        %p369 = pneg %p173
        %p370 = pneg %p170
        %p371 = pneg %p194
        %p372 = pneg %p191
        %p373 = pneg %p215
        %p374 = pneg %p212
        %p375 = pneg %p236
        %p376 = pneg %p233
        %s377 = smul.u32 32, %s26
        %s378 = ssub.s32 38, %s377
        %p379 = scmp.lt.s32.totalorder %s378, 32
        %s380 = scalar_select %p379, %s378, 32
        %s381 = smul.u32 64, %s380
        %s382 = smul.u32 %s381, 8
        %p383 = scmp.eq.s32.totalorder %s26, 0
        // Predicated region
        $region69: #{tpu_custom_call.1} parent=55 // pred_check
          %p384 = pneg %p383
        $region70: #{tpu_custom_call.1} parent=55 // pred_check_branch
          %386 = sbr.rel (%p384) target = $region72
        $region71: #{tpu_custom_call.1} parent=55 // pred_region
          %vm387 = vcmask 0
          %388 = vst.msk [vmem:[#allocation2] sm:$0x1] %vm387, -inf
          %389 = vst.msk [vmem:[#allocation3] sm:$0x1] %vm387, 0.0
          %v390 = vlaneseq
          %vm391 = vcmp.ge.s32.totalorder %v390, 0
          %vm392 = vcmp.lt.s32.totalorder %v390, 512
          %vm393 = vmand %vm391, %vm392
          %394 = vst.msk [vmem:[#allocation4] sm:$0xf] %vm393, 0.0
        $region72: #{tpu_custom_call.1} parent=55 // pred_fallthru
          _
        %s395 = smul.u32 %s26, 256
        %v396 = vlaneseq
        %v397 = vshrl.u32 %v396, 7
        %v398 = vadd.s32 %v397, 8
        %v399 = vadd.s32 %v397, 16
        %v400 = vadd.s32 %v397, 24
        %v401 = vadd.s32 %v397, 32
        %v402 = vadd.s32 %v397, 40
        %v403 = vadd.s32 %v397, 48
        %v404 = vadd.s32 %v397, 56
        %v405 = vadd.s32 %v397, 64
        %v406 = vadd.s32 %v397, 72
        %v407 = vadd.s32 %v397, 80
        %v408 = vadd.s32 %v397, 88
        %v409 = vadd.s32 %v397, 96
        %v410 = vadd.s32 %v397, 104
        %v411 = vadd.s32 %v397, 112
        %v412 = vadd.s32 %v397, 120
        %v413 = vadd.s32 %v397, 128
        %v414 = vadd.s32 %v397, 136
        %v415 = vadd.s32 %v397, 144
        %v416 = vadd.s32 %v397, 152
        %v417 = vadd.s32 %v397, 160
        %v418 = vadd.s32 %v397, 168
        %v419 = vadd.s32 %v397, 176
        %v420 = vadd.s32 %v397, 184
        %v421 = vadd.s32 %v397, 192
        %v422 = vadd.s32 %v397, 200
        %v423 = vadd.s32 %v397, 208
        %v424 = vadd.s32 %v397, 216
        %v425 = vadd.s32 %v397, 224
        %v426 = vadd.s32 %v397, 232
        %v427 = vadd.s32 %v397, 240
        %v428 = vadd.s32 %v397, 248
        %v429 = vstv %s395
        %v430 = vadd.s32 %v429, %v397
        %v431 = vadd.s32 %v429, %v398
        %v432 = vadd.s32 %v429, %v399
        %v433 = vadd.s32 %v429, %v400
        %v434 = vadd.s32 %v429, %v401
        %v435 = vadd.s32 %v429, %v402
        %v436 = vadd.s32 %v429, %v403
        %v437 = vadd.s32 %v429, %v404
        %v438 = vadd.s32 %v429, %v405
        %v439 = vadd.s32 %v429, %v406
        %v440 = vadd.s32 %v429, %v407
        %v441 = vadd.s32 %v429, %v408
        %v442 = vadd.s32 %v429, %v409
        %v443 = vadd.s32 %v429, %v410
        %v444 = vadd.s32 %v429, %v411
        %v445 = vadd.s32 %v429, %v412
        %v446 = vadd.s32 %v429, %v413
        %v447 = vadd.s32 %v429, %v414
        %v448 = vadd.s32 %v429, %v415
        %v449 = vadd.s32 %v429, %v416
        %v450 = vadd.s32 %v429, %v417
        %v451 = vadd.s32 %v429, %v418
        %v452 = vadd.s32 %v429, %v419
        %v453 = vadd.s32 %v429, %v420
        %v454 = vadd.s32 %v429, %v421
        %v455 = vadd.s32 %v429, %v422
        %v456 = vadd.s32 %v429, %v423
        %v457 = vadd.s32 %v429, %v424
        %v458 = vadd.s32 %v429, %v425
        %v459 = vadd.s32 %v429, %v426
        %v460 = vadd.s32 %v429, %v427
        %v461 = vadd.s32 %v429, %v428
        %vm462 = vcmp.lt.s32.totalorder %v430, 300
        %vm463 = vcmp.lt.s32.totalorder %v431, 300
        %vm464 = vcmp.lt.s32.totalorder %v432, 300
        %vm465 = vcmp.lt.s32.totalorder %v433, 300
        %vm466 = vcmp.lt.s32.totalorder %v434, 300
        %vm467 = vcmp.lt.s32.totalorder %v435, 300
        %vm468 = vcmp.lt.s32.totalorder %v436, 300
        %vm469 = vcmp.lt.s32.totalorder %v437, 300
        %vm470 = vcmp.lt.s32.totalorder %v438, 300
        %vm471 = vcmp.lt.s32.totalorder %v439, 300
        %vm472 = vcmp.lt.s32.totalorder %v440, 300
        %vm473 = vcmp.lt.s32.totalorder %v441, 300
        %vm474 = vcmp.lt.s32.totalorder %v442, 300
        %vm475 = vcmp.lt.s32.totalorder %v443, 300
        %vm476 = vcmp.lt.s32.totalorder %v444, 300
        %vm477 = vcmp.lt.s32.totalorder %v445, 300
        %vm478 = vcmp.lt.s32.totalorder %v446, 300
        %vm479 = vcmp.lt.s32.totalorder %v447, 300
        %vm480 = vcmp.lt.s32.totalorder %v448, 300
        %vm481 = vcmp.lt.s32.totalorder %v449, 300
        %vm482 = vcmp.lt.s32.totalorder %v450, 300
        %vm483 = vcmp.lt.s32.totalorder %v451, 300
        %vm484 = vcmp.lt.s32.totalorder %v452, 300
        %vm485 = vcmp.lt.s32.totalorder %v453, 300
        %vm486 = vcmp.lt.s32.totalorder %v454, 300
        %vm487 = vcmp.lt.s32.totalorder %v455, 300
        %vm488 = vcmp.lt.s32.totalorder %v456, 300
        %vm489 = vcmp.lt.s32.totalorder %v457, 300
        %vm490 = vcmp.lt.s32.totalorder %v458, 300
        %vm491 = vcmp.lt.s32.totalorder %v459, 300
        %vm492 = vcmp.lt.s32.totalorder %v460, 300
        %vm493 = vcmp.lt.s32.totalorder %v461, 300
        %v494 = vld [vmem:[%s339] sm:$0xff]
        %v495 = vld [vmem:[%s339 + $0x8] sm:$0xff]
        %v496 = vld [vmem:[%s339 + $0x10] sm:$0xff]
        %v497 = vld [vmem:[%s339 + $0x18] sm:$0xff]
        %v498 = vld [vmem:[%s339 + $0x20] sm:$0xff]
        %v499 = vld [vmem:[%s339 + $0x28] sm:$0xff]
        %v500 = vld [vmem:[%s339 + $0x30] sm:$0xff]
        %v501 = vld [vmem:[%s339 + $0x38] sm:$0xff]
        %v502 = vld [vmem:[%s339 + $0x40] sm:$0xff]
        %v503 = vld [vmem:[%s339 + $0x48] sm:$0xff]
        %v504 = vld [vmem:[%s339 + $0x50] sm:$0xff]
        %v505 = vld [vmem:[%s339 + $0x58] sm:$0xff]
        %v506 = vld [vmem:[%s339 + $0x60] sm:$0xff]
        %v507 = vld [vmem:[%s339 + $0x68] sm:$0xff]
        %v508 = vld [vmem:[%s339 + $0x70] sm:$0xff]
        %v509 = vld [vmem:[%s339 + $0x78] sm:$0xff]
        %v510 = vld [vmem:[%s339 + $0x80] sm:$0xff]
        %v511 = vld [vmem:[%s339 + $0x88] sm:$0xff]
        %v512 = vld [vmem:[%s339 + $0x90] sm:$0xff]
        %v513 = vld [vmem:[%s339 + $0x98] sm:$0xff]
        %v514 = vld [vmem:[%s339 + $0xa0] sm:$0xff]
        %v515 = vld [vmem:[%s339 + $0xa8] sm:$0xff]
        %v516 = vld [vmem:[%s339 + $0xb0] sm:$0xff]
        %v517 = vld [vmem:[%s339 + $0xb8] sm:$0xff]
        %v518 = vld [vmem:[%s339 + $0xc0] sm:$0xff]
        %v519 = vld [vmem:[%s339 + $0xc8] sm:$0xff]
        %v520 = vld [vmem:[%s339 + $0xd0] sm:$0xff]
        %v521 = vld [vmem:[%s339 + $0xd8] sm:$0xff]
        %v522 = vld [vmem:[%s339 + $0xe0] sm:$0xff]
        %v523 = vld [vmem:[%s339 + $0xe8] sm:$0xff]
        %v524 = vld [vmem:[%s339 + $0xf0] sm:$0xff]
        %v525 = vld [vmem:[%s339 + $0xf8] sm:$0xff]
        %v526 = vld [vmem:[%s339 + $0x100] sm:$0xff]
        %v527 = vld [vmem:[%s339 + $0x108] sm:$0xff]
        %v528 = vld [vmem:[%s339 + $0x110] sm:$0xff]
        %v529 = vld [vmem:[%s339 + $0x118] sm:$0xff]
        %v530 = vld [vmem:[%s339 + $0x120] sm:$0xff]
        %v531 = vld [vmem:[%s339 + $0x128] sm:$0xff]
        %v532 = vld [vmem:[%s339 + $0x130] sm:$0xff]
        %v533 = vld [vmem:[%s339 + $0x138] sm:$0xff]
        %v534 = vld [vmem:[%s339 + $0x140] sm:$0xff]
        %v535 = vld [vmem:[%s339 + $0x148] sm:$0xff]
        %v536 = vld [vmem:[%s339 + $0x150] sm:$0xff]
        %v537 = vld [vmem:[%s339 + $0x158] sm:$0xff]
        %v538 = vld [vmem:[%s339 + $0x160] sm:$0xff]
        %v539 = vld [vmem:[%s339 + $0x168] sm:$0xff]
        %v540 = vld [vmem:[%s339 + $0x170] sm:$0xff]
        %v541 = vld [vmem:[%s339 + $0x178] sm:$0xff]
        %v542 = vld [vmem:[%s339 + $0x180] sm:$0xff]
        %v543 = vld [vmem:[%s339 + $0x188] sm:$0xff]
        %v544 = vld [vmem:[%s339 + $0x190] sm:$0xff]
        %v545 = vld [vmem:[%s339 + $0x198] sm:$0xff]
        %v546 = vld [vmem:[%s339 + $0x1a0] sm:$0xff]
        %v547 = vld [vmem:[%s339 + $0x1a8] sm:$0xff]
        %v548 = vld [vmem:[%s339 + $0x1b0] sm:$0xff]
        %v549 = vld [vmem:[%s339 + $0x1b8] sm:$0xff]
        %v550 = vld [vmem:[%s339 + $0x1c0] sm:$0xff]
        %v551 = vld [vmem:[%s339 + $0x1c8] sm:$0xff]
        %v552 = vld [vmem:[%s339 + $0x1d0] sm:$0xff]
        %v553 = vld [vmem:[%s339 + $0x1d8] sm:$0xff]
        %v554 = vld [vmem:[%s339 + $0x1e0] sm:$0xff]
        %v555 = vld [vmem:[%s339 + $0x1e8] sm:$0xff]
        %v556 = vld [vmem:[%s339 + $0x1f0] sm:$0xff]
        %v557 = vld [vmem:[%s339 + $0x1f8] sm:$0xff]
        %v558 = vld [vmem:[%s339 + $0x200] sm:$0xff]
        %v559 = vld [vmem:[%s339 + $0x208] sm:$0xff]
        %v560 = vld [vmem:[%s339 + $0x210] sm:$0xff]
        %v561 = vld [vmem:[%s339 + $0x218] sm:$0xff]
        %v562 = vld [vmem:[%s339 + $0x220] sm:$0xff]
        %v563 = vld [vmem:[%s339 + $0x228] sm:$0xff]
        %v564 = vld [vmem:[%s339 + $0x230] sm:$0xff]
        %v565 = vld [vmem:[%s339 + $0x238] sm:$0xff]
        %v566 = vld [vmem:[%s339 + $0x240] sm:$0xff]
        %v567 = vld [vmem:[%s339 + $0x248] sm:$0xff]
        %v568 = vld [vmem:[%s339 + $0x250] sm:$0xff]
        %v569 = vld [vmem:[%s339 + $0x258] sm:$0xff]
        %v570 = vld [vmem:[%s339 + $0x260] sm:$0xff]
        %v571 = vld [vmem:[%s339 + $0x268] sm:$0xff]
        %v572 = vld [vmem:[%s339 + $0x270] sm:$0xff]
        %v573 = vld [vmem:[%s339 + $0x278] sm:$0xff]
        %v574 = vld [vmem:[%s339 + $0x280] sm:$0xff]
        %v575 = vld [vmem:[%s339 + $0x288] sm:$0xff]
        %v576 = vld [vmem:[%s339 + $0x290] sm:$0xff]
        %v577 = vld [vmem:[%s339 + $0x298] sm:$0xff]
        %v578 = vld [vmem:[%s339 + $0x2a0] sm:$0xff]
        %v579 = vld [vmem:[%s339 + $0x2a8] sm:$0xff]
        %v580 = vld [vmem:[%s339 + $0x2b0] sm:$0xff]
        %v581 = vld [vmem:[%s339 + $0x2b8] sm:$0xff]
        %v582 = vld [vmem:[%s339 + $0x2c0] sm:$0xff]
        %v583 = vld [vmem:[%s339 + $0x2c8] sm:$0xff]
        %v584 = vld [vmem:[%s339 + $0x2d0] sm:$0xff]
        %v585 = vld [vmem:[%s339 + $0x2d8] sm:$0xff]
        %v586 = vld [vmem:[%s339 + $0x2e0] sm:$0xff]
        %v587 = vld [vmem:[%s339 + $0x2e8] sm:$0xff]
        %v588 = vld [vmem:[%s339 + $0x2f0] sm:$0xff]
        %v589 = vld [vmem:[%s339 + $0x2f8] sm:$0xff]
        %v590 = vld [vmem:[%s339 + $0x300] sm:$0xff]
        %v591 = vld [vmem:[%s339 + $0x308] sm:$0xff]
        %v592 = vld [vmem:[%s339 + $0x310] sm:$0xff]
        %v593 = vld [vmem:[%s339 + $0x318] sm:$0xff]
        %v594 = vld [vmem:[%s339 + $0x320] sm:$0xff]
        %v595 = vld [vmem:[%s339 + $0x328] sm:$0xff]
        %v596 = vld [vmem:[%s339 + $0x330] sm:$0xff]
        %v597 = vld [vmem:[%s339 + $0x338] sm:$0xff]
        %v598 = vld [vmem:[%s339 + $0x340] sm:$0xff]
        %v599 = vld [vmem:[%s339 + $0x348] sm:$0xff]
        %v600 = vld [vmem:[%s339 + $0x350] sm:$0xff]
        %v601 = vld [vmem:[%s339 + $0x358] sm:$0xff]
        %v602 = vld [vmem:[%s339 + $0x360] sm:$0xff]
        %v603 = vld [vmem:[%s339 + $0x368] sm:$0xff]
        %v604 = vld [vmem:[%s339 + $0x370] sm:$0xff]
        %v605 = vld [vmem:[%s339 + $0x378] sm:$0xff]
        %v606 = vld [vmem:[%s339 + $0x380] sm:$0xff]
        %v607 = vld [vmem:[%s339 + $0x388] sm:$0xff]
        %v608 = vld [vmem:[%s339 + $0x390] sm:$0xff]
        %v609 = vld [vmem:[%s339 + $0x398] sm:$0xff]
        %v610 = vld [vmem:[%s339 + $0x3a0] sm:$0xff]
        %v611 = vld [vmem:[%s339 + $0x3a8] sm:$0xff]
        %v612 = vld [vmem:[%s339 + $0x3b0] sm:$0xff]
        %v613 = vld [vmem:[%s339 + $0x3b8] sm:$0xff]
        %v614 = vld [vmem:[%s339 + $0x3c0] sm:$0xff]
        %v615 = vld [vmem:[%s339 + $0x3c8] sm:$0xff]
        %v616 = vld [vmem:[%s339 + $0x3d0] sm:$0xff]
        %v617 = vld [vmem:[%s339 + $0x3d8] sm:$0xff]
        %v618 = vld [vmem:[%s339 + $0x3e0] sm:$0xff]
        %v619 = vld [vmem:[%s339 + $0x3e8] sm:$0xff]
        %v620 = vld [vmem:[%s339 + $0x3f0] sm:$0xff]
        %v621 = vld [vmem:[%s339 + $0x3f8] sm:$0xff]
        %v622 = vld [vmem:[#allocation9] sm:$0xff]
        %v623 = vld [vmem:[#allocation9 + $0x8] sm:$0xff]
        %v624 = vld [vmem:[#allocation9 + $0x10] sm:$0xff]
        %v625 = vld [vmem:[#allocation9 + $0x18] sm:$0xff]
        %v626 = vld [vmem:[#allocation9 + $0x20] sm:$0xff]
        %v627 = vld [vmem:[#allocation9 + $0x28] sm:$0xff]
        %v628 = vld [vmem:[#allocation9 + $0x30] sm:$0xff]
        %v629 = vld [vmem:[#allocation9 + $0x38] sm:$0xff]
        %v630 = vld [vmem:[#allocation9 + $0x40] sm:$0xff]
        %v631 = vld [vmem:[#allocation9 + $0x48] sm:$0xff]
        %v632 = vld [vmem:[#allocation9 + $0x50] sm:$0xff]
        %v633 = vld [vmem:[#allocation9 + $0x58] sm:$0xff]
        %v634 = vld [vmem:[#allocation9 + $0x60] sm:$0xff]
        %v635 = vld [vmem:[#allocation9 + $0x68] sm:$0xff]
        %v636 = vld [vmem:[#allocation9 + $0x70] sm:$0xff]
        %v637 = vld [vmem:[#allocation9 + $0x78] sm:$0xff]
        %v638 = vld [vmem:[#allocation9 + $0x80] sm:$0xff]
        %v639 = vld [vmem:[#allocation9 + $0x88] sm:$0xff]
        %v640 = vld [vmem:[#allocation9 + $0x90] sm:$0xff]
        %v641 = vld [vmem:[#allocation9 + $0x98] sm:$0xff]
        %v642 = vld [vmem:[#allocation9 + $0xa0] sm:$0xff]
        %v643 = vld [vmem:[#allocation9 + $0xa8] sm:$0xff]
        %v644 = vld [vmem:[#allocation9 + $0xb0] sm:$0xff]
        %v645 = vld [vmem:[#allocation9 + $0xb8] sm:$0xff]
        %v646 = vld [vmem:[#allocation9 + $0xc0] sm:$0xff]
        %v647 = vld [vmem:[#allocation9 + $0xc8] sm:$0xff]
        %v648 = vld [vmem:[#allocation9 + $0xd0] sm:$0xff]
        %v649 = vld [vmem:[#allocation9 + $0xd8] sm:$0xff]
        %v650 = vld [vmem:[#allocation9 + $0xe0] sm:$0xff]
        %v651 = vld [vmem:[#allocation9 + $0xe8] sm:$0xff]
        %v652 = vld [vmem:[#allocation9 + $0xf0] sm:$0xff]
        %v653 = vld [vmem:[#allocation9 + $0xf8] sm:$0xff]
        %v654 = vld [vmem:[#allocation9 + $0x100] sm:$0xff]
        %v655 = vld [vmem:[#allocation9 + $0x108] sm:$0xff]
        %v656 = vld [vmem:[#allocation9 + $0x110] sm:$0xff]
        %v657 = vld [vmem:[#allocation9 + $0x118] sm:$0xff]
        %v658 = vld [vmem:[#allocation9 + $0x120] sm:$0xff]
        %v659 = vld [vmem:[#allocation9 + $0x128] sm:$0xff]
        %v660 = vld [vmem:[#allocation9 + $0x130] sm:$0xff]
        %v661 = vld [vmem:[#allocation9 + $0x138] sm:$0xff]
        %v662 = vld [vmem:[#allocation9 + $0x140] sm:$0xff]
        %v663 = vld [vmem:[#allocation9 + $0x148] sm:$0xff]
        %v664 = vld [vmem:[#allocation9 + $0x150] sm:$0xff]
        %v665 = vld [vmem:[#allocation9 + $0x158] sm:$0xff]
        %v666 = vld [vmem:[#allocation9 + $0x160] sm:$0xff]
        %v667 = vld [vmem:[#allocation9 + $0x168] sm:$0xff]
        %v668 = vld [vmem:[#allocation9 + $0x170] sm:$0xff]
        %v669 = vld [vmem:[#allocation9 + $0x178] sm:$0xff]
        %v670 = vld [vmem:[#allocation9 + $0x180] sm:$0xff]
        %v671 = vld [vmem:[#allocation9 + $0x188] sm:$0xff]
        %v672 = vld [vmem:[#allocation9 + $0x190] sm:$0xff]
        %v673 = vld [vmem:[#allocation9 + $0x198] sm:$0xff]
        %v674 = vld [vmem:[#allocation9 + $0x1a0] sm:$0xff]
        %v675 = vld [vmem:[#allocation9 + $0x1a8] sm:$0xff]
        %v676 = vld [vmem:[#allocation9 + $0x1b0] sm:$0xff]
        %v677 = vld [vmem:[#allocation9 + $0x1b8] sm:$0xff]
        %v678 = vld [vmem:[#allocation9 + $0x1c0] sm:$0xff]
        %v679 = vld [vmem:[#allocation9 + $0x1c8] sm:$0xff]
        %v680 = vld [vmem:[#allocation9 + $0x1d0] sm:$0xff]
        %v681 = vld [vmem:[#allocation9 + $0x1d8] sm:$0xff]
        %v682 = vld [vmem:[#allocation9 + $0x1e0] sm:$0xff]
        %v683 = vld [vmem:[#allocation9 + $0x1e8] sm:$0xff]
        %v684 = vld [vmem:[#allocation9 + $0x1f0] sm:$0xff]
        %v685 = vld [vmem:[#allocation9 + $0x1f8] sm:$0xff]
        %v686 = vld [vmem:[#allocation9 + $0x200] sm:$0xff]
        %v687 = vld [vmem:[#allocation9 + $0x208] sm:$0xff]
        %v688 = vld [vmem:[#allocation9 + $0x210] sm:$0xff]
        %v689 = vld [vmem:[#allocation9 + $0x218] sm:$0xff]
        %v690 = vld [vmem:[#allocation9 + $0x220] sm:$0xff]
        %v691 = vld [vmem:[#allocation9 + $0x228] sm:$0xff]
        %v692 = vld [vmem:[#allocation9 + $0x230] sm:$0xff]
        %v693 = vld [vmem:[#allocation9 + $0x238] sm:$0xff]
        %v694 = vld [vmem:[#allocation9 + $0x240] sm:$0xff]
        %v695 = vld [vmem:[#allocation9 + $0x248] sm:$0xff]
        %v696 = vld [vmem:[#allocation9 + $0x250] sm:$0xff]
        %v697 = vld [vmem:[#allocation9 + $0x258] sm:$0xff]
        %v698 = vld [vmem:[#allocation9 + $0x260] sm:$0xff]
        %v699 = vld [vmem:[#allocation9 + $0x268] sm:$0xff]
        %v700 = vld [vmem:[#allocation9 + $0x270] sm:$0xff]
        %v701 = vld [vmem:[#allocation9 + $0x278] sm:$0xff]
        %v702 = vld [vmem:[#allocation9 + $0x280] sm:$0xff]
        %v703 = vld [vmem:[#allocation9 + $0x288] sm:$0xff]
        %v704 = vld [vmem:[#allocation9 + $0x290] sm:$0xff]
        %v705 = vld [vmem:[#allocation9 + $0x298] sm:$0xff]
        %v706 = vld [vmem:[#allocation9 + $0x2a0] sm:$0xff]
        %v707 = vld [vmem:[#allocation9 + $0x2a8] sm:$0xff]
        %v708 = vld [vmem:[#allocation9 + $0x2b0] sm:$0xff]
        %v709 = vld [vmem:[#allocation9 + $0x2b8] sm:$0xff]
        %v710 = vld [vmem:[#allocation9 + $0x2c0] sm:$0xff]
        %v711 = vld [vmem:[#allocation9 + $0x2c8] sm:$0xff]
        %v712 = vld [vmem:[#allocation9 + $0x2d0] sm:$0xff]
        %v713 = vld [vmem:[#allocation9 + $0x2d8] sm:$0xff]
        %v714 = vld [vmem:[#allocation9 + $0x2e0] sm:$0xff]
        %v715 = vld [vmem:[#allocation9 + $0x2e8] sm:$0xff]
        %v716 = vld [vmem:[#allocation9 + $0x2f0] sm:$0xff]
        %v717 = vld [vmem:[#allocation9 + $0x2f8] sm:$0xff]
        %v718 = vld [vmem:[#allocation9 + $0x300] sm:$0xff]
        %v719 = vld [vmem:[#allocation9 + $0x308] sm:$0xff]
        %v720 = vld [vmem:[#allocation9 + $0x310] sm:$0xff]
        %v721 = vld [vmem:[#allocation9 + $0x318] sm:$0xff]
        %v722 = vld [vmem:[#allocation9 + $0x320] sm:$0xff]
        %v723 = vld [vmem:[#allocation9 + $0x328] sm:$0xff]
        %v724 = vld [vmem:[#allocation9 + $0x330] sm:$0xff]
        %v725 = vld [vmem:[#allocation9 + $0x338] sm:$0xff]
        %v726 = vld [vmem:[#allocation9 + $0x340] sm:$0xff]
        %v727 = vld [vmem:[#allocation9 + $0x348] sm:$0xff]
        %v728 = vld [vmem:[#allocation9 + $0x350] sm:$0xff]
        %v729 = vld [vmem:[#allocation9 + $0x358] sm:$0xff]
        %v730 = vld [vmem:[#allocation9 + $0x360] sm:$0xff]
        %v731 = vld [vmem:[#allocation9 + $0x368] sm:$0xff]
        %v732 = vld [vmem:[#allocation9 + $0x370] sm:$0xff]
        %v733 = vld [vmem:[#allocation9 + $0x378] sm:$0xff]
        %v734 = vld [vmem:[#allocation9 + $0x380] sm:$0xff]
        %v735 = vld [vmem:[#allocation9 + $0x388] sm:$0xff]
        %v736 = vld [vmem:[#allocation9 + $0x390] sm:$0xff]
        %v737 = vld [vmem:[#allocation9 + $0x398] sm:$0xff]
        %v738 = vld [vmem:[#allocation9 + $0x3a0] sm:$0xff]
        %v739 = vld [vmem:[#allocation9 + $0x3a8] sm:$0xff]
        %v740 = vld [vmem:[#allocation9 + $0x3b0] sm:$0xff]
        %v741 = vld [vmem:[#allocation9 + $0x3b8] sm:$0xff]
        %v742 = vld [vmem:[#allocation9 + $0x3c0] sm:$0xff]
        %v743 = vld [vmem:[#allocation9 + $0x3c8] sm:$0xff]
        %v744 = vld [vmem:[#allocation9 + $0x3d0] sm:$0xff]
        %v745 = vld [vmem:[#allocation9 + $0x3d8] sm:$0xff]
        %v746 = vld [vmem:[#allocation9 + $0x3e0] sm:$0xff]
        %v747 = vld [vmem:[#allocation9 + $0x3e8] sm:$0xff]
        %v748 = vld [vmem:[#allocation9 + $0x3f0] sm:$0xff]
        %v749 = vld [vmem:[#allocation9 + $0x3f8] sm:$0xff]
        %v750 = vld [vmem:[#allocation9 + $0x400] sm:$0xff]
        %v751 = vld [vmem:[#allocation9 + $0x408] sm:$0xff]
        %v752 = vld [vmem:[#allocation9 + $0x410] sm:$0xff]
        %v753 = vld [vmem:[#allocation9 + $0x418] sm:$0xff]
        %v754 = vld [vmem:[#allocation9 + $0x420] sm:$0xff]
        %v755 = vld [vmem:[#allocation9 + $0x428] sm:$0xff]
        %v756 = vld [vmem:[#allocation9 + $0x430] sm:$0xff]
        %v757 = vld [vmem:[#allocation9 + $0x438] sm:$0xff]
        %v758 = vld [vmem:[#allocation9 + $0x440] sm:$0xff]
        %v759 = vld [vmem:[#allocation9 + $0x448] sm:$0xff]
        %v760 = vld [vmem:[#allocation9 + $0x450] sm:$0xff]
        %v761 = vld [vmem:[#allocation9 + $0x458] sm:$0xff]
        %v762 = vld [vmem:[#allocation9 + $0x460] sm:$0xff]
        %v763 = vld [vmem:[#allocation9 + $0x468] sm:$0xff]
        %v764 = vld [vmem:[#allocation9 + $0x470] sm:$0xff]
        %v765 = vld [vmem:[#allocation9 + $0x478] sm:$0xff]
        %v766 = vld [vmem:[#allocation9 + $0x480] sm:$0xff]
        %v767 = vld [vmem:[#allocation9 + $0x488] sm:$0xff]
        %v768 = vld [vmem:[#allocation9 + $0x490] sm:$0xff]
        %v769 = vld [vmem:[#allocation9 + $0x498] sm:$0xff]
        %v770 = vld [vmem:[#allocation9 + $0x4a0] sm:$0xff]
        %v771 = vld [vmem:[#allocation9 + $0x4a8] sm:$0xff]
        %v772 = vld [vmem:[#allocation9 + $0x4b0] sm:$0xff]
        %v773 = vld [vmem:[#allocation9 + $0x4b8] sm:$0xff]
        %v774 = vld [vmem:[#allocation9 + $0x4c0] sm:$0xff]
        %v775 = vld [vmem:[#allocation9 + $0x4c8] sm:$0xff]
        %v776 = vld [vmem:[#allocation9 + $0x4d0] sm:$0xff]
        %v777 = vld [vmem:[#allocation9 + $0x4d8] sm:$0xff]
        %v778 = vld [vmem:[#allocation9 + $0x4e0] sm:$0xff]
        %v779 = vld [vmem:[#allocation9 + $0x4e8] sm:$0xff]
        %v780 = vld [vmem:[#allocation9 + $0x4f0] sm:$0xff]
        %v781 = vld [vmem:[#allocation9 + $0x4f8] sm:$0xff]
        %v782 = vld [vmem:[#allocation9 + $0x500] sm:$0xff]
        %v783 = vld [vmem:[#allocation9 + $0x508] sm:$0xff]
        %v784 = vld [vmem:[#allocation9 + $0x510] sm:$0xff]
        %v785 = vld [vmem:[#allocation9 + $0x518] sm:$0xff]
        %v786 = vld [vmem:[#allocation9 + $0x520] sm:$0xff]
        %v787 = vld [vmem:[#allocation9 + $0x528] sm:$0xff]
        %v788 = vld [vmem:[#allocation9 + $0x530] sm:$0xff]
        %v789 = vld [vmem:[#allocation9 + $0x538] sm:$0xff]
        %v790 = vld [vmem:[#allocation9 + $0x540] sm:$0xff]
        %v791 = vld [vmem:[#allocation9 + $0x548] sm:$0xff]
        %v792 = vld [vmem:[#allocation9 + $0x550] sm:$0xff]
        %v793 = vld [vmem:[#allocation9 + $0x558] sm:$0xff]
        %v794 = vld [vmem:[#allocation9 + $0x560] sm:$0xff]
        %v795 = vld [vmem:[#allocation9 + $0x568] sm:$0xff]
        %v796 = vld [vmem:[#allocation9 + $0x570] sm:$0xff]
        %v797 = vld [vmem:[#allocation9 + $0x578] sm:$0xff]
        %v798 = vld [vmem:[#allocation9 + $0x580] sm:$0xff]
        %v799 = vld [vmem:[#allocation9 + $0x588] sm:$0xff]
        %v800 = vld [vmem:[#allocation9 + $0x590] sm:$0xff]
        %v801 = vld [vmem:[#allocation9 + $0x598] sm:$0xff]
        %v802 = vld [vmem:[#allocation9 + $0x5a0] sm:$0xff]
        %v803 = vld [vmem:[#allocation9 + $0x5a8] sm:$0xff]
        %v804 = vld [vmem:[#allocation9 + $0x5b0] sm:$0xff]
        %v805 = vld [vmem:[#allocation9 + $0x5b8] sm:$0xff]
        %v806 = vld [vmem:[#allocation9 + $0x5c0] sm:$0xff]
        %v807 = vld [vmem:[#allocation9 + $0x5c8] sm:$0xff]
        %v808 = vld [vmem:[#allocation9 + $0x5d0] sm:$0xff]
        %v809 = vld [vmem:[#allocation9 + $0x5d8] sm:$0xff]
        %v810 = vld [vmem:[#allocation9 + $0x5e0] sm:$0xff]
        %v811 = vld [vmem:[#allocation9 + $0x5e8] sm:$0xff]
        %v812 = vld [vmem:[#allocation9 + $0x5f0] sm:$0xff]
        %v813 = vld [vmem:[#allocation9 + $0x5f8] sm:$0xff]
        %v814 = vld [vmem:[#allocation9 + $0x600] sm:$0xff]
        %v815 = vld [vmem:[#allocation9 + $0x608] sm:$0xff]
        %v816 = vld [vmem:[#allocation9 + $0x610] sm:$0xff]
        %v817 = vld [vmem:[#allocation9 + $0x618] sm:$0xff]
        %v818 = vld [vmem:[#allocation9 + $0x620] sm:$0xff]
        %v819 = vld [vmem:[#allocation9 + $0x628] sm:$0xff]
        %v820 = vld [vmem:[#allocation9 + $0x630] sm:$0xff]
        %v821 = vld [vmem:[#allocation9 + $0x638] sm:$0xff]
        %v822 = vld [vmem:[#allocation9 + $0x640] sm:$0xff]
        %v823 = vld [vmem:[#allocation9 + $0x648] sm:$0xff]
        %v824 = vld [vmem:[#allocation9 + $0x650] sm:$0xff]
        %v825 = vld [vmem:[#allocation9 + $0x658] sm:$0xff]
        %v826 = vld [vmem:[#allocation9 + $0x660] sm:$0xff]
        %v827 = vld [vmem:[#allocation9 + $0x668] sm:$0xff]
        %v828 = vld [vmem:[#allocation9 + $0x670] sm:$0xff]
        %v829 = vld [vmem:[#allocation9 + $0x678] sm:$0xff]
        %v830 = vld [vmem:[#allocation9 + $0x680] sm:$0xff]
        %v831 = vld [vmem:[#allocation9 + $0x688] sm:$0xff]
        %v832 = vld [vmem:[#allocation9 + $0x690] sm:$0xff]
        %v833 = vld [vmem:[#allocation9 + $0x698] sm:$0xff]
        %v834 = vld [vmem:[#allocation9 + $0x6a0] sm:$0xff]
        %v835 = vld [vmem:[#allocation9 + $0x6a8] sm:$0xff]
        %v836 = vld [vmem:[#allocation9 + $0x6b0] sm:$0xff]
        %v837 = vld [vmem:[#allocation9 + $0x6b8] sm:$0xff]
        %v838 = vld [vmem:[#allocation9 + $0x6c0] sm:$0xff]
        %v839 = vld [vmem:[#allocation9 + $0x6c8] sm:$0xff]
        %v840 = vld [vmem:[#allocation9 + $0x6d0] sm:$0xff]
        %v841 = vld [vmem:[#allocation9 + $0x6d8] sm:$0xff]
        %v842 = vld [vmem:[#allocation9 + $0x6e0] sm:$0xff]
        %v843 = vld [vmem:[#allocation9 + $0x6e8] sm:$0xff]
        %v844 = vld [vmem:[#allocation9 + $0x6f0] sm:$0xff]
        %v845 = vld [vmem:[#allocation9 + $0x6f8] sm:$0xff]
        %v846 = vld [vmem:[#allocation9 + $0x700] sm:$0xff]
        %v847 = vld [vmem:[#allocation9 + $0x708] sm:$0xff]
        %v848 = vld [vmem:[#allocation9 + $0x710] sm:$0xff]
        %v849 = vld [vmem:[#allocation9 + $0x718] sm:$0xff]
        %v850 = vld [vmem:[#allocation9 + $0x720] sm:$0xff]
        %v851 = vld [vmem:[#allocation9 + $0x728] sm:$0xff]
        %v852 = vld [vmem:[#allocation9 + $0x730] sm:$0xff]
        %v853 = vld [vmem:[#allocation9 + $0x738] sm:$0xff]
        %v854 = vld [vmem:[#allocation9 + $0x740] sm:$0xff]
        %v855 = vld [vmem:[#allocation9 + $0x748] sm:$0xff]
        %v856 = vld [vmem:[#allocation9 + $0x750] sm:$0xff]
        %v857 = vld [vmem:[#allocation9 + $0x758] sm:$0xff]
        %v858 = vld [vmem:[#allocation9 + $0x760] sm:$0xff]
        %v859 = vld [vmem:[#allocation9 + $0x768] sm:$0xff]
        %v860 = vld [vmem:[#allocation9 + $0x770] sm:$0xff]
        %v861 = vld [vmem:[#allocation9 + $0x778] sm:$0xff]
        %v862 = vld [vmem:[#allocation9 + $0x780] sm:$0xff]
        %v863 = vld [vmem:[#allocation9 + $0x788] sm:$0xff]
        %v864 = vld [vmem:[#allocation9 + $0x790] sm:$0xff]
        %v865 = vld [vmem:[#allocation9 + $0x798] sm:$0xff]
        %v866 = vld [vmem:[#allocation9 + $0x7a0] sm:$0xff]
        %v867 = vld [vmem:[#allocation9 + $0x7a8] sm:$0xff]
        %v868 = vld [vmem:[#allocation9 + $0x7b0] sm:$0xff]
        %v869 = vld [vmem:[#allocation9 + $0x7b8] sm:$0xff]
        %v870 = vld [vmem:[#allocation9 + $0x7c0] sm:$0xff]
        %v871 = vld [vmem:[#allocation9 + $0x7c8] sm:$0xff]
        %v872 = vld [vmem:[#allocation9 + $0x7d0] sm:$0xff]
        %v873 = vld [vmem:[#allocation9 + $0x7d8] sm:$0xff]
        %v874 = vld [vmem:[#allocation9 + $0x7e0] sm:$0xff]
        %v875 = vld [vmem:[#allocation9 + $0x7e8] sm:$0xff]
        %v876 = vld [vmem:[#allocation9 + $0x7f0] sm:$0xff]
        %v877 = vld [vmem:[#allocation9 + $0x7f8] sm:$0xff]
        %v878 = vld [vmem:[%s2] sm:$0xf]
        %v880 = vlaneseq
        %v881 = vshrl.u32 %v880, 7
        %v882 = vsub.s32 0, %v881
        %v883 = vrot.slane %v878, %v882
        %v884 = vlaneseq
        %v885 = vshrl.u32 %v884, 7
        %v886 = vsub.s32 1, %v885
        %v887 = vrot.slane %v878, %v886
        %v888 = vlaneseq
        %v889 = vshrl.u32 %v888, 7
        %v890 = vsub.s32 2, %v889
        %v891 = vrot.slane %v878, %v890
        %v892 = vlaneseq
        %v893 = vshrl.u32 %v892, 7
        %v894 = vsub.s32 3, %v893
        %v895 = vrot.slane %v878, %v894
        %v1028 = vunpack.c.l.b16 %v494
        %v1029 = vunpack.c.h.b16 %v494
        %v1030 = vunpack.c.l.b16 %v495
        %v1031 = vunpack.c.h.b16 %v495
        %v1032 = vunpack.c.l.b16 %v496
        %v1033 = vunpack.c.h.b16 %v496
        %v1034 = vunpack.c.l.b16 %v497
        %v1035 = vunpack.c.h.b16 %v497
        %v1036 = vunpack.c.l.b16 %v498
        %v1037 = vunpack.c.h.b16 %v498
        %v1038 = vunpack.c.l.b16 %v499
        %v1039 = vunpack.c.h.b16 %v499
        %v1040 = vunpack.c.l.b16 %v500
        %v1041 = vunpack.c.h.b16 %v500
        %v1042 = vunpack.c.l.b16 %v501
        %v1043 = vunpack.c.h.b16 %v501
        %v1044 = vunpack.c.l.b16 %v502
        %v1045 = vunpack.c.h.b16 %v502
        %v1046 = vunpack.c.l.b16 %v503
        %v1047 = vunpack.c.h.b16 %v503
        %v1048 = vunpack.c.l.b16 %v504
        %v1049 = vunpack.c.h.b16 %v504
        %v1050 = vunpack.c.l.b16 %v505
        %v1051 = vunpack.c.h.b16 %v505
        %v1052 = vunpack.c.l.b16 %v506
        %v1053 = vunpack.c.h.b16 %v506
        %v1054 = vunpack.c.l.b16 %v507
        %v1055 = vunpack.c.h.b16 %v507
        %v1056 = vunpack.c.l.b16 %v508
        %v1057 = vunpack.c.h.b16 %v508
        %v1058 = vunpack.c.l.b16 %v509
        %v1059 = vunpack.c.h.b16 %v509
        %v1060 = vunpack.c.l.b16 %v510
        %v1061 = vunpack.c.h.b16 %v510
        %v1062 = vunpack.c.l.b16 %v511
        %v1063 = vunpack.c.h.b16 %v511
        %v1064 = vunpack.c.l.b16 %v512
        %v1065 = vunpack.c.h.b16 %v512
        %v1066 = vunpack.c.l.b16 %v513
        %v1067 = vunpack.c.h.b16 %v513
        %v1068 = vunpack.c.l.b16 %v514
        %v1069 = vunpack.c.h.b16 %v514
        %v1070 = vunpack.c.l.b16 %v515
        %v1071 = vunpack.c.h.b16 %v515
        %v1072 = vunpack.c.l.b16 %v516
        %v1073 = vunpack.c.h.b16 %v516
        %v1074 = vunpack.c.l.b16 %v517
        %v1075 = vunpack.c.h.b16 %v517
        %v1076 = vunpack.c.l.b16 %v518
        %v1077 = vunpack.c.h.b16 %v518
        %v1078 = vunpack.c.l.b16 %v519
        %v1079 = vunpack.c.h.b16 %v519
        %v1080 = vunpack.c.l.b16 %v520
        %v1081 = vunpack.c.h.b16 %v520
        %v1082 = vunpack.c.l.b16 %v521
        %v1083 = vunpack.c.h.b16 %v521
        %v1084 = vunpack.c.l.b16 %v522
        %v1085 = vunpack.c.h.b16 %v522
        %v1086 = vunpack.c.l.b16 %v523
        %v1087 = vunpack.c.h.b16 %v523
        %v1088 = vunpack.c.l.b16 %v524
        %v1089 = vunpack.c.h.b16 %v524
        %v1090 = vunpack.c.l.b16 %v525
        %v1091 = vunpack.c.h.b16 %v525
        %v1092 = vunpack.c.l.b16 %v526
        %v1093 = vunpack.c.h.b16 %v526
        %v1094 = vunpack.c.l.b16 %v527
        %v1095 = vunpack.c.h.b16 %v527
        %v1096 = vunpack.c.l.b16 %v528
        %v1097 = vunpack.c.h.b16 %v528
        %v1098 = vunpack.c.l.b16 %v529
        %v1099 = vunpack.c.h.b16 %v529
        %v1100 = vunpack.c.l.b16 %v530
        %v1101 = vunpack.c.h.b16 %v530
        %v1102 = vunpack.c.l.b16 %v531
        %v1103 = vunpack.c.h.b16 %v531
        %v1104 = vunpack.c.l.b16 %v532
        %v1105 = vunpack.c.h.b16 %v532
        %v1106 = vunpack.c.l.b16 %v533
        %v1107 = vunpack.c.h.b16 %v533
        %v1108 = vunpack.c.l.b16 %v534
        %v1109 = vunpack.c.h.b16 %v534
        %v1110 = vunpack.c.l.b16 %v535
        %v1111 = vunpack.c.h.b16 %v535
        %v1112 = vunpack.c.l.b16 %v536
        %v1113 = vunpack.c.h.b16 %v536
        %v1114 = vunpack.c.l.b16 %v537
        %v1115 = vunpack.c.h.b16 %v537
        %v1116 = vunpack.c.l.b16 %v538
        %v1117 = vunpack.c.h.b16 %v538
        %v1118 = vunpack.c.l.b16 %v539
        %v1119 = vunpack.c.h.b16 %v539
        %v1120 = vunpack.c.l.b16 %v540
        %v1121 = vunpack.c.h.b16 %v540
        %v1122 = vunpack.c.l.b16 %v541
        %v1123 = vunpack.c.h.b16 %v541
        %v1124 = vunpack.c.l.b16 %v542
        %v1125 = vunpack.c.h.b16 %v542
        %v1126 = vunpack.c.l.b16 %v543
        %v1127 = vunpack.c.h.b16 %v543
        %v1128 = vunpack.c.l.b16 %v544
        %v1129 = vunpack.c.h.b16 %v544
        %v1130 = vunpack.c.l.b16 %v545
        %v1131 = vunpack.c.h.b16 %v545
        %v1132 = vunpack.c.l.b16 %v546
        %v1133 = vunpack.c.h.b16 %v546
        %v1134 = vunpack.c.l.b16 %v547
        %v1135 = vunpack.c.h.b16 %v547
        %v1136 = vunpack.c.l.b16 %v548
        %v1137 = vunpack.c.h.b16 %v548
        %v1138 = vunpack.c.l.b16 %v549
        %v1139 = vunpack.c.h.b16 %v549
        %v1140 = vunpack.c.l.b16 %v550
        %v1141 = vunpack.c.h.b16 %v550
        %v1142 = vunpack.c.l.b16 %v551
        %v1143 = vunpack.c.h.b16 %v551
        %v1144 = vunpack.c.l.b16 %v552
        %v1145 = vunpack.c.h.b16 %v552
        %v1146 = vunpack.c.l.b16 %v553
        %v1147 = vunpack.c.h.b16 %v553
        %v1148 = vunpack.c.l.b16 %v554
        %v1149 = vunpack.c.h.b16 %v554
        %v1150 = vunpack.c.l.b16 %v555
        %v1151 = vunpack.c.h.b16 %v555
        %v1152 = vunpack.c.l.b16 %v556
        %v1153 = vunpack.c.h.b16 %v556
        %v1154 = vunpack.c.l.b16 %v557
        %v1155 = vunpack.c.h.b16 %v557
        %v1156 = vunpack.c.l.b16 %v558
        %v1157 = vunpack.c.h.b16 %v558
        %v1158 = vunpack.c.l.b16 %v559
        %v1159 = vunpack.c.h.b16 %v559
        %v1160 = vunpack.c.l.b16 %v560
        %v1161 = vunpack.c.h.b16 %v560
        %v1162 = vunpack.c.l.b16 %v561
        %v1163 = vunpack.c.h.b16 %v561
        %v1164 = vunpack.c.l.b16 %v562
        %v1165 = vunpack.c.h.b16 %v562
        %v1166 = vunpack.c.l.b16 %v563
        %v1167 = vunpack.c.h.b16 %v563
        %v1168 = vunpack.c.l.b16 %v564
        %v1169 = vunpack.c.h.b16 %v564
        %v1170 = vunpack.c.l.b16 %v565
        %v1171 = vunpack.c.h.b16 %v565
        %v1172 = vunpack.c.l.b16 %v566
        %v1173 = vunpack.c.h.b16 %v566
        %v1174 = vunpack.c.l.b16 %v567
        %v1175 = vunpack.c.h.b16 %v567
        %v1176 = vunpack.c.l.b16 %v568
        %v1177 = vunpack.c.h.b16 %v568
        %v1178 = vunpack.c.l.b16 %v569
        %v1179 = vunpack.c.h.b16 %v569
        %v1180 = vunpack.c.l.b16 %v570
        %v1181 = vunpack.c.h.b16 %v570
        %v1182 = vunpack.c.l.b16 %v571
        %v1183 = vunpack.c.h.b16 %v571
        %v1184 = vunpack.c.l.b16 %v572
        %v1185 = vunpack.c.h.b16 %v572
        %v1186 = vunpack.c.l.b16 %v573
        %v1187 = vunpack.c.h.b16 %v573
        %v1188 = vunpack.c.l.b16 %v574
        %v1189 = vunpack.c.h.b16 %v574
        %v1190 = vunpack.c.l.b16 %v575
        %v1191 = vunpack.c.h.b16 %v575
        %v1192 = vunpack.c.l.b16 %v576
        %v1193 = vunpack.c.h.b16 %v576
        %v1194 = vunpack.c.l.b16 %v577
        %v1195 = vunpack.c.h.b16 %v577
        %v1196 = vunpack.c.l.b16 %v578
        %v1197 = vunpack.c.h.b16 %v578
        %v1198 = vunpack.c.l.b16 %v579
        %v1199 = vunpack.c.h.b16 %v579
        %v1200 = vunpack.c.l.b16 %v580
        %v1201 = vunpack.c.h.b16 %v580
        %v1202 = vunpack.c.l.b16 %v581
        %v1203 = vunpack.c.h.b16 %v581
        %v1204 = vunpack.c.l.b16 %v582
        %v1205 = vunpack.c.h.b16 %v582
        %v1206 = vunpack.c.l.b16 %v583
        %v1207 = vunpack.c.h.b16 %v583
        %v1208 = vunpack.c.l.b16 %v584
        %v1209 = vunpack.c.h.b16 %v584
        %v1210 = vunpack.c.l.b16 %v585
        %v1211 = vunpack.c.h.b16 %v585
        %v1212 = vunpack.c.l.b16 %v586
        %v1213 = vunpack.c.h.b16 %v586
        %v1214 = vunpack.c.l.b16 %v587
        %v1215 = vunpack.c.h.b16 %v587
        %v1216 = vunpack.c.l.b16 %v588
        %v1217 = vunpack.c.h.b16 %v588
        %v1218 = vunpack.c.l.b16 %v589
        %v1219 = vunpack.c.h.b16 %v589
        %v1220 = vunpack.c.l.b16 %v590
        %v1221 = vunpack.c.h.b16 %v590
        %v1222 = vunpack.c.l.b16 %v591
        %v1223 = vunpack.c.h.b16 %v591
        %v1224 = vunpack.c.l.b16 %v592
        %v1225 = vunpack.c.h.b16 %v592
        %v1226 = vunpack.c.l.b16 %v593
        %v1227 = vunpack.c.h.b16 %v593
        %v1228 = vunpack.c.l.b16 %v594
        %v1229 = vunpack.c.h.b16 %v594
        %v1230 = vunpack.c.l.b16 %v595
        %v1231 = vunpack.c.h.b16 %v595
        %v1232 = vunpack.c.l.b16 %v596
        %v1233 = vunpack.c.h.b16 %v596
        %v1234 = vunpack.c.l.b16 %v597
        %v1235 = vunpack.c.h.b16 %v597
        %v1236 = vunpack.c.l.b16 %v598
        %v1237 = vunpack.c.h.b16 %v598
        %v1238 = vunpack.c.l.b16 %v599
        %v1239 = vunpack.c.h.b16 %v599
        %v1240 = vunpack.c.l.b16 %v600
        %v1241 = vunpack.c.h.b16 %v600
        %v1242 = vunpack.c.l.b16 %v601
        %v1243 = vunpack.c.h.b16 %v601
        %v1244 = vunpack.c.l.b16 %v602
        %v1245 = vunpack.c.h.b16 %v602
        %v1246 = vunpack.c.l.b16 %v603
        %v1247 = vunpack.c.h.b16 %v603
        %v1248 = vunpack.c.l.b16 %v604
        %v1249 = vunpack.c.h.b16 %v604
        %v1250 = vunpack.c.l.b16 %v605
        %v1251 = vunpack.c.h.b16 %v605
        %v1252 = vunpack.c.l.b16 %v606
        %v1253 = vunpack.c.h.b16 %v606
        %v1254 = vunpack.c.l.b16 %v607
        %v1255 = vunpack.c.h.b16 %v607
        %v1256 = vunpack.c.l.b16 %v608
        %v1257 = vunpack.c.h.b16 %v608
        %v1258 = vunpack.c.l.b16 %v609
        %v1259 = vunpack.c.h.b16 %v609
        %v1260 = vunpack.c.l.b16 %v610
        %v1261 = vunpack.c.h.b16 %v610
        %v1262 = vunpack.c.l.b16 %v611
        %v1263 = vunpack.c.h.b16 %v611
        %v1264 = vunpack.c.l.b16 %v612
        %v1265 = vunpack.c.h.b16 %v612
        %v1266 = vunpack.c.l.b16 %v613
        %v1267 = vunpack.c.h.b16 %v613
        %v1268 = vunpack.c.l.b16 %v614
        %v1269 = vunpack.c.h.b16 %v614
        %v1270 = vunpack.c.l.b16 %v615
        %v1271 = vunpack.c.h.b16 %v615
        %v1272 = vunpack.c.l.b16 %v616
        %v1273 = vunpack.c.h.b16 %v616
        %v1274 = vunpack.c.l.b16 %v617
        %v1275 = vunpack.c.h.b16 %v617
        %v1276 = vunpack.c.l.b16 %v618
        %v1277 = vunpack.c.h.b16 %v618
        %v1278 = vunpack.c.l.b16 %v619
        %v1279 = vunpack.c.h.b16 %v619
        %v1280 = vunpack.c.l.b16 %v620
        %v1281 = vunpack.c.h.b16 %v620
        %v1282 = vunpack.c.l.b16 %v621
        %v1283 = vunpack.c.h.b16 %v621
        %v1284 = vpack.c.b16 %v1036, %v1028
        %v1285 = vpack.c.b16 %v1037, %v1029
        %v1286 = vpack.c.b16 %v1038, %v1030
        %v1287 = vpack.c.b16 %v1039, %v1031
        %v1288 = vpack.c.b16 %v1040, %v1032
        %v1289 = vpack.c.b16 %v1041, %v1033
        %v1290 = vpack.c.b16 %v1042, %v1034
        %v1291 = vpack.c.b16 %v1043, %v1035
        %v1292 = vpack.c.b16 %v1052, %v1044
        %v1293 = vpack.c.b16 %v1053, %v1045
        %v1294 = vpack.c.b16 %v1054, %v1046
        %v1295 = vpack.c.b16 %v1055, %v1047
        %v1296 = vpack.c.b16 %v1056, %v1048
        %v1297 = vpack.c.b16 %v1057, %v1049
        %v1298 = vpack.c.b16 %v1058, %v1050
        %v1299 = vpack.c.b16 %v1059, %v1051
        %v1300 = vpack.c.b16 %v1068, %v1060
        %v1301 = vpack.c.b16 %v1069, %v1061
        %v1302 = vpack.c.b16 %v1070, %v1062
        %v1303 = vpack.c.b16 %v1071, %v1063
        %v1304 = vpack.c.b16 %v1072, %v1064
        %v1305 = vpack.c.b16 %v1073, %v1065
        %v1306 = vpack.c.b16 %v1074, %v1066
        %v1307 = vpack.c.b16 %v1075, %v1067
        %v1308 = vpack.c.b16 %v1084, %v1076
        %v1309 = vpack.c.b16 %v1085, %v1077
        %v1310 = vpack.c.b16 %v1086, %v1078
        %v1311 = vpack.c.b16 %v1087, %v1079
        %v1312 = vpack.c.b16 %v1088, %v1080
        %v1313 = vpack.c.b16 %v1089, %v1081
        %v1314 = vpack.c.b16 %v1090, %v1082
        %v1315 = vpack.c.b16 %v1091, %v1083
        %v1316 = vpack.c.b16 %v1100, %v1092
        %v1317 = vpack.c.b16 %v1101, %v1093
        %v1318 = vpack.c.b16 %v1102, %v1094
        %v1319 = vpack.c.b16 %v1103, %v1095
        %v1320 = vpack.c.b16 %v1104, %v1096
        %v1321 = vpack.c.b16 %v1105, %v1097
        %v1322 = vpack.c.b16 %v1106, %v1098
        %v1323 = vpack.c.b16 %v1107, %v1099
        %v1324 = vpack.c.b16 %v1116, %v1108
        %v1325 = vpack.c.b16 %v1117, %v1109
        %v1326 = vpack.c.b16 %v1118, %v1110
        %v1327 = vpack.c.b16 %v1119, %v1111
        %v1328 = vpack.c.b16 %v1120, %v1112
        %v1329 = vpack.c.b16 %v1121, %v1113
        %v1330 = vpack.c.b16 %v1122, %v1114
        %v1331 = vpack.c.b16 %v1123, %v1115
        %v1332 = vpack.c.b16 %v1132, %v1124
        %v1333 = vpack.c.b16 %v1133, %v1125
        %v1334 = vpack.c.b16 %v1134, %v1126
        %v1335 = vpack.c.b16 %v1135, %v1127
        %v1336 = vpack.c.b16 %v1136, %v1128
        %v1337 = vpack.c.b16 %v1137, %v1129
        %v1338 = vpack.c.b16 %v1138, %v1130
        %v1339 = vpack.c.b16 %v1139, %v1131
        %v1340 = vpack.c.b16 %v1148, %v1140
        %v1341 = vpack.c.b16 %v1149, %v1141
        %v1342 = vpack.c.b16 %v1150, %v1142
        %v1343 = vpack.c.b16 %v1151, %v1143
        %v1344 = vpack.c.b16 %v1152, %v1144
        %v1345 = vpack.c.b16 %v1153, %v1145
        %v1346 = vpack.c.b16 %v1154, %v1146
        %v1347 = vpack.c.b16 %v1155, %v1147
        %v1348 = vpack.c.b16 %v1164, %v1156
        %v1349 = vpack.c.b16 %v1165, %v1157
        %v1350 = vpack.c.b16 %v1166, %v1158
        %v1351 = vpack.c.b16 %v1167, %v1159
        %v1352 = vpack.c.b16 %v1168, %v1160
        %v1353 = vpack.c.b16 %v1169, %v1161
        %v1354 = vpack.c.b16 %v1170, %v1162
        %v1355 = vpack.c.b16 %v1171, %v1163
        %v1356 = vpack.c.b16 %v1180, %v1172
        %v1357 = vpack.c.b16 %v1181, %v1173
        %v1358 = vpack.c.b16 %v1182, %v1174
        %v1359 = vpack.c.b16 %v1183, %v1175
        %v1360 = vpack.c.b16 %v1184, %v1176
        %v1361 = vpack.c.b16 %v1185, %v1177
        %v1362 = vpack.c.b16 %v1186, %v1178
        %v1363 = vpack.c.b16 %v1187, %v1179
        %v1364 = vpack.c.b16 %v1196, %v1188
        %v1365 = vpack.c.b16 %v1197, %v1189
        %v1366 = vpack.c.b16 %v1198, %v1190
        %v1367 = vpack.c.b16 %v1199, %v1191
        %v1368 = vpack.c.b16 %v1200, %v1192
        %v1369 = vpack.c.b16 %v1201, %v1193
        %v1370 = vpack.c.b16 %v1202, %v1194
        %v1371 = vpack.c.b16 %v1203, %v1195
        %v1372 = vpack.c.b16 %v1212, %v1204
        %v1373 = vpack.c.b16 %v1213, %v1205
        %v1374 = vpack.c.b16 %v1214, %v1206
        %v1375 = vpack.c.b16 %v1215, %v1207
        %v1376 = vpack.c.b16 %v1216, %v1208
        %v1377 = vpack.c.b16 %v1217, %v1209
        %v1378 = vpack.c.b16 %v1218, %v1210
        %v1379 = vpack.c.b16 %v1219, %v1211
        %v1380 = vpack.c.b16 %v1228, %v1220
        %v1381 = vpack.c.b16 %v1229, %v1221
        %v1382 = vpack.c.b16 %v1230, %v1222
        %v1383 = vpack.c.b16 %v1231, %v1223
        %v1384 = vpack.c.b16 %v1232, %v1224
        %v1385 = vpack.c.b16 %v1233, %v1225
        %v1386 = vpack.c.b16 %v1234, %v1226
        %v1387 = vpack.c.b16 %v1235, %v1227
        %v1388 = vpack.c.b16 %v1244, %v1236
        %v1389 = vpack.c.b16 %v1245, %v1237
        %v1390 = vpack.c.b16 %v1246, %v1238
        %v1391 = vpack.c.b16 %v1247, %v1239
        %v1392 = vpack.c.b16 %v1248, %v1240
        %v1393 = vpack.c.b16 %v1249, %v1241
        %v1394 = vpack.c.b16 %v1250, %v1242
        %v1395 = vpack.c.b16 %v1251, %v1243
        %v1396 = vpack.c.b16 %v1260, %v1252
        %v1397 = vpack.c.b16 %v1261, %v1253
        %v1398 = vpack.c.b16 %v1262, %v1254
        %v1399 = vpack.c.b16 %v1263, %v1255
        %v1400 = vpack.c.b16 %v1264, %v1256
        %v1401 = vpack.c.b16 %v1265, %v1257
        %v1402 = vpack.c.b16 %v1266, %v1258
        %v1403 = vpack.c.b16 %v1267, %v1259
        %v1404 = vpack.c.b16 %v1276, %v1268
        %v1405 = vpack.c.b16 %v1277, %v1269
        %v1406 = vpack.c.b16 %v1278, %v1270
        %v1407 = vpack.c.b16 %v1279, %v1271
        %v1408 = vpack.c.b16 %v1280, %v1272
        %v1409 = vpack.c.b16 %v1281, %v1273
        %v1410 = vpack.c.b16 %v1282, %v1274
        %v1411 = vpack.c.b16 %v1283, %v1275
        %v1796 = vunpack.c.l.b16 %v622
        %v1797 = vunpack.c.h.b16 %v622
        %v1798 = vunpack.c.l.b16 %v623
        %v1799 = vunpack.c.h.b16 %v623
        %v1800 = vunpack.c.l.b16 %v624
        %v1801 = vunpack.c.h.b16 %v624
        %v1802 = vunpack.c.l.b16 %v625
        %v1803 = vunpack.c.h.b16 %v625
        %v1804 = vunpack.c.l.b16 %v626
        %v1805 = vunpack.c.h.b16 %v626
        %v1806 = vunpack.c.l.b16 %v627
        %v1807 = vunpack.c.h.b16 %v627
        %v1808 = vunpack.c.l.b16 %v628
        %v1809 = vunpack.c.h.b16 %v628
        %v1810 = vunpack.c.l.b16 %v629
        %v1811 = vunpack.c.h.b16 %v629
        %v1812 = vunpack.c.l.b16 %v630
        %v1813 = vunpack.c.h.b16 %v630
        %v1814 = vunpack.c.l.b16 %v631
        %v1815 = vunpack.c.h.b16 %v631
        %v1816 = vunpack.c.l.b16 %v632
        %v1817 = vunpack.c.h.b16 %v632
        %v1818 = vunpack.c.l.b16 %v633
        %v1819 = vunpack.c.h.b16 %v633
        %v1820 = vunpack.c.l.b16 %v634
        %v1821 = vunpack.c.h.b16 %v634
        %v1822 = vunpack.c.l.b16 %v635
        %v1823 = vunpack.c.h.b16 %v635
        %v1824 = vunpack.c.l.b16 %v636
        %v1825 = vunpack.c.h.b16 %v636
        %v1826 = vunpack.c.l.b16 %v637
        %v1827 = vunpack.c.h.b16 %v637
        %v1828 = vunpack.c.l.b16 %v638
        %v1829 = vunpack.c.h.b16 %v638
        %v1830 = vunpack.c.l.b16 %v639
        %v1831 = vunpack.c.h.b16 %v639
        %v1832 = vunpack.c.l.b16 %v640
        %v1833 = vunpack.c.h.b16 %v640
        %v1834 = vunpack.c.l.b16 %v641
        %v1835 = vunpack.c.h.b16 %v641
        %v1836 = vunpack.c.l.b16 %v642
        %v1837 = vunpack.c.h.b16 %v642
        %v1838 = vunpack.c.l.b16 %v643
        %v1839 = vunpack.c.h.b16 %v643
        %v1840 = vunpack.c.l.b16 %v644
        %v1841 = vunpack.c.h.b16 %v644
        %v1842 = vunpack.c.l.b16 %v645
        %v1843 = vunpack.c.h.b16 %v645
        %v1844 = vunpack.c.l.b16 %v646
        %v1845 = vunpack.c.h.b16 %v646
        %v1846 = vunpack.c.l.b16 %v647
        %v1847 = vunpack.c.h.b16 %v647
        %v1848 = vunpack.c.l.b16 %v648
        %v1849 = vunpack.c.h.b16 %v648
        %v1850 = vunpack.c.l.b16 %v649
        %v1851 = vunpack.c.h.b16 %v649
        %v1852 = vunpack.c.l.b16 %v650
        %v1853 = vunpack.c.h.b16 %v650
        %v1854 = vunpack.c.l.b16 %v651
        %v1855 = vunpack.c.h.b16 %v651
        %v1856 = vunpack.c.l.b16 %v652
        %v1857 = vunpack.c.h.b16 %v652
        %v1858 = vunpack.c.l.b16 %v653
        %v1859 = vunpack.c.h.b16 %v653
        %v1860 = vunpack.c.l.b16 %v654
        %v1861 = vunpack.c.h.b16 %v654
        %v1862 = vunpack.c.l.b16 %v655
        %v1863 = vunpack.c.h.b16 %v655
        %v1864 = vunpack.c.l.b16 %v656
        %v1865 = vunpack.c.h.b16 %v656
        %v1866 = vunpack.c.l.b16 %v657
        %v1867 = vunpack.c.h.b16 %v657
        %v1868 = vunpack.c.l.b16 %v658
        %v1869 = vunpack.c.h.b16 %v658
        %v1870 = vunpack.c.l.b16 %v659
        %v1871 = vunpack.c.h.b16 %v659
        %v1872 = vunpack.c.l.b16 %v660
        %v1873 = vunpack.c.h.b16 %v660
        %v1874 = vunpack.c.l.b16 %v661
        %v1875 = vunpack.c.h.b16 %v661
        %v1876 = vunpack.c.l.b16 %v662
        %v1877 = vunpack.c.h.b16 %v662
        %v1878 = vunpack.c.l.b16 %v663
        %v1879 = vunpack.c.h.b16 %v663
        %v1880 = vunpack.c.l.b16 %v664
        %v1881 = vunpack.c.h.b16 %v664
        %v1882 = vunpack.c.l.b16 %v665
        %v1883 = vunpack.c.h.b16 %v665
        %v1884 = vunpack.c.l.b16 %v666
        %v1885 = vunpack.c.h.b16 %v666
        %v1886 = vunpack.c.l.b16 %v667
        %v1887 = vunpack.c.h.b16 %v667
        %v1888 = vunpack.c.l.b16 %v668
        %v1889 = vunpack.c.h.b16 %v668
        %v1890 = vunpack.c.l.b16 %v669
        %v1891 = vunpack.c.h.b16 %v669
        %v1892 = vunpack.c.l.b16 %v670
        %v1893 = vunpack.c.h.b16 %v670
        %v1894 = vunpack.c.l.b16 %v671
        %v1895 = vunpack.c.h.b16 %v671
        %v1896 = vunpack.c.l.b16 %v672
        %v1897 = vunpack.c.h.b16 %v672
        %v1898 = vunpack.c.l.b16 %v673
        %v1899 = vunpack.c.h.b16 %v673
        %v1900 = vunpack.c.l.b16 %v674
        %v1901 = vunpack.c.h.b16 %v674
        %v1902 = vunpack.c.l.b16 %v675
        %v1903 = vunpack.c.h.b16 %v675
        %v1904 = vunpack.c.l.b16 %v676
        %v1905 = vunpack.c.h.b16 %v676
        %v1906 = vunpack.c.l.b16 %v677
        %v1907 = vunpack.c.h.b16 %v677
        %v1908 = vunpack.c.l.b16 %v678
        %v1909 = vunpack.c.h.b16 %v678
        %v1910 = vunpack.c.l.b16 %v679
        %v1911 = vunpack.c.h.b16 %v679
        %v1912 = vunpack.c.l.b16 %v680
        %v1913 = vunpack.c.h.b16 %v680
        %v1914 = vunpack.c.l.b16 %v681
        %v1915 = vunpack.c.h.b16 %v681
        %v1916 = vunpack.c.l.b16 %v682
        %v1917 = vunpack.c.h.b16 %v682
        %v1918 = vunpack.c.l.b16 %v683
        %v1919 = vunpack.c.h.b16 %v683
        %v1920 = vunpack.c.l.b16 %v684
        %v1921 = vunpack.c.h.b16 %v684
        %v1922 = vunpack.c.l.b16 %v685
        %v1923 = vunpack.c.h.b16 %v685
        %v1924 = vunpack.c.l.b16 %v686
        %v1925 = vunpack.c.h.b16 %v686
        %v1926 = vunpack.c.l.b16 %v687
        %v1927 = vunpack.c.h.b16 %v687
        %v1928 = vunpack.c.l.b16 %v688
        %v1929 = vunpack.c.h.b16 %v688
        %v1930 = vunpack.c.l.b16 %v689
        %v1931 = vunpack.c.h.b16 %v689
        %v1932 = vunpack.c.l.b16 %v690
        %v1933 = vunpack.c.h.b16 %v690
        %v1934 = vunpack.c.l.b16 %v691
        %v1935 = vunpack.c.h.b16 %v691
        %v1936 = vunpack.c.l.b16 %v692
        %v1937 = vunpack.c.h.b16 %v692
        %v1938 = vunpack.c.l.b16 %v693
        %v1939 = vunpack.c.h.b16 %v693
        %v1940 = vunpack.c.l.b16 %v694
        %v1941 = vunpack.c.h.b16 %v694
        %v1942 = vunpack.c.l.b16 %v695
        %v1943 = vunpack.c.h.b16 %v695
        %v1944 = vunpack.c.l.b16 %v696
        %v1945 = vunpack.c.h.b16 %v696
        %v1946 = vunpack.c.l.b16 %v697
        %v1947 = vunpack.c.h.b16 %v697
        %v1948 = vunpack.c.l.b16 %v698
        %v1949 = vunpack.c.h.b16 %v698
        %v1950 = vunpack.c.l.b16 %v699
        %v1951 = vunpack.c.h.b16 %v699
        %v1952 = vunpack.c.l.b16 %v700
        %v1953 = vunpack.c.h.b16 %v700
        %v1954 = vunpack.c.l.b16 %v701
        %v1955 = vunpack.c.h.b16 %v701
        %v1956 = vunpack.c.l.b16 %v702
        %v1957 = vunpack.c.h.b16 %v702
        %v1958 = vunpack.c.l.b16 %v703
        %v1959 = vunpack.c.h.b16 %v703
        %v1960 = vunpack.c.l.b16 %v704
        %v1961 = vunpack.c.h.b16 %v704
        %v1962 = vunpack.c.l.b16 %v705
        %v1963 = vunpack.c.h.b16 %v705
        %v1964 = vunpack.c.l.b16 %v706
        %v1965 = vunpack.c.h.b16 %v706
        %v1966 = vunpack.c.l.b16 %v707
        %v1967 = vunpack.c.h.b16 %v707
        %v1968 = vunpack.c.l.b16 %v708
        %v1969 = vunpack.c.h.b16 %v708
        %v1970 = vunpack.c.l.b16 %v709
        %v1971 = vunpack.c.h.b16 %v709
        %v1972 = vunpack.c.l.b16 %v710
        %v1973 = vunpack.c.h.b16 %v710
        %v1974 = vunpack.c.l.b16 %v711
        %v1975 = vunpack.c.h.b16 %v711
        %v1976 = vunpack.c.l.b16 %v712
        %v1977 = vunpack.c.h.b16 %v712
        %v1978 = vunpack.c.l.b16 %v713
        %v1979 = vunpack.c.h.b16 %v713
        %v1980 = vunpack.c.l.b16 %v714
        %v1981 = vunpack.c.h.b16 %v714
        %v1982 = vunpack.c.l.b16 %v715
        %v1983 = vunpack.c.h.b16 %v715
        %v1984 = vunpack.c.l.b16 %v716
        %v1985 = vunpack.c.h.b16 %v716
        %v1986 = vunpack.c.l.b16 %v717
        %v1987 = vunpack.c.h.b16 %v717
        %v1988 = vunpack.c.l.b16 %v718
        %v1989 = vunpack.c.h.b16 %v718
        %v1990 = vunpack.c.l.b16 %v719
        %v1991 = vunpack.c.h.b16 %v719
        %v1992 = vunpack.c.l.b16 %v720
        %v1993 = vunpack.c.h.b16 %v720
        %v1994 = vunpack.c.l.b16 %v721
        %v1995 = vunpack.c.h.b16 %v721
        %v1996 = vunpack.c.l.b16 %v722
        %v1997 = vunpack.c.h.b16 %v722
        %v1998 = vunpack.c.l.b16 %v723
        %v1999 = vunpack.c.h.b16 %v723
        %v2000 = vunpack.c.l.b16 %v724
        %v2001 = vunpack.c.h.b16 %v724
        %v2002 = vunpack.c.l.b16 %v725
        %v2003 = vunpack.c.h.b16 %v725
        %v2004 = vunpack.c.l.b16 %v726
        %v2005 = vunpack.c.h.b16 %v726
        %v2006 = vunpack.c.l.b16 %v727
        %v2007 = vunpack.c.h.b16 %v727
        %v2008 = vunpack.c.l.b16 %v728
        %v2009 = vunpack.c.h.b16 %v728
        %v2010 = vunpack.c.l.b16 %v729
        %v2011 = vunpack.c.h.b16 %v729
        %v2012 = vunpack.c.l.b16 %v730
        %v2013 = vunpack.c.h.b16 %v730
        %v2014 = vunpack.c.l.b16 %v731
        %v2015 = vunpack.c.h.b16 %v731
        %v2016 = vunpack.c.l.b16 %v732
        %v2017 = vunpack.c.h.b16 %v732
        %v2018 = vunpack.c.l.b16 %v733
        %v2019 = vunpack.c.h.b16 %v733
        %v2020 = vunpack.c.l.b16 %v734
        %v2021 = vunpack.c.h.b16 %v734
        %v2022 = vunpack.c.l.b16 %v735
        %v2023 = vunpack.c.h.b16 %v735
        %v2024 = vunpack.c.l.b16 %v736
        %v2025 = vunpack.c.h.b16 %v736
        %v2026 = vunpack.c.l.b16 %v737
        %v2027 = vunpack.c.h.b16 %v737
        %v2028 = vunpack.c.l.b16 %v738
        %v2029 = vunpack.c.h.b16 %v738
        %v2030 = vunpack.c.l.b16 %v739
        %v2031 = vunpack.c.h.b16 %v739
        %v2032 = vunpack.c.l.b16 %v740
        %v2033 = vunpack.c.h.b16 %v740
        %v2034 = vunpack.c.l.b16 %v741
        %v2035 = vunpack.c.h.b16 %v741
        %v2036 = vunpack.c.l.b16 %v742
        %v2037 = vunpack.c.h.b16 %v742
        %v2038 = vunpack.c.l.b16 %v743
        %v2039 = vunpack.c.h.b16 %v743
        %v2040 = vunpack.c.l.b16 %v744
        %v2041 = vunpack.c.h.b16 %v744
        %v2042 = vunpack.c.l.b16 %v745
        %v2043 = vunpack.c.h.b16 %v745
        %v2044 = vunpack.c.l.b16 %v746
        %v2045 = vunpack.c.h.b16 %v746
        %v2046 = vunpack.c.l.b16 %v747
        %v2047 = vunpack.c.h.b16 %v747
        %v2048 = vunpack.c.l.b16 %v748
        %v2049 = vunpack.c.h.b16 %v748
        %v2050 = vunpack.c.l.b16 %v749
        %v2051 = vunpack.c.h.b16 %v749
        %v2052 = vunpack.c.l.b16 %v750
        %v2053 = vunpack.c.h.b16 %v750
        %v2054 = vunpack.c.l.b16 %v751
        %v2055 = vunpack.c.h.b16 %v751
        %v2056 = vunpack.c.l.b16 %v752
        %v2057 = vunpack.c.h.b16 %v752
        %v2058 = vunpack.c.l.b16 %v753
        %v2059 = vunpack.c.h.b16 %v753
        %v2060 = vunpack.c.l.b16 %v754
        %v2061 = vunpack.c.h.b16 %v754
        %v2062 = vunpack.c.l.b16 %v755
        %v2063 = vunpack.c.h.b16 %v755
        %v2064 = vunpack.c.l.b16 %v756
        %v2065 = vunpack.c.h.b16 %v756
        %v2066 = vunpack.c.l.b16 %v757
        %v2067 = vunpack.c.h.b16 %v757
        %v2068 = vunpack.c.l.b16 %v758
        %v2069 = vunpack.c.h.b16 %v758
        %v2070 = vunpack.c.l.b16 %v759
        %v2071 = vunpack.c.h.b16 %v759
        %v2072 = vunpack.c.l.b16 %v760
        %v2073 = vunpack.c.h.b16 %v760
        %v2074 = vunpack.c.l.b16 %v761
        %v2075 = vunpack.c.h.b16 %v761
        %v2076 = vunpack.c.l.b16 %v762
        %v2077 = vunpack.c.h.b16 %v762
        %v2078 = vunpack.c.l.b16 %v763
        %v2079 = vunpack.c.h.b16 %v763
        %v2080 = vunpack.c.l.b16 %v764
        %v2081 = vunpack.c.h.b16 %v764
        %v2082 = vunpack.c.l.b16 %v765
        %v2083 = vunpack.c.h.b16 %v765
        %v2084 = vunpack.c.l.b16 %v766
        %v2085 = vunpack.c.h.b16 %v766
        %v2086 = vunpack.c.l.b16 %v767
        %v2087 = vunpack.c.h.b16 %v767
        %v2088 = vunpack.c.l.b16 %v768
        %v2089 = vunpack.c.h.b16 %v768
        %v2090 = vunpack.c.l.b16 %v769
        %v2091 = vunpack.c.h.b16 %v769
        %v2092 = vunpack.c.l.b16 %v770
        %v2093 = vunpack.c.h.b16 %v770
        %v2094 = vunpack.c.l.b16 %v771
        %v2095 = vunpack.c.h.b16 %v771
        %v2096 = vunpack.c.l.b16 %v772
        %v2097 = vunpack.c.h.b16 %v772
        %v2098 = vunpack.c.l.b16 %v773
        %v2099 = vunpack.c.h.b16 %v773
        %v2100 = vunpack.c.l.b16 %v774
        %v2101 = vunpack.c.h.b16 %v774
        %v2102 = vunpack.c.l.b16 %v775
        %v2103 = vunpack.c.h.b16 %v775
        %v2104 = vunpack.c.l.b16 %v776
        %v2105 = vunpack.c.h.b16 %v776
        %v2106 = vunpack.c.l.b16 %v777
        %v2107 = vunpack.c.h.b16 %v777
        %v2108 = vunpack.c.l.b16 %v778
        %v2109 = vunpack.c.h.b16 %v778
        %v2110 = vunpack.c.l.b16 %v779
        %v2111 = vunpack.c.h.b16 %v779
        %v2112 = vunpack.c.l.b16 %v780
        %v2113 = vunpack.c.h.b16 %v780
        %v2114 = vunpack.c.l.b16 %v781
        %v2115 = vunpack.c.h.b16 %v781
        %v2116 = vunpack.c.l.b16 %v782
        %v2117 = vunpack.c.h.b16 %v782
        %v2118 = vunpack.c.l.b16 %v783
        %v2119 = vunpack.c.h.b16 %v783
        %v2120 = vunpack.c.l.b16 %v784
        %v2121 = vunpack.c.h.b16 %v784
        %v2122 = vunpack.c.l.b16 %v785
        %v2123 = vunpack.c.h.b16 %v785
        %v2124 = vunpack.c.l.b16 %v786
        %v2125 = vunpack.c.h.b16 %v786
        %v2126 = vunpack.c.l.b16 %v787
        %v2127 = vunpack.c.h.b16 %v787
        %v2128 = vunpack.c.l.b16 %v788
        %v2129 = vunpack.c.h.b16 %v788
        %v2130 = vunpack.c.l.b16 %v789
        %v2131 = vunpack.c.h.b16 %v789
        %v2132 = vunpack.c.l.b16 %v790
        %v2133 = vunpack.c.h.b16 %v790
        %v2134 = vunpack.c.l.b16 %v791
        %v2135 = vunpack.c.h.b16 %v791
        %v2136 = vunpack.c.l.b16 %v792
        %v2137 = vunpack.c.h.b16 %v792
        %v2138 = vunpack.c.l.b16 %v793
        %v2139 = vunpack.c.h.b16 %v793
        %v2140 = vunpack.c.l.b16 %v794
        %v2141 = vunpack.c.h.b16 %v794
        %v2142 = vunpack.c.l.b16 %v795
        %v2143 = vunpack.c.h.b16 %v795
        %v2144 = vunpack.c.l.b16 %v796
        %v2145 = vunpack.c.h.b16 %v796
        %v2146 = vunpack.c.l.b16 %v797
        %v2147 = vunpack.c.h.b16 %v797
        %v2148 = vunpack.c.l.b16 %v798
        %v2149 = vunpack.c.h.b16 %v798
        %v2150 = vunpack.c.l.b16 %v799
        %v2151 = vunpack.c.h.b16 %v799
        %v2152 = vunpack.c.l.b16 %v800
        %v2153 = vunpack.c.h.b16 %v800
        %v2154 = vunpack.c.l.b16 %v801
        %v2155 = vunpack.c.h.b16 %v801
        %v2156 = vunpack.c.l.b16 %v802
        %v2157 = vunpack.c.h.b16 %v802
        %v2158 = vunpack.c.l.b16 %v803
        %v2159 = vunpack.c.h.b16 %v803
        %v2160 = vunpack.c.l.b16 %v804
        %v2161 = vunpack.c.h.b16 %v804
        %v2162 = vunpack.c.l.b16 %v805
        %v2163 = vunpack.c.h.b16 %v805
        %v2164 = vunpack.c.l.b16 %v806
        %v2165 = vunpack.c.h.b16 %v806
        %v2166 = vunpack.c.l.b16 %v807
        %v2167 = vunpack.c.h.b16 %v807
        %v2168 = vunpack.c.l.b16 %v808
        %v2169 = vunpack.c.h.b16 %v808
        %v2170 = vunpack.c.l.b16 %v809
        %v2171 = vunpack.c.h.b16 %v809
        %v2172 = vunpack.c.l.b16 %v810
        %v2173 = vunpack.c.h.b16 %v810
        %v2174 = vunpack.c.l.b16 %v811
        %v2175 = vunpack.c.h.b16 %v811
        %v2176 = vunpack.c.l.b16 %v812
        %v2177 = vunpack.c.h.b16 %v812
        %v2178 = vunpack.c.l.b16 %v813
        %v2179 = vunpack.c.h.b16 %v813
        %v2180 = vunpack.c.l.b16 %v814
        %v2181 = vunpack.c.h.b16 %v814
        %v2182 = vunpack.c.l.b16 %v815
        %v2183 = vunpack.c.h.b16 %v815
        %v2184 = vunpack.c.l.b16 %v816
        %v2185 = vunpack.c.h.b16 %v816
        %v2186 = vunpack.c.l.b16 %v817
        %v2187 = vunpack.c.h.b16 %v817
        %v2188 = vunpack.c.l.b16 %v818
        %v2189 = vunpack.c.h.b16 %v818
        %v2190 = vunpack.c.l.b16 %v819
        %v2191 = vunpack.c.h.b16 %v819
        %v2192 = vunpack.c.l.b16 %v820
        %v2193 = vunpack.c.h.b16 %v820
        %v2194 = vunpack.c.l.b16 %v821
        %v2195 = vunpack.c.h.b16 %v821
        %v2196 = vunpack.c.l.b16 %v822
        %v2197 = vunpack.c.h.b16 %v822
        %v2198 = vunpack.c.l.b16 %v823
        %v2199 = vunpack.c.h.b16 %v823
        %v2200 = vunpack.c.l.b16 %v824
        %v2201 = vunpack.c.h.b16 %v824
        %v2202 = vunpack.c.l.b16 %v825
        %v2203 = vunpack.c.h.b16 %v825
        %v2204 = vunpack.c.l.b16 %v826
        %v2205 = vunpack.c.h.b16 %v826
        %v2206 = vunpack.c.l.b16 %v827
        %v2207 = vunpack.c.h.b16 %v827
        %v2208 = vunpack.c.l.b16 %v828
        %v2209 = vunpack.c.h.b16 %v828
        %v2210 = vunpack.c.l.b16 %v829
        %v2211 = vunpack.c.h.b16 %v829
        %v2212 = vunpack.c.l.b16 %v830
        %v2213 = vunpack.c.h.b16 %v830
        %v2214 = vunpack.c.l.b16 %v831
        %v2215 = vunpack.c.h.b16 %v831
        %v2216 = vunpack.c.l.b16 %v832
        %v2217 = vunpack.c.h.b16 %v832
        %v2218 = vunpack.c.l.b16 %v833
        %v2219 = vunpack.c.h.b16 %v833
        %v2220 = vunpack.c.l.b16 %v834
        %v2221 = vunpack.c.h.b16 %v834
        %v2222 = vunpack.c.l.b16 %v835
        %v2223 = vunpack.c.h.b16 %v835
        %v2224 = vunpack.c.l.b16 %v836
        %v2225 = vunpack.c.h.b16 %v836
        %v2226 = vunpack.c.l.b16 %v837
        %v2227 = vunpack.c.h.b16 %v837
        %v2228 = vunpack.c.l.b16 %v838
        %v2229 = vunpack.c.h.b16 %v838
        %v2230 = vunpack.c.l.b16 %v839
        %v2231 = vunpack.c.h.b16 %v839
        %v2232 = vunpack.c.l.b16 %v840
        %v2233 = vunpack.c.h.b16 %v840
        %v2234 = vunpack.c.l.b16 %v841
        %v2235 = vunpack.c.h.b16 %v841
        %v2236 = vunpack.c.l.b16 %v842
        %v2237 = vunpack.c.h.b16 %v842
        %v2238 = vunpack.c.l.b16 %v843
        %v2239 = vunpack.c.h.b16 %v843
        %v2240 = vunpack.c.l.b16 %v844
        %v2241 = vunpack.c.h.b16 %v844
        %v2242 = vunpack.c.l.b16 %v845
        %v2243 = vunpack.c.h.b16 %v845
        %v2244 = vunpack.c.l.b16 %v846
        %v2245 = vunpack.c.h.b16 %v846
        %v2246 = vunpack.c.l.b16 %v847
        %v2247 = vunpack.c.h.b16 %v847
        %v2248 = vunpack.c.l.b16 %v848
        %v2249 = vunpack.c.h.b16 %v848
        %v2250 = vunpack.c.l.b16 %v849
        %v2251 = vunpack.c.h.b16 %v849
        %v2252 = vunpack.c.l.b16 %v850
        %v2253 = vunpack.c.h.b16 %v850
        %v2254 = vunpack.c.l.b16 %v851
        %v2255 = vunpack.c.h.b16 %v851
        %v2256 = vunpack.c.l.b16 %v852
        %v2257 = vunpack.c.h.b16 %v852
        %v2258 = vunpack.c.l.b16 %v853
        %v2259 = vunpack.c.h.b16 %v853
        %v2260 = vunpack.c.l.b16 %v854
        %v2261 = vunpack.c.h.b16 %v854
        %v2262 = vunpack.c.l.b16 %v855
        %v2263 = vunpack.c.h.b16 %v855
        %v2264 = vunpack.c.l.b16 %v856
        %v2265 = vunpack.c.h.b16 %v856
        %v2266 = vunpack.c.l.b16 %v857
        %v2267 = vunpack.c.h.b16 %v857
        %v2268 = vunpack.c.l.b16 %v858
        %v2269 = vunpack.c.h.b16 %v858
        %v2270 = vunpack.c.l.b16 %v859
        %v2271 = vunpack.c.h.b16 %v859
        %v2272 = vunpack.c.l.b16 %v860
        %v2273 = vunpack.c.h.b16 %v860
        %v2274 = vunpack.c.l.b16 %v861
        %v2275 = vunpack.c.h.b16 %v861
        %v2276 = vunpack.c.l.b16 %v862
        %v2277 = vunpack.c.h.b16 %v862
        %v2278 = vunpack.c.l.b16 %v863
        %v2279 = vunpack.c.h.b16 %v863
        %v2280 = vunpack.c.l.b16 %v864
        %v2281 = vunpack.c.h.b16 %v864
        %v2282 = vunpack.c.l.b16 %v865
        %v2283 = vunpack.c.h.b16 %v865
        %v2284 = vunpack.c.l.b16 %v866
        %v2285 = vunpack.c.h.b16 %v866
        %v2286 = vunpack.c.l.b16 %v867
        %v2287 = vunpack.c.h.b16 %v867
        %v2288 = vunpack.c.l.b16 %v868
        %v2289 = vunpack.c.h.b16 %v868
        %v2290 = vunpack.c.l.b16 %v869
        %v2291 = vunpack.c.h.b16 %v869
        %v2292 = vunpack.c.l.b16 %v870
        %v2293 = vunpack.c.h.b16 %v870
        %v2294 = vunpack.c.l.b16 %v871
        %v2295 = vunpack.c.h.b16 %v871
        %v2296 = vunpack.c.l.b16 %v872
        %v2297 = vunpack.c.h.b16 %v872
        %v2298 = vunpack.c.l.b16 %v873
        %v2299 = vunpack.c.h.b16 %v873
        %v2300 = vunpack.c.l.b16 %v874
        %v2301 = vunpack.c.h.b16 %v874
        %v2302 = vunpack.c.l.b16 %v875
        %v2303 = vunpack.c.h.b16 %v875
        %v2304 = vunpack.c.l.b16 %v876
        %v2305 = vunpack.c.h.b16 %v876
        %v2306 = vunpack.c.l.b16 %v877
        %v2307 = vunpack.c.h.b16 %v877
        %v2308 = vpack.c.b16 %v1800, %v1796
        %v2309 = vpack.c.b16 %v1801, %v1797
        %v2310 = vpack.c.b16 %v1802, %v1798
        %v2311 = vpack.c.b16 %v1803, %v1799
        %v2312 = vpack.c.b16 %v1808, %v1804
        %v2313 = vpack.c.b16 %v1809, %v1805
        %v2314 = vpack.c.b16 %v1810, %v1806
        %v2315 = vpack.c.b16 %v1811, %v1807
        %v2316 = vpack.c.b16 %v1816, %v1812
        %v2317 = vpack.c.b16 %v1817, %v1813
        %v2318 = vpack.c.b16 %v1818, %v1814
        %v2319 = vpack.c.b16 %v1819, %v1815
        %v2320 = vpack.c.b16 %v1824, %v1820
        %v2321 = vpack.c.b16 %v1825, %v1821
        %v2322 = vpack.c.b16 %v1826, %v1822
        %v2323 = vpack.c.b16 %v1827, %v1823
        %v2324 = vpack.c.b16 %v1832, %v1828
        %v2325 = vpack.c.b16 %v1833, %v1829
        %v2326 = vpack.c.b16 %v1834, %v1830
        %v2327 = vpack.c.b16 %v1835, %v1831
        %v2328 = vpack.c.b16 %v1840, %v1836
        %v2329 = vpack.c.b16 %v1841, %v1837
        %v2330 = vpack.c.b16 %v1842, %v1838
        %v2331 = vpack.c.b16 %v1843, %v1839
        %v2332 = vpack.c.b16 %v1848, %v1844
        %v2333 = vpack.c.b16 %v1849, %v1845
        %v2334 = vpack.c.b16 %v1850, %v1846
        %v2335 = vpack.c.b16 %v1851, %v1847
        %v2336 = vpack.c.b16 %v1856, %v1852
        %v2337 = vpack.c.b16 %v1857, %v1853
        %v2338 = vpack.c.b16 %v1858, %v1854
        %v2339 = vpack.c.b16 %v1859, %v1855
        %v2340 = vpack.c.b16 %v1864, %v1860
        %v2341 = vpack.c.b16 %v1865, %v1861
        %v2342 = vpack.c.b16 %v1866, %v1862
        %v2343 = vpack.c.b16 %v1867, %v1863
        %v2344 = vpack.c.b16 %v1872, %v1868
        %v2345 = vpack.c.b16 %v1873, %v1869
        %v2346 = vpack.c.b16 %v1874, %v1870
        %v2347 = vpack.c.b16 %v1875, %v1871
        %v2348 = vpack.c.b16 %v1880, %v1876
        %v2349 = vpack.c.b16 %v1881, %v1877
        %v2350 = vpack.c.b16 %v1882, %v1878
        %v2351 = vpack.c.b16 %v1883, %v1879
        %v2352 = vpack.c.b16 %v1888, %v1884
        %v2353 = vpack.c.b16 %v1889, %v1885
        %v2354 = vpack.c.b16 %v1890, %v1886
        %v2355 = vpack.c.b16 %v1891, %v1887
        %v2356 = vpack.c.b16 %v1896, %v1892
        %v2357 = vpack.c.b16 %v1897, %v1893
        %v2358 = vpack.c.b16 %v1898, %v1894
        %v2359 = vpack.c.b16 %v1899, %v1895
        %v2360 = vpack.c.b16 %v1904, %v1900
        %v2361 = vpack.c.b16 %v1905, %v1901
        %v2362 = vpack.c.b16 %v1906, %v1902
        %v2363 = vpack.c.b16 %v1907, %v1903
        %v2364 = vpack.c.b16 %v1912, %v1908
        %v2365 = vpack.c.b16 %v1913, %v1909
        %v2366 = vpack.c.b16 %v1914, %v1910
        %v2367 = vpack.c.b16 %v1915, %v1911
        %v2368 = vpack.c.b16 %v1920, %v1916
        %v2369 = vpack.c.b16 %v1921, %v1917
        %v2370 = vpack.c.b16 %v1922, %v1918
        %v2371 = vpack.c.b16 %v1923, %v1919
        %v2372 = vpack.c.b16 %v1928, %v1924
        %v2373 = vpack.c.b16 %v1929, %v1925
        %v2374 = vpack.c.b16 %v1930, %v1926
        %v2375 = vpack.c.b16 %v1931, %v1927
        %v2376 = vpack.c.b16 %v1936, %v1932
        %v2377 = vpack.c.b16 %v1937, %v1933
        %v2378 = vpack.c.b16 %v1938, %v1934
        %v2379 = vpack.c.b16 %v1939, %v1935
        %v2380 = vpack.c.b16 %v1944, %v1940
        %v2381 = vpack.c.b16 %v1945, %v1941
        %v2382 = vpack.c.b16 %v1946, %v1942
        %v2383 = vpack.c.b16 %v1947, %v1943
        %v2384 = vpack.c.b16 %v1952, %v1948
        %v2385 = vpack.c.b16 %v1953, %v1949
        %v2386 = vpack.c.b16 %v1954, %v1950
        %v2387 = vpack.c.b16 %v1955, %v1951
        %v2388 = vpack.c.b16 %v1960, %v1956
        %v2389 = vpack.c.b16 %v1961, %v1957
        %v2390 = vpack.c.b16 %v1962, %v1958
        %v2391 = vpack.c.b16 %v1963, %v1959
        %v2392 = vpack.c.b16 %v1968, %v1964
        %v2393 = vpack.c.b16 %v1969, %v1965
        %v2394 = vpack.c.b16 %v1970, %v1966
        %v2395 = vpack.c.b16 %v1971, %v1967
        %v2396 = vpack.c.b16 %v1976, %v1972
        %v2397 = vpack.c.b16 %v1977, %v1973
        %v2398 = vpack.c.b16 %v1978, %v1974
        %v2399 = vpack.c.b16 %v1979, %v1975
        %v2400 = vpack.c.b16 %v1984, %v1980
        %v2401 = vpack.c.b16 %v1985, %v1981
        %v2402 = vpack.c.b16 %v1986, %v1982
        %v2403 = vpack.c.b16 %v1987, %v1983
        %v2404 = vpack.c.b16 %v1992, %v1988
        %v2405 = vpack.c.b16 %v1993, %v1989
        %v2406 = vpack.c.b16 %v1994, %v1990
        %v2407 = vpack.c.b16 %v1995, %v1991
        %v2408 = vpack.c.b16 %v2000, %v1996
        %v2409 = vpack.c.b16 %v2001, %v1997
        %v2410 = vpack.c.b16 %v2002, %v1998
        %v2411 = vpack.c.b16 %v2003, %v1999
        %v2412 = vpack.c.b16 %v2008, %v2004
        %v2413 = vpack.c.b16 %v2009, %v2005
        %v2414 = vpack.c.b16 %v2010, %v2006
        %v2415 = vpack.c.b16 %v2011, %v2007
        %v2416 = vpack.c.b16 %v2016, %v2012
        %v2417 = vpack.c.b16 %v2017, %v2013
        %v2418 = vpack.c.b16 %v2018, %v2014
        %v2419 = vpack.c.b16 %v2019, %v2015
        %v2420 = vpack.c.b16 %v2024, %v2020
        %v2421 = vpack.c.b16 %v2025, %v2021
        %v2422 = vpack.c.b16 %v2026, %v2022
        %v2423 = vpack.c.b16 %v2027, %v2023
        %v2424 = vpack.c.b16 %v2032, %v2028
        %v2425 = vpack.c.b16 %v2033, %v2029
        %v2426 = vpack.c.b16 %v2034, %v2030
        %v2427 = vpack.c.b16 %v2035, %v2031
        %v2428 = vpack.c.b16 %v2040, %v2036
        %v2429 = vpack.c.b16 %v2041, %v2037
        %v2430 = vpack.c.b16 %v2042, %v2038
        %v2431 = vpack.c.b16 %v2043, %v2039
        %v2432 = vpack.c.b16 %v2048, %v2044
        %v2433 = vpack.c.b16 %v2049, %v2045
        %v2434 = vpack.c.b16 %v2050, %v2046
        %v2435 = vpack.c.b16 %v2051, %v2047
        %v2436 = vpack.c.b16 %v2056, %v2052
        %v2437 = vpack.c.b16 %v2057, %v2053
        %v2438 = vpack.c.b16 %v2058, %v2054
        %v2439 = vpack.c.b16 %v2059, %v2055
        %v2440 = vpack.c.b16 %v2064, %v2060
        %v2441 = vpack.c.b16 %v2065, %v2061
        %v2442 = vpack.c.b16 %v2066, %v2062
        %v2443 = vpack.c.b16 %v2067, %v2063
        %v2444 = vpack.c.b16 %v2072, %v2068
        %v2445 = vpack.c.b16 %v2073, %v2069
        %v2446 = vpack.c.b16 %v2074, %v2070
        %v2447 = vpack.c.b16 %v2075, %v2071
        %v2448 = vpack.c.b16 %v2080, %v2076
        %v2449 = vpack.c.b16 %v2081, %v2077
        %v2450 = vpack.c.b16 %v2082, %v2078
        %v2451 = vpack.c.b16 %v2083, %v2079
        %v2452 = vpack.c.b16 %v2088, %v2084
        %v2453 = vpack.c.b16 %v2089, %v2085
        %v2454 = vpack.c.b16 %v2090, %v2086
        %v2455 = vpack.c.b16 %v2091, %v2087
        %v2456 = vpack.c.b16 %v2096, %v2092
        %v2457 = vpack.c.b16 %v2097, %v2093
        %v2458 = vpack.c.b16 %v2098, %v2094
        %v2459 = vpack.c.b16 %v2099, %v2095
        %v2460 = vpack.c.b16 %v2104, %v2100
        %v2461 = vpack.c.b16 %v2105, %v2101
        %v2462 = vpack.c.b16 %v2106, %v2102
        %v2463 = vpack.c.b16 %v2107, %v2103
        %v2464 = vpack.c.b16 %v2112, %v2108
        %v2465 = vpack.c.b16 %v2113, %v2109
        %v2466 = vpack.c.b16 %v2114, %v2110
        %v2467 = vpack.c.b16 %v2115, %v2111
        %v2468 = vpack.c.b16 %v2120, %v2116
        %v2469 = vpack.c.b16 %v2121, %v2117
        %v2470 = vpack.c.b16 %v2122, %v2118
        %v2471 = vpack.c.b16 %v2123, %v2119
        %v2472 = vpack.c.b16 %v2128, %v2124
        %v2473 = vpack.c.b16 %v2129, %v2125
        %v2474 = vpack.c.b16 %v2130, %v2126
        %v2475 = vpack.c.b16 %v2131, %v2127
        %v2476 = vpack.c.b16 %v2136, %v2132
        %v2477 = vpack.c.b16 %v2137, %v2133
        %v2478 = vpack.c.b16 %v2138, %v2134
        %v2479 = vpack.c.b16 %v2139, %v2135
        %v2480 = vpack.c.b16 %v2144, %v2140
        %v2481 = vpack.c.b16 %v2145, %v2141
        %v2482 = vpack.c.b16 %v2146, %v2142
        %v2483 = vpack.c.b16 %v2147, %v2143
        %v2484 = vpack.c.b16 %v2152, %v2148
        %v2485 = vpack.c.b16 %v2153, %v2149
        %v2486 = vpack.c.b16 %v2154, %v2150
        %v2487 = vpack.c.b16 %v2155, %v2151
        %v2488 = vpack.c.b16 %v2160, %v2156
        %v2489 = vpack.c.b16 %v2161, %v2157
        %v2490 = vpack.c.b16 %v2162, %v2158
        %v2491 = vpack.c.b16 %v2163, %v2159
        %v2492 = vpack.c.b16 %v2168, %v2164
        %v2493 = vpack.c.b16 %v2169, %v2165
        %v2494 = vpack.c.b16 %v2170, %v2166
        %v2495 = vpack.c.b16 %v2171, %v2167
        %v2496 = vpack.c.b16 %v2176, %v2172
        %v2497 = vpack.c.b16 %v2177, %v2173
        %v2498 = vpack.c.b16 %v2178, %v2174
        %v2499 = vpack.c.b16 %v2179, %v2175
        %v2500 = vpack.c.b16 %v2184, %v2180
        %v2501 = vpack.c.b16 %v2185, %v2181
        %v2502 = vpack.c.b16 %v2186, %v2182
        %v2503 = vpack.c.b16 %v2187, %v2183
        %v2504 = vpack.c.b16 %v2192, %v2188
        %v2505 = vpack.c.b16 %v2193, %v2189
        %v2506 = vpack.c.b16 %v2194, %v2190
        %v2507 = vpack.c.b16 %v2195, %v2191
        %v2508 = vpack.c.b16 %v2200, %v2196
        %v2509 = vpack.c.b16 %v2201, %v2197
        %v2510 = vpack.c.b16 %v2202, %v2198
        %v2511 = vpack.c.b16 %v2203, %v2199
        %v2512 = vpack.c.b16 %v2208, %v2204
        %v2513 = vpack.c.b16 %v2209, %v2205
        %v2514 = vpack.c.b16 %v2210, %v2206
        %v2515 = vpack.c.b16 %v2211, %v2207
        %v2516 = vpack.c.b16 %v2216, %v2212
        %v2517 = vpack.c.b16 %v2217, %v2213
        %v2518 = vpack.c.b16 %v2218, %v2214
        %v2519 = vpack.c.b16 %v2219, %v2215
        %v2520 = vpack.c.b16 %v2224, %v2220
        %v2521 = vpack.c.b16 %v2225, %v2221
        %v2522 = vpack.c.b16 %v2226, %v2222
        %v2523 = vpack.c.b16 %v2227, %v2223
        %v2524 = vpack.c.b16 %v2232, %v2228
        %v2525 = vpack.c.b16 %v2233, %v2229
        %v2526 = vpack.c.b16 %v2234, %v2230
        %v2527 = vpack.c.b16 %v2235, %v2231
        %v2528 = vpack.c.b16 %v2240, %v2236
        %v2529 = vpack.c.b16 %v2241, %v2237
        %v2530 = vpack.c.b16 %v2242, %v2238
        %v2531 = vpack.c.b16 %v2243, %v2239
        %v2532 = vpack.c.b16 %v2248, %v2244
        %v2533 = vpack.c.b16 %v2249, %v2245
        %v2534 = vpack.c.b16 %v2250, %v2246
        %v2535 = vpack.c.b16 %v2251, %v2247
        %v2536 = vpack.c.b16 %v2256, %v2252
        %v2537 = vpack.c.b16 %v2257, %v2253
        %v2538 = vpack.c.b16 %v2258, %v2254
        %v2539 = vpack.c.b16 %v2259, %v2255
        %v2540 = vpack.c.b16 %v2264, %v2260
        %v2541 = vpack.c.b16 %v2265, %v2261
        %v2542 = vpack.c.b16 %v2266, %v2262
        %v2543 = vpack.c.b16 %v2267, %v2263
        %v2544 = vpack.c.b16 %v2272, %v2268
        %v2545 = vpack.c.b16 %v2273, %v2269
        %v2546 = vpack.c.b16 %v2274, %v2270
        %v2547 = vpack.c.b16 %v2275, %v2271
        %v2548 = vpack.c.b16 %v2280, %v2276
        %v2549 = vpack.c.b16 %v2281, %v2277
        %v2550 = vpack.c.b16 %v2282, %v2278
        %v2551 = vpack.c.b16 %v2283, %v2279
        %v2552 = vpack.c.b16 %v2288, %v2284
        %v2553 = vpack.c.b16 %v2289, %v2285
        %v2554 = vpack.c.b16 %v2290, %v2286
        %v2555 = vpack.c.b16 %v2291, %v2287
        %v2556 = vpack.c.b16 %v2296, %v2292
        %v2557 = vpack.c.b16 %v2297, %v2293
        %v2558 = vpack.c.b16 %v2298, %v2294
        %v2559 = vpack.c.b16 %v2299, %v2295
        %v2560 = vpack.c.b16 %v2304, %v2300
        %v2561 = vpack.c.b16 %v2305, %v2301
        %v2562 = vpack.c.b16 %v2306, %v2302
        %v2563 = vpack.c.b16 %v2307, %v2303
        %2820 = vmatprep.subr.bf16.mxu0 %v2309
        %2821 = vmatpush1.bf16.msra.mxu0 %v2308
        %2822 = vmatprep.subr.bf16.mxu0 %v2313
        %2823 = vmatpush1.bf16.msra.mxu0 %v2312
        %2824 = vmatprep.subr.bf16.mxu0 %v2317
        %2825 = vmatpush1.bf16.msra.mxu0 %v2316
        %2826 = vmatprep.subr.bf16.mxu0 %v2321
        %2827 = vmatpush1.bf16.msra.mxu0 %v2320
        %2828 = vmatprep.subr.bf16.mxu0 %v2325
        %2829 = vmatpush1.bf16.msra.mxu0 %v2324
        %2830 = vmatprep.subr.bf16.mxu0 %v2329
        %2831 = vmatpush1.bf16.msra.mxu0 %v2328
        %2832 = vmatprep.subr.bf16.mxu0 %v2333
        %2833 = vmatpush1.bf16.msra.mxu0 %v2332
        %2834 = vmatprep.subr.bf16.mxu0 %v2337
        %2835 = vmatpush1.bf16.msra.mxu0 %v2336
        %2836 = vmatprep.subr.bf16.mxu0 %v2341
        %2837 = vmatpush1.bf16.msra.mxu0 %v2340
        %2838 = vmatprep.subr.bf16.mxu0 %v2345
        %2839 = vmatpush1.bf16.msra.mxu0 %v2344
        %2840 = vmatprep.subr.bf16.mxu0 %v2349
        %2841 = vmatpush1.bf16.msra.mxu0 %v2348
        %2842 = vmatprep.subr.bf16.mxu0 %v2353
        %2843 = vmatpush1.bf16.msra.mxu0 %v2352
        %2844 = vmatprep.subr.bf16.mxu0 %v2357
        %2845 = vmatpush1.bf16.msra.mxu0 %v2356
        %2846 = vmatprep.subr.bf16.mxu0 %v2361
        %2847 = vmatpush1.bf16.msra.mxu0 %v2360
        %2848 = vmatprep.subr.bf16.mxu0 %v2365
        %2849 = vmatpush1.bf16.msra.mxu0 %v2364
        %2850 = vmatprep.subr.bf16.mxu0 %v2369
        %2851 = vmatpush1.bf16.msra.mxu0 %v2368
        %2852 = vmatprep.mubr.bf16.mxu0 %v1285
        %2853 = vmatmul.mubr.bf16.gmra.mrb[0].mxu0 %v1284
        %v2854 = vpop.f32.mrb[0].mxu0
        %v2855 = vadd.f32 %v883, %v2854
        %v2856 = vpop.f32.mrb[0].mxu0
        %v2857 = vadd.f32 %v887, %v2856
        %v2858 = vpop.f32.mrb[0].mxu0
        %v2859 = vadd.f32 %v883, %v2858
        %v2860 = vpop.f32.mrb[0].mxu0
        %v2861 = vadd.f32 %v887, %v2860
        %2862 = vmatprep.mubr.bf16.mxu0 %v1293
        %2863 = vmatmul.mubr.bf16.gmra.mrb[0].mxu0 %v1292
        %v2864 = vpop.f32.mrb[0].mxu0
        %v2865 = vadd.f32 %v883, %v2864
        %v2866 = vpop.f32.mrb[0].mxu0
        %v2867 = vadd.f32 %v887, %v2866
        %v2868 = vpop.f32.mrb[0].mxu0
        %v2869 = vadd.f32 %v883, %v2868
        %v2870 = vpop.f32.mrb[0].mxu0
        %v2871 = vadd.f32 %v887, %v2870
        %2872 = vmatprep.mubr.bf16.mxu0 %v1301
        %2873 = vmatmul.mubr.bf16.gmra.mrb[0].mxu0 %v1300
        %v2874 = vpop.f32.mrb[0].mxu0
        %v2875 = vadd.f32 %v883, %v2874
        %v2876 = vpop.f32.mrb[0].mxu0
        %v2877 = vadd.f32 %v887, %v2876
        %v2878 = vpop.f32.mrb[0].mxu0
        %v2879 = vadd.f32 %v883, %v2878
        %v2880 = vpop.f32.mrb[0].mxu0
        %v2881 = vadd.f32 %v887, %v2880
        %2882 = vmatprep.mubr.bf16.mxu0 %v1309
        %2883 = vmatmul.mubr.bf16.gmra.mrb[0].mxu0 %v1308
        %v2884 = vpop.f32.mrb[0].mxu0
        %v2885 = vadd.f32 %v883, %v2884
        %v2886 = vpop.f32.mrb[0].mxu0
        %v2887 = vadd.f32 %v887, %v2886
        %v2888 = vpop.f32.mrb[0].mxu0
        %v2889 = vadd.f32 %v883, %v2888
        %v2890 = vpop.f32.mrb[0].mxu0
        %v2891 = vadd.f32 %v887, %v2890
        %2892 = vmatprep.mubr.bf16.mxu0 %v1317
        %2893 = vmatmul.mubr.bf16.gmra.mrb[0].mxu0 %v1316
        %v2894 = vpop.f32.mrb[0].mxu0
        %v2895 = vadd.f32 %v883, %v2894
        %v2896 = vpop.f32.mrb[0].mxu0
        %v2897 = vadd.f32 %v887, %v2896
        %v2898 = vpop.f32.mrb[0].mxu0
        %v2899 = vadd.f32 %v883, %v2898
        %v2900 = vpop.f32.mrb[0].mxu0
        %v2901 = vadd.f32 %v887, %v2900
        %2902 = vmatprep.mubr.bf16.mxu0 %v1325
        %2903 = vmatmul.mubr.bf16.gmra.mrb[0].mxu0 %v1324
        %v2904 = vpop.f32.mrb[0].mxu0
        %v2905 = vadd.f32 %v883, %v2904
        %v2906 = vpop.f32.mrb[0].mxu0
        %v2907 = vadd.f32 %v887, %v2906
        %v2908 = vpop.f32.mrb[0].mxu0
        %v2909 = vadd.f32 %v883, %v2908
        %v2910 = vpop.f32.mrb[0].mxu0
        %v2911 = vadd.f32 %v887, %v2910
        %2912 = vmatprep.mubr.bf16.mxu0 %v1333
        %2913 = vmatmul.mubr.bf16.gmra.mrb[0].mxu0 %v1332
        %v2914 = vpop.f32.mrb[0].mxu0
        %v2915 = vadd.f32 %v883, %v2914
        %v2916 = vpop.f32.mrb[0].mxu0
        %v2917 = vadd.f32 %v887, %v2916
        %v2918 = vpop.f32.mrb[0].mxu0
        %v2919 = vadd.f32 %v883, %v2918
        %v2920 = vpop.f32.mrb[0].mxu0
        %v2921 = vadd.f32 %v887, %v2920
        %2922 = vmatprep.mubr.bf16.mxu0 %v1341
        %2923 = vmatmul.mubr.bf16.gmra.mrb[0].mxu0 %v1340
        %v2924 = vpop.f32.mrb[0].mxu0
        %v2925 = vadd.f32 %v883, %v2924
        %v2926 = vpop.f32.mrb[0].mxu0
        %v2927 = vadd.f32 %v887, %v2926
        %v2928 = vpop.f32.mrb[0].mxu0
        %v2929 = vadd.f32 %v883, %v2928
        %v2930 = vpop.f32.mrb[0].mxu0
        %v2931 = vadd.f32 %v887, %v2930
        %2932 = vmatprep.mubr.bf16.mxu0 %v1349
        %2933 = vmatmul.mubr.bf16.gmra.mrb[0].mxu0 %v1348
        %v2934 = vpop.f32.mrb[0].mxu0
        %v2935 = vadd.f32 %v883, %v2934
        %v2936 = vpop.f32.mrb[0].mxu0
        %v2937 = vadd.f32 %v887, %v2936
        %v2938 = vpop.f32.mrb[0].mxu0
        %v2939 = vadd.f32 %v883, %v2938
        %v2940 = vpop.f32.mrb[0].mxu0
        %v2941 = vadd.f32 %v887, %v2940
        %2942 = vmatprep.mubr.bf16.mxu0 %v1357
        %2943 = vmatmul.mubr.bf16.gmra.mrb[0].mxu0 %v1356
        %v2944 = vpop.f32.mrb[0].mxu0
        %v2945 = vadd.f32 %v883, %v2944
        %v2946 = vpop.f32.mrb[0].mxu0
        %v2947 = vadd.f32 %v887, %v2946
        %v2948 = vpop.f32.mrb[0].mxu0
        %v2949 = vadd.f32 %v883, %v2948
        %v2950 = vpop.f32.mrb[0].mxu0
        %v2951 = vadd.f32 %v887, %v2950
        %2952 = vmatprep.mubr.bf16.mxu0 %v1365
        %2953 = vmatmul.mubr.bf16.gmra.mrb[0].mxu0 %v1364
        %v2954 = vpop.f32.mrb[0].mxu0
        %v2955 = vadd.f32 %v883, %v2954
        %v2956 = vpop.f32.mrb[0].mxu0
        %v2957 = vadd.f32 %v887, %v2956
        %v2958 = vpop.f32.mrb[0].mxu0
        %v2959 = vadd.f32 %v883, %v2958
        %v2960 = vpop.f32.mrb[0].mxu0
        %v2961 = vadd.f32 %v887, %v2960
        %2962 = vmatprep.mubr.bf16.mxu0 %v1373
        %2963 = vmatmul.mubr.bf16.gmra.mrb[0].mxu0 %v1372
        %v2964 = vpop.f32.mrb[0].mxu0
        %v2965 = vadd.f32 %v883, %v2964
        %v2966 = vpop.f32.mrb[0].mxu0
        %v2967 = vadd.f32 %v887, %v2966
        %v2968 = vpop.f32.mrb[0].mxu0
        %v2969 = vadd.f32 %v883, %v2968
        %v2970 = vpop.f32.mrb[0].mxu0
        %v2971 = vadd.f32 %v887, %v2970
        %2972 = vmatprep.mubr.bf16.mxu0 %v1381
        %2973 = vmatmul.mubr.bf16.gmra.mrb[0].mxu0 %v1380
        %v2974 = vpop.f32.mrb[0].mxu0
        %v2975 = vadd.f32 %v883, %v2974
        %v2976 = vpop.f32.mrb[0].mxu0
        %v2977 = vadd.f32 %v887, %v2976
        %v2978 = vpop.f32.mrb[0].mxu0
        %v2979 = vadd.f32 %v883, %v2978
        %v2980 = vpop.f32.mrb[0].mxu0
        %v2981 = vadd.f32 %v887, %v2980
        %2982 = vmatprep.mubr.bf16.mxu0 %v1389
        %2983 = vmatmul.mubr.bf16.gmra.mrb[0].mxu0 %v1388
        %v2984 = vpop.f32.mrb[0].mxu0
        %v2985 = vadd.f32 %v883, %v2984
        %v2986 = vpop.f32.mrb[0].mxu0
        %v2987 = vadd.f32 %v887, %v2986
        %v2988 = vpop.f32.mrb[0].mxu0
        %v2989 = vadd.f32 %v883, %v2988
        %v2990 = vpop.f32.mrb[0].mxu0
        %v2991 = vadd.f32 %v887, %v2990
        %2992 = vmatprep.mubr.bf16.mxu0 %v1397
        %2993 = vmatmul.mubr.bf16.gmra.mrb[0].mxu0 %v1396
        %v2994 = vpop.f32.mrb[0].mxu0
        %v2995 = vadd.f32 %v883, %v2994
        %v2996 = vpop.f32.mrb[0].mxu0
        %v2997 = vadd.f32 %v887, %v2996
        %v2998 = vpop.f32.mrb[0].mxu0
        %v2999 = vadd.f32 %v883, %v2998
        %v3000 = vpop.f32.mrb[0].mxu0
        %v3001 = vadd.f32 %v887, %v3000
        %3002 = vmatprep.mubr.bf16.mxu0 %v1405
        %3003 = vmatmul.mubr.bf16.gmra.mrb[0].mxu0 %v1404
        %v3004 = vpop.f32.mrb[0].mxu0
        %v3005 = vadd.f32 %v883, %v3004
        %v3006 = vpop.f32.mrb[0].mxu0
        %v3007 = vadd.f32 %v887, %v3006
        %v3008 = vpop.f32.mrb[0].mxu0
        %v3009 = vadd.f32 %v883, %v3008
        %v3010 = vpop.f32.mrb[0].mxu0
        %v3011 = vadd.f32 %v887, %v3010
        %3012 = vdwg.mxu0
        %3013 = vmatprep.subr.bf16.mxu0 %v2373
        %3014 = vmatpush1.bf16.msra.mxu0 %v2372
        %3015 = vmatprep.subr.bf16.mxu0 %v2377
        %3016 = vmatpush1.bf16.msra.mxu0 %v2376
        %3017 = vmatprep.subr.bf16.mxu0 %v2381
        %3018 = vmatpush1.bf16.msra.mxu0 %v2380
        %3019 = vmatprep.subr.bf16.mxu0 %v2385
        %3020 = vmatpush1.bf16.msra.mxu0 %v2384
        %3021 = vmatprep.subr.bf16.mxu0 %v2389
        %3022 = vmatpush1.bf16.msra.mxu0 %v2388
        %3023 = vmatprep.subr.bf16.mxu0 %v2393
        %3024 = vmatpush1.bf16.msra.mxu0 %v2392
        %3025 = vmatprep.subr.bf16.mxu0 %v2397
        %3026 = vmatpush1.bf16.msra.mxu0 %v2396
        %3027 = vmatprep.subr.bf16.mxu0 %v2401
        %3028 = vmatpush1.bf16.msra.mxu0 %v2400
        %3029 = vmatprep.subr.bf16.mxu0 %v2405
        %3030 = vmatpush1.bf16.msra.mxu0 %v2404
        %3031 = vmatprep.subr.bf16.mxu0 %v2409
        %3032 = vmatpush1.bf16.msra.mxu0 %v2408
        %3033 = vmatprep.subr.bf16.mxu0 %v2413
        %3034 = vmatpush1.bf16.msra.mxu0 %v2412
        %3035 = vmatprep.subr.bf16.mxu0 %v2417
        %3036 = vmatpush1.bf16.msra.mxu0 %v2416
        %3037 = vmatprep.subr.bf16.mxu0 %v2421
        %3038 = vmatpush1.bf16.msra.mxu0 %v2420
        %3039 = vmatprep.subr.bf16.mxu0 %v2425
        %3040 = vmatpush1.bf16.msra.mxu0 %v2424
        %3041 = vmatprep.subr.bf16.mxu0 %v2429
        %3042 = vmatpush1.bf16.msra.mxu0 %v2428
        %3043 = vmatprep.subr.bf16.mxu0 %v2433
        %3044 = vmatpush1.bf16.msra.mxu0 %v2432
        %3045 = vmatprep.mubr.bf16.mxu0 %v1287
        %3046 = vmatmul.mubr.bf16.gmra.mrb[0].mxu0 %v1286
        %v3047 = vpop.f32.mrb[0].mxu0
        %v3048 = vadd.f32 %v2855, %v3047
        %v3049 = vpop.f32.mrb[0].mxu0
        %v3050 = vadd.f32 %v2857, %v3049
        %v3051 = vpop.f32.mrb[0].mxu0
        %v3052 = vadd.f32 %v2859, %v3051
        %v3053 = vpop.f32.mrb[0].mxu0
        %v3054 = vadd.f32 %v2861, %v3053
        %3055 = vmatprep.mubr.bf16.mxu0 %v1295
        %3056 = vmatmul.mubr.bf16.gmra.mrb[0].mxu0 %v1294
        %v3057 = vpop.f32.mrb[0].mxu0
        %v3058 = vadd.f32 %v2865, %v3057
        %v3059 = vpop.f32.mrb[0].mxu0
        %v3060 = vadd.f32 %v2867, %v3059
        %v3061 = vpop.f32.mrb[0].mxu0
        %v3062 = vadd.f32 %v2869, %v3061
        %v3063 = vpop.f32.mrb[0].mxu0
        %v3064 = vadd.f32 %v2871, %v3063
        %3065 = vmatprep.mubr.bf16.mxu0 %v1303
        %3066 = vmatmul.mubr.bf16.gmra.mrb[0].mxu0 %v1302
        %v3067 = vpop.f32.mrb[0].mxu0
        %v3068 = vadd.f32 %v2875, %v3067
        %v3069 = vpop.f32.mrb[0].mxu0
        %v3070 = vadd.f32 %v2877, %v3069
        %v3071 = vpop.f32.mrb[0].mxu0
        %v3072 = vadd.f32 %v2879, %v3071
        %v3073 = vpop.f32.mrb[0].mxu0
        %v3074 = vadd.f32 %v2881, %v3073
        %3075 = vmatprep.mubr.bf16.mxu0 %v1311
        %3076 = vmatmul.mubr.bf16.gmra.mrb[0].mxu0 %v1310
        %v3077 = vpop.f32.mrb[0].mxu0
        %v3078 = vadd.f32 %v2885, %v3077
        %v3079 = vpop.f32.mrb[0].mxu0
        %v3080 = vadd.f32 %v2887, %v3079
        %v3081 = vpop.f32.mrb[0].mxu0
        %v3082 = vadd.f32 %v2889, %v3081
        %v3083 = vpop.f32.mrb[0].mxu0
        %v3084 = vadd.f32 %v2891, %v3083
        %3085 = vmatprep.mubr.bf16.mxu0 %v1319
        %3086 = vmatmul.mubr.bf16.gmra.mrb[0].mxu0 %v1318
        %v3087 = vpop.f32.mrb[0].mxu0
        %v3088 = vadd.f32 %v2895, %v3087
        %v3089 = vpop.f32.mrb[0].mxu0
        %v3090 = vadd.f32 %v2897, %v3089
        %v3091 = vpop.f32.mrb[0].mxu0
        %v3092 = vadd.f32 %v2899, %v3091
        %v3093 = vpop.f32.mrb[0].mxu0
        %v3094 = vadd.f32 %v2901, %v3093
        %3095 = vmatprep.mubr.bf16.mxu0 %v1327
        %3096 = vmatmul.mubr.bf16.gmra.mrb[0].mxu0 %v1326
        %v3097 = vpop.f32.mrb[0].mxu0
        %v3098 = vadd.f32 %v2905, %v3097
        %v3099 = vpop.f32.mrb[0].mxu0
        %v3100 = vadd.f32 %v2907, %v3099
        %v3101 = vpop.f32.mrb[0].mxu0
        %v3102 = vadd.f32 %v2909, %v3101
        %v3103 = vpop.f32.mrb[0].mxu0
        %v3104 = vadd.f32 %v2911, %v3103
        %3105 = vmatprep.mubr.bf16.mxu0 %v1335
        %3106 = vmatmul.mubr.bf16.gmra.mrb[0].mxu0 %v1334
        %v3107 = vpop.f32.mrb[0].mxu0
        %v3108 = vadd.f32 %v2915, %v3107
        %v3109 = vpop.f32.mrb[0].mxu0
        %v3110 = vadd.f32 %v2917, %v3109
        %v3111 = vpop.f32.mrb[0].mxu0
        %v3112 = vadd.f32 %v2919, %v3111
        %v3113 = vpop.f32.mrb[0].mxu0
        %v3114 = vadd.f32 %v2921, %v3113
        %3115 = vmatprep.mubr.bf16.mxu0 %v1343
        %3116 = vmatmul.mubr.bf16.gmra.mrb[0].mxu0 %v1342
        %v3117 = vpop.f32.mrb[0].mxu0
        %v3118 = vadd.f32 %v2925, %v3117
        %v3119 = vpop.f32.mrb[0].mxu0
        %v3120 = vadd.f32 %v2927, %v3119
        %v3121 = vpop.f32.mrb[0].mxu0
        %v3122 = vadd.f32 %v2929, %v3121
        %v3123 = vpop.f32.mrb[0].mxu0
        %v3124 = vadd.f32 %v2931, %v3123
        %3125 = vmatprep.mubr.bf16.mxu0 %v1351
        %3126 = vmatmul.mubr.bf16.gmra.mrb[0].mxu0 %v1350
        %v3127 = vpop.f32.mrb[0].mxu0
        %v3128 = vadd.f32 %v2935, %v3127
        %v3129 = vpop.f32.mrb[0].mxu0
        %v3130 = vadd.f32 %v2937, %v3129
        %v3131 = vpop.f32.mrb[0].mxu0
        %v3132 = vadd.f32 %v2939, %v3131
        %v3133 = vpop.f32.mrb[0].mxu0
        %v3134 = vadd.f32 %v2941, %v3133
        %3135 = vmatprep.mubr.bf16.mxu0 %v1359
        %3136 = vmatmul.mubr.bf16.gmra.mrb[0].mxu0 %v1358
        %v3137 = vpop.f32.mrb[0].mxu0
        %v3138 = vadd.f32 %v2945, %v3137
        %v3139 = vpop.f32.mrb[0].mxu0
        %v3140 = vadd.f32 %v2947, %v3139
        %v3141 = vpop.f32.mrb[0].mxu0
        %v3142 = vadd.f32 %v2949, %v3141
        %v3143 = vpop.f32.mrb[0].mxu0
        %v3144 = vadd.f32 %v2951, %v3143
        %3145 = vmatprep.mubr.bf16.mxu0 %v1367
        %3146 = vmatmul.mubr.bf16.gmra.mrb[0].mxu0 %v1366
        %v3147 = vpop.f32.mrb[0].mxu0
        %v3148 = vadd.f32 %v2955, %v3147
        %v3149 = vpop.f32.mrb[0].mxu0
        %v3150 = vadd.f32 %v2957, %v3149
        %v3151 = vpop.f32.mrb[0].mxu0
        %v3152 = vadd.f32 %v2959, %v3151
        %v3153 = vpop.f32.mrb[0].mxu0
        %v3154 = vadd.f32 %v2961, %v3153
        %3155 = vmatprep.mubr.bf16.mxu0 %v1375
        %3156 = vmatmul.mubr.bf16.gmra.mrb[0].mxu0 %v1374
        %v3157 = vpop.f32.mrb[0].mxu0
        %v3158 = vadd.f32 %v2965, %v3157
        %v3159 = vpop.f32.mrb[0].mxu0
        %v3160 = vadd.f32 %v2967, %v3159
        %v3161 = vpop.f32.mrb[0].mxu0
        %v3162 = vadd.f32 %v2969, %v3161
        %v3163 = vpop.f32.mrb[0].mxu0
        %v3164 = vadd.f32 %v2971, %v3163
        %3165 = vmatprep.mubr.bf16.mxu0 %v1383
        %3166 = vmatmul.mubr.bf16.gmra.mrb[0].mxu0 %v1382
        %v3167 = vpop.f32.mrb[0].mxu0
        %v3168 = vadd.f32 %v2975, %v3167
        %v3169 = vpop.f32.mrb[0].mxu0
        %v3170 = vadd.f32 %v2977, %v3169
        %v3171 = vpop.f32.mrb[0].mxu0
        %v3172 = vadd.f32 %v2979, %v3171
        %v3173 = vpop.f32.mrb[0].mxu0
        %v3174 = vadd.f32 %v2981, %v3173
        %3175 = vmatprep.mubr.bf16.mxu0 %v1391
        %3176 = vmatmul.mubr.bf16.gmra.mrb[0].mxu0 %v1390
        %v3177 = vpop.f32.mrb[0].mxu0
        %v3178 = vadd.f32 %v2985, %v3177
        %v3179 = vpop.f32.mrb[0].mxu0
        %v3180 = vadd.f32 %v2987, %v3179
        %v3181 = vpop.f32.mrb[0].mxu0
        %v3182 = vadd.f32 %v2989, %v3181
        %v3183 = vpop.f32.mrb[0].mxu0
        %v3184 = vadd.f32 %v2991, %v3183
        %3185 = vmatprep.mubr.bf16.mxu0 %v1399
        %3186 = vmatmul.mubr.bf16.gmra.mrb[0].mxu0 %v1398
        %v3187 = vpop.f32.mrb[0].mxu0
        %v3188 = vadd.f32 %v2995, %v3187
        %v3189 = vpop.f32.mrb[0].mxu0
        %v3190 = vadd.f32 %v2997, %v3189
        %v3191 = vpop.f32.mrb[0].mxu0
        %v3192 = vadd.f32 %v2999, %v3191
        %v3193 = vpop.f32.mrb[0].mxu0
        %v3194 = vadd.f32 %v3001, %v3193
        %3195 = vmatprep.mubr.bf16.mxu0 %v1407
        %3196 = vmatmul.mubr.bf16.gmra.mrb[0].mxu0 %v1406
        %v3197 = vpop.f32.mrb[0].mxu0
        %v3198 = vadd.f32 %v3005, %v3197
        %v3199 = vpop.f32.mrb[0].mxu0
        %v3200 = vadd.f32 %v3007, %v3199
        %v3201 = vpop.f32.mrb[0].mxu0
        %v3202 = vadd.f32 %v3009, %v3201
        %v3203 = vpop.f32.mrb[0].mxu0
        %v3204 = vadd.f32 %v3011, %v3203
        %3205 = vdwg.mxu0
        %3206 = vmatprep.subr.bf16.mxu0 %v2437
        %3207 = vmatpush1.bf16.msra.mxu0 %v2436
        %3208 = vmatprep.subr.bf16.mxu0 %v2441
        %3209 = vmatpush1.bf16.msra.mxu0 %v2440
        %3210 = vmatprep.subr.bf16.mxu0 %v2445
        %3211 = vmatpush1.bf16.msra.mxu0 %v2444
        %3212 = vmatprep.subr.bf16.mxu0 %v2449
        %3213 = vmatpush1.bf16.msra.mxu0 %v2448
        %3214 = vmatprep.subr.bf16.mxu0 %v2453
        %3215 = vmatpush1.bf16.msra.mxu0 %v2452
        %3216 = vmatprep.subr.bf16.mxu0 %v2457
        %3217 = vmatpush1.bf16.msra.mxu0 %v2456
        %3218 = vmatprep.subr.bf16.mxu0 %v2461
        %3219 = vmatpush1.bf16.msra.mxu0 %v2460
        %3220 = vmatprep.subr.bf16.mxu0 %v2465
        %3221 = vmatpush1.bf16.msra.mxu0 %v2464
        %3222 = vmatprep.subr.bf16.mxu0 %v2469
        %3223 = vmatpush1.bf16.msra.mxu0 %v2468
        %3224 = vmatprep.subr.bf16.mxu0 %v2473
        %3225 = vmatpush1.bf16.msra.mxu0 %v2472
        %3226 = vmatprep.subr.bf16.mxu0 %v2477
        %3227 = vmatpush1.bf16.msra.mxu0 %v2476
        %3228 = vmatprep.subr.bf16.mxu0 %v2481
        %3229 = vmatpush1.bf16.msra.mxu0 %v2480
        %3230 = vmatprep.subr.bf16.mxu0 %v2485
        %3231 = vmatpush1.bf16.msra.mxu0 %v2484
        %3232 = vmatprep.subr.bf16.mxu0 %v2489
        %3233 = vmatpush1.bf16.msra.mxu0 %v2488
        %3234 = vmatprep.subr.bf16.mxu0 %v2493
        %3235 = vmatpush1.bf16.msra.mxu0 %v2492
        %3236 = vmatprep.subr.bf16.mxu0 %v2497
        %3237 = vmatpush1.bf16.msra.mxu0 %v2496
        %3238 = vmatprep.mubr.bf16.mxu0 %v1289
        %3239 = vmatmul.mubr.bf16.gmra.mrb[0].mxu0 %v1288
        %v3240 = vpop.f32.mrb[0].mxu0
        %v3241 = vadd.f32 %v3048, %v3240
        %v3242 = vpop.f32.mrb[0].mxu0
        %v3243 = vadd.f32 %v3050, %v3242
        %v3244 = vpop.f32.mrb[0].mxu0
        %v3245 = vadd.f32 %v3052, %v3244
        %v3246 = vpop.f32.mrb[0].mxu0
        %v3247 = vadd.f32 %v3054, %v3246
        %3248 = vmatprep.mubr.bf16.mxu0 %v1297
        %3249 = vmatmul.mubr.bf16.gmra.mrb[0].mxu0 %v1296
        %v3250 = vpop.f32.mrb[0].mxu0
        %v3251 = vadd.f32 %v3058, %v3250
        %v3252 = vpop.f32.mrb[0].mxu0
        %v3253 = vadd.f32 %v3060, %v3252
        %v3254 = vpop.f32.mrb[0].mxu0
        %v3255 = vadd.f32 %v3062, %v3254
        %v3256 = vpop.f32.mrb[0].mxu0
        %v3257 = vadd.f32 %v3064, %v3256
        %3258 = vmatprep.mubr.bf16.mxu0 %v1305
        %3259 = vmatmul.mubr.bf16.gmra.mrb[0].mxu0 %v1304
        %v3260 = vpop.f32.mrb[0].mxu0
        %v3261 = vadd.f32 %v3068, %v3260
        %v3262 = vpop.f32.mrb[0].mxu0
        %v3263 = vadd.f32 %v3070, %v3262
        %v3264 = vpop.f32.mrb[0].mxu0
        %v3265 = vadd.f32 %v3072, %v3264
        %v3266 = vpop.f32.mrb[0].mxu0
        %v3267 = vadd.f32 %v3074, %v3266
        %3268 = vmatprep.mubr.bf16.mxu0 %v1313
        %3269 = vmatmul.mubr.bf16.gmra.mrb[0].mxu0 %v1312
        %v3270 = vpop.f32.mrb[0].mxu0
        %v3271 = vadd.f32 %v3078, %v3270
        %v3272 = vpop.f32.mrb[0].mxu0
        %v3273 = vadd.f32 %v3080, %v3272
        %v3274 = vpop.f32.mrb[0].mxu0
        %v3275 = vadd.f32 %v3082, %v3274
        %v3276 = vpop.f32.mrb[0].mxu0
        %v3277 = vadd.f32 %v3084, %v3276
        %3278 = vmatprep.mubr.bf16.mxu0 %v1321
        %3279 = vmatmul.mubr.bf16.gmra.mrb[0].mxu0 %v1320
        %v3280 = vpop.f32.mrb[0].mxu0
        %v3281 = vadd.f32 %v3088, %v3280
        %v3282 = vpop.f32.mrb[0].mxu0
        %v3283 = vadd.f32 %v3090, %v3282
        %v3284 = vpop.f32.mrb[0].mxu0
        %v3285 = vadd.f32 %v3092, %v3284
        %v3286 = vpop.f32.mrb[0].mxu0
        %v3287 = vadd.f32 %v3094, %v3286
        %3288 = vmatprep.mubr.bf16.mxu0 %v1329
        %3289 = vmatmul.mubr.bf16.gmra.mrb[0].mxu0 %v1328
        %v3290 = vpop.f32.mrb[0].mxu0
        %v3291 = vadd.f32 %v3098, %v3290
        %v3292 = vpop.f32.mrb[0].mxu0
        %v3293 = vadd.f32 %v3100, %v3292
        %v3294 = vpop.f32.mrb[0].mxu0
        %v3295 = vadd.f32 %v3102, %v3294
        %v3296 = vpop.f32.mrb[0].mxu0
        %v3297 = vadd.f32 %v3104, %v3296
        %3298 = vmatprep.mubr.bf16.mxu0 %v1337
        %3299 = vmatmul.mubr.bf16.gmra.mrb[0].mxu0 %v1336
        %v3300 = vpop.f32.mrb[0].mxu0
        %v3301 = vadd.f32 %v3108, %v3300
        %v3302 = vpop.f32.mrb[0].mxu0
        %v3303 = vadd.f32 %v3110, %v3302
        %v3304 = vpop.f32.mrb[0].mxu0
        %v3305 = vadd.f32 %v3112, %v3304
        %v3306 = vpop.f32.mrb[0].mxu0
        %v3307 = vadd.f32 %v3114, %v3306
        %3308 = vmatprep.mubr.bf16.mxu0 %v1345
        %3309 = vmatmul.mubr.bf16.gmra.mrb[0].mxu0 %v1344
        %v3310 = vpop.f32.mrb[0].mxu0
        %v3311 = vadd.f32 %v3118, %v3310
        %v3312 = vpop.f32.mrb[0].mxu0
        %v3313 = vadd.f32 %v3120, %v3312
        %v3314 = vpop.f32.mrb[0].mxu0
        %v3315 = vadd.f32 %v3122, %v3314
        %v3316 = vpop.f32.mrb[0].mxu0
        %v3317 = vadd.f32 %v3124, %v3316
        %3318 = vmatprep.mubr.bf16.mxu0 %v1353
        %3319 = vmatmul.mubr.bf16.gmra.mrb[0].mxu0 %v1352
        %v3320 = vpop.f32.mrb[0].mxu0
        %v3321 = vadd.f32 %v3128, %v3320
        %v3322 = vpop.f32.mrb[0].mxu0
        %v3323 = vadd.f32 %v3130, %v3322
        %v3324 = vpop.f32.mrb[0].mxu0
        %v3325 = vadd.f32 %v3132, %v3324
        %v3326 = vpop.f32.mrb[0].mxu0
        %v3327 = vadd.f32 %v3134, %v3326
        %3328 = vmatprep.mubr.bf16.mxu0 %v1361
        %3329 = vmatmul.mubr.bf16.gmra.mrb[0].mxu0 %v1360
        %v3330 = vpop.f32.mrb[0].mxu0
        %v3331 = vadd.f32 %v3138, %v3330
        %v3332 = vpop.f32.mrb[0].mxu0
        %v3333 = vadd.f32 %v3140, %v3332
        %v3334 = vpop.f32.mrb[0].mxu0
        %v3335 = vadd.f32 %v3142, %v3334
        %v3336 = vpop.f32.mrb[0].mxu0
        %v3337 = vadd.f32 %v3144, %v3336
        %3338 = vmatprep.mubr.bf16.mxu0 %v1369
        %3339 = vmatmul.mubr.bf16.gmra.mrb[0].mxu0 %v1368
        %v3340 = vpop.f32.mrb[0].mxu0
        %v3341 = vadd.f32 %v3148, %v3340
        %v3342 = vpop.f32.mrb[0].mxu0
        %v3343 = vadd.f32 %v3150, %v3342
        %v3344 = vpop.f32.mrb[0].mxu0
        %v3345 = vadd.f32 %v3152, %v3344
        %v3346 = vpop.f32.mrb[0].mxu0
        %v3347 = vadd.f32 %v3154, %v3346
        %3348 = vmatprep.mubr.bf16.mxu0 %v1377
        %3349 = vmatmul.mubr.bf16.gmra.mrb[0].mxu0 %v1376
        %v3350 = vpop.f32.mrb[0].mxu0
        %v3351 = vadd.f32 %v3158, %v3350
        %v3352 = vpop.f32.mrb[0].mxu0
        %v3353 = vadd.f32 %v3160, %v3352
        %v3354 = vpop.f32.mrb[0].mxu0
        %v3355 = vadd.f32 %v3162, %v3354
        %v3356 = vpop.f32.mrb[0].mxu0
        %v3357 = vadd.f32 %v3164, %v3356
        %3358 = vmatprep.mubr.bf16.mxu0 %v1385
        %3359 = vmatmul.mubr.bf16.gmra.mrb[0].mxu0 %v1384
        %v3360 = vpop.f32.mrb[0].mxu0
        %v3361 = vadd.f32 %v3168, %v3360
        %v3362 = vpop.f32.mrb[0].mxu0
        %v3363 = vadd.f32 %v3170, %v3362
        %v3364 = vpop.f32.mrb[0].mxu0
        %v3365 = vadd.f32 %v3172, %v3364
        %v3366 = vpop.f32.mrb[0].mxu0
        %v3367 = vadd.f32 %v3174, %v3366
        %3368 = vmatprep.mubr.bf16.mxu0 %v1393
        %3369 = vmatmul.mubr.bf16.gmra.mrb[0].mxu0 %v1392
        %v3370 = vpop.f32.mrb[0].mxu0
        %v3371 = vadd.f32 %v3178, %v3370
        %v3372 = vpop.f32.mrb[0].mxu0
        %v3373 = vadd.f32 %v3180, %v3372
        %v3374 = vpop.f32.mrb[0].mxu0
        %v3375 = vadd.f32 %v3182, %v3374
        %v3376 = vpop.f32.mrb[0].mxu0
        %v3377 = vadd.f32 %v3184, %v3376
        %3378 = vmatprep.mubr.bf16.mxu0 %v1401
        %3379 = vmatmul.mubr.bf16.gmra.mrb[0].mxu0 %v1400
        %v3380 = vpop.f32.mrb[0].mxu0
        %v3381 = vadd.f32 %v3188, %v3380
        %v3382 = vpop.f32.mrb[0].mxu0
        %v3383 = vadd.f32 %v3190, %v3382
        %v3384 = vpop.f32.mrb[0].mxu0
        %v3385 = vadd.f32 %v3192, %v3384
        %v3386 = vpop.f32.mrb[0].mxu0
        %v3387 = vadd.f32 %v3194, %v3386
        %3388 = vmatprep.mubr.bf16.mxu0 %v1409
        %3389 = vmatmul.mubr.bf16.gmra.mrb[0].mxu0 %v1408
        %v3390 = vpop.f32.mrb[0].mxu0
        %v3391 = vadd.f32 %v3198, %v3390
        %v3392 = vpop.f32.mrb[0].mxu0
        %v3393 = vadd.f32 %v3200, %v3392
        %v3394 = vpop.f32.mrb[0].mxu0
        %v3395 = vadd.f32 %v3202, %v3394
        %v3396 = vpop.f32.mrb[0].mxu0
        %v3397 = vadd.f32 %v3204, %v3396
        %3398 = vdwg.mxu0
        %3399 = vmatprep.subr.bf16.mxu0 %v2501
        %3400 = vmatpush1.bf16.msra.mxu0 %v2500
        %3401 = vmatprep.subr.bf16.mxu0 %v2505
        %3402 = vmatpush1.bf16.msra.mxu0 %v2504
        %3403 = vmatprep.subr.bf16.mxu0 %v2509
        %3404 = vmatpush1.bf16.msra.mxu0 %v2508
        %3405 = vmatprep.subr.bf16.mxu0 %v2513
        %3406 = vmatpush1.bf16.msra.mxu0 %v2512
        %3407 = vmatprep.subr.bf16.mxu0 %v2517
        %3408 = vmatpush1.bf16.msra.mxu0 %v2516
        %3409 = vmatprep.subr.bf16.mxu0 %v2521
        %3410 = vmatpush1.bf16.msra.mxu0 %v2520
        %3411 = vmatprep.subr.bf16.mxu0 %v2525
        %3412 = vmatpush1.bf16.msra.mxu0 %v2524
        %3413 = vmatprep.subr.bf16.mxu0 %v2529
        %3414 = vmatpush1.bf16.msra.mxu0 %v2528
        %3415 = vmatprep.subr.bf16.mxu0 %v2533
        %3416 = vmatpush1.bf16.msra.mxu0 %v2532
        %3417 = vmatprep.subr.bf16.mxu0 %v2537
        %3418 = vmatpush1.bf16.msra.mxu0 %v2536
        %3419 = vmatprep.subr.bf16.mxu0 %v2541
        %3420 = vmatpush1.bf16.msra.mxu0 %v2540
        %3421 = vmatprep.subr.bf16.mxu0 %v2545
        %3422 = vmatpush1.bf16.msra.mxu0 %v2544
        %3423 = vmatprep.subr.bf16.mxu0 %v2549
        %3424 = vmatpush1.bf16.msra.mxu0 %v2548
        %3425 = vmatprep.subr.bf16.mxu0 %v2553
        %3426 = vmatpush1.bf16.msra.mxu0 %v2552
        %3427 = vmatprep.subr.bf16.mxu0 %v2557
        %3428 = vmatpush1.bf16.msra.mxu0 %v2556
        %3429 = vmatprep.subr.bf16.mxu0 %v2561
        %3430 = vmatpush1.bf16.msra.mxu0 %v2560
        %3431 = vmatprep.mubr.bf16.mxu0 %v1291
        %3432 = vmatmul.mubr.bf16.gmra.mrb[0].mxu0 %v1290
        %v3433 = vpop.f32.mrb[0].mxu0
        %v3434 = vadd.f32 %v3241, %v3433
        %v3435 = vpop.f32.mrb[0].mxu0
        %v3436 = vadd.f32 %v3243, %v3435
        %v3437 = vpop.f32.mrb[0].mxu0
        %v3438 = vadd.f32 %v3245, %v3437
        %v3439 = vpop.f32.mrb[0].mxu0
        %v3440 = vadd.f32 %v3247, %v3439
        %3441 = vmatprep.mubr.bf16.mxu0 %v1299
        %3442 = vmatmul.mubr.bf16.gmra.mrb[0].mxu0 %v1298
        %v3443 = vpop.f32.mrb[0].mxu0
        %v3444 = vadd.f32 %v3251, %v3443
        %v3445 = vpop.f32.mrb[0].mxu0
        %v3446 = vadd.f32 %v3253, %v3445
        %v3447 = vpop.f32.mrb[0].mxu0
        %v3448 = vadd.f32 %v3255, %v3447
        %v3449 = vpop.f32.mrb[0].mxu0
        %v3450 = vadd.f32 %v3257, %v3449
        %3451 = vmatprep.mubr.bf16.mxu0 %v1307
        %3452 = vmatmul.mubr.bf16.gmra.mrb[0].mxu0 %v1306
        %v3453 = vpop.f32.mrb[0].mxu0
        %v3454 = vadd.f32 %v3261, %v3453
        %v3455 = vpop.f32.mrb[0].mxu0
        %v3456 = vadd.f32 %v3263, %v3455
        %v3457 = vpop.f32.mrb[0].mxu0
        %v3458 = vadd.f32 %v3265, %v3457
        %v3459 = vpop.f32.mrb[0].mxu0
        %v3460 = vadd.f32 %v3267, %v3459
        %3461 = vmatprep.mubr.bf16.mxu0 %v1315
        %3462 = vmatmul.mubr.bf16.gmra.mrb[0].mxu0 %v1314
        %v3463 = vpop.f32.mrb[0].mxu0
        %v3464 = vadd.f32 %v3271, %v3463
        %v3465 = vpop.f32.mrb[0].mxu0
        %v3466 = vadd.f32 %v3273, %v3465
        %v3467 = vpop.f32.mrb[0].mxu0
        %v3468 = vadd.f32 %v3275, %v3467
        %v3469 = vpop.f32.mrb[0].mxu0
        %v3470 = vadd.f32 %v3277, %v3469
        %3471 = vmatprep.mubr.bf16.mxu0 %v1323
        %3472 = vmatmul.mubr.bf16.gmra.mrb[0].mxu0 %v1322
        %v3473 = vpop.f32.mrb[0].mxu0
        %v3474 = vadd.f32 %v3281, %v3473
        %v3475 = vpop.f32.mrb[0].mxu0
        %v3476 = vadd.f32 %v3283, %v3475
        %v3477 = vpop.f32.mrb[0].mxu0
        %v3478 = vadd.f32 %v3285, %v3477
        %v3479 = vpop.f32.mrb[0].mxu0
        %v3480 = vadd.f32 %v3287, %v3479
        %3481 = vmatprep.mubr.bf16.mxu0 %v1331
        %3482 = vmatmul.mubr.bf16.gmra.mrb[0].mxu0 %v1330
        %v3483 = vpop.f32.mrb[0].mxu0
        %v3484 = vadd.f32 %v3291, %v3483
        %v3485 = vpop.f32.mrb[0].mxu0
        %v3486 = vadd.f32 %v3293, %v3485
        %v3487 = vpop.f32.mrb[0].mxu0
        %v3488 = vadd.f32 %v3295, %v3487
        %v3489 = vpop.f32.mrb[0].mxu0
        %v3490 = vadd.f32 %v3297, %v3489
        %3491 = vmatprep.mubr.bf16.mxu0 %v1339
        %3492 = vmatmul.mubr.bf16.gmra.mrb[0].mxu0 %v1338
        %v3493 = vpop.f32.mrb[0].mxu0
        %v3494 = vadd.f32 %v3301, %v3493
        %v3495 = vpop.f32.mrb[0].mxu0
        %v3496 = vadd.f32 %v3303, %v3495
        %v3497 = vpop.f32.mrb[0].mxu0
        %v3498 = vadd.f32 %v3305, %v3497
        %v3499 = vpop.f32.mrb[0].mxu0
        %v3500 = vadd.f32 %v3307, %v3499
        %3501 = vmatprep.mubr.bf16.mxu0 %v1347
        %3502 = vmatmul.mubr.bf16.gmra.mrb[0].mxu0 %v1346
        %v3503 = vpop.f32.mrb[0].mxu0
        %v3504 = vadd.f32 %v3311, %v3503
        %v3505 = vpop.f32.mrb[0].mxu0
        %v3506 = vadd.f32 %v3313, %v3505
        %v3507 = vpop.f32.mrb[0].mxu0
        %v3508 = vadd.f32 %v3315, %v3507
        %v3509 = vpop.f32.mrb[0].mxu0
        %v3510 = vadd.f32 %v3317, %v3509
        %3511 = vmatprep.mubr.bf16.mxu0 %v1355
        %3512 = vmatmul.mubr.bf16.gmra.mrb[0].mxu0 %v1354
        %v3513 = vpop.f32.mrb[0].mxu0
        %v3514 = vadd.f32 %v3321, %v3513
        %v3515 = vpop.f32.mrb[0].mxu0
        %v3516 = vadd.f32 %v3323, %v3515
        %v3517 = vpop.f32.mrb[0].mxu0
        %v3518 = vadd.f32 %v3325, %v3517
        %v3519 = vpop.f32.mrb[0].mxu0
        %v3520 = vadd.f32 %v3327, %v3519
        %3521 = vmatprep.mubr.bf16.mxu0 %v1363
        %3522 = vmatmul.mubr.bf16.gmra.mrb[0].mxu0 %v1362
        %v3523 = vpop.f32.mrb[0].mxu0
        %v3524 = vadd.f32 %v3331, %v3523
        %v3525 = vpop.f32.mrb[0].mxu0
        %v3526 = vadd.f32 %v3333, %v3525
        %v3527 = vpop.f32.mrb[0].mxu0
        %v3528 = vadd.f32 %v3335, %v3527
        %v3529 = vpop.f32.mrb[0].mxu0
        %v3530 = vadd.f32 %v3337, %v3529
        %3531 = vmatprep.mubr.bf16.mxu0 %v1371
        %3532 = vmatmul.mubr.bf16.gmra.mrb[0].mxu0 %v1370
        %v3533 = vpop.f32.mrb[0].mxu0
        %v3534 = vadd.f32 %v3341, %v3533
        %v3535 = vpop.f32.mrb[0].mxu0
        %v3536 = vadd.f32 %v3343, %v3535
        %v3537 = vpop.f32.mrb[0].mxu0
        %v3538 = vadd.f32 %v3345, %v3537
        %v3539 = vpop.f32.mrb[0].mxu0
        %v3540 = vadd.f32 %v3347, %v3539
        %3541 = vmatprep.mubr.bf16.mxu0 %v1379
        %3542 = vmatmul.mubr.bf16.gmra.mrb[0].mxu0 %v1378
        %v3543 = vpop.f32.mrb[0].mxu0
        %v3544 = vadd.f32 %v3351, %v3543
        %v3545 = vpop.f32.mrb[0].mxu0
        %v3546 = vadd.f32 %v3353, %v3545
        %v3547 = vpop.f32.mrb[0].mxu0
        %v3548 = vadd.f32 %v3355, %v3547
        %v3549 = vpop.f32.mrb[0].mxu0
        %v3550 = vadd.f32 %v3357, %v3549
        %3551 = vmatprep.mubr.bf16.mxu0 %v1387
        %3552 = vmatmul.mubr.bf16.gmra.mrb[0].mxu0 %v1386
        %v3553 = vpop.f32.mrb[0].mxu0
        %v3554 = vadd.f32 %v3361, %v3553
        %v3555 = vpop.f32.mrb[0].mxu0
        %v3556 = vadd.f32 %v3363, %v3555
        %v3557 = vpop.f32.mrb[0].mxu0
        %v3558 = vadd.f32 %v3365, %v3557
        %v3559 = vpop.f32.mrb[0].mxu0
        %v3560 = vadd.f32 %v3367, %v3559
        %3561 = vmatprep.mubr.bf16.mxu0 %v1395
        %3562 = vmatmul.mubr.bf16.gmra.mrb[0].mxu0 %v1394
        %v3563 = vpop.f32.mrb[0].mxu0
        %v3564 = vadd.f32 %v3371, %v3563
        %v3565 = vpop.f32.mrb[0].mxu0
        %v3566 = vadd.f32 %v3373, %v3565
        %v3567 = vpop.f32.mrb[0].mxu0
        %v3568 = vadd.f32 %v3375, %v3567
        %v3569 = vpop.f32.mrb[0].mxu0
        %v3570 = vadd.f32 %v3377, %v3569
        %3571 = vmatprep.mubr.bf16.mxu0 %v1403
        %3572 = vmatmul.mubr.bf16.gmra.mrb[0].mxu0 %v1402
        %v3573 = vpop.f32.mrb[0].mxu0
        %v3574 = vadd.f32 %v3381, %v3573
        %v3575 = vpop.f32.mrb[0].mxu0
        %v3576 = vadd.f32 %v3383, %v3575
        %v3577 = vpop.f32.mrb[0].mxu0
        %v3578 = vadd.f32 %v3385, %v3577
        %v3579 = vpop.f32.mrb[0].mxu0
        %v3580 = vadd.f32 %v3387, %v3579
        %3581 = vmatprep.mubr.bf16.mxu0 %v1411
        %3582 = vmatmul.mubr.bf16.gmra.mrb[0].mxu0 %v1410
        %v3583 = vpop.f32.mrb[0].mxu0
        %v3584 = vadd.f32 %v3391, %v3583
        %v3585 = vpop.f32.mrb[0].mxu0
        %v3586 = vadd.f32 %v3393, %v3585
        %v3587 = vpop.f32.mrb[0].mxu0
        %v3588 = vadd.f32 %v3395, %v3587
        %v3589 = vpop.f32.mrb[0].mxu0
        %v3590 = vadd.f32 %v3397, %v3589
        %3591 = vdwg.mxu0
        %3592 = vmatprep.subr.bf16.mxu0 %v2311
        %3593 = vmatpush1.bf16.msra.mxu0 %v2310
        %3594 = vmatprep.subr.bf16.mxu0 %v2315
        %3595 = vmatpush1.bf16.msra.mxu0 %v2314
        %3596 = vmatprep.subr.bf16.mxu0 %v2319
        %3597 = vmatpush1.bf16.msra.mxu0 %v2318
        %3598 = vmatprep.subr.bf16.mxu0 %v2323
        %3599 = vmatpush1.bf16.msra.mxu0 %v2322
        %3600 = vmatprep.subr.bf16.mxu0 %v2327
        %3601 = vmatpush1.bf16.msra.mxu0 %v2326
        %3602 = vmatprep.subr.bf16.mxu0 %v2331
        %3603 = vmatpush1.bf16.msra.mxu0 %v2330
        %3604 = vmatprep.subr.bf16.mxu0 %v2335
        %3605 = vmatpush1.bf16.msra.mxu0 %v2334
        %3606 = vmatprep.subr.bf16.mxu0 %v2339
        %3607 = vmatpush1.bf16.msra.mxu0 %v2338
        %3608 = vmatprep.subr.bf16.mxu0 %v2343
        %3609 = vmatpush1.bf16.msra.mxu0 %v2342
        %3610 = vmatprep.subr.bf16.mxu0 %v2347
        %3611 = vmatpush1.bf16.msra.mxu0 %v2346
        %3612 = vmatprep.subr.bf16.mxu0 %v2351
        %3613 = vmatpush1.bf16.msra.mxu0 %v2350
        %3614 = vmatprep.subr.bf16.mxu0 %v2355
        %3615 = vmatpush1.bf16.msra.mxu0 %v2354
        %3616 = vmatprep.subr.bf16.mxu0 %v2359
        %3617 = vmatpush1.bf16.msra.mxu0 %v2358
        %3618 = vmatprep.subr.bf16.mxu0 %v2363
        %3619 = vmatpush1.bf16.msra.mxu0 %v2362
        %3620 = vmatprep.subr.bf16.mxu0 %v2367
        %3621 = vmatpush1.bf16.msra.mxu0 %v2366
        %3622 = vmatprep.subr.bf16.mxu0 %v2371
        %3623 = vmatpush1.bf16.msra.mxu0 %v2370
        %3624 = vmatprep.mubr.bf16.mxu0 %v1285
        %3625 = vmatmul.mubr.bf16.gmra.mrb[0].mxu0 %v1284
        %v3626 = vpop.f32.mrb[0].mxu0
        %v3627 = vadd.f32 %v891, %v3626
        %v3628 = vpop.f32.mrb[0].mxu0
        %v3629 = vadd.f32 %v895, %v3628
        %v3630 = vpop.f32.mrb[0].mxu0
        %v3631 = vadd.f32 %v891, %v3630
        %v3632 = vpop.f32.mrb[0].mxu0
        %v3633 = vadd.f32 %v895, %v3632
        %3634 = vmatprep.mubr.bf16.mxu0 %v1293
        %3635 = vmatmul.mubr.bf16.gmra.mrb[0].mxu0 %v1292
        %v3636 = vpop.f32.mrb[0].mxu0
        %v3637 = vadd.f32 %v891, %v3636
        %v3638 = vpop.f32.mrb[0].mxu0
        %v3639 = vadd.f32 %v895, %v3638
        %v3640 = vpop.f32.mrb[0].mxu0
        %v3641 = vadd.f32 %v891, %v3640
        %v3642 = vpop.f32.mrb[0].mxu0
        %v3643 = vadd.f32 %v895, %v3642
        %3644 = vmatprep.mubr.bf16.mxu0 %v1301
        %3645 = vmatmul.mubr.bf16.gmra.mrb[0].mxu0 %v1300
        %v3646 = vpop.f32.mrb[0].mxu0
        %v3647 = vadd.f32 %v891, %v3646
        %v3648 = vpop.f32.mrb[0].mxu0
        %v3649 = vadd.f32 %v895, %v3648
        %v3650 = vpop.f32.mrb[0].mxu0
        %v3651 = vadd.f32 %v891, %v3650
        %v3652 = vpop.f32.mrb[0].mxu0
        %v3653 = vadd.f32 %v895, %v3652
        %3654 = vmatprep.mubr.bf16.mxu0 %v1309
        %3655 = vmatmul.mubr.bf16.gmra.mrb[0].mxu0 %v1308
        %v3656 = vpop.f32.mrb[0].mxu0
        %v3657 = vadd.f32 %v891, %v3656
        %v3658 = vpop.f32.mrb[0].mxu0
        %v3659 = vadd.f32 %v895, %v3658
        %v3660 = vpop.f32.mrb[0].mxu0
        %v3661 = vadd.f32 %v891, %v3660
        %v3662 = vpop.f32.mrb[0].mxu0
        %v3663 = vadd.f32 %v895, %v3662
        %3664 = vmatprep.mubr.bf16.mxu0 %v1317
        %3665 = vmatmul.mubr.bf16.gmra.mrb[0].mxu0 %v1316
        %v3666 = vpop.f32.mrb[0].mxu0
        %v3667 = vadd.f32 %v891, %v3666
        %v3668 = vpop.f32.mrb[0].mxu0
        %v3669 = vadd.f32 %v895, %v3668
        %v3670 = vpop.f32.mrb[0].mxu0
        %v3671 = vadd.f32 %v891, %v3670
        %v3672 = vpop.f32.mrb[0].mxu0
        %v3673 = vadd.f32 %v895, %v3672
        %3674 = vmatprep.mubr.bf16.mxu0 %v1325
        %3675 = vmatmul.mubr.bf16.gmra.mrb[0].mxu0 %v1324
        %v3676 = vpop.f32.mrb[0].mxu0
        %v3677 = vadd.f32 %v891, %v3676
        %v3678 = vpop.f32.mrb[0].mxu0
        %v3679 = vadd.f32 %v895, %v3678
        %v3680 = vpop.f32.mrb[0].mxu0
        %v3681 = vadd.f32 %v891, %v3680
        %v3682 = vpop.f32.mrb[0].mxu0
        %v3683 = vadd.f32 %v895, %v3682
        %3684 = vmatprep.mubr.bf16.mxu0 %v1333
        %3685 = vmatmul.mubr.bf16.gmra.mrb[0].mxu0 %v1332
        %v3686 = vpop.f32.mrb[0].mxu0
        %v3687 = vadd.f32 %v891, %v3686
        %v3688 = vpop.f32.mrb[0].mxu0
        %v3689 = vadd.f32 %v895, %v3688
        %v3690 = vpop.f32.mrb[0].mxu0
        %v3691 = vadd.f32 %v891, %v3690
        %v3692 = vpop.f32.mrb[0].mxu0
        %v3693 = vadd.f32 %v895, %v3692
        %3694 = vmatprep.mubr.bf16.mxu0 %v1341
        %3695 = vmatmul.mubr.bf16.gmra.mrb[0].mxu0 %v1340
        %v3696 = vpop.f32.mrb[0].mxu0
        %v3697 = vadd.f32 %v891, %v3696
        %v3698 = vpop.f32.mrb[0].mxu0
        %v3699 = vadd.f32 %v895, %v3698
        %v3700 = vpop.f32.mrb[0].mxu0
        %v3701 = vadd.f32 %v891, %v3700
        %v3702 = vpop.f32.mrb[0].mxu0
        %v3703 = vadd.f32 %v895, %v3702
        %3704 = vmatprep.mubr.bf16.mxu0 %v1349
        %3705 = vmatmul.mubr.bf16.gmra.mrb[0].mxu0 %v1348
        %v3706 = vpop.f32.mrb[0].mxu0
        %v3707 = vadd.f32 %v891, %v3706
        %v3708 = vpop.f32.mrb[0].mxu0
        %v3709 = vadd.f32 %v895, %v3708
        %v3710 = vpop.f32.mrb[0].mxu0
        %v3711 = vadd.f32 %v891, %v3710
        %v3712 = vpop.f32.mrb[0].mxu0
        %v3713 = vadd.f32 %v895, %v3712
        %3714 = vmatprep.mubr.bf16.mxu0 %v1357
        %3715 = vmatmul.mubr.bf16.gmra.mrb[0].mxu0 %v1356
        %v3716 = vpop.f32.mrb[0].mxu0
        %v3717 = vadd.f32 %v891, %v3716
        %v3718 = vpop.f32.mrb[0].mxu0
        %v3719 = vadd.f32 %v895, %v3718
        %v3720 = vpop.f32.mrb[0].mxu0
        %v3721 = vadd.f32 %v891, %v3720
        %v3722 = vpop.f32.mrb[0].mxu0
        %v3723 = vadd.f32 %v895, %v3722
        %3724 = vmatprep.mubr.bf16.mxu0 %v1365
        %3725 = vmatmul.mubr.bf16.gmra.mrb[0].mxu0 %v1364
        %v3726 = vpop.f32.mrb[0].mxu0
        %v3727 = vadd.f32 %v891, %v3726
        %v3728 = vpop.f32.mrb[0].mxu0
        %v3729 = vadd.f32 %v895, %v3728
        %v3730 = vpop.f32.mrb[0].mxu0
        %v3731 = vadd.f32 %v891, %v3730
        %v3732 = vpop.f32.mrb[0].mxu0
        %v3733 = vadd.f32 %v895, %v3732
        %3734 = vmatprep.mubr.bf16.mxu0 %v1373
        %3735 = vmatmul.mubr.bf16.gmra.mrb[0].mxu0 %v1372
        %v3736 = vpop.f32.mrb[0].mxu0
        %v3737 = vadd.f32 %v891, %v3736
        %v3738 = vpop.f32.mrb[0].mxu0
        %v3739 = vadd.f32 %v895, %v3738
        %v3740 = vpop.f32.mrb[0].mxu0
        %v3741 = vadd.f32 %v891, %v3740
        %v3742 = vpop.f32.mrb[0].mxu0
        %v3743 = vadd.f32 %v895, %v3742
        %3744 = vmatprep.mubr.bf16.mxu0 %v1381
        %3745 = vmatmul.mubr.bf16.gmra.mrb[0].mxu0 %v1380
        %v3746 = vpop.f32.mrb[0].mxu0
        %v3747 = vadd.f32 %v891, %v3746
        %v3748 = vpop.f32.mrb[0].mxu0
        %v3749 = vadd.f32 %v895, %v3748
        %v3750 = vpop.f32.mrb[0].mxu0
        %v3751 = vadd.f32 %v891, %v3750
        %v3752 = vpop.f32.mrb[0].mxu0
        %v3753 = vadd.f32 %v895, %v3752
        %3754 = vmatprep.mubr.bf16.mxu0 %v1389
        %3755 = vmatmul.mubr.bf16.gmra.mrb[0].mxu0 %v1388
        %v3756 = vpop.f32.mrb[0].mxu0
        %v3757 = vadd.f32 %v891, %v3756
        %v3758 = vpop.f32.mrb[0].mxu0
        %v3759 = vadd.f32 %v895, %v3758
        %v3760 = vpop.f32.mrb[0].mxu0
        %v3761 = vadd.f32 %v891, %v3760
        %v3762 = vpop.f32.mrb[0].mxu0
        %v3763 = vadd.f32 %v895, %v3762
        %3764 = vmatprep.mubr.bf16.mxu0 %v1397
        %3765 = vmatmul.mubr.bf16.gmra.mrb[0].mxu0 %v1396
        %v3766 = vpop.f32.mrb[0].mxu0
        %v3767 = vadd.f32 %v891, %v3766
        %v3768 = vpop.f32.mrb[0].mxu0
        %v3769 = vadd.f32 %v895, %v3768
        %v3770 = vpop.f32.mrb[0].mxu0
        %v3771 = vadd.f32 %v891, %v3770
        %v3772 = vpop.f32.mrb[0].mxu0
        %v3773 = vadd.f32 %v895, %v3772
        %3774 = vmatprep.mubr.bf16.mxu0 %v1405
        %3775 = vmatmul.mubr.bf16.gmra.mrb[0].mxu0 %v1404
        %v3776 = vpop.f32.mrb[0].mxu0
        %v3777 = vadd.f32 %v891, %v3776
        %v3778 = vpop.f32.mrb[0].mxu0
        %v3779 = vadd.f32 %v895, %v3778
        %v3780 = vpop.f32.mrb[0].mxu0
        %v3781 = vadd.f32 %v891, %v3780
        %v3782 = vpop.f32.mrb[0].mxu0
        %v3783 = vadd.f32 %v895, %v3782
        %3784 = vdwg.mxu0
        %3785 = vmatprep.subr.bf16.mxu0 %v2375
        %3786 = vmatpush1.bf16.msra.mxu0 %v2374
        %3787 = vmatprep.subr.bf16.mxu0 %v2379
        %3788 = vmatpush1.bf16.msra.mxu0 %v2378
        %3789 = vmatprep.subr.bf16.mxu0 %v2383
        %3790 = vmatpush1.bf16.msra.mxu0 %v2382
        %3791 = vmatprep.subr.bf16.mxu0 %v2387
        %3792 = vmatpush1.bf16.msra.mxu0 %v2386
        %3793 = vmatprep.subr.bf16.mxu0 %v2391
        %3794 = vmatpush1.bf16.msra.mxu0 %v2390
        %3795 = vmatprep.subr.bf16.mxu0 %v2395
        %3796 = vmatpush1.bf16.msra.mxu0 %v2394
        %3797 = vmatprep.subr.bf16.mxu0 %v2399
        %3798 = vmatpush1.bf16.msra.mxu0 %v2398
        %3799 = vmatprep.subr.bf16.mxu0 %v2403
        %3800 = vmatpush1.bf16.msra.mxu0 %v2402
        %3801 = vmatprep.subr.bf16.mxu0 %v2407
        %3802 = vmatpush1.bf16.msra.mxu0 %v2406
        %3803 = vmatprep.subr.bf16.mxu0 %v2411
        %3804 = vmatpush1.bf16.msra.mxu0 %v2410
        %3805 = vmatprep.subr.bf16.mxu0 %v2415
        %3806 = vmatpush1.bf16.msra.mxu0 %v2414
        %3807 = vmatprep.subr.bf16.mxu0 %v2419
        %3808 = vmatpush1.bf16.msra.mxu0 %v2418
        %3809 = vmatprep.subr.bf16.mxu0 %v2423
        %3810 = vmatpush1.bf16.msra.mxu0 %v2422
        %3811 = vmatprep.subr.bf16.mxu0 %v2427
        %3812 = vmatpush1.bf16.msra.mxu0 %v2426
        %3813 = vmatprep.subr.bf16.mxu0 %v2431
        %3814 = vmatpush1.bf16.msra.mxu0 %v2430
        %3815 = vmatprep.subr.bf16.mxu0 %v2435
        %3816 = vmatpush1.bf16.msra.mxu0 %v2434
        %3817 = vmatprep.mubr.bf16.mxu0 %v1287
        %3818 = vmatmul.mubr.bf16.gmra.mrb[0].mxu0 %v1286
        %v3819 = vpop.f32.mrb[0].mxu0
        %v3820 = vadd.f32 %v3627, %v3819
        %v3821 = vpop.f32.mrb[0].mxu0
        %v3822 = vadd.f32 %v3629, %v3821
        %v3823 = vpop.f32.mrb[0].mxu0
        %v3824 = vadd.f32 %v3631, %v3823
        %v3825 = vpop.f32.mrb[0].mxu0
        %v3826 = vadd.f32 %v3633, %v3825
        %3827 = vmatprep.mubr.bf16.mxu0 %v1295
        %3828 = vmatmul.mubr.bf16.gmra.mrb[0].mxu0 %v1294
        %v3829 = vpop.f32.mrb[0].mxu0
        %v3830 = vadd.f32 %v3637, %v3829
        %v3831 = vpop.f32.mrb[0].mxu0
        %v3832 = vadd.f32 %v3639, %v3831
        %v3833 = vpop.f32.mrb[0].mxu0
        %v3834 = vadd.f32 %v3641, %v3833
        %v3835 = vpop.f32.mrb[0].mxu0
        %v3836 = vadd.f32 %v3643, %v3835
        %3837 = vmatprep.mubr.bf16.mxu0 %v1303
        %3838 = vmatmul.mubr.bf16.gmra.mrb[0].mxu0 %v1302
        %v3839 = vpop.f32.mrb[0].mxu0
        %v3840 = vadd.f32 %v3647, %v3839
        %v3841 = vpop.f32.mrb[0].mxu0
        %v3842 = vadd.f32 %v3649, %v3841
        %v3843 = vpop.f32.mrb[0].mxu0
        %v3844 = vadd.f32 %v3651, %v3843
        %v3845 = vpop.f32.mrb[0].mxu0
        %v3846 = vadd.f32 %v3653, %v3845
        %3847 = vmatprep.mubr.bf16.mxu0 %v1311
        %3848 = vmatmul.mubr.bf16.gmra.mrb[0].mxu0 %v1310
        %v3849 = vpop.f32.mrb[0].mxu0
        %v3850 = vadd.f32 %v3657, %v3849
        %v3851 = vpop.f32.mrb[0].mxu0
        %v3852 = vadd.f32 %v3659, %v3851
        %v3853 = vpop.f32.mrb[0].mxu0
        %v3854 = vadd.f32 %v3661, %v3853
        %v3855 = vpop.f32.mrb[0].mxu0
        %v3856 = vadd.f32 %v3663, %v3855
        %3857 = vmatprep.mubr.bf16.mxu0 %v1319
        %3858 = vmatmul.mubr.bf16.gmra.mrb[0].mxu0 %v1318
        %v3859 = vpop.f32.mrb[0].mxu0
        %v3860 = vadd.f32 %v3667, %v3859
        %v3861 = vpop.f32.mrb[0].mxu0
        %v3862 = vadd.f32 %v3669, %v3861
        %v3863 = vpop.f32.mrb[0].mxu0
        %v3864 = vadd.f32 %v3671, %v3863
        %v3865 = vpop.f32.mrb[0].mxu0
        %v3866 = vadd.f32 %v3673, %v3865
        %3867 = vmatprep.mubr.bf16.mxu0 %v1327
        %3868 = vmatmul.mubr.bf16.gmra.mrb[0].mxu0 %v1326
        %v3869 = vpop.f32.mrb[0].mxu0
        %v3870 = vadd.f32 %v3677, %v3869
        %v3871 = vpop.f32.mrb[0].mxu0
        %v3872 = vadd.f32 %v3679, %v3871
        %v3873 = vpop.f32.mrb[0].mxu0
        %v3874 = vadd.f32 %v3681, %v3873
        %v3875 = vpop.f32.mrb[0].mxu0
        %v3876 = vadd.f32 %v3683, %v3875
        %3877 = vmatprep.mubr.bf16.mxu0 %v1335
        %3878 = vmatmul.mubr.bf16.gmra.mrb[0].mxu0 %v1334
        %v3879 = vpop.f32.mrb[0].mxu0
        %v3880 = vadd.f32 %v3687, %v3879
        %v3881 = vpop.f32.mrb[0].mxu0
        %v3882 = vadd.f32 %v3689, %v3881
        %v3883 = vpop.f32.mrb[0].mxu0
        %v3884 = vadd.f32 %v3691, %v3883
        %v3885 = vpop.f32.mrb[0].mxu0
        %v3886 = vadd.f32 %v3693, %v3885
        %3887 = vmatprep.mubr.bf16.mxu0 %v1343
        %3888 = vmatmul.mubr.bf16.gmra.mrb[0].mxu0 %v1342
        %v3889 = vpop.f32.mrb[0].mxu0
        %v3890 = vadd.f32 %v3697, %v3889
        %v3891 = vpop.f32.mrb[0].mxu0
        %v3892 = vadd.f32 %v3699, %v3891
        %v3893 = vpop.f32.mrb[0].mxu0
        %v3894 = vadd.f32 %v3701, %v3893
        %v3895 = vpop.f32.mrb[0].mxu0
        %v3896 = vadd.f32 %v3703, %v3895
        %3897 = vmatprep.mubr.bf16.mxu0 %v1351
        %3898 = vmatmul.mubr.bf16.gmra.mrb[0].mxu0 %v1350
        %v3899 = vpop.f32.mrb[0].mxu0
        %v3900 = vadd.f32 %v3707, %v3899
        %v3901 = vpop.f32.mrb[0].mxu0
        %v3902 = vadd.f32 %v3709, %v3901
        %v3903 = vpop.f32.mrb[0].mxu0
        %v3904 = vadd.f32 %v3711, %v3903
        %v3905 = vpop.f32.mrb[0].mxu0
        %v3906 = vadd.f32 %v3713, %v3905
        %3907 = vmatprep.mubr.bf16.mxu0 %v1359
        %3908 = vmatmul.mubr.bf16.gmra.mrb[0].mxu0 %v1358
        %v3909 = vpop.f32.mrb[0].mxu0
        %v3910 = vadd.f32 %v3717, %v3909
        %v3911 = vpop.f32.mrb[0].mxu0
        %v3912 = vadd.f32 %v3719, %v3911
        %v3913 = vpop.f32.mrb[0].mxu0
        %v3914 = vadd.f32 %v3721, %v3913
        %v3915 = vpop.f32.mrb[0].mxu0
        %v3916 = vadd.f32 %v3723, %v3915
        %3917 = vmatprep.mubr.bf16.mxu0 %v1367
        %3918 = vmatmul.mubr.bf16.gmra.mrb[0].mxu0 %v1366
        %v3919 = vpop.f32.mrb[0].mxu0
        %v3920 = vadd.f32 %v3727, %v3919
        %v3921 = vpop.f32.mrb[0].mxu0
        %v3922 = vadd.f32 %v3729, %v3921
        %v3923 = vpop.f32.mrb[0].mxu0
        %v3924 = vadd.f32 %v3731, %v3923
        %v3925 = vpop.f32.mrb[0].mxu0
        %v3926 = vadd.f32 %v3733, %v3925
        %3927 = vmatprep.mubr.bf16.mxu0 %v1375
        %3928 = vmatmul.mubr.bf16.gmra.mrb[0].mxu0 %v1374
        %v3929 = vpop.f32.mrb[0].mxu0
        %v3930 = vadd.f32 %v3737, %v3929
        %v3931 = vpop.f32.mrb[0].mxu0
        %v3932 = vadd.f32 %v3739, %v3931
        %v3933 = vpop.f32.mrb[0].mxu0
        %v3934 = vadd.f32 %v3741, %v3933
        %v3935 = vpop.f32.mrb[0].mxu0
        %v3936 = vadd.f32 %v3743, %v3935
        %3937 = vmatprep.mubr.bf16.mxu0 %v1383
        %3938 = vmatmul.mubr.bf16.gmra.mrb[0].mxu0 %v1382
        %v3939 = vpop.f32.mrb[0].mxu0
        %v3940 = vadd.f32 %v3747, %v3939
        %v3941 = vpop.f32.mrb[0].mxu0
        %v3942 = vadd.f32 %v3749, %v3941
        %v3943 = vpop.f32.mrb[0].mxu0
        %v3944 = vadd.f32 %v3751, %v3943
        %v3945 = vpop.f32.mrb[0].mxu0
        %v3946 = vadd.f32 %v3753, %v3945
        %3947 = vmatprep.mubr.bf16.mxu0 %v1391
        %3948 = vmatmul.mubr.bf16.gmra.mrb[0].mxu0 %v1390
        %v3949 = vpop.f32.mrb[0].mxu0
        %v3950 = vadd.f32 %v3757, %v3949
        %v3951 = vpop.f32.mrb[0].mxu0
        %v3952 = vadd.f32 %v3759, %v3951
        %v3953 = vpop.f32.mrb[0].mxu0
        %v3954 = vadd.f32 %v3761, %v3953
        %v3955 = vpop.f32.mrb[0].mxu0
        %v3956 = vadd.f32 %v3763, %v3955
        %3957 = vmatprep.mubr.bf16.mxu0 %v1399
        %3958 = vmatmul.mubr.bf16.gmra.mrb[0].mxu0 %v1398
        %v3959 = vpop.f32.mrb[0].mxu0
        %v3960 = vadd.f32 %v3767, %v3959
        %v3961 = vpop.f32.mrb[0].mxu0
        %v3962 = vadd.f32 %v3769, %v3961
        %v3963 = vpop.f32.mrb[0].mxu0
        %v3964 = vadd.f32 %v3771, %v3963
        %v3965 = vpop.f32.mrb[0].mxu0
        %v3966 = vadd.f32 %v3773, %v3965
        %3967 = vmatprep.mubr.bf16.mxu0 %v1407
        %3968 = vmatmul.mubr.bf16.gmra.mrb[0].mxu0 %v1406
        %v3969 = vpop.f32.mrb[0].mxu0
        %v3970 = vadd.f32 %v3777, %v3969
        %v3971 = vpop.f32.mrb[0].mxu0
        %v3972 = vadd.f32 %v3779, %v3971
        %v3973 = vpop.f32.mrb[0].mxu0
        %v3974 = vadd.f32 %v3781, %v3973
        %v3975 = vpop.f32.mrb[0].mxu0
        %v3976 = vadd.f32 %v3783, %v3975
        %3977 = vdwg.mxu0
        %3978 = vmatprep.subr.bf16.mxu0 %v2439
        %3979 = vmatpush1.bf16.msra.mxu0 %v2438
        %3980 = vmatprep.subr.bf16.mxu0 %v2443
        %3981 = vmatpush1.bf16.msra.mxu0 %v2442
        %3982 = vmatprep.subr.bf16.mxu0 %v2447
        %3983 = vmatpush1.bf16.msra.mxu0 %v2446
        %3984 = vmatprep.subr.bf16.mxu0 %v2451
        %3985 = vmatpush1.bf16.msra.mxu0 %v2450
        %3986 = vmatprep.subr.bf16.mxu0 %v2455
        %3987 = vmatpush1.bf16.msra.mxu0 %v2454
        %3988 = vmatprep.subr.bf16.mxu0 %v2459
        %3989 = vmatpush1.bf16.msra.mxu0 %v2458
        %3990 = vmatprep.subr.bf16.mxu0 %v2463
        %3991 = vmatpush1.bf16.msra.mxu0 %v2462
        %3992 = vmatprep.subr.bf16.mxu0 %v2467
        %3993 = vmatpush1.bf16.msra.mxu0 %v2466
        %3994 = vmatprep.subr.bf16.mxu0 %v2471
        %3995 = vmatpush1.bf16.msra.mxu0 %v2470
        %3996 = vmatprep.subr.bf16.mxu0 %v2475
        %3997 = vmatpush1.bf16.msra.mxu0 %v2474
        %3998 = vmatprep.subr.bf16.mxu0 %v2479
        %3999 = vmatpush1.bf16.msra.mxu0 %v2478
        %4000 = vmatprep.subr.bf16.mxu0 %v2483
        %4001 = vmatpush1.bf16.msra.mxu0 %v2482
        %4002 = vmatprep.subr.bf16.mxu0 %v2487
        %4003 = vmatpush1.bf16.msra.mxu0 %v2486
        %4004 = vmatprep.subr.bf16.mxu0 %v2491
        %4005 = vmatpush1.bf16.msra.mxu0 %v2490
        %4006 = vmatprep.subr.bf16.mxu0 %v2495
        %4007 = vmatpush1.bf16.msra.mxu0 %v2494
        %4008 = vmatprep.subr.bf16.mxu0 %v2499
        %4009 = vmatpush1.bf16.msra.mxu0 %v2498
        %4010 = vmatprep.mubr.bf16.mxu0 %v1289
        %4011 = vmatmul.mubr.bf16.gmra.mrb[0].mxu0 %v1288
        %v4012 = vpop.f32.mrb[0].mxu0
        %v4013 = vadd.f32 %v3820, %v4012
        %v4014 = vpop.f32.mrb[0].mxu0
        %v4015 = vadd.f32 %v3822, %v4014
        %v4016 = vpop.f32.mrb[0].mxu0
        %v4017 = vadd.f32 %v3824, %v4016
        %v4018 = vpop.f32.mrb[0].mxu0
        %v4019 = vadd.f32 %v3826, %v4018
        %4020 = vmatprep.mubr.bf16.mxu0 %v1297
        %4021 = vmatmul.mubr.bf16.gmra.mrb[0].mxu0 %v1296
        %v4022 = vpop.f32.mrb[0].mxu0
        %v4023 = vadd.f32 %v3830, %v4022
        %v4024 = vpop.f32.mrb[0].mxu0
        %v4025 = vadd.f32 %v3832, %v4024
        %v4026 = vpop.f32.mrb[0].mxu0
        %v4027 = vadd.f32 %v3834, %v4026
        %v4028 = vpop.f32.mrb[0].mxu0
        %v4029 = vadd.f32 %v3836, %v4028
        %4030 = vmatprep.mubr.bf16.mxu0 %v1305
        %4031 = vmatmul.mubr.bf16.gmra.mrb[0].mxu0 %v1304
        %v4032 = vpop.f32.mrb[0].mxu0
        %v4033 = vadd.f32 %v3840, %v4032
        %v4034 = vpop.f32.mrb[0].mxu0
        %v4035 = vadd.f32 %v3842, %v4034
        %v4036 = vpop.f32.mrb[0].mxu0
        %v4037 = vadd.f32 %v3844, %v4036
        %v4038 = vpop.f32.mrb[0].mxu0
        %v4039 = vadd.f32 %v3846, %v4038
        %4040 = vmatprep.mubr.bf16.mxu0 %v1313
        %4041 = vmatmul.mubr.bf16.gmra.mrb[0].mxu0 %v1312
        %v4042 = vpop.f32.mrb[0].mxu0
        %v4043 = vadd.f32 %v3850, %v4042
        %v4044 = vpop.f32.mrb[0].mxu0
        %v4045 = vadd.f32 %v3852, %v4044
        %v4046 = vpop.f32.mrb[0].mxu0
        %v4047 = vadd.f32 %v3854, %v4046
        %v4048 = vpop.f32.mrb[0].mxu0
        %v4049 = vadd.f32 %v3856, %v4048
        %4050 = vmatprep.mubr.bf16.mxu0 %v1321
        %4051 = vmatmul.mubr.bf16.gmra.mrb[0].mxu0 %v1320
        %v4052 = vpop.f32.mrb[0].mxu0
        %v4053 = vadd.f32 %v3860, %v4052
        %v4054 = vpop.f32.mrb[0].mxu0
        %v4055 = vadd.f32 %v3862, %v4054
        %v4056 = vpop.f32.mrb[0].mxu0
        %v4057 = vadd.f32 %v3864, %v4056
        %v4058 = vpop.f32.mrb[0].mxu0
        %v4059 = vadd.f32 %v3866, %v4058
        %4060 = vmatprep.mubr.bf16.mxu0 %v1329
        %4061 = vmatmul.mubr.bf16.gmra.mrb[0].mxu0 %v1328
        %v4062 = vpop.f32.mrb[0].mxu0
        %v4063 = vadd.f32 %v3870, %v4062
        %v4064 = vpop.f32.mrb[0].mxu0
        %v4065 = vadd.f32 %v3872, %v4064
        %v4066 = vpop.f32.mrb[0].mxu0
        %v4067 = vadd.f32 %v3874, %v4066
        %v4068 = vpop.f32.mrb[0].mxu0
        %v4069 = vadd.f32 %v3876, %v4068
        %4070 = vmatprep.mubr.bf16.mxu0 %v1337
        %4071 = vmatmul.mubr.bf16.gmra.mrb[0].mxu0 %v1336
        %v4072 = vpop.f32.mrb[0].mxu0
        %v4073 = vadd.f32 %v3880, %v4072
        %v4074 = vpop.f32.mrb[0].mxu0
        %v4075 = vadd.f32 %v3882, %v4074
        %v4076 = vpop.f32.mrb[0].mxu0
        %v4077 = vadd.f32 %v3884, %v4076
        %v4078 = vpop.f32.mrb[0].mxu0
        %v4079 = vadd.f32 %v3886, %v4078
        %4080 = vmatprep.mubr.bf16.mxu0 %v1345
        %4081 = vmatmul.mubr.bf16.gmra.mrb[0].mxu0 %v1344
        %v4082 = vpop.f32.mrb[0].mxu0
        %v4083 = vadd.f32 %v3890, %v4082
        %v4084 = vpop.f32.mrb[0].mxu0
        %v4085 = vadd.f32 %v3892, %v4084
        %v4086 = vpop.f32.mrb[0].mxu0
        %v4087 = vadd.f32 %v3894, %v4086
        %v4088 = vpop.f32.mrb[0].mxu0
        %v4089 = vadd.f32 %v3896, %v4088
        %4090 = vmatprep.mubr.bf16.mxu0 %v1353
        %4091 = vmatmul.mubr.bf16.gmra.mrb[0].mxu0 %v1352
        %v4092 = vpop.f32.mrb[0].mxu0
        %v4093 = vadd.f32 %v3900, %v4092
        %v4094 = vpop.f32.mrb[0].mxu0
        %v4095 = vadd.f32 %v3902, %v4094
        %v4096 = vpop.f32.mrb[0].mxu0
        %v4097 = vadd.f32 %v3904, %v4096
        %v4098 = vpop.f32.mrb[0].mxu0
        %v4099 = vadd.f32 %v3906, %v4098
        %4100 = vmatprep.mubr.bf16.mxu0 %v1361
        %4101 = vmatmul.mubr.bf16.gmra.mrb[0].mxu0 %v1360
        %v4102 = vpop.f32.mrb[0].mxu0
        %v4103 = vadd.f32 %v3910, %v4102
        %v4104 = vpop.f32.mrb[0].mxu0
        %v4105 = vadd.f32 %v3912, %v4104
        %v4106 = vpop.f32.mrb[0].mxu0
        %v4107 = vadd.f32 %v3914, %v4106
        %v4108 = vpop.f32.mrb[0].mxu0
        %v4109 = vadd.f32 %v3916, %v4108
        %4110 = vmatprep.mubr.bf16.mxu0 %v1369
        %4111 = vmatmul.mubr.bf16.gmra.mrb[0].mxu0 %v1368
        %v4112 = vpop.f32.mrb[0].mxu0
        %v4113 = vadd.f32 %v3920, %v4112
        %v4114 = vpop.f32.mrb[0].mxu0
        %v4115 = vadd.f32 %v3922, %v4114
        %v4116 = vpop.f32.mrb[0].mxu0
        %v4117 = vadd.f32 %v3924, %v4116
        %v4118 = vpop.f32.mrb[0].mxu0
        %v4119 = vadd.f32 %v3926, %v4118
        %4120 = vmatprep.mubr.bf16.mxu0 %v1377
        %4121 = vmatmul.mubr.bf16.gmra.mrb[0].mxu0 %v1376
        %v4122 = vpop.f32.mrb[0].mxu0
        %v4123 = vadd.f32 %v3930, %v4122
        %v4124 = vpop.f32.mrb[0].mxu0
        %v4125 = vadd.f32 %v3932, %v4124
        %v4126 = vpop.f32.mrb[0].mxu0
        %v4127 = vadd.f32 %v3934, %v4126
        %v4128 = vpop.f32.mrb[0].mxu0
        %v4129 = vadd.f32 %v3936, %v4128
        %4130 = vmatprep.mubr.bf16.mxu0 %v1385
        %4131 = vmatmul.mubr.bf16.gmra.mrb[0].mxu0 %v1384
        %v4132 = vpop.f32.mrb[0].mxu0
        %v4133 = vadd.f32 %v3940, %v4132
        %v4134 = vpop.f32.mrb[0].mxu0
        %v4135 = vadd.f32 %v3942, %v4134
        %v4136 = vpop.f32.mrb[0].mxu0
        %v4137 = vadd.f32 %v3944, %v4136
        %v4138 = vpop.f32.mrb[0].mxu0
        %v4139 = vadd.f32 %v3946, %v4138
        %4140 = vmatprep.mubr.bf16.mxu0 %v1393
        %4141 = vmatmul.mubr.bf16.gmra.mrb[0].mxu0 %v1392
        %v4142 = vpop.f32.mrb[0].mxu0
        %v4143 = vadd.f32 %v3950, %v4142
        %v4144 = vpop.f32.mrb[0].mxu0
        %v4145 = vadd.f32 %v3952, %v4144
        %v4146 = vpop.f32.mrb[0].mxu0
        %v4147 = vadd.f32 %v3954, %v4146
        %v4148 = vpop.f32.mrb[0].mxu0
        %v4149 = vadd.f32 %v3956, %v4148
        %4150 = vmatprep.mubr.bf16.mxu0 %v1401
        %4151 = vmatmul.mubr.bf16.gmra.mrb[0].mxu0 %v1400
        %v4152 = vpop.f32.mrb[0].mxu0
        %v4153 = vadd.f32 %v3960, %v4152
        %v4154 = vpop.f32.mrb[0].mxu0
        %v4155 = vadd.f32 %v3962, %v4154
        %v4156 = vpop.f32.mrb[0].mxu0
        %v4157 = vadd.f32 %v3964, %v4156
        %v4158 = vpop.f32.mrb[0].mxu0
        %v4159 = vadd.f32 %v3966, %v4158
        %4160 = vmatprep.mubr.bf16.mxu0 %v1409
        %4161 = vmatmul.mubr.bf16.gmra.mrb[0].mxu0 %v1408
        %v4162 = vpop.f32.mrb[0].mxu0
        %v4163 = vadd.f32 %v3970, %v4162
        %v4164 = vpop.f32.mrb[0].mxu0
        %v4165 = vadd.f32 %v3972, %v4164
        %v4166 = vpop.f32.mrb[0].mxu0
        %v4167 = vadd.f32 %v3974, %v4166
        %v4168 = vpop.f32.mrb[0].mxu0
        %v4169 = vadd.f32 %v3976, %v4168
        %4170 = vdwg.mxu0
        %4171 = vmatprep.subr.bf16.mxu0 %v2503
        %4172 = vmatpush1.bf16.msra.mxu0 %v2502
        %4173 = vmatprep.subr.bf16.mxu0 %v2507
        %4174 = vmatpush1.bf16.msra.mxu0 %v2506
        %4175 = vmatprep.subr.bf16.mxu0 %v2511
        %4176 = vmatpush1.bf16.msra.mxu0 %v2510
        %4177 = vmatprep.subr.bf16.mxu0 %v2515
        %4178 = vmatpush1.bf16.msra.mxu0 %v2514
        %4179 = vmatprep.subr.bf16.mxu0 %v2519
        %4180 = vmatpush1.bf16.msra.mxu0 %v2518
        %4181 = vmatprep.subr.bf16.mxu0 %v2523
        %4182 = vmatpush1.bf16.msra.mxu0 %v2522
        %4183 = vmatprep.subr.bf16.mxu0 %v2527
        %4184 = vmatpush1.bf16.msra.mxu0 %v2526
        %4185 = vmatprep.subr.bf16.mxu0 %v2531
        %4186 = vmatpush1.bf16.msra.mxu0 %v2530
        %4187 = vmatprep.subr.bf16.mxu0 %v2535
        %4188 = vmatpush1.bf16.msra.mxu0 %v2534
        %4189 = vmatprep.subr.bf16.mxu0 %v2539
        %4190 = vmatpush1.bf16.msra.mxu0 %v2538
        %4191 = vmatprep.subr.bf16.mxu0 %v2543
        %4192 = vmatpush1.bf16.msra.mxu0 %v2542
        %4193 = vmatprep.subr.bf16.mxu0 %v2547
        %4194 = vmatpush1.bf16.msra.mxu0 %v2546
        %4195 = vmatprep.subr.bf16.mxu0 %v2551
        %4196 = vmatpush1.bf16.msra.mxu0 %v2550
        %4197 = vmatprep.subr.bf16.mxu0 %v2555
        %4198 = vmatpush1.bf16.msra.mxu0 %v2554
        %4199 = vmatprep.subr.bf16.mxu0 %v2559
        %4200 = vmatpush1.bf16.msra.mxu0 %v2558
        %4201 = vmatprep.subr.bf16.mxu0 %v2563
        %4202 = vmatpush1.bf16.msra.mxu0 %v2562
        %4203 = vmatprep.mubr.bf16.mxu0 %v1291
        %4204 = vmatmul.mubr.bf16.gmra.mrb[0].mxu0 %v1290
        %v4205 = vpop.f32.mrb[0].mxu0
        %v4206 = vadd.f32 %v4013, %v4205
        %v4207 = vpop.f32.mrb[0].mxu0
        %v4208 = vadd.f32 %v4015, %v4207
        %v4209 = vpop.f32.mrb[0].mxu0
        %v4210 = vadd.f32 %v4017, %v4209
        %v4211 = vpop.f32.mrb[0].mxu0
        %v4212 = vadd.f32 %v4019, %v4211
        %4213 = vmatprep.mubr.bf16.mxu0 %v1299
        %4214 = vmatmul.mubr.bf16.gmra.mrb[0].mxu0 %v1298
        %v4215 = vpop.f32.mrb[0].mxu0
        %v4216 = vadd.f32 %v4023, %v4215
        %v4217 = vpop.f32.mrb[0].mxu0
        %v4218 = vadd.f32 %v4025, %v4217
        %v4219 = vpop.f32.mrb[0].mxu0
        %v4220 = vadd.f32 %v4027, %v4219
        %v4221 = vpop.f32.mrb[0].mxu0
        %v4222 = vadd.f32 %v4029, %v4221
        %4223 = vmatprep.mubr.bf16.mxu0 %v1307
        %4224 = vmatmul.mubr.bf16.gmra.mrb[0].mxu0 %v1306
        %v4225 = vpop.f32.mrb[0].mxu0
        %v4226 = vadd.f32 %v4033, %v4225
        %v4227 = vpop.f32.mrb[0].mxu0
        %v4228 = vadd.f32 %v4035, %v4227
        %v4229 = vpop.f32.mrb[0].mxu0
        %v4230 = vadd.f32 %v4037, %v4229
        %v4231 = vpop.f32.mrb[0].mxu0
        %v4232 = vadd.f32 %v4039, %v4231
        %4233 = vmatprep.mubr.bf16.mxu0 %v1315
        %4234 = vmatmul.mubr.bf16.gmra.mrb[0].mxu0 %v1314
        %v4235 = vpop.f32.mrb[0].mxu0
        %v4236 = vadd.f32 %v4043, %v4235
        %v4237 = vpop.f32.mrb[0].mxu0
        %v4238 = vadd.f32 %v4045, %v4237
        %v4239 = vpop.f32.mrb[0].mxu0
        %v4240 = vadd.f32 %v4047, %v4239
        %v4241 = vpop.f32.mrb[0].mxu0
        %v4242 = vadd.f32 %v4049, %v4241
        %4243 = vmatprep.mubr.bf16.mxu0 %v1323
        %4244 = vmatmul.mubr.bf16.gmra.mrb[0].mxu0 %v1322
        %v4245 = vpop.f32.mrb[0].mxu0
        %v4246 = vadd.f32 %v4053, %v4245
        %v4247 = vpop.f32.mrb[0].mxu0
        %v4248 = vadd.f32 %v4055, %v4247
        %v4249 = vpop.f32.mrb[0].mxu0
        %v4250 = vadd.f32 %v4057, %v4249
        %v4251 = vpop.f32.mrb[0].mxu0
        %v4252 = vadd.f32 %v4059, %v4251
        %4253 = vmatprep.mubr.bf16.mxu0 %v1331
        %4254 = vmatmul.mubr.bf16.gmra.mrb[0].mxu0 %v1330
        %v4255 = vpop.f32.mrb[0].mxu0
        %v4256 = vadd.f32 %v4063, %v4255
        %v4257 = vpop.f32.mrb[0].mxu0
        %v4258 = vadd.f32 %v4065, %v4257
        %v4259 = vpop.f32.mrb[0].mxu0
        %v4260 = vadd.f32 %v4067, %v4259
        %v4261 = vpop.f32.mrb[0].mxu0
        %v4262 = vadd.f32 %v4069, %v4261
        %4263 = vmatprep.mubr.bf16.mxu0 %v1339
        %4264 = vmatmul.mubr.bf16.gmra.mrb[0].mxu0 %v1338
        %v4265 = vpop.f32.mrb[0].mxu0
        %v4266 = vadd.f32 %v4073, %v4265
        %v4267 = vpop.f32.mrb[0].mxu0
        %v4268 = vadd.f32 %v4075, %v4267
        %v4269 = vpop.f32.mrb[0].mxu0
        %v4270 = vadd.f32 %v4077, %v4269
        %v4271 = vpop.f32.mrb[0].mxu0
        %v4272 = vadd.f32 %v4079, %v4271
        %4273 = vmatprep.mubr.bf16.mxu0 %v1347
        %4274 = vmatmul.mubr.bf16.gmra.mrb[0].mxu0 %v1346
        %v4275 = vpop.f32.mrb[0].mxu0
        %v4276 = vadd.f32 %v4083, %v4275
        %v4277 = vpop.f32.mrb[0].mxu0
        %v4278 = vadd.f32 %v4085, %v4277
        %v4279 = vpop.f32.mrb[0].mxu0
        %v4280 = vadd.f32 %v4087, %v4279
        %v4281 = vpop.f32.mrb[0].mxu0
        %v4282 = vadd.f32 %v4089, %v4281
        %4283 = vmatprep.mubr.bf16.mxu0 %v1355
        %4284 = vmatmul.mubr.bf16.gmra.mrb[0].mxu0 %v1354
        %v4285 = vpop.f32.mrb[0].mxu0
        %v4286 = vadd.f32 %v4093, %v4285
        %v4287 = vpop.f32.mrb[0].mxu0
        %v4288 = vadd.f32 %v4095, %v4287
        %v4289 = vpop.f32.mrb[0].mxu0
        %v4290 = vadd.f32 %v4097, %v4289
        %v4291 = vpop.f32.mrb[0].mxu0
        %v4292 = vadd.f32 %v4099, %v4291
        %4293 = vmatprep.mubr.bf16.mxu0 %v1363
        %4294 = vmatmul.mubr.bf16.gmra.mrb[0].mxu0 %v1362
        %v4295 = vpop.f32.mrb[0].mxu0
        %v4296 = vadd.f32 %v4103, %v4295
        %v4297 = vpop.f32.mrb[0].mxu0
        %v4298 = vadd.f32 %v4105, %v4297
        %v4299 = vpop.f32.mrb[0].mxu0
        %v4300 = vadd.f32 %v4107, %v4299
        %v4301 = vpop.f32.mrb[0].mxu0
        %v4302 = vadd.f32 %v4109, %v4301
        %4303 = vmatprep.mubr.bf16.mxu0 %v1371
        %4304 = vmatmul.mubr.bf16.gmra.mrb[0].mxu0 %v1370
        %v4305 = vpop.f32.mrb[0].mxu0
        %v4306 = vadd.f32 %v4113, %v4305
        %v4307 = vpop.f32.mrb[0].mxu0
        %v4308 = vadd.f32 %v4115, %v4307
        %v4309 = vpop.f32.mrb[0].mxu0
        %v4310 = vadd.f32 %v4117, %v4309
        %v4311 = vpop.f32.mrb[0].mxu0
        %v4312 = vadd.f32 %v4119, %v4311
        %4313 = vmatprep.mubr.bf16.mxu0 %v1379
        %4314 = vmatmul.mubr.bf16.gmra.mrb[0].mxu0 %v1378
        %v4315 = vpop.f32.mrb[0].mxu0
        %v4316 = vadd.f32 %v4123, %v4315
        %v4317 = vpop.f32.mrb[0].mxu0
        %v4318 = vadd.f32 %v4125, %v4317
        %v4319 = vpop.f32.mrb[0].mxu0
        %v4320 = vadd.f32 %v4127, %v4319
        %v4321 = vpop.f32.mrb[0].mxu0
        %v4322 = vadd.f32 %v4129, %v4321
        %4323 = vmatprep.mubr.bf16.mxu0 %v1387
        %4324 = vmatmul.mubr.bf16.gmra.mrb[0].mxu0 %v1386
        %v4325 = vpop.f32.mrb[0].mxu0
        %v4326 = vadd.f32 %v4133, %v4325
        %v4327 = vpop.f32.mrb[0].mxu0
        %v4328 = vadd.f32 %v4135, %v4327
        %v4329 = vpop.f32.mrb[0].mxu0
        %v4330 = vadd.f32 %v4137, %v4329
        %v4331 = vpop.f32.mrb[0].mxu0
        %v4332 = vadd.f32 %v4139, %v4331
        %4333 = vmatprep.mubr.bf16.mxu0 %v1395
        %4334 = vmatmul.mubr.bf16.gmra.mrb[0].mxu0 %v1394
        %v4335 = vpop.f32.mrb[0].mxu0
        %v4336 = vadd.f32 %v4143, %v4335
        %v4337 = vpop.f32.mrb[0].mxu0
        %v4338 = vadd.f32 %v4145, %v4337
        %v4339 = vpop.f32.mrb[0].mxu0
        %v4340 = vadd.f32 %v4147, %v4339
        %v4341 = vpop.f32.mrb[0].mxu0
        %v4342 = vadd.f32 %v4149, %v4341
        %4343 = vmatprep.mubr.bf16.mxu0 %v1403
        %4344 = vmatmul.mubr.bf16.gmra.mrb[0].mxu0 %v1402
        %v4345 = vpop.f32.mrb[0].mxu0
        %v4346 = vadd.f32 %v4153, %v4345
        %v4347 = vpop.f32.mrb[0].mxu0
        %v4348 = vadd.f32 %v4155, %v4347
        %v4349 = vpop.f32.mrb[0].mxu0
        %v4350 = vadd.f32 %v4157, %v4349
        %v4351 = vpop.f32.mrb[0].mxu0
        %v4352 = vadd.f32 %v4159, %v4351
        %4353 = vmatprep.mubr.bf16.mxu0 %v1411
        %4354 = vmatmul.mubr.bf16.gmra.mrb[0].mxu0 %v1410
        %v4355 = vpop.f32.mrb[0].mxu0
        %v4356 = vadd.f32 %v4163, %v4355
        %v4357 = vpop.f32.mrb[0].mxu0
        %v4358 = vadd.f32 %v4165, %v4357
        %v4359 = vpop.f32.mrb[0].mxu0
        %v4360 = vadd.f32 %v4167, %v4359
        %v4361 = vpop.f32.mrb[0].mxu0
        %v4362 = vadd.f32 %v4169, %v4361
        %4363 = vdwg.mxu0
        %v4364 = vmax.f32 %v3434, 0.0
        %v4365 = vmax.f32 %v3436, 0.0
        %v4366 = vmax.f32 %v4206, 0.0
        %v4367 = vmax.f32 %v4208, 0.0
        %v4368 = vmax.f32 %v3438, 0.0
        %v4369 = vmax.f32 %v3440, 0.0
        %v4370 = vmax.f32 %v4210, 0.0
        %v4371 = vmax.f32 %v4212, 0.0
        %v4372 = vmax.f32 %v3444, 0.0
        %v4373 = vmax.f32 %v3446, 0.0
        %v4374 = vmax.f32 %v4216, 0.0
        %v4375 = vmax.f32 %v4218, 0.0
        %v4376 = vmax.f32 %v3448, 0.0
        %v4377 = vmax.f32 %v3450, 0.0
        %v4378 = vmax.f32 %v4220, 0.0
        %v4379 = vmax.f32 %v4222, 0.0
        %v4380 = vmax.f32 %v3454, 0.0
        %v4381 = vmax.f32 %v3456, 0.0
        %v4382 = vmax.f32 %v4226, 0.0
        %v4383 = vmax.f32 %v4228, 0.0
        %v4384 = vmax.f32 %v3458, 0.0
        %v4385 = vmax.f32 %v3460, 0.0
        %v4386 = vmax.f32 %v4230, 0.0
        %v4387 = vmax.f32 %v4232, 0.0
        %v4388 = vmax.f32 %v3464, 0.0
        %v4389 = vmax.f32 %v3466, 0.0
        %v4390 = vmax.f32 %v4236, 0.0
        %v4391 = vmax.f32 %v4238, 0.0
        %v4392 = vmax.f32 %v3468, 0.0
        %v4393 = vmax.f32 %v3470, 0.0
        %v4394 = vmax.f32 %v4240, 0.0
        %v4395 = vmax.f32 %v4242, 0.0
        %v4396 = vmax.f32 %v3474, 0.0
        %v4397 = vmax.f32 %v3476, 0.0
        %v4398 = vmax.f32 %v4246, 0.0
        %v4399 = vmax.f32 %v4248, 0.0
        %v4400 = vmax.f32 %v3478, 0.0
        %v4401 = vmax.f32 %v3480, 0.0
        %v4402 = vmax.f32 %v4250, 0.0
        %v4403 = vmax.f32 %v4252, 0.0
        %v4404 = vmax.f32 %v3484, 0.0
        %v4405 = vmax.f32 %v3486, 0.0
        %v4406 = vmax.f32 %v4256, 0.0
        %v4407 = vmax.f32 %v4258, 0.0
        %v4408 = vmax.f32 %v3488, 0.0
        %v4409 = vmax.f32 %v3490, 0.0
        %v4410 = vmax.f32 %v4260, 0.0
        %v4411 = vmax.f32 %v4262, 0.0
        %v4412 = vmax.f32 %v3494, 0.0
        %v4413 = vmax.f32 %v3496, 0.0
        %v4414 = vmax.f32 %v4266, 0.0
        %v4415 = vmax.f32 %v4268, 0.0
        %v4416 = vmax.f32 %v3498, 0.0
        %v4417 = vmax.f32 %v3500, 0.0
        %v4418 = vmax.f32 %v4270, 0.0
        %v4419 = vmax.f32 %v4272, 0.0
        %v4420 = vmax.f32 %v3504, 0.0
        %v4421 = vmax.f32 %v3506, 0.0
        %v4422 = vmax.f32 %v4276, 0.0
        %v4423 = vmax.f32 %v4278, 0.0
        %v4424 = vmax.f32 %v3508, 0.0
        %v4425 = vmax.f32 %v3510, 0.0
        %v4426 = vmax.f32 %v4280, 0.0
        %v4427 = vmax.f32 %v4282, 0.0
        %v4428 = vmax.f32 %v3514, 0.0
        %v4429 = vmax.f32 %v3516, 0.0
        %v4430 = vmax.f32 %v4286, 0.0
        %v4431 = vmax.f32 %v4288, 0.0
        %v4432 = vmax.f32 %v3518, 0.0
        %v4433 = vmax.f32 %v3520, 0.0
        %v4434 = vmax.f32 %v4290, 0.0
        %v4435 = vmax.f32 %v4292, 0.0
        %v4436 = vmax.f32 %v3524, 0.0
        %v4437 = vmax.f32 %v3526, 0.0
        %v4438 = vmax.f32 %v4296, 0.0
        %v4439 = vmax.f32 %v4298, 0.0
        %v4440 = vmax.f32 %v3528, 0.0
        %v4441 = vmax.f32 %v3530, 0.0
        %v4442 = vmax.f32 %v4300, 0.0
        %v4443 = vmax.f32 %v4302, 0.0
        %v4444 = vmax.f32 %v3534, 0.0
        %v4445 = vmax.f32 %v3536, 0.0
        %v4446 = vmax.f32 %v4306, 0.0
        %v4447 = vmax.f32 %v4308, 0.0
        %v4448 = vmax.f32 %v3538, 0.0
        %v4449 = vmax.f32 %v3540, 0.0
        %v4450 = vmax.f32 %v4310, 0.0
        %v4451 = vmax.f32 %v4312, 0.0
        %v4452 = vmax.f32 %v3544, 0.0
        %v4453 = vmax.f32 %v3546, 0.0
        %v4454 = vmax.f32 %v4316, 0.0
        %v4455 = vmax.f32 %v4318, 0.0
        %v4456 = vmax.f32 %v3548, 0.0
        %v4457 = vmax.f32 %v3550, 0.0
        %v4458 = vmax.f32 %v4320, 0.0
        %v4459 = vmax.f32 %v4322, 0.0
        %v4460 = vmax.f32 %v3554, 0.0
        %v4461 = vmax.f32 %v3556, 0.0
        %v4462 = vmax.f32 %v4326, 0.0
        %v4463 = vmax.f32 %v4328, 0.0
        %v4464 = vmax.f32 %v3558, 0.0
        %v4465 = vmax.f32 %v3560, 0.0
        %v4466 = vmax.f32 %v4330, 0.0
        %v4467 = vmax.f32 %v4332, 0.0
        %v4468 = vmax.f32 %v3564, 0.0
        %v4469 = vmax.f32 %v3566, 0.0
        %v4470 = vmax.f32 %v4336, 0.0
        %v4471 = vmax.f32 %v4338, 0.0
        %v4472 = vmax.f32 %v3568, 0.0
        %v4473 = vmax.f32 %v3570, 0.0
        %v4474 = vmax.f32 %v4340, 0.0
        %v4475 = vmax.f32 %v4342, 0.0
        %v4476 = vmax.f32 %v3574, 0.0
        %v4477 = vmax.f32 %v3576, 0.0
        %v4478 = vmax.f32 %v4346, 0.0
        %v4479 = vmax.f32 %v4348, 0.0
        %v4480 = vmax.f32 %v3578, 0.0
        %v4481 = vmax.f32 %v3580, 0.0
        %v4482 = vmax.f32 %v4350, 0.0
        %v4483 = vmax.f32 %v4352, 0.0
        %v4484 = vmax.f32 %v3584, 0.0
        %v4485 = vmax.f32 %v3586, 0.0
        %v4486 = vmax.f32 %v4356, 0.0
        %v4487 = vmax.f32 %v4358, 0.0
        %v4488 = vmax.f32 %v3588, 0.0
        %v4489 = vmax.f32 %v3590, 0.0
        %v4490 = vmax.f32 %v4360, 0.0
        %v4491 = vmax.f32 %v4362, 0.0
        %v4492 = vsel %vm462, 1, 0
        %v4493 = vsel %vm463, 1, 0
        %v4494 = vsel %vm464, 1, 0
        %v4495 = vsel %vm465, 1, 0
        %v4496 = vsel %vm466, 1, 0
        %v4497 = vsel %vm467, 1, 0
        %v4498 = vsel %vm468, 1, 0
        %v4499 = vsel %vm469, 1, 0
        %v4500 = vsel %vm470, 1, 0
        %v4501 = vsel %vm471, 1, 0
        %v4502 = vsel %vm472, 1, 0
        %v4503 = vsel %vm473, 1, 0
        %v4504 = vsel %vm474, 1, 0
        %v4505 = vsel %vm475, 1, 0
        %v4506 = vsel %vm476, 1, 0
        %v4507 = vsel %vm477, 1, 0
        %v4508 = vsel %vm478, 1, 0
        %v4509 = vsel %vm479, 1, 0
        %v4510 = vsel %vm480, 1, 0
        %v4511 = vsel %vm481, 1, 0
        %v4512 = vsel %vm482, 1, 0
        %v4513 = vsel %vm483, 1, 0
        %v4514 = vsel %vm484, 1, 0
        %v4515 = vsel %vm485, 1, 0
        %v4516 = vsel %vm486, 1, 0
        %v4517 = vsel %vm487, 1, 0
        %v4518 = vsel %vm488, 1, 0
        %v4519 = vsel %vm489, 1, 0
        %v4520 = vsel %vm490, 1, 0
        %v4521 = vsel %vm491, 1, 0
        %v4522 = vsel %vm492, 1, 0
        %v4523 = vsel %vm493, 1, 0
        %vm4524 = vcmp.eq.s32.totalorder %v4492, 1
        %vm4525 = vcmp.eq.s32.totalorder %v4493, 1
        %vm4526 = vcmp.eq.s32.totalorder %v4494, 1
        %vm4527 = vcmp.eq.s32.totalorder %v4495, 1
        %vm4528 = vcmp.eq.s32.totalorder %v4496, 1
        %vm4529 = vcmp.eq.s32.totalorder %v4497, 1
        %vm4530 = vcmp.eq.s32.totalorder %v4498, 1
        %vm4531 = vcmp.eq.s32.totalorder %v4499, 1
        %vm4532 = vcmp.eq.s32.totalorder %v4500, 1
        %vm4533 = vcmp.eq.s32.totalorder %v4501, 1
        %vm4534 = vcmp.eq.s32.totalorder %v4502, 1
        %vm4535 = vcmp.eq.s32.totalorder %v4503, 1
        %vm4536 = vcmp.eq.s32.totalorder %v4504, 1
        %vm4537 = vcmp.eq.s32.totalorder %v4505, 1
        %vm4538 = vcmp.eq.s32.totalorder %v4506, 1
        %vm4539 = vcmp.eq.s32.totalorder %v4507, 1
        %vm4540 = vcmp.eq.s32.totalorder %v4508, 1
        %vm4541 = vcmp.eq.s32.totalorder %v4509, 1
        %vm4542 = vcmp.eq.s32.totalorder %v4510, 1
        %vm4543 = vcmp.eq.s32.totalorder %v4511, 1
        %vm4544 = vcmp.eq.s32.totalorder %v4512, 1
        %vm4545 = vcmp.eq.s32.totalorder %v4513, 1
        %vm4546 = vcmp.eq.s32.totalorder %v4514, 1
        %vm4547 = vcmp.eq.s32.totalorder %v4515, 1
        %vm4548 = vcmp.eq.s32.totalorder %v4516, 1
        %vm4549 = vcmp.eq.s32.totalorder %v4517, 1
        %vm4550 = vcmp.eq.s32.totalorder %v4518, 1
        %vm4551 = vcmp.eq.s32.totalorder %v4519, 1
        %vm4552 = vcmp.eq.s32.totalorder %v4520, 1
        %vm4553 = vcmp.eq.s32.totalorder %v4521, 1
        %vm4554 = vcmp.eq.s32.totalorder %v4522, 1
        %vm4555 = vcmp.eq.s32.totalorder %v4523, 1
        %v4556 = vsel %vm4524, %v4364, 0.0
        %v4557 = vsel %vm4524, %v4365, 0.0
        %v4558 = vsel %vm4524, %v4366, 0.0
        %v4559 = vsel %vm4524, %v4367, 0.0
        %v4560 = vsel %vm4525, %v4368, 0.0
        %v4561 = vsel %vm4525, %v4369, 0.0
        %v4562 = vsel %vm4525, %v4370, 0.0
        %v4563 = vsel %vm4525, %v4371, 0.0
        %v4564 = vsel %vm4526, %v4372, 0.0
        %v4565 = vsel %vm4526, %v4373, 0.0
        %v4566 = vsel %vm4526, %v4374, 0.0
        %v4567 = vsel %vm4526, %v4375, 0.0
        %v4568 = vsel %vm4527, %v4376, 0.0
        %v4569 = vsel %vm4527, %v4377, 0.0
        %v4570 = vsel %vm4527, %v4378, 0.0
        %v4571 = vsel %vm4527, %v4379, 0.0
        %v4572 = vsel %vm4528, %v4380, 0.0
        %v4573 = vsel %vm4528, %v4381, 0.0
        %v4574 = vsel %vm4528, %v4382, 0.0
        %v4575 = vsel %vm4528, %v4383, 0.0
        %v4576 = vsel %vm4529, %v4384, 0.0
        %v4577 = vsel %vm4529, %v4385, 0.0
        %v4578 = vsel %vm4529, %v4386, 0.0
        %v4579 = vsel %vm4529, %v4387, 0.0
        %v4580 = vsel %vm4530, %v4388, 0.0
        %v4581 = vsel %vm4530, %v4389, 0.0
        %v4582 = vsel %vm4530, %v4390, 0.0
        %v4583 = vsel %vm4530, %v4391, 0.0
        %v4584 = vsel %vm4531, %v4392, 0.0
        %v4585 = vsel %vm4531, %v4393, 0.0
        %v4586 = vsel %vm4531, %v4394, 0.0
        %v4587 = vsel %vm4531, %v4395, 0.0
        %v4588 = vsel %vm4532, %v4396, 0.0
        %v4589 = vsel %vm4532, %v4397, 0.0
        %v4590 = vsel %vm4532, %v4398, 0.0
        %v4591 = vsel %vm4532, %v4399, 0.0
        %v4592 = vsel %vm4533, %v4400, 0.0
        %v4593 = vsel %vm4533, %v4401, 0.0
        %v4594 = vsel %vm4533, %v4402, 0.0
        %v4595 = vsel %vm4533, %v4403, 0.0
        %v4596 = vsel %vm4534, %v4404, 0.0
        %v4597 = vsel %vm4534, %v4405, 0.0
        %v4598 = vsel %vm4534, %v4406, 0.0
        %v4599 = vsel %vm4534, %v4407, 0.0
        %v4600 = vsel %vm4535, %v4408, 0.0
        %v4601 = vsel %vm4535, %v4409, 0.0
        %v4602 = vsel %vm4535, %v4410, 0.0
        %v4603 = vsel %vm4535, %v4411, 0.0
        %v4604 = vsel %vm4536, %v4412, 0.0
        %v4605 = vsel %vm4536, %v4413, 0.0
        %v4606 = vsel %vm4536, %v4414, 0.0
        %v4607 = vsel %vm4536, %v4415, 0.0
        %v4608 = vsel %vm4537, %v4416, 0.0
        %v4609 = vsel %vm4537, %v4417, 0.0
        %v4610 = vsel %vm4537, %v4418, 0.0
        %v4611 = vsel %vm4537, %v4419, 0.0
        %v4612 = vsel %vm4538, %v4420, 0.0
        %v4613 = vsel %vm4538, %v4421, 0.0
        %v4614 = vsel %vm4538, %v4422, 0.0
        %v4615 = vsel %vm4538, %v4423, 0.0
        %v4616 = vsel %vm4539, %v4424, 0.0
        %v4617 = vsel %vm4539, %v4425, 0.0
        %v4618 = vsel %vm4539, %v4426, 0.0
        %v4619 = vsel %vm4539, %v4427, 0.0
        %v4620 = vsel %vm4540, %v4428, 0.0
        %v4621 = vsel %vm4540, %v4429, 0.0
        %v4622 = vsel %vm4540, %v4430, 0.0
        %v4623 = vsel %vm4540, %v4431, 0.0
        %v4624 = vsel %vm4541, %v4432, 0.0
        %v4625 = vsel %vm4541, %v4433, 0.0
        %v4626 = vsel %vm4541, %v4434, 0.0
        %v4627 = vsel %vm4541, %v4435, 0.0
        %v4628 = vsel %vm4542, %v4436, 0.0
        %v4629 = vsel %vm4542, %v4437, 0.0
        %v4630 = vsel %vm4542, %v4438, 0.0
        %v4631 = vsel %vm4542, %v4439, 0.0
        %v4632 = vsel %vm4543, %v4440, 0.0
        %v4633 = vsel %vm4543, %v4441, 0.0
        %v4634 = vsel %vm4543, %v4442, 0.0
        %v4635 = vsel %vm4543, %v4443, 0.0
        %v4636 = vsel %vm4544, %v4444, 0.0
        %v4637 = vsel %vm4544, %v4445, 0.0
        %v4638 = vsel %vm4544, %v4446, 0.0
        %v4639 = vsel %vm4544, %v4447, 0.0
        %v4640 = vsel %vm4545, %v4448, 0.0
        %v4641 = vsel %vm4545, %v4449, 0.0
        %v4642 = vsel %vm4545, %v4450, 0.0
        %v4643 = vsel %vm4545, %v4451, 0.0
        %v4644 = vsel %vm4546, %v4452, 0.0
        %v4645 = vsel %vm4546, %v4453, 0.0
        %v4646 = vsel %vm4546, %v4454, 0.0
        %v4647 = vsel %vm4546, %v4455, 0.0
        %v4648 = vsel %vm4547, %v4456, 0.0
        %v4649 = vsel %vm4547, %v4457, 0.0
        %v4650 = vsel %vm4547, %v4458, 0.0
        %v4651 = vsel %vm4547, %v4459, 0.0
        %v4652 = vsel %vm4548, %v4460, 0.0
        %v4653 = vsel %vm4548, %v4461, 0.0
        %v4654 = vsel %vm4548, %v4462, 0.0
        %v4655 = vsel %vm4548, %v4463, 0.0
        %v4656 = vsel %vm4549, %v4464, 0.0
        %v4657 = vsel %vm4549, %v4465, 0.0
        %v4658 = vsel %vm4549, %v4466, 0.0
        %v4659 = vsel %vm4549, %v4467, 0.0
        %v4660 = vsel %vm4550, %v4468, 0.0
        %v4661 = vsel %vm4550, %v4469, 0.0
        %v4662 = vsel %vm4550, %v4470, 0.0
        %v4663 = vsel %vm4550, %v4471, 0.0
        %v4664 = vsel %vm4551, %v4472, 0.0
        %v4665 = vsel %vm4551, %v4473, 0.0
        %v4666 = vsel %vm4551, %v4474, 0.0
        %v4667 = vsel %vm4551, %v4475, 0.0
        %v4668 = vsel %vm4552, %v4476, 0.0
        %v4669 = vsel %vm4552, %v4477, 0.0
        %v4670 = vsel %vm4552, %v4478, 0.0
        %v4671 = vsel %vm4552, %v4479, 0.0
        %v4672 = vsel %vm4553, %v4480, 0.0
        %v4673 = vsel %vm4553, %v4481, 0.0
        %v4674 = vsel %vm4553, %v4482, 0.0
        %v4675 = vsel %vm4553, %v4483, 0.0
        %v4676 = vsel %vm4554, %v4484, 0.0
        %v4677 = vsel %vm4554, %v4485, 0.0
        %v4678 = vsel %vm4554, %v4486, 0.0
        %v4679 = vsel %vm4554, %v4487, 0.0
        %v4680 = vsel %vm4555, %v4488, 0.0
        %v4681 = vsel %vm4555, %v4489, 0.0
        %v4682 = vsel %vm4555, %v4490, 0.0
        %v4683 = vsel %vm4555, %v4491, 0.0
        %v4684 = vpack.c.bf16 %v4560, %v4556
        %v4685 = vpack.c.bf16 %v4561, %v4557
        %v4686 = vpack.c.bf16 %v4562, %v4558
        %v4687 = vpack.c.bf16 %v4563, %v4559
        %v4688 = vpack.c.bf16 %v4568, %v4564
        %v4689 = vpack.c.bf16 %v4569, %v4565
        %v4690 = vpack.c.bf16 %v4570, %v4566
        %v4691 = vpack.c.bf16 %v4571, %v4567
        %v4692 = vpack.c.bf16 %v4576, %v4572
        %v4693 = vpack.c.bf16 %v4577, %v4573
        %v4694 = vpack.c.bf16 %v4578, %v4574
        %v4695 = vpack.c.bf16 %v4579, %v4575
        %v4696 = vpack.c.bf16 %v4584, %v4580
        %v4697 = vpack.c.bf16 %v4585, %v4581
        %v4698 = vpack.c.bf16 %v4586, %v4582
        %v4699 = vpack.c.bf16 %v4587, %v4583
        %v4700 = vpack.c.bf16 %v4592, %v4588
        %v4701 = vpack.c.bf16 %v4593, %v4589
        %v4702 = vpack.c.bf16 %v4594, %v4590
        %v4703 = vpack.c.bf16 %v4595, %v4591
        %v4704 = vpack.c.bf16 %v4600, %v4596
        %v4705 = vpack.c.bf16 %v4601, %v4597
        %v4706 = vpack.c.bf16 %v4602, %v4598
        %v4707 = vpack.c.bf16 %v4603, %v4599
        %v4708 = vpack.c.bf16 %v4608, %v4604
        %v4709 = vpack.c.bf16 %v4609, %v4605
        %v4710 = vpack.c.bf16 %v4610, %v4606
        %v4711 = vpack.c.bf16 %v4611, %v4607
        %v4712 = vpack.c.bf16 %v4616, %v4612
        %v4713 = vpack.c.bf16 %v4617, %v4613
        %v4714 = vpack.c.bf16 %v4618, %v4614
        %v4715 = vpack.c.bf16 %v4619, %v4615
        %v4716 = vpack.c.bf16 %v4624, %v4620
        %v4717 = vpack.c.bf16 %v4625, %v4621
        %v4718 = vpack.c.bf16 %v4626, %v4622
        %v4719 = vpack.c.bf16 %v4627, %v4623
        %v4720 = vpack.c.bf16 %v4632, %v4628
        %v4721 = vpack.c.bf16 %v4633, %v4629
        %v4722 = vpack.c.bf16 %v4634, %v4630
        %v4723 = vpack.c.bf16 %v4635, %v4631
        %v4724 = vpack.c.bf16 %v4640, %v4636
        %v4725 = vpack.c.bf16 %v4641, %v4637
        %v4726 = vpack.c.bf16 %v4642, %v4638
        %v4727 = vpack.c.bf16 %v4643, %v4639
        %v4728 = vpack.c.bf16 %v4648, %v4644
        %v4729 = vpack.c.bf16 %v4649, %v4645
        %v4730 = vpack.c.bf16 %v4650, %v4646
        %v4731 = vpack.c.bf16 %v4651, %v4647
        %v4732 = vpack.c.bf16 %v4656, %v4652
        %v4733 = vpack.c.bf16 %v4657, %v4653
        %v4734 = vpack.c.bf16 %v4658, %v4654
        %v4735 = vpack.c.bf16 %v4659, %v4655
        %v4736 = vpack.c.bf16 %v4664, %v4660
        %v4737 = vpack.c.bf16 %v4665, %v4661
        %v4738 = vpack.c.bf16 %v4666, %v4662
        %v4739 = vpack.c.bf16 %v4667, %v4663
        %v4740 = vpack.c.bf16 %v4672, %v4668
        %v4741 = vpack.c.bf16 %v4673, %v4669
        %v4742 = vpack.c.bf16 %v4674, %v4670
        %v4743 = vpack.c.bf16 %v4675, %v4671
        %v4744 = vpack.c.bf16 %v4680, %v4676
        %v4745 = vpack.c.bf16 %v4681, %v4677
        %v4746 = vpack.c.bf16 %v4682, %v4678
        %v4747 = vpack.c.bf16 %v4683, %v4679
        %v4748 = vld [vmem:[#allocation11] sm:$0xff]
        %v4749 = vld [vmem:[#allocation11 + $0x8] sm:$0xff]
        %v4750 = vld [vmem:[#allocation11 + $0x10] sm:$0xff]
        %v4751 = vld [vmem:[#allocation11 + $0x18] sm:$0xff]
        %v4752 = vld [vmem:[#allocation11 + $0x20] sm:$0xff]
        %v4753 = vld [vmem:[#allocation11 + $0x28] sm:$0xff]
        %v4754 = vld [vmem:[#allocation11 + $0x30] sm:$0xff]
        %v4755 = vld [vmem:[#allocation11 + $0x38] sm:$0xff]
        %v4756 = vld [vmem:[#allocation11 + $0x40] sm:$0xff]
        %v4757 = vld [vmem:[#allocation11 + $0x48] sm:$0xff]
        %v4758 = vld [vmem:[#allocation11 + $0x50] sm:$0xff]
        %v4759 = vld [vmem:[#allocation11 + $0x58] sm:$0xff]
        %v4760 = vld [vmem:[#allocation11 + $0x60] sm:$0xff]
        %v4761 = vld [vmem:[#allocation11 + $0x68] sm:$0xff]
        %v4762 = vld [vmem:[#allocation11 + $0x70] sm:$0xff]
        %v4763 = vld [vmem:[#allocation11 + $0x78] sm:$0xff]
        %v4764 = vld [vmem:[#allocation11 + $0x80] sm:$0xff]
        %v4765 = vld [vmem:[#allocation11 + $0x88] sm:$0xff]
        %v4766 = vld [vmem:[#allocation11 + $0x90] sm:$0xff]
        %v4767 = vld [vmem:[#allocation11 + $0x98] sm:$0xff]
        %v4768 = vld [vmem:[#allocation11 + $0xa0] sm:$0xff]
        %v4769 = vld [vmem:[#allocation11 + $0xa8] sm:$0xff]
        %v4770 = vld [vmem:[#allocation11 + $0xb0] sm:$0xff]
        %v4771 = vld [vmem:[#allocation11 + $0xb8] sm:$0xff]
        %v4772 = vld [vmem:[#allocation11 + $0xc0] sm:$0xff]
        %v4773 = vld [vmem:[#allocation11 + $0xc8] sm:$0xff]
        %v4774 = vld [vmem:[#allocation11 + $0xd0] sm:$0xff]
        %v4775 = vld [vmem:[#allocation11 + $0xd8] sm:$0xff]
        %v4776 = vld [vmem:[#allocation11 + $0xe0] sm:$0xff]
        %v4777 = vld [vmem:[#allocation11 + $0xe8] sm:$0xff]
        %v4778 = vld [vmem:[#allocation11 + $0xf0] sm:$0xff]
        %v4779 = vld [vmem:[#allocation11 + $0xf8] sm:$0xff]
        %v4780 = vld [vmem:[#allocation11 + $0x100] sm:$0xff]
        %v4781 = vld [vmem:[#allocation11 + $0x108] sm:$0xff]
        %v4782 = vld [vmem:[#allocation11 + $0x110] sm:$0xff]
        %v4783 = vld [vmem:[#allocation11 + $0x118] sm:$0xff]
        %v4784 = vld [vmem:[#allocation11 + $0x120] sm:$0xff]
        %v4785 = vld [vmem:[#allocation11 + $0x128] sm:$0xff]
        %v4786 = vld [vmem:[#allocation11 + $0x130] sm:$0xff]
        %v4787 = vld [vmem:[#allocation11 + $0x138] sm:$0xff]
        %v4788 = vld [vmem:[#allocation11 + $0x140] sm:$0xff]
        %v4789 = vld [vmem:[#allocation11 + $0x148] sm:$0xff]
        %v4790 = vld [vmem:[#allocation11 + $0x150] sm:$0xff]
        %v4791 = vld [vmem:[#allocation11 + $0x158] sm:$0xff]
        %v4792 = vld [vmem:[#allocation11 + $0x160] sm:$0xff]
        %v4793 = vld [vmem:[#allocation11 + $0x168] sm:$0xff]
        %v4794 = vld [vmem:[#allocation11 + $0x170] sm:$0xff]
        %v4795 = vld [vmem:[#allocation11 + $0x178] sm:$0xff]
        %v4796 = vld [vmem:[#allocation11 + $0x180] sm:$0xff]
        %v4797 = vld [vmem:[#allocation11 + $0x188] sm:$0xff]
        %v4798 = vld [vmem:[#allocation11 + $0x190] sm:$0xff]
        %v4799 = vld [vmem:[#allocation11 + $0x198] sm:$0xff]
        %v4800 = vld [vmem:[#allocation11 + $0x1a0] sm:$0xff]
        %v4801 = vld [vmem:[#allocation11 + $0x1a8] sm:$0xff]
        %v4802 = vld [vmem:[#allocation11 + $0x1b0] sm:$0xff]
        %v4803 = vld [vmem:[#allocation11 + $0x1b8] sm:$0xff]
        %v4804 = vld [vmem:[#allocation11 + $0x1c0] sm:$0xff]
        %v4805 = vld [vmem:[#allocation11 + $0x1c8] sm:$0xff]
        %v4806 = vld [vmem:[#allocation11 + $0x1d0] sm:$0xff]
        %v4807 = vld [vmem:[#allocation11 + $0x1d8] sm:$0xff]
        %v4808 = vld [vmem:[#allocation11 + $0x1e0] sm:$0xff]
        %v4809 = vld [vmem:[#allocation11 + $0x1e8] sm:$0xff]
        %v4810 = vld [vmem:[#allocation11 + $0x1f0] sm:$0xff]
        %v4811 = vld [vmem:[#allocation11 + $0x1f8] sm:$0xff]
        %v4812 = vld [vmem:[#allocation11 + $0x200] sm:$0xff]
        %v4813 = vld [vmem:[#allocation11 + $0x208] sm:$0xff]
        %v4814 = vld [vmem:[#allocation11 + $0x210] sm:$0xff]
        %v4815 = vld [vmem:[#allocation11 + $0x218] sm:$0xff]
        %v4816 = vld [vmem:[#allocation11 + $0x220] sm:$0xff]
        %v4817 = vld [vmem:[#allocation11 + $0x228] sm:$0xff]
        %v4818 = vld [vmem:[#allocation11 + $0x230] sm:$0xff]
        %v4819 = vld [vmem:[#allocation11 + $0x238] sm:$0xff]
        %v4820 = vld [vmem:[#allocation11 + $0x240] sm:$0xff]
        %v4821 = vld [vmem:[#allocation11 + $0x248] sm:$0xff]
        %v4822 = vld [vmem:[#allocation11 + $0x250] sm:$0xff]
        %v4823 = vld [vmem:[#allocation11 + $0x258] sm:$0xff]
        %v4824 = vld [vmem:[#allocation11 + $0x260] sm:$0xff]
        %v4825 = vld [vmem:[#allocation11 + $0x268] sm:$0xff]
        %v4826 = vld [vmem:[#allocation11 + $0x270] sm:$0xff]
        %v4827 = vld [vmem:[#allocation11 + $0x278] sm:$0xff]
        %v4828 = vld [vmem:[#allocation11 + $0x280] sm:$0xff]
        %v4829 = vld [vmem:[#allocation11 + $0x288] sm:$0xff]
        %v4830 = vld [vmem:[#allocation11 + $0x290] sm:$0xff]
        %v4831 = vld [vmem:[#allocation11 + $0x298] sm:$0xff]
        %v4832 = vld [vmem:[#allocation11 + $0x2a0] sm:$0xff]
        %v4833 = vld [vmem:[#allocation11 + $0x2a8] sm:$0xff]
        %v4834 = vld [vmem:[#allocation11 + $0x2b0] sm:$0xff]
        %v4835 = vld [vmem:[#allocation11 + $0x2b8] sm:$0xff]
        %v4836 = vld [vmem:[#allocation11 + $0x2c0] sm:$0xff]
        %v4837 = vld [vmem:[#allocation11 + $0x2c8] sm:$0xff]
        %v4838 = vld [vmem:[#allocation11 + $0x2d0] sm:$0xff]
        %v4839 = vld [vmem:[#allocation11 + $0x2d8] sm:$0xff]
        %v4840 = vld [vmem:[#allocation11 + $0x2e0] sm:$0xff]
        %v4841 = vld [vmem:[#allocation11 + $0x2e8] sm:$0xff]
        %v4842 = vld [vmem:[#allocation11 + $0x2f0] sm:$0xff]
        %v4843 = vld [vmem:[#allocation11 + $0x2f8] sm:$0xff]
        %v4844 = vld [vmem:[#allocation11 + $0x300] sm:$0xff]
        %v4845 = vld [vmem:[#allocation11 + $0x308] sm:$0xff]
        %v4846 = vld [vmem:[#allocation11 + $0x310] sm:$0xff]
        %v4847 = vld [vmem:[#allocation11 + $0x318] sm:$0xff]
        %v4848 = vld [vmem:[#allocation11 + $0x320] sm:$0xff]
        %v4849 = vld [vmem:[#allocation11 + $0x328] sm:$0xff]
        %v4850 = vld [vmem:[#allocation11 + $0x330] sm:$0xff]
        %v4851 = vld [vmem:[#allocation11 + $0x338] sm:$0xff]
        %v4852 = vld [vmem:[#allocation11 + $0x340] sm:$0xff]
        %v4853 = vld [vmem:[#allocation11 + $0x348] sm:$0xff]
        %v4854 = vld [vmem:[#allocation11 + $0x350] sm:$0xff]
        %v4855 = vld [vmem:[#allocation11 + $0x358] sm:$0xff]
        %v4856 = vld [vmem:[#allocation11 + $0x360] sm:$0xff]
        %v4857 = vld [vmem:[#allocation11 + $0x368] sm:$0xff]
        %v4858 = vld [vmem:[#allocation11 + $0x370] sm:$0xff]
        %v4859 = vld [vmem:[#allocation11 + $0x378] sm:$0xff]
        %v4860 = vld [vmem:[#allocation11 + $0x380] sm:$0xff]
        %v4861 = vld [vmem:[#allocation11 + $0x388] sm:$0xff]
        %v4862 = vld [vmem:[#allocation11 + $0x390] sm:$0xff]
        %v4863 = vld [vmem:[#allocation11 + $0x398] sm:$0xff]
        %v4864 = vld [vmem:[#allocation11 + $0x3a0] sm:$0xff]
        %v4865 = vld [vmem:[#allocation11 + $0x3a8] sm:$0xff]
        %v4866 = vld [vmem:[#allocation11 + $0x3b0] sm:$0xff]
        %v4867 = vld [vmem:[#allocation11 + $0x3b8] sm:$0xff]
        %v4868 = vld [vmem:[#allocation11 + $0x3c0] sm:$0xff]
        %v4869 = vld [vmem:[#allocation11 + $0x3c8] sm:$0xff]
        %v4870 = vld [vmem:[#allocation11 + $0x3d0] sm:$0xff]
        %v4871 = vld [vmem:[#allocation11 + $0x3d8] sm:$0xff]
        %v4872 = vld [vmem:[#allocation11 + $0x3e0] sm:$0xff]
        %v4873 = vld [vmem:[#allocation11 + $0x3e8] sm:$0xff]
        %v4874 = vld [vmem:[#allocation11 + $0x3f0] sm:$0xff]
        %v4875 = vld [vmem:[#allocation11 + $0x3f8] sm:$0xff]
        %v4876 = vld [vmem:[#allocation11 + $0x400] sm:$0xff]
        %v4877 = vld [vmem:[#allocation11 + $0x408] sm:$0xff]
        %v4878 = vld [vmem:[#allocation11 + $0x410] sm:$0xff]
        %v4879 = vld [vmem:[#allocation11 + $0x418] sm:$0xff]
        %v4880 = vld [vmem:[#allocation11 + $0x420] sm:$0xff]
        %v4881 = vld [vmem:[#allocation11 + $0x428] sm:$0xff]
        %v4882 = vld [vmem:[#allocation11 + $0x430] sm:$0xff]
        %v4883 = vld [vmem:[#allocation11 + $0x438] sm:$0xff]
        %v4884 = vld [vmem:[#allocation11 + $0x440] sm:$0xff]
        %v4885 = vld [vmem:[#allocation11 + $0x448] sm:$0xff]
        %v4886 = vld [vmem:[#allocation11 + $0x450] sm:$0xff]
        %v4887 = vld [vmem:[#allocation11 + $0x458] sm:$0xff]
        %v4888 = vld [vmem:[#allocation11 + $0x460] sm:$0xff]
        %v4889 = vld [vmem:[#allocation11 + $0x468] sm:$0xff]
        %v4890 = vld [vmem:[#allocation11 + $0x470] sm:$0xff]
        %v4891 = vld [vmem:[#allocation11 + $0x478] sm:$0xff]
        %v4892 = vld [vmem:[#allocation11 + $0x480] sm:$0xff]
        %v4893 = vld [vmem:[#allocation11 + $0x488] sm:$0xff]
        %v4894 = vld [vmem:[#allocation11 + $0x490] sm:$0xff]
        %v4895 = vld [vmem:[#allocation11 + $0x498] sm:$0xff]
        %v4896 = vld [vmem:[#allocation11 + $0x4a0] sm:$0xff]
        %v4897 = vld [vmem:[#allocation11 + $0x4a8] sm:$0xff]
        %v4898 = vld [vmem:[#allocation11 + $0x4b0] sm:$0xff]
        %v4899 = vld [vmem:[#allocation11 + $0x4b8] sm:$0xff]
        %v4900 = vld [vmem:[#allocation11 + $0x4c0] sm:$0xff]
        %v4901 = vld [vmem:[#allocation11 + $0x4c8] sm:$0xff]
        %v4902 = vld [vmem:[#allocation11 + $0x4d0] sm:$0xff]
        %v4903 = vld [vmem:[#allocation11 + $0x4d8] sm:$0xff]
        %v4904 = vld [vmem:[#allocation11 + $0x4e0] sm:$0xff]
        %v4905 = vld [vmem:[#allocation11 + $0x4e8] sm:$0xff]
        %v4906 = vld [vmem:[#allocation11 + $0x4f0] sm:$0xff]
        %v4907 = vld [vmem:[#allocation11 + $0x4f8] sm:$0xff]
        %v4908 = vld [vmem:[#allocation11 + $0x500] sm:$0xff]
        %v4909 = vld [vmem:[#allocation11 + $0x508] sm:$0xff]
        %v4910 = vld [vmem:[#allocation11 + $0x510] sm:$0xff]
        %v4911 = vld [vmem:[#allocation11 + $0x518] sm:$0xff]
        %v4912 = vld [vmem:[#allocation11 + $0x520] sm:$0xff]
        %v4913 = vld [vmem:[#allocation11 + $0x528] sm:$0xff]
        %v4914 = vld [vmem:[#allocation11 + $0x530] sm:$0xff]
        %v4915 = vld [vmem:[#allocation11 + $0x538] sm:$0xff]
        %v4916 = vld [vmem:[#allocation11 + $0x540] sm:$0xff]
        %v4917 = vld [vmem:[#allocation11 + $0x548] sm:$0xff]
        %v4918 = vld [vmem:[#allocation11 + $0x550] sm:$0xff]
        %v4919 = vld [vmem:[#allocation11 + $0x558] sm:$0xff]
        %v4920 = vld [vmem:[#allocation11 + $0x560] sm:$0xff]
        %v4921 = vld [vmem:[#allocation11 + $0x568] sm:$0xff]
        %v4922 = vld [vmem:[#allocation11 + $0x570] sm:$0xff]
        %v4923 = vld [vmem:[#allocation11 + $0x578] sm:$0xff]
        %v4924 = vld [vmem:[#allocation11 + $0x580] sm:$0xff]
        %v4925 = vld [vmem:[#allocation11 + $0x588] sm:$0xff]
        %v4926 = vld [vmem:[#allocation11 + $0x590] sm:$0xff]
        %v4927 = vld [vmem:[#allocation11 + $0x598] sm:$0xff]
        %v4928 = vld [vmem:[#allocation11 + $0x5a0] sm:$0xff]
        %v4929 = vld [vmem:[#allocation11 + $0x5a8] sm:$0xff]
        %v4930 = vld [vmem:[#allocation11 + $0x5b0] sm:$0xff]
        %v4931 = vld [vmem:[#allocation11 + $0x5b8] sm:$0xff]
        %v4932 = vld [vmem:[#allocation11 + $0x5c0] sm:$0xff]
        %v4933 = vld [vmem:[#allocation11 + $0x5c8] sm:$0xff]
        %v4934 = vld [vmem:[#allocation11 + $0x5d0] sm:$0xff]
        %v4935 = vld [vmem:[#allocation11 + $0x5d8] sm:$0xff]
        %v4936 = vld [vmem:[#allocation11 + $0x5e0] sm:$0xff]
        %v4937 = vld [vmem:[#allocation11 + $0x5e8] sm:$0xff]
        %v4938 = vld [vmem:[#allocation11 + $0x5f0] sm:$0xff]
        %v4939 = vld [vmem:[#allocation11 + $0x5f8] sm:$0xff]
        %v4940 = vld [vmem:[%s4] sm:$0x3f]
        %v4942 = vlaneseq
        %v4943 = vshrl.u32 %v4942, 7
        %v4944 = vsub.s32 0, %v4943
        %v4945 = vrot.slane %v4940, %v4944
        %v4946 = vlaneseq
        %v4947 = vshrl.u32 %v4946, 7
        %v4948 = vsub.s32 1, %v4947
        %v4949 = vrot.slane %v4940, %v4948
        %v4950 = vlaneseq
        %v4951 = vshrl.u32 %v4950, 7
        %v4952 = vsub.s32 2, %v4951
        %v4953 = vrot.slane %v4940, %v4952
        %v4954 = vlaneseq
        %v4955 = vshrl.u32 %v4954, 7
        %v4956 = vsub.s32 3, %v4955
        %v4957 = vrot.slane %v4940, %v4956
        %v4958 = vlaneseq
        %v4959 = vshrl.u32 %v4958, 7
        %v4960 = vsub.s32 4, %v4959
        %v4961 = vrot.slane %v4940, %v4960
        %v4962 = vlaneseq
        %v4963 = vshrl.u32 %v4962, 7
        %v4964 = vsub.s32 5, %v4963
        %v4965 = vrot.slane %v4940, %v4964
        %v5164 = vunpack.c.l.b16 %v4748
        %v5165 = vunpack.c.h.b16 %v4748
        %v5166 = vunpack.c.l.b16 %v4749
        %v5167 = vunpack.c.h.b16 %v4749
        %v5168 = vunpack.c.l.b16 %v4750
        %v5169 = vunpack.c.h.b16 %v4750
        %v5170 = vunpack.c.l.b16 %v4751
        %v5171 = vunpack.c.h.b16 %v4751
        %v5172 = vunpack.c.l.b16 %v4752
        %v5173 = vunpack.c.h.b16 %v4752
        %v5174 = vunpack.c.l.b16 %v4753
        %v5175 = vunpack.c.h.b16 %v4753
        %v5176 = vunpack.c.l.b16 %v4754
        %v5177 = vunpack.c.h.b16 %v4754
        %v5178 = vunpack.c.l.b16 %v4755
        %v5179 = vunpack.c.h.b16 %v4755
        %v5180 = vunpack.c.l.b16 %v4756
        %v5181 = vunpack.c.h.b16 %v4756
        %v5182 = vunpack.c.l.b16 %v4757
        %v5183 = vunpack.c.h.b16 %v4757
        %v5184 = vunpack.c.l.b16 %v4758
        %v5185 = vunpack.c.h.b16 %v4758
        %v5186 = vunpack.c.l.b16 %v4759
        %v5187 = vunpack.c.h.b16 %v4759
        %v5188 = vunpack.c.l.b16 %v4760
        %v5189 = vunpack.c.h.b16 %v4760
        %v5190 = vunpack.c.l.b16 %v4761
        %v5191 = vunpack.c.h.b16 %v4761
        %v5192 = vunpack.c.l.b16 %v4762
        %v5193 = vunpack.c.h.b16 %v4762
        %v5194 = vunpack.c.l.b16 %v4763
        %v5195 = vunpack.c.h.b16 %v4763
        %v5196 = vunpack.c.l.b16 %v4764
        %v5197 = vunpack.c.h.b16 %v4764
        %v5198 = vunpack.c.l.b16 %v4765
        %v5199 = vunpack.c.h.b16 %v4765
        %v5200 = vunpack.c.l.b16 %v4766
        %v5201 = vunpack.c.h.b16 %v4766
        %v5202 = vunpack.c.l.b16 %v4767
        %v5203 = vunpack.c.h.b16 %v4767
        %v5204 = vunpack.c.l.b16 %v4768
        %v5205 = vunpack.c.h.b16 %v4768
        %v5206 = vunpack.c.l.b16 %v4769
        %v5207 = vunpack.c.h.b16 %v4769
        %v5208 = vunpack.c.l.b16 %v4770
        %v5209 = vunpack.c.h.b16 %v4770
        %v5210 = vunpack.c.l.b16 %v4771
        %v5211 = vunpack.c.h.b16 %v4771
        %v5212 = vunpack.c.l.b16 %v4772
        %v5213 = vunpack.c.h.b16 %v4772
        %v5214 = vunpack.c.l.b16 %v4773
        %v5215 = vunpack.c.h.b16 %v4773
        %v5216 = vunpack.c.l.b16 %v4774
        %v5217 = vunpack.c.h.b16 %v4774
        %v5218 = vunpack.c.l.b16 %v4775
        %v5219 = vunpack.c.h.b16 %v4775
        %v5220 = vunpack.c.l.b16 %v4776
        %v5221 = vunpack.c.h.b16 %v4776
        %v5222 = vunpack.c.l.b16 %v4777
        %v5223 = vunpack.c.h.b16 %v4777
        %v5224 = vunpack.c.l.b16 %v4778
        %v5225 = vunpack.c.h.b16 %v4778
        %v5226 = vunpack.c.l.b16 %v4779
        %v5227 = vunpack.c.h.b16 %v4779
        %v5228 = vunpack.c.l.b16 %v4780
        %v5229 = vunpack.c.h.b16 %v4780
        %v5230 = vunpack.c.l.b16 %v4781
        %v5231 = vunpack.c.h.b16 %v4781
        %v5232 = vunpack.c.l.b16 %v4782
        %v5233 = vunpack.c.h.b16 %v4782
        %v5234 = vunpack.c.l.b16 %v4783
        %v5235 = vunpack.c.h.b16 %v4783
        %v5236 = vunpack.c.l.b16 %v4784
        %v5237 = vunpack.c.h.b16 %v4784
        %v5238 = vunpack.c.l.b16 %v4785
        %v5239 = vunpack.c.h.b16 %v4785
        %v5240 = vunpack.c.l.b16 %v4786
        %v5241 = vunpack.c.h.b16 %v4786
        %v5242 = vunpack.c.l.b16 %v4787
        %v5243 = vunpack.c.h.b16 %v4787
        %v5244 = vunpack.c.l.b16 %v4788
        %v5245 = vunpack.c.h.b16 %v4788
        %v5246 = vunpack.c.l.b16 %v4789
        %v5247 = vunpack.c.h.b16 %v4789
        %v5248 = vunpack.c.l.b16 %v4790
        %v5249 = vunpack.c.h.b16 %v4790
        %v5250 = vunpack.c.l.b16 %v4791
        %v5251 = vunpack.c.h.b16 %v4791
        %v5252 = vunpack.c.l.b16 %v4792
        %v5253 = vunpack.c.h.b16 %v4792
        %v5254 = vunpack.c.l.b16 %v4793
        %v5255 = vunpack.c.h.b16 %v4793
        %v5256 = vunpack.c.l.b16 %v4794
        %v5257 = vunpack.c.h.b16 %v4794
        %v5258 = vunpack.c.l.b16 %v4795
        %v5259 = vunpack.c.h.b16 %v4795
        %v5260 = vunpack.c.l.b16 %v4796
        %v5261 = vunpack.c.h.b16 %v4796
        %v5262 = vunpack.c.l.b16 %v4797
        %v5263 = vunpack.c.h.b16 %v4797
        %v5264 = vunpack.c.l.b16 %v4798
        %v5265 = vunpack.c.h.b16 %v4798
        %v5266 = vunpack.c.l.b16 %v4799
        %v5267 = vunpack.c.h.b16 %v4799
        %v5268 = vunpack.c.l.b16 %v4800
        %v5269 = vunpack.c.h.b16 %v4800
        %v5270 = vunpack.c.l.b16 %v4801
        %v5271 = vunpack.c.h.b16 %v4801
        %v5272 = vunpack.c.l.b16 %v4802
        %v5273 = vunpack.c.h.b16 %v4802
        %v5274 = vunpack.c.l.b16 %v4803
        %v5275 = vunpack.c.h.b16 %v4803
        %v5276 = vunpack.c.l.b16 %v4804
        %v5277 = vunpack.c.h.b16 %v4804
        %v5278 = vunpack.c.l.b16 %v4805
        %v5279 = vunpack.c.h.b16 %v4805
        %v5280 = vunpack.c.l.b16 %v4806
        %v5281 = vunpack.c.h.b16 %v4806
        %v5282 = vunpack.c.l.b16 %v4807
        %v5283 = vunpack.c.h.b16 %v4807
        %v5284 = vunpack.c.l.b16 %v4808
        %v5285 = vunpack.c.h.b16 %v4808
        %v5286 = vunpack.c.l.b16 %v4809
        %v5287 = vunpack.c.h.b16 %v4809
        %v5288 = vunpack.c.l.b16 %v4810
        %v5289 = vunpack.c.h.b16 %v4810
        %v5290 = vunpack.c.l.b16 %v4811
        %v5291 = vunpack.c.h.b16 %v4811
        %v5292 = vunpack.c.l.b16 %v4812
        %v5293 = vunpack.c.h.b16 %v4812
        %v5294 = vunpack.c.l.b16 %v4813
        %v5295 = vunpack.c.h.b16 %v4813
        %v5296 = vunpack.c.l.b16 %v4814
        %v5297 = vunpack.c.h.b16 %v4814
        %v5298 = vunpack.c.l.b16 %v4815
        %v5299 = vunpack.c.h.b16 %v4815
        %v5300 = vunpack.c.l.b16 %v4816
        %v5301 = vunpack.c.h.b16 %v4816
        %v5302 = vunpack.c.l.b16 %v4817
        %v5303 = vunpack.c.h.b16 %v4817
        %v5304 = vunpack.c.l.b16 %v4818
        %v5305 = vunpack.c.h.b16 %v4818
        %v5306 = vunpack.c.l.b16 %v4819
        %v5307 = vunpack.c.h.b16 %v4819
        %v5308 = vunpack.c.l.b16 %v4820
        %v5309 = vunpack.c.h.b16 %v4820
        %v5310 = vunpack.c.l.b16 %v4821
        %v5311 = vunpack.c.h.b16 %v4821
        %v5312 = vunpack.c.l.b16 %v4822
        %v5313 = vunpack.c.h.b16 %v4822
        %v5314 = vunpack.c.l.b16 %v4823
        %v5315 = vunpack.c.h.b16 %v4823
        %v5316 = vunpack.c.l.b16 %v4824
        %v5317 = vunpack.c.h.b16 %v4824
        %v5318 = vunpack.c.l.b16 %v4825
        %v5319 = vunpack.c.h.b16 %v4825
        %v5320 = vunpack.c.l.b16 %v4826
        %v5321 = vunpack.c.h.b16 %v4826
        %v5322 = vunpack.c.l.b16 %v4827
        %v5323 = vunpack.c.h.b16 %v4827
        %v5324 = vunpack.c.l.b16 %v4828
        %v5325 = vunpack.c.h.b16 %v4828
        %v5326 = vunpack.c.l.b16 %v4829
        %v5327 = vunpack.c.h.b16 %v4829
        %v5328 = vunpack.c.l.b16 %v4830
        %v5329 = vunpack.c.h.b16 %v4830
        %v5330 = vunpack.c.l.b16 %v4831
        %v5331 = vunpack.c.h.b16 %v4831
        %v5332 = vunpack.c.l.b16 %v4832
        %v5333 = vunpack.c.h.b16 %v4832
        %v5334 = vunpack.c.l.b16 %v4833
        %v5335 = vunpack.c.h.b16 %v4833
        %v5336 = vunpack.c.l.b16 %v4834
        %v5337 = vunpack.c.h.b16 %v4834
        %v5338 = vunpack.c.l.b16 %v4835
        %v5339 = vunpack.c.h.b16 %v4835
        %v5340 = vunpack.c.l.b16 %v4836
        %v5341 = vunpack.c.h.b16 %v4836
        %v5342 = vunpack.c.l.b16 %v4837
        %v5343 = vunpack.c.h.b16 %v4837
        %v5344 = vunpack.c.l.b16 %v4838
        %v5345 = vunpack.c.h.b16 %v4838
        %v5346 = vunpack.c.l.b16 %v4839
        %v5347 = vunpack.c.h.b16 %v4839
        %v5348 = vunpack.c.l.b16 %v4840
        %v5349 = vunpack.c.h.b16 %v4840
        %v5350 = vunpack.c.l.b16 %v4841
        %v5351 = vunpack.c.h.b16 %v4841
        %v5352 = vunpack.c.l.b16 %v4842
        %v5353 = vunpack.c.h.b16 %v4842
        %v5354 = vunpack.c.l.b16 %v4843
        %v5355 = vunpack.c.h.b16 %v4843
        %v5356 = vunpack.c.l.b16 %v4844
        %v5357 = vunpack.c.h.b16 %v4844
        %v5358 = vunpack.c.l.b16 %v4845
        %v5359 = vunpack.c.h.b16 %v4845
        %v5360 = vunpack.c.l.b16 %v4846
        %v5361 = vunpack.c.h.b16 %v4846
        %v5362 = vunpack.c.l.b16 %v4847
        %v5363 = vunpack.c.h.b16 %v4847
        %v5364 = vunpack.c.l.b16 %v4848
        %v5365 = vunpack.c.h.b16 %v4848
        %v5366 = vunpack.c.l.b16 %v4849
        %v5367 = vunpack.c.h.b16 %v4849
        %v5368 = vunpack.c.l.b16 %v4850
        %v5369 = vunpack.c.h.b16 %v4850
        %v5370 = vunpack.c.l.b16 %v4851
        %v5371 = vunpack.c.h.b16 %v4851
        %v5372 = vunpack.c.l.b16 %v4852
        %v5373 = vunpack.c.h.b16 %v4852
        %v5374 = vunpack.c.l.b16 %v4853
        %v5375 = vunpack.c.h.b16 %v4853
        %v5376 = vunpack.c.l.b16 %v4854
        %v5377 = vunpack.c.h.b16 %v4854
        %v5378 = vunpack.c.l.b16 %v4855
        %v5379 = vunpack.c.h.b16 %v4855
        %v5380 = vunpack.c.l.b16 %v4856
        %v5381 = vunpack.c.h.b16 %v4856
        %v5382 = vunpack.c.l.b16 %v4857
        %v5383 = vunpack.c.h.b16 %v4857
        %v5384 = vunpack.c.l.b16 %v4858
        %v5385 = vunpack.c.h.b16 %v4858
        %v5386 = vunpack.c.l.b16 %v4859
        %v5387 = vunpack.c.h.b16 %v4859
        %v5388 = vunpack.c.l.b16 %v4860
        %v5389 = vunpack.c.h.b16 %v4860
        %v5390 = vunpack.c.l.b16 %v4861
        %v5391 = vunpack.c.h.b16 %v4861
        %v5392 = vunpack.c.l.b16 %v4862
        %v5393 = vunpack.c.h.b16 %v4862
        %v5394 = vunpack.c.l.b16 %v4863
        %v5395 = vunpack.c.h.b16 %v4863
        %v5396 = vunpack.c.l.b16 %v4864
        %v5397 = vunpack.c.h.b16 %v4864
        %v5398 = vunpack.c.l.b16 %v4865
        %v5399 = vunpack.c.h.b16 %v4865
        %v5400 = vunpack.c.l.b16 %v4866
        %v5401 = vunpack.c.h.b16 %v4866
        %v5402 = vunpack.c.l.b16 %v4867
        %v5403 = vunpack.c.h.b16 %v4867
        %v5404 = vunpack.c.l.b16 %v4868
        %v5405 = vunpack.c.h.b16 %v4868
        %v5406 = vunpack.c.l.b16 %v4869
        %v5407 = vunpack.c.h.b16 %v4869
        %v5408 = vunpack.c.l.b16 %v4870
        %v5409 = vunpack.c.h.b16 %v4870
        %v5410 = vunpack.c.l.b16 %v4871
        %v5411 = vunpack.c.h.b16 %v4871
        %v5412 = vunpack.c.l.b16 %v4872
        %v5413 = vunpack.c.h.b16 %v4872
        %v5414 = vunpack.c.l.b16 %v4873
        %v5415 = vunpack.c.h.b16 %v4873
        %v5416 = vunpack.c.l.b16 %v4874
        %v5417 = vunpack.c.h.b16 %v4874
        %v5418 = vunpack.c.l.b16 %v4875
        %v5419 = vunpack.c.h.b16 %v4875
        %v5420 = vunpack.c.l.b16 %v4876
        %v5421 = vunpack.c.h.b16 %v4876
        %v5422 = vunpack.c.l.b16 %v4877
        %v5423 = vunpack.c.h.b16 %v4877
        %v5424 = vunpack.c.l.b16 %v4878
        %v5425 = vunpack.c.h.b16 %v4878
        %v5426 = vunpack.c.l.b16 %v4879
        %v5427 = vunpack.c.h.b16 %v4879
        %v5428 = vunpack.c.l.b16 %v4880
        %v5429 = vunpack.c.h.b16 %v4880
        %v5430 = vunpack.c.l.b16 %v4881
        %v5431 = vunpack.c.h.b16 %v4881
        %v5432 = vunpack.c.l.b16 %v4882
        %v5433 = vunpack.c.h.b16 %v4882
        %v5434 = vunpack.c.l.b16 %v4883
        %v5435 = vunpack.c.h.b16 %v4883
        %v5436 = vunpack.c.l.b16 %v4884
        %v5437 = vunpack.c.h.b16 %v4884
        %v5438 = vunpack.c.l.b16 %v4885
        %v5439 = vunpack.c.h.b16 %v4885
        %v5440 = vunpack.c.l.b16 %v4886
        %v5441 = vunpack.c.h.b16 %v4886
        %v5442 = vunpack.c.l.b16 %v4887
        %v5443 = vunpack.c.h.b16 %v4887
        %v5444 = vunpack.c.l.b16 %v4888
        %v5445 = vunpack.c.h.b16 %v4888
        %v5446 = vunpack.c.l.b16 %v4889
        %v5447 = vunpack.c.h.b16 %v4889
        %v5448 = vunpack.c.l.b16 %v4890
        %v5449 = vunpack.c.h.b16 %v4890
        %v5450 = vunpack.c.l.b16 %v4891
        %v5451 = vunpack.c.h.b16 %v4891
        %v5452 = vunpack.c.l.b16 %v4892
        %v5453 = vunpack.c.h.b16 %v4892
        %v5454 = vunpack.c.l.b16 %v4893
        %v5455 = vunpack.c.h.b16 %v4893
        %v5456 = vunpack.c.l.b16 %v4894
        %v5457 = vunpack.c.h.b16 %v4894
        %v5458 = vunpack.c.l.b16 %v4895
        %v5459 = vunpack.c.h.b16 %v4895
        %v5460 = vunpack.c.l.b16 %v4896
        %v5461 = vunpack.c.h.b16 %v4896
        %v5462 = vunpack.c.l.b16 %v4897
        %v5463 = vunpack.c.h.b16 %v4897
        %v5464 = vunpack.c.l.b16 %v4898
        %v5465 = vunpack.c.h.b16 %v4898
        %v5466 = vunpack.c.l.b16 %v4899
        %v5467 = vunpack.c.h.b16 %v4899
        %v5468 = vunpack.c.l.b16 %v4900
        %v5469 = vunpack.c.h.b16 %v4900
        %v5470 = vunpack.c.l.b16 %v4901
        %v5471 = vunpack.c.h.b16 %v4901
        %v5472 = vunpack.c.l.b16 %v4902
        %v5473 = vunpack.c.h.b16 %v4902
        %v5474 = vunpack.c.l.b16 %v4903
        %v5475 = vunpack.c.h.b16 %v4903
        %v5476 = vunpack.c.l.b16 %v4904
        %v5477 = vunpack.c.h.b16 %v4904
        %v5478 = vunpack.c.l.b16 %v4905
        %v5479 = vunpack.c.h.b16 %v4905
        %v5480 = vunpack.c.l.b16 %v4906
        %v5481 = vunpack.c.h.b16 %v4906
        %v5482 = vunpack.c.l.b16 %v4907
        %v5483 = vunpack.c.h.b16 %v4907
        %v5484 = vunpack.c.l.b16 %v4908
        %v5485 = vunpack.c.h.b16 %v4908
        %v5486 = vunpack.c.l.b16 %v4909
        %v5487 = vunpack.c.h.b16 %v4909
        %v5488 = vunpack.c.l.b16 %v4910
        %v5489 = vunpack.c.h.b16 %v4910
        %v5490 = vunpack.c.l.b16 %v4911
        %v5491 = vunpack.c.h.b16 %v4911
        %v5492 = vunpack.c.l.b16 %v4912
        %v5493 = vunpack.c.h.b16 %v4912
        %v5494 = vunpack.c.l.b16 %v4913
        %v5495 = vunpack.c.h.b16 %v4913
        %v5496 = vunpack.c.l.b16 %v4914
        %v5497 = vunpack.c.h.b16 %v4914
        %v5498 = vunpack.c.l.b16 %v4915
        %v5499 = vunpack.c.h.b16 %v4915
        %v5500 = vunpack.c.l.b16 %v4916
        %v5501 = vunpack.c.h.b16 %v4916
        %v5502 = vunpack.c.l.b16 %v4917
        %v5503 = vunpack.c.h.b16 %v4917
        %v5504 = vunpack.c.l.b16 %v4918
        %v5505 = vunpack.c.h.b16 %v4918
        %v5506 = vunpack.c.l.b16 %v4919
        %v5507 = vunpack.c.h.b16 %v4919
        %v5508 = vunpack.c.l.b16 %v4920
        %v5509 = vunpack.c.h.b16 %v4920
        %v5510 = vunpack.c.l.b16 %v4921
        %v5511 = vunpack.c.h.b16 %v4921
        %v5512 = vunpack.c.l.b16 %v4922
        %v5513 = vunpack.c.h.b16 %v4922
        %v5514 = vunpack.c.l.b16 %v4923
        %v5515 = vunpack.c.h.b16 %v4923
        %v5516 = vunpack.c.l.b16 %v4924
        %v5517 = vunpack.c.h.b16 %v4924
        %v5518 = vunpack.c.l.b16 %v4925
        %v5519 = vunpack.c.h.b16 %v4925
        %v5520 = vunpack.c.l.b16 %v4926
        %v5521 = vunpack.c.h.b16 %v4926
        %v5522 = vunpack.c.l.b16 %v4927
        %v5523 = vunpack.c.h.b16 %v4927
        %v5524 = vunpack.c.l.b16 %v4928
        %v5525 = vunpack.c.h.b16 %v4928
        %v5526 = vunpack.c.l.b16 %v4929
        %v5527 = vunpack.c.h.b16 %v4929
        %v5528 = vunpack.c.l.b16 %v4930
        %v5529 = vunpack.c.h.b16 %v4930
        %v5530 = vunpack.c.l.b16 %v4931
        %v5531 = vunpack.c.h.b16 %v4931
        %v5532 = vunpack.c.l.b16 %v4932
        %v5533 = vunpack.c.h.b16 %v4932
        %v5534 = vunpack.c.l.b16 %v4933
        %v5535 = vunpack.c.h.b16 %v4933
        %v5536 = vunpack.c.l.b16 %v4934
        %v5537 = vunpack.c.h.b16 %v4934
        %v5538 = vunpack.c.l.b16 %v4935
        %v5539 = vunpack.c.h.b16 %v4935
        %v5540 = vunpack.c.l.b16 %v4936
        %v5541 = vunpack.c.h.b16 %v4936
        %v5542 = vunpack.c.l.b16 %v4937
        %v5543 = vunpack.c.h.b16 %v4937
        %v5544 = vunpack.c.l.b16 %v4938
        %v5545 = vunpack.c.h.b16 %v4938
        %v5546 = vunpack.c.l.b16 %v4939
        %v5547 = vunpack.c.h.b16 %v4939
        %v5548 = vpack.c.b16 %v5170, %v5164
        %v5549 = vpack.c.b16 %v5171, %v5165
        %v5550 = vpack.c.b16 %v5172, %v5166
        %v5551 = vpack.c.b16 %v5173, %v5167
        %v5552 = vpack.c.b16 %v5174, %v5168
        %v5553 = vpack.c.b16 %v5175, %v5169
        %v5554 = vpack.c.b16 %v5182, %v5176
        %v5555 = vpack.c.b16 %v5183, %v5177
        %v5556 = vpack.c.b16 %v5184, %v5178
        %v5557 = vpack.c.b16 %v5185, %v5179
        %v5558 = vpack.c.b16 %v5186, %v5180
        %v5559 = vpack.c.b16 %v5187, %v5181
        %v5560 = vpack.c.b16 %v5194, %v5188
        %v5561 = vpack.c.b16 %v5195, %v5189
        %v5562 = vpack.c.b16 %v5196, %v5190
        %v5563 = vpack.c.b16 %v5197, %v5191
        %v5564 = vpack.c.b16 %v5198, %v5192
        %v5565 = vpack.c.b16 %v5199, %v5193
        %v5566 = vpack.c.b16 %v5206, %v5200
        %v5567 = vpack.c.b16 %v5207, %v5201
        %v5568 = vpack.c.b16 %v5208, %v5202
        %v5569 = vpack.c.b16 %v5209, %v5203
        %v5570 = vpack.c.b16 %v5210, %v5204
        %v5571 = vpack.c.b16 %v5211, %v5205
        %v5572 = vpack.c.b16 %v5218, %v5212
        %v5573 = vpack.c.b16 %v5219, %v5213
        %v5574 = vpack.c.b16 %v5220, %v5214
        %v5575 = vpack.c.b16 %v5221, %v5215
        %v5576 = vpack.c.b16 %v5222, %v5216
        %v5577 = vpack.c.b16 %v5223, %v5217
        %v5578 = vpack.c.b16 %v5230, %v5224
        %v5579 = vpack.c.b16 %v5231, %v5225
        %v5580 = vpack.c.b16 %v5232, %v5226
        %v5581 = vpack.c.b16 %v5233, %v5227
        %v5582 = vpack.c.b16 %v5234, %v5228
        %v5583 = vpack.c.b16 %v5235, %v5229
        %v5584 = vpack.c.b16 %v5242, %v5236
        %v5585 = vpack.c.b16 %v5243, %v5237
        %v5586 = vpack.c.b16 %v5244, %v5238
        %v5587 = vpack.c.b16 %v5245, %v5239
        %v5588 = vpack.c.b16 %v5246, %v5240
        %v5589 = vpack.c.b16 %v5247, %v5241
        %v5590 = vpack.c.b16 %v5254, %v5248
        %v5591 = vpack.c.b16 %v5255, %v5249
        %v5592 = vpack.c.b16 %v5256, %v5250
        %v5593 = vpack.c.b16 %v5257, %v5251
        %v5594 = vpack.c.b16 %v5258, %v5252
        %v5595 = vpack.c.b16 %v5259, %v5253
        %v5596 = vpack.c.b16 %v5266, %v5260
        %v5597 = vpack.c.b16 %v5267, %v5261
        %v5598 = vpack.c.b16 %v5268, %v5262
        %v5599 = vpack.c.b16 %v5269, %v5263
        %v5600 = vpack.c.b16 %v5270, %v5264
        %v5601 = vpack.c.b16 %v5271, %v5265
        %v5602 = vpack.c.b16 %v5278, %v5272
        %v5603 = vpack.c.b16 %v5279, %v5273
        %v5604 = vpack.c.b16 %v5280, %v5274
        %v5605 = vpack.c.b16 %v5281, %v5275
        %v5606 = vpack.c.b16 %v5282, %v5276
        %v5607 = vpack.c.b16 %v5283, %v5277
        %v5608 = vpack.c.b16 %v5290, %v5284
        %v5609 = vpack.c.b16 %v5291, %v5285
        %v5610 = vpack.c.b16 %v5292, %v5286
        %v5611 = vpack.c.b16 %v5293, %v5287
        %v5612 = vpack.c.b16 %v5294, %v5288
        %v5613 = vpack.c.b16 %v5295, %v5289
        %v5614 = vpack.c.b16 %v5302, %v5296
        %v5615 = vpack.c.b16 %v5303, %v5297
        %v5616 = vpack.c.b16 %v5304, %v5298
        %v5617 = vpack.c.b16 %v5305, %v5299
        %v5618 = vpack.c.b16 %v5306, %v5300
        %v5619 = vpack.c.b16 %v5307, %v5301
        %v5620 = vpack.c.b16 %v5314, %v5308
        %v5621 = vpack.c.b16 %v5315, %v5309
        %v5622 = vpack.c.b16 %v5316, %v5310
        %v5623 = vpack.c.b16 %v5317, %v5311
        %v5624 = vpack.c.b16 %v5318, %v5312
        %v5625 = vpack.c.b16 %v5319, %v5313
        %v5626 = vpack.c.b16 %v5326, %v5320
        %v5627 = vpack.c.b16 %v5327, %v5321
        %v5628 = vpack.c.b16 %v5328, %v5322
        %v5629 = vpack.c.b16 %v5329, %v5323
        %v5630 = vpack.c.b16 %v5330, %v5324
        %v5631 = vpack.c.b16 %v5331, %v5325
        %v5632 = vpack.c.b16 %v5338, %v5332
        %v5633 = vpack.c.b16 %v5339, %v5333
        %v5634 = vpack.c.b16 %v5340, %v5334
        %v5635 = vpack.c.b16 %v5341, %v5335
        %v5636 = vpack.c.b16 %v5342, %v5336
        %v5637 = vpack.c.b16 %v5343, %v5337
        %v5638 = vpack.c.b16 %v5350, %v5344
        %v5639 = vpack.c.b16 %v5351, %v5345
        %v5640 = vpack.c.b16 %v5352, %v5346
        %v5641 = vpack.c.b16 %v5353, %v5347
        %v5642 = vpack.c.b16 %v5354, %v5348
        %v5643 = vpack.c.b16 %v5355, %v5349
        %v5644 = vpack.c.b16 %v5362, %v5356
        %v5645 = vpack.c.b16 %v5363, %v5357
        %v5646 = vpack.c.b16 %v5364, %v5358
        %v5647 = vpack.c.b16 %v5365, %v5359
        %v5648 = vpack.c.b16 %v5366, %v5360
        %v5649 = vpack.c.b16 %v5367, %v5361
        %v5650 = vpack.c.b16 %v5374, %v5368
        %v5651 = vpack.c.b16 %v5375, %v5369
        %v5652 = vpack.c.b16 %v5376, %v5370
        %v5653 = vpack.c.b16 %v5377, %v5371
        %v5654 = vpack.c.b16 %v5378, %v5372
        %v5655 = vpack.c.b16 %v5379, %v5373
        %v5656 = vpack.c.b16 %v5386, %v5380
        %v5657 = vpack.c.b16 %v5387, %v5381
        %v5658 = vpack.c.b16 %v5388, %v5382
        %v5659 = vpack.c.b16 %v5389, %v5383
        %v5660 = vpack.c.b16 %v5390, %v5384
        %v5661 = vpack.c.b16 %v5391, %v5385
        %v5662 = vpack.c.b16 %v5398, %v5392
        %v5663 = vpack.c.b16 %v5399, %v5393
        %v5664 = vpack.c.b16 %v5400, %v5394
        %v5665 = vpack.c.b16 %v5401, %v5395
        %v5666 = vpack.c.b16 %v5402, %v5396
        %v5667 = vpack.c.b16 %v5403, %v5397
        %v5668 = vpack.c.b16 %v5410, %v5404
        %v5669 = vpack.c.b16 %v5411, %v5405
        %v5670 = vpack.c.b16 %v5412, %v5406
        %v5671 = vpack.c.b16 %v5413, %v5407
        %v5672 = vpack.c.b16 %v5414, %v5408
        %v5673 = vpack.c.b16 %v5415, %v5409
        %v5674 = vpack.c.b16 %v5422, %v5416
        %v5675 = vpack.c.b16 %v5423, %v5417
        %v5676 = vpack.c.b16 %v5424, %v5418
        %v5677 = vpack.c.b16 %v5425, %v5419
        %v5678 = vpack.c.b16 %v5426, %v5420
        %v5679 = vpack.c.b16 %v5427, %v5421
        %v5680 = vpack.c.b16 %v5434, %v5428
        %v5681 = vpack.c.b16 %v5435, %v5429
        %v5682 = vpack.c.b16 %v5436, %v5430
        %v5683 = vpack.c.b16 %v5437, %v5431
        %v5684 = vpack.c.b16 %v5438, %v5432
        %v5685 = vpack.c.b16 %v5439, %v5433
        %v5686 = vpack.c.b16 %v5446, %v5440
        %v5687 = vpack.c.b16 %v5447, %v5441
        %v5688 = vpack.c.b16 %v5448, %v5442
        %v5689 = vpack.c.b16 %v5449, %v5443
        %v5690 = vpack.c.b16 %v5450, %v5444
        %v5691 = vpack.c.b16 %v5451, %v5445
        %v5692 = vpack.c.b16 %v5458, %v5452
        %v5693 = vpack.c.b16 %v5459, %v5453
        %v5694 = vpack.c.b16 %v5460, %v5454
        %v5695 = vpack.c.b16 %v5461, %v5455
        %v5696 = vpack.c.b16 %v5462, %v5456
        %v5697 = vpack.c.b16 %v5463, %v5457
        %v5698 = vpack.c.b16 %v5470, %v5464
        %v5699 = vpack.c.b16 %v5471, %v5465
        %v5700 = vpack.c.b16 %v5472, %v5466
        %v5701 = vpack.c.b16 %v5473, %v5467
        %v5702 = vpack.c.b16 %v5474, %v5468
        %v5703 = vpack.c.b16 %v5475, %v5469
        %v5704 = vpack.c.b16 %v5482, %v5476
        %v5705 = vpack.c.b16 %v5483, %v5477
        %v5706 = vpack.c.b16 %v5484, %v5478
        %v5707 = vpack.c.b16 %v5485, %v5479
        %v5708 = vpack.c.b16 %v5486, %v5480
        %v5709 = vpack.c.b16 %v5487, %v5481
        %v5710 = vpack.c.b16 %v5494, %v5488
        %v5711 = vpack.c.b16 %v5495, %v5489
        %v5712 = vpack.c.b16 %v5496, %v5490
        %v5713 = vpack.c.b16 %v5497, %v5491
        %v5714 = vpack.c.b16 %v5498, %v5492
        %v5715 = vpack.c.b16 %v5499, %v5493
        %v5716 = vpack.c.b16 %v5506, %v5500
        %v5717 = vpack.c.b16 %v5507, %v5501
        %v5718 = vpack.c.b16 %v5508, %v5502
        %v5719 = vpack.c.b16 %v5509, %v5503
        %v5720 = vpack.c.b16 %v5510, %v5504
        %v5721 = vpack.c.b16 %v5511, %v5505
        %v5722 = vpack.c.b16 %v5518, %v5512
        %v5723 = vpack.c.b16 %v5519, %v5513
        %v5724 = vpack.c.b16 %v5520, %v5514
        %v5725 = vpack.c.b16 %v5521, %v5515
        %v5726 = vpack.c.b16 %v5522, %v5516
        %v5727 = vpack.c.b16 %v5523, %v5517
        %v5728 = vpack.c.b16 %v5530, %v5524
        %v5729 = vpack.c.b16 %v5531, %v5525
        %v5730 = vpack.c.b16 %v5532, %v5526
        %v5731 = vpack.c.b16 %v5533, %v5527
        %v5732 = vpack.c.b16 %v5534, %v5528
        %v5733 = vpack.c.b16 %v5535, %v5529
        %v5734 = vpack.c.b16 %v5542, %v5536
        %v5735 = vpack.c.b16 %v5543, %v5537
        %v5736 = vpack.c.b16 %v5544, %v5538
        %v5737 = vpack.c.b16 %v5545, %v5539
        %v5738 = vpack.c.b16 %v5546, %v5540
        %v5739 = vpack.c.b16 %v5547, %v5541
        %5932 = vmatprep.subr.bf16.mxu0 %v5549
        %5933 = vmatpush1.bf16.msra.mxu0 %v5548
        %5934 = vmatprep.subr.bf16.mxu0 %v5555
        %5935 = vmatpush1.bf16.msra.mxu0 %v5554
        %5936 = vmatprep.subr.bf16.mxu0 %v5561
        %5937 = vmatpush1.bf16.msra.mxu0 %v5560
        %5938 = vmatprep.subr.bf16.mxu0 %v5567
        %5939 = vmatpush1.bf16.msra.mxu0 %v5566
        %5940 = vmatprep.subr.bf16.mxu0 %v5573
        %5941 = vmatpush1.bf16.msra.mxu0 %v5572
        %5942 = vmatprep.subr.bf16.mxu0 %v5579
        %5943 = vmatpush1.bf16.msra.mxu0 %v5578
        %5944 = vmatprep.subr.bf16.mxu0 %v5585
        %5945 = vmatpush1.bf16.msra.mxu0 %v5584
        %5946 = vmatprep.subr.bf16.mxu0 %v5591
        %5947 = vmatpush1.bf16.msra.mxu0 %v5590
        %5948 = vmatprep.subr.bf16.mxu0 %v5597
        %5949 = vmatpush1.bf16.msra.mxu0 %v5596
        %5950 = vmatprep.subr.bf16.mxu0 %v5603
        %5951 = vmatpush1.bf16.msra.mxu0 %v5602
        %5952 = vmatprep.subr.bf16.mxu0 %v5609
        %5953 = vmatpush1.bf16.msra.mxu0 %v5608
        %5954 = vmatprep.subr.bf16.mxu0 %v5615
        %5955 = vmatpush1.bf16.msra.mxu0 %v5614
        %5956 = vmatprep.subr.bf16.mxu0 %v5621
        %5957 = vmatpush1.bf16.msra.mxu0 %v5620
        %5958 = vmatprep.subr.bf16.mxu0 %v5627
        %5959 = vmatpush1.bf16.msra.mxu0 %v5626
        %5960 = vmatprep.subr.bf16.mxu0 %v5633
        %5961 = vmatpush1.bf16.msra.mxu0 %v5632
        %5962 = vmatprep.subr.bf16.mxu0 %v5639
        %5963 = vmatpush1.bf16.msra.mxu0 %v5638
        %5964 = vmatprep.mubr.bf16.mxu0 %v4685
        %5965 = vmatmul.mubr.bf16.gmra.mrb[0].mxu0 %v4684
        %v5966 = vpop.f32.mrb[0].mxu0
        %v5967 = vadd.f32 %v4945, %v5966
        %v5968 = vpop.f32.mrb[0].mxu0
        %v5969 = vadd.f32 %v4949, %v5968
        %v5970 = vpop.f32.mrb[0].mxu0
        %v5971 = vadd.f32 %v4945, %v5970
        %v5972 = vpop.f32.mrb[0].mxu0
        %v5973 = vadd.f32 %v4949, %v5972
        %5974 = vmatprep.mubr.bf16.mxu0 %v4689
        %5975 = vmatmul.mubr.bf16.gmra.mrb[0].mxu0 %v4688
        %v5976 = vpop.f32.mrb[0].mxu0
        %v5977 = vadd.f32 %v4945, %v5976
        %v5978 = vpop.f32.mrb[0].mxu0
        %v5979 = vadd.f32 %v4949, %v5978
        %v5980 = vpop.f32.mrb[0].mxu0
        %v5981 = vadd.f32 %v4945, %v5980
        %v5982 = vpop.f32.mrb[0].mxu0
        %v5983 = vadd.f32 %v4949, %v5982
        %5984 = vmatprep.mubr.bf16.mxu0 %v4693
        %5985 = vmatmul.mubr.bf16.gmra.mrb[0].mxu0 %v4692
        %v5986 = vpop.f32.mrb[0].mxu0
        %v5987 = vadd.f32 %v4945, %v5986
        %v5988 = vpop.f32.mrb[0].mxu0
        %v5989 = vadd.f32 %v4949, %v5988
        %v5990 = vpop.f32.mrb[0].mxu0
        %v5991 = vadd.f32 %v4945, %v5990
        %v5992 = vpop.f32.mrb[0].mxu0
        %v5993 = vadd.f32 %v4949, %v5992
        %5994 = vmatprep.mubr.bf16.mxu0 %v4697
        %5995 = vmatmul.mubr.bf16.gmra.mrb[0].mxu0 %v4696
        %v5996 = vpop.f32.mrb[0].mxu0
        %v5997 = vadd.f32 %v4945, %v5996
        %v5998 = vpop.f32.mrb[0].mxu0
        %v5999 = vadd.f32 %v4949, %v5998
        %v6000 = vpop.f32.mrb[0].mxu0
        %v6001 = vadd.f32 %v4945, %v6000
        %v6002 = vpop.f32.mrb[0].mxu0
        %v6003 = vadd.f32 %v4949, %v6002
        %6004 = vmatprep.mubr.bf16.mxu0 %v4701
        %6005 = vmatmul.mubr.bf16.gmra.mrb[0].mxu0 %v4700
        %v6006 = vpop.f32.mrb[0].mxu0
        %v6007 = vadd.f32 %v4945, %v6006
        %v6008 = vpop.f32.mrb[0].mxu0
        %v6009 = vadd.f32 %v4949, %v6008
        %v6010 = vpop.f32.mrb[0].mxu0
        %v6011 = vadd.f32 %v4945, %v6010
        %v6012 = vpop.f32.mrb[0].mxu0
        %v6013 = vadd.f32 %v4949, %v6012
        %6014 = vmatprep.mubr.bf16.mxu0 %v4705
        %6015 = vmatmul.mubr.bf16.gmra.mrb[0].mxu0 %v4704
        %v6016 = vpop.f32.mrb[0].mxu0
        %v6017 = vadd.f32 %v4945, %v6016
        %v6018 = vpop.f32.mrb[0].mxu0
        %v6019 = vadd.f32 %v4949, %v6018
        %v6020 = vpop.f32.mrb[0].mxu0
        %v6021 = vadd.f32 %v4945, %v6020
        %v6022 = vpop.f32.mrb[0].mxu0
        %v6023 = vadd.f32 %v4949, %v6022
        %6024 = vmatprep.mubr.bf16.mxu0 %v4709
        %6025 = vmatmul.mubr.bf16.gmra.mrb[0].mxu0 %v4708
        %v6026 = vpop.f32.mrb[0].mxu0
        %v6027 = vadd.f32 %v4945, %v6026
        %v6028 = vpop.f32.mrb[0].mxu0
        %v6029 = vadd.f32 %v4949, %v6028
        %v6030 = vpop.f32.mrb[0].mxu0
        %v6031 = vadd.f32 %v4945, %v6030
        %v6032 = vpop.f32.mrb[0].mxu0
        %v6033 = vadd.f32 %v4949, %v6032
        %6034 = vmatprep.mubr.bf16.mxu0 %v4713
        %6035 = vmatmul.mubr.bf16.gmra.mrb[0].mxu0 %v4712
        %v6036 = vpop.f32.mrb[0].mxu0
        %v6037 = vadd.f32 %v4945, %v6036
        %v6038 = vpop.f32.mrb[0].mxu0
        %v6039 = vadd.f32 %v4949, %v6038
        %v6040 = vpop.f32.mrb[0].mxu0
        %v6041 = vadd.f32 %v4945, %v6040
        %v6042 = vpop.f32.mrb[0].mxu0
        %v6043 = vadd.f32 %v4949, %v6042
        %6044 = vmatprep.mubr.bf16.mxu0 %v4717
        %6045 = vmatmul.mubr.bf16.gmra.mrb[0].mxu0 %v4716
        %v6046 = vpop.f32.mrb[0].mxu0
        %v6047 = vadd.f32 %v4945, %v6046
        %v6048 = vpop.f32.mrb[0].mxu0
        %v6049 = vadd.f32 %v4949, %v6048
        %v6050 = vpop.f32.mrb[0].mxu0
        %v6051 = vadd.f32 %v4945, %v6050
        %v6052 = vpop.f32.mrb[0].mxu0
        %v6053 = vadd.f32 %v4949, %v6052
        %6054 = vmatprep.mubr.bf16.mxu0 %v4721
        %6055 = vmatmul.mubr.bf16.gmra.mrb[0].mxu0 %v4720
        %v6056 = vpop.f32.mrb[0].mxu0
        %v6057 = vadd.f32 %v4945, %v6056
        %v6058 = vpop.f32.mrb[0].mxu0
        %v6059 = vadd.f32 %v4949, %v6058
        %v6060 = vpop.f32.mrb[0].mxu0
        %v6061 = vadd.f32 %v4945, %v6060
        %v6062 = vpop.f32.mrb[0].mxu0
        %v6063 = vadd.f32 %v4949, %v6062
        %6064 = vmatprep.mubr.bf16.mxu0 %v4725
        %6065 = vmatmul.mubr.bf16.gmra.mrb[0].mxu0 %v4724
        %v6066 = vpop.f32.mrb[0].mxu0
        %v6067 = vadd.f32 %v4945, %v6066
        %v6068 = vpop.f32.mrb[0].mxu0
        %v6069 = vadd.f32 %v4949, %v6068
        %v6070 = vpop.f32.mrb[0].mxu0
        %v6071 = vadd.f32 %v4945, %v6070
        %v6072 = vpop.f32.mrb[0].mxu0
        %v6073 = vadd.f32 %v4949, %v6072
        %6074 = vmatprep.mubr.bf16.mxu0 %v4729
        %6075 = vmatmul.mubr.bf16.gmra.mrb[0].mxu0 %v4728
        %v6076 = vpop.f32.mrb[0].mxu0
        %v6077 = vadd.f32 %v4945, %v6076
        %v6078 = vpop.f32.mrb[0].mxu0
        %v6079 = vadd.f32 %v4949, %v6078
        %v6080 = vpop.f32.mrb[0].mxu0
        %v6081 = vadd.f32 %v4945, %v6080
        %v6082 = vpop.f32.mrb[0].mxu0
        %v6083 = vadd.f32 %v4949, %v6082
        %6084 = vmatprep.mubr.bf16.mxu0 %v4733
        %6085 = vmatmul.mubr.bf16.gmra.mrb[0].mxu0 %v4732
        %v6086 = vpop.f32.mrb[0].mxu0
        %v6087 = vadd.f32 %v4945, %v6086
        %v6088 = vpop.f32.mrb[0].mxu0
        %v6089 = vadd.f32 %v4949, %v6088
        %v6090 = vpop.f32.mrb[0].mxu0
        %v6091 = vadd.f32 %v4945, %v6090
        %v6092 = vpop.f32.mrb[0].mxu0
        %v6093 = vadd.f32 %v4949, %v6092
        %6094 = vmatprep.mubr.bf16.mxu0 %v4737
        %6095 = vmatmul.mubr.bf16.gmra.mrb[0].mxu0 %v4736
        %v6096 = vpop.f32.mrb[0].mxu0
        %v6097 = vadd.f32 %v4945, %v6096
        %v6098 = vpop.f32.mrb[0].mxu0
        %v6099 = vadd.f32 %v4949, %v6098
        %v6100 = vpop.f32.mrb[0].mxu0
        %v6101 = vadd.f32 %v4945, %v6100
        %v6102 = vpop.f32.mrb[0].mxu0
        %v6103 = vadd.f32 %v4949, %v6102
        %6104 = vmatprep.mubr.bf16.mxu0 %v4741
        %6105 = vmatmul.mubr.bf16.gmra.mrb[0].mxu0 %v4740
        %v6106 = vpop.f32.mrb[0].mxu0
        %v6107 = vadd.f32 %v4945, %v6106
        %v6108 = vpop.f32.mrb[0].mxu0
        %v6109 = vadd.f32 %v4949, %v6108
        %v6110 = vpop.f32.mrb[0].mxu0
        %v6111 = vadd.f32 %v4945, %v6110
        %v6112 = vpop.f32.mrb[0].mxu0
        %v6113 = vadd.f32 %v4949, %v6112
        %6114 = vmatprep.mubr.bf16.mxu0 %v4745
        %6115 = vmatmul.mubr.bf16.gmra.mrb[0].mxu0 %v4744
        %v6116 = vpop.f32.mrb[0].mxu0
        %v6117 = vadd.f32 %v4945, %v6116
        %v6118 = vpop.f32.mrb[0].mxu0
        %v6119 = vadd.f32 %v4949, %v6118
        %v6120 = vpop.f32.mrb[0].mxu0
        %v6121 = vadd.f32 %v4945, %v6120
        %v6122 = vpop.f32.mrb[0].mxu0
        %v6123 = vadd.f32 %v4949, %v6122
        %6124 = vdwg.mxu0
        %6125 = vmatprep.subr.bf16.mxu0 %v5645
        %6126 = vmatpush1.bf16.msra.mxu0 %v5644
        %6127 = vmatprep.subr.bf16.mxu0 %v5651
        %6128 = vmatpush1.bf16.msra.mxu0 %v5650
        %6129 = vmatprep.subr.bf16.mxu0 %v5657
        %6130 = vmatpush1.bf16.msra.mxu0 %v5656
        %6131 = vmatprep.subr.bf16.mxu0 %v5663
        %6132 = vmatpush1.bf16.msra.mxu0 %v5662
        %6133 = vmatprep.subr.bf16.mxu0 %v5669
        %6134 = vmatpush1.bf16.msra.mxu0 %v5668
        %6135 = vmatprep.subr.bf16.mxu0 %v5675
        %6136 = vmatpush1.bf16.msra.mxu0 %v5674
        %6137 = vmatprep.subr.bf16.mxu0 %v5681
        %6138 = vmatpush1.bf16.msra.mxu0 %v5680
        %6139 = vmatprep.subr.bf16.mxu0 %v5687
        %6140 = vmatpush1.bf16.msra.mxu0 %v5686
        %6141 = vmatprep.subr.bf16.mxu0 %v5693
        %6142 = vmatpush1.bf16.msra.mxu0 %v5692
        %6143 = vmatprep.subr.bf16.mxu0 %v5699
        %6144 = vmatpush1.bf16.msra.mxu0 %v5698
        %6145 = vmatprep.subr.bf16.mxu0 %v5705
        %6146 = vmatpush1.bf16.msra.mxu0 %v5704
        %6147 = vmatprep.subr.bf16.mxu0 %v5711
        %6148 = vmatpush1.bf16.msra.mxu0 %v5710
        %6149 = vmatprep.subr.bf16.mxu0 %v5717
        %6150 = vmatpush1.bf16.msra.mxu0 %v5716
        %6151 = vmatprep.subr.bf16.mxu0 %v5723
        %6152 = vmatpush1.bf16.msra.mxu0 %v5722
        %6153 = vmatprep.subr.bf16.mxu0 %v5729
        %6154 = vmatpush1.bf16.msra.mxu0 %v5728
        %6155 = vmatprep.subr.bf16.mxu0 %v5735
        %6156 = vmatpush1.bf16.msra.mxu0 %v5734
        %6157 = vmatprep.mubr.bf16.mxu0 %v4687
        %6158 = vmatmul.mubr.bf16.gmra.mrb[0].mxu0 %v4686
        %v6159 = vpop.f32.mrb[0].mxu0
        %v6160 = vadd.f32 %v5967, %v6159
        %v6161 = vpop.f32.mrb[0].mxu0
        %v6162 = vadd.f32 %v5969, %v6161
        %v6163 = vpop.f32.mrb[0].mxu0
        %v6164 = vadd.f32 %v5971, %v6163
        %v6165 = vpop.f32.mrb[0].mxu0
        %v6166 = vadd.f32 %v5973, %v6165
        %6167 = vmatprep.mubr.bf16.mxu0 %v4691
        %6168 = vmatmul.mubr.bf16.gmra.mrb[0].mxu0 %v4690
        %v6169 = vpop.f32.mrb[0].mxu0
        %v6170 = vadd.f32 %v5977, %v6169
        %v6171 = vpop.f32.mrb[0].mxu0
        %v6172 = vadd.f32 %v5979, %v6171
        %v6173 = vpop.f32.mrb[0].mxu0
        %v6174 = vadd.f32 %v5981, %v6173
        %v6175 = vpop.f32.mrb[0].mxu0
        %v6176 = vadd.f32 %v5983, %v6175
        %6177 = vmatprep.mubr.bf16.mxu0 %v4695
        %6178 = vmatmul.mubr.bf16.gmra.mrb[0].mxu0 %v4694
        %v6179 = vpop.f32.mrb[0].mxu0
        %v6180 = vadd.f32 %v5987, %v6179
        %v6181 = vpop.f32.mrb[0].mxu0
        %v6182 = vadd.f32 %v5989, %v6181
        %v6183 = vpop.f32.mrb[0].mxu0
        %v6184 = vadd.f32 %v5991, %v6183
        %v6185 = vpop.f32.mrb[0].mxu0
        %v6186 = vadd.f32 %v5993, %v6185
        %6187 = vmatprep.mubr.bf16.mxu0 %v4699
        %6188 = vmatmul.mubr.bf16.gmra.mrb[0].mxu0 %v4698
        %v6189 = vpop.f32.mrb[0].mxu0
        %v6190 = vadd.f32 %v5997, %v6189
        %v6191 = vpop.f32.mrb[0].mxu0
        %v6192 = vadd.f32 %v5999, %v6191
        %v6193 = vpop.f32.mrb[0].mxu0
        %v6194 = vadd.f32 %v6001, %v6193
        %v6195 = vpop.f32.mrb[0].mxu0
        %v6196 = vadd.f32 %v6003, %v6195
        %6197 = vmatprep.mubr.bf16.mxu0 %v4703
        %6198 = vmatmul.mubr.bf16.gmra.mrb[0].mxu0 %v4702
        %v6199 = vpop.f32.mrb[0].mxu0
        %v6200 = vadd.f32 %v6007, %v6199
        %v6201 = vpop.f32.mrb[0].mxu0
        %v6202 = vadd.f32 %v6009, %v6201
        %v6203 = vpop.f32.mrb[0].mxu0
        %v6204 = vadd.f32 %v6011, %v6203
        %v6205 = vpop.f32.mrb[0].mxu0
        %v6206 = vadd.f32 %v6013, %v6205
        %6207 = vmatprep.mubr.bf16.mxu0 %v4707
        %6208 = vmatmul.mubr.bf16.gmra.mrb[0].mxu0 %v4706
        %v6209 = vpop.f32.mrb[0].mxu0
        %v6210 = vadd.f32 %v6017, %v6209
        %v6211 = vpop.f32.mrb[0].mxu0
        %v6212 = vadd.f32 %v6019, %v6211
        %v6213 = vpop.f32.mrb[0].mxu0
        %v6214 = vadd.f32 %v6021, %v6213
        %v6215 = vpop.f32.mrb[0].mxu0
        %v6216 = vadd.f32 %v6023, %v6215
        %6217 = vmatprep.mubr.bf16.mxu0 %v4711
        %6218 = vmatmul.mubr.bf16.gmra.mrb[0].mxu0 %v4710
        %v6219 = vpop.f32.mrb[0].mxu0
        %v6220 = vadd.f32 %v6027, %v6219
        %v6221 = vpop.f32.mrb[0].mxu0
        %v6222 = vadd.f32 %v6029, %v6221
        %v6223 = vpop.f32.mrb[0].mxu0
        %v6224 = vadd.f32 %v6031, %v6223
        %v6225 = vpop.f32.mrb[0].mxu0
        %v6226 = vadd.f32 %v6033, %v6225
        %6227 = vmatprep.mubr.bf16.mxu0 %v4715
        %6228 = vmatmul.mubr.bf16.gmra.mrb[0].mxu0 %v4714
        %v6229 = vpop.f32.mrb[0].mxu0
        %v6230 = vadd.f32 %v6037, %v6229
        %v6231 = vpop.f32.mrb[0].mxu0
        %v6232 = vadd.f32 %v6039, %v6231
        %v6233 = vpop.f32.mrb[0].mxu0
        %v6234 = vadd.f32 %v6041, %v6233
        %v6235 = vpop.f32.mrb[0].mxu0
        %v6236 = vadd.f32 %v6043, %v6235
        %6237 = vmatprep.mubr.bf16.mxu0 %v4719
        %6238 = vmatmul.mubr.bf16.gmra.mrb[0].mxu0 %v4718
        %v6239 = vpop.f32.mrb[0].mxu0
        %v6240 = vadd.f32 %v6047, %v6239
        %v6241 = vpop.f32.mrb[0].mxu0
        %v6242 = vadd.f32 %v6049, %v6241
        %v6243 = vpop.f32.mrb[0].mxu0
        %v6244 = vadd.f32 %v6051, %v6243
        %v6245 = vpop.f32.mrb[0].mxu0
        %v6246 = vadd.f32 %v6053, %v6245
        %6247 = vmatprep.mubr.bf16.mxu0 %v4723
        %6248 = vmatmul.mubr.bf16.gmra.mrb[0].mxu0 %v4722
        %v6249 = vpop.f32.mrb[0].mxu0
        %v6250 = vadd.f32 %v6057, %v6249
        %v6251 = vpop.f32.mrb[0].mxu0
        %v6252 = vadd.f32 %v6059, %v6251
        %v6253 = vpop.f32.mrb[0].mxu0
        %v6254 = vadd.f32 %v6061, %v6253
        %v6255 = vpop.f32.mrb[0].mxu0
        %v6256 = vadd.f32 %v6063, %v6255
        %6257 = vmatprep.mubr.bf16.mxu0 %v4727
        %6258 = vmatmul.mubr.bf16.gmra.mrb[0].mxu0 %v4726
        %v6259 = vpop.f32.mrb[0].mxu0
        %v6260 = vadd.f32 %v6067, %v6259
        %v6261 = vpop.f32.mrb[0].mxu0
        %v6262 = vadd.f32 %v6069, %v6261
        %v6263 = vpop.f32.mrb[0].mxu0
        %v6264 = vadd.f32 %v6071, %v6263
        %v6265 = vpop.f32.mrb[0].mxu0
        %v6266 = vadd.f32 %v6073, %v6265
        %6267 = vmatprep.mubr.bf16.mxu0 %v4731
        %6268 = vmatmul.mubr.bf16.gmra.mrb[0].mxu0 %v4730
        %v6269 = vpop.f32.mrb[0].mxu0
        %v6270 = vadd.f32 %v6077, %v6269
        %v6271 = vpop.f32.mrb[0].mxu0
        %v6272 = vadd.f32 %v6079, %v6271
        %v6273 = vpop.f32.mrb[0].mxu0
        %v6274 = vadd.f32 %v6081, %v6273
        %v6275 = vpop.f32.mrb[0].mxu0
        %v6276 = vadd.f32 %v6083, %v6275
        %6277 = vmatprep.mubr.bf16.mxu0 %v4735
        %6278 = vmatmul.mubr.bf16.gmra.mrb[0].mxu0 %v4734
        %v6279 = vpop.f32.mrb[0].mxu0
        %v6280 = vadd.f32 %v6087, %v6279
        %v6281 = vpop.f32.mrb[0].mxu0
        %v6282 = vadd.f32 %v6089, %v6281
        %v6283 = vpop.f32.mrb[0].mxu0
        %v6284 = vadd.f32 %v6091, %v6283
        %v6285 = vpop.f32.mrb[0].mxu0
        %v6286 = vadd.f32 %v6093, %v6285
        %6287 = vmatprep.mubr.bf16.mxu0 %v4739
        %6288 = vmatmul.mubr.bf16.gmra.mrb[0].mxu0 %v4738
        %v6289 = vpop.f32.mrb[0].mxu0
        %v6290 = vadd.f32 %v6097, %v6289
        %v6291 = vpop.f32.mrb[0].mxu0
        %v6292 = vadd.f32 %v6099, %v6291
        %v6293 = vpop.f32.mrb[0].mxu0
        %v6294 = vadd.f32 %v6101, %v6293
        %v6295 = vpop.f32.mrb[0].mxu0
        %v6296 = vadd.f32 %v6103, %v6295
        %6297 = vmatprep.mubr.bf16.mxu0 %v4743
        %6298 = vmatmul.mubr.bf16.gmra.mrb[0].mxu0 %v4742
        %v6299 = vpop.f32.mrb[0].mxu0
        %v6300 = vadd.f32 %v6107, %v6299
        %v6301 = vpop.f32.mrb[0].mxu0
        %v6302 = vadd.f32 %v6109, %v6301
        %v6303 = vpop.f32.mrb[0].mxu0
        %v6304 = vadd.f32 %v6111, %v6303
        %v6305 = vpop.f32.mrb[0].mxu0
        %v6306 = vadd.f32 %v6113, %v6305
        %6307 = vmatprep.mubr.bf16.mxu0 %v4747
        %6308 = vmatmul.mubr.bf16.gmra.mrb[0].mxu0 %v4746
        %v6309 = vpop.f32.mrb[0].mxu0
        %v6310 = vadd.f32 %v6117, %v6309
        %v6311 = vpop.f32.mrb[0].mxu0
        %v6312 = vadd.f32 %v6119, %v6311
        %v6313 = vpop.f32.mrb[0].mxu0
        %v6314 = vadd.f32 %v6121, %v6313
        %v6315 = vpop.f32.mrb[0].mxu0
        %v6316 = vadd.f32 %v6123, %v6315
        %6317 = vdwg.mxu0
        %6318 = vmatprep.subr.bf16.mxu0 %v5551
        %6319 = vmatpush1.bf16.msra.mxu0 %v5550
        %6320 = vmatprep.subr.bf16.mxu0 %v5557
        %6321 = vmatpush1.bf16.msra.mxu0 %v5556
        %6322 = vmatprep.subr.bf16.mxu0 %v5563
        %6323 = vmatpush1.bf16.msra.mxu0 %v5562
        %6324 = vmatprep.subr.bf16.mxu0 %v5569
        %6325 = vmatpush1.bf16.msra.mxu0 %v5568
        %6326 = vmatprep.subr.bf16.mxu0 %v5575
        %6327 = vmatpush1.bf16.msra.mxu0 %v5574
        %6328 = vmatprep.subr.bf16.mxu0 %v5581
        %6329 = vmatpush1.bf16.msra.mxu0 %v5580
        %6330 = vmatprep.subr.bf16.mxu0 %v5587
        %6331 = vmatpush1.bf16.msra.mxu0 %v5586
        %6332 = vmatprep.subr.bf16.mxu0 %v5593
        %6333 = vmatpush1.bf16.msra.mxu0 %v5592
        %6334 = vmatprep.subr.bf16.mxu0 %v5599
        %6335 = vmatpush1.bf16.msra.mxu0 %v5598
        %6336 = vmatprep.subr.bf16.mxu0 %v5605
        %6337 = vmatpush1.bf16.msra.mxu0 %v5604
        %6338 = vmatprep.subr.bf16.mxu0 %v5611
        %6339 = vmatpush1.bf16.msra.mxu0 %v5610
        %6340 = vmatprep.subr.bf16.mxu0 %v5617
        %6341 = vmatpush1.bf16.msra.mxu0 %v5616
        %6342 = vmatprep.subr.bf16.mxu0 %v5623
        %6343 = vmatpush1.bf16.msra.mxu0 %v5622
        %6344 = vmatprep.subr.bf16.mxu0 %v5629
        %6345 = vmatpush1.bf16.msra.mxu0 %v5628
        %6346 = vmatprep.subr.bf16.mxu0 %v5635
        %6347 = vmatpush1.bf16.msra.mxu0 %v5634
        %6348 = vmatprep.subr.bf16.mxu0 %v5641
        %6349 = vmatpush1.bf16.msra.mxu0 %v5640
        %6350 = vmatprep.mubr.bf16.mxu0 %v4685
        %6351 = vmatmul.mubr.bf16.gmra.mrb[0].mxu0 %v4684
        %v6352 = vpop.f32.mrb[0].mxu0
        %v6353 = vadd.f32 %v4953, %v6352
        %v6354 = vpop.f32.mrb[0].mxu0
        %v6355 = vadd.f32 %v4957, %v6354
        %v6356 = vpop.f32.mrb[0].mxu0
        %v6357 = vadd.f32 %v4953, %v6356
        %v6358 = vpop.f32.mrb[0].mxu0
        %v6359 = vadd.f32 %v4957, %v6358
        %6360 = vmatprep.mubr.bf16.mxu0 %v4689
        %6361 = vmatmul.mubr.bf16.gmra.mrb[0].mxu0 %v4688
        %v6362 = vpop.f32.mrb[0].mxu0
        %v6363 = vadd.f32 %v4953, %v6362
        %v6364 = vpop.f32.mrb[0].mxu0
        %v6365 = vadd.f32 %v4957, %v6364
        %v6366 = vpop.f32.mrb[0].mxu0
        %v6367 = vadd.f32 %v4953, %v6366
        %v6368 = vpop.f32.mrb[0].mxu0
        %v6369 = vadd.f32 %v4957, %v6368
        %6370 = vmatprep.mubr.bf16.mxu0 %v4693
        %6371 = vmatmul.mubr.bf16.gmra.mrb[0].mxu0 %v4692
        %v6372 = vpop.f32.mrb[0].mxu0
        %v6373 = vadd.f32 %v4953, %v6372
        %v6374 = vpop.f32.mrb[0].mxu0
        %v6375 = vadd.f32 %v4957, %v6374
        %v6376 = vpop.f32.mrb[0].mxu0
        %v6377 = vadd.f32 %v4953, %v6376
        %v6378 = vpop.f32.mrb[0].mxu0
        %v6379 = vadd.f32 %v4957, %v6378
        %6380 = vmatprep.mubr.bf16.mxu0 %v4697
        %6381 = vmatmul.mubr.bf16.gmra.mrb[0].mxu0 %v4696
        %v6382 = vpop.f32.mrb[0].mxu0
        %v6383 = vadd.f32 %v4953, %v6382
        %v6384 = vpop.f32.mrb[0].mxu0
        %v6385 = vadd.f32 %v4957, %v6384
        %v6386 = vpop.f32.mrb[0].mxu0
        %v6387 = vadd.f32 %v4953, %v6386
        %v6388 = vpop.f32.mrb[0].mxu0
        %v6389 = vadd.f32 %v4957, %v6388
        %6390 = vmatprep.mubr.bf16.mxu0 %v4701
        %6391 = vmatmul.mubr.bf16.gmra.mrb[0].mxu0 %v4700
        %v6392 = vpop.f32.mrb[0].mxu0
        %v6393 = vadd.f32 %v4953, %v6392
        %v6394 = vpop.f32.mrb[0].mxu0
        %v6395 = vadd.f32 %v4957, %v6394
        %v6396 = vpop.f32.mrb[0].mxu0
        %v6397 = vadd.f32 %v4953, %v6396
        %v6398 = vpop.f32.mrb[0].mxu0
        %v6399 = vadd.f32 %v4957, %v6398
        %6400 = vmatprep.mubr.bf16.mxu0 %v4705
        %6401 = vmatmul.mubr.bf16.gmra.mrb[0].mxu0 %v4704
        %v6402 = vpop.f32.mrb[0].mxu0
        %v6403 = vadd.f32 %v4953, %v6402
        %v6404 = vpop.f32.mrb[0].mxu0
        %v6405 = vadd.f32 %v4957, %v6404
        %v6406 = vpop.f32.mrb[0].mxu0
        %v6407 = vadd.f32 %v4953, %v6406
        %v6408 = vpop.f32.mrb[0].mxu0
        %v6409 = vadd.f32 %v4957, %v6408
        %6410 = vmatprep.mubr.bf16.mxu0 %v4709
        %6411 = vmatmul.mubr.bf16.gmra.mrb[0].mxu0 %v4708
        %v6412 = vpop.f32.mrb[0].mxu0
        %v6413 = vadd.f32 %v4953, %v6412
        %v6414 = vpop.f32.mrb[0].mxu0
        %v6415 = vadd.f32 %v4957, %v6414
        %v6416 = vpop.f32.mrb[0].mxu0
        %v6417 = vadd.f32 %v4953, %v6416
        %v6418 = vpop.f32.mrb[0].mxu0
        %v6419 = vadd.f32 %v4957, %v6418
        %6420 = vmatprep.mubr.bf16.mxu0 %v4713
        %6421 = vmatmul.mubr.bf16.gmra.mrb[0].mxu0 %v4712
        %v6422 = vpop.f32.mrb[0].mxu0
        %v6423 = vadd.f32 %v4953, %v6422
        %v6424 = vpop.f32.mrb[0].mxu0
        %v6425 = vadd.f32 %v4957, %v6424
        %v6426 = vpop.f32.mrb[0].mxu0
        %v6427 = vadd.f32 %v4953, %v6426
        %v6428 = vpop.f32.mrb[0].mxu0
        %v6429 = vadd.f32 %v4957, %v6428
        %6430 = vmatprep.mubr.bf16.mxu0 %v4717
        %6431 = vmatmul.mubr.bf16.gmra.mrb[0].mxu0 %v4716
        %v6432 = vpop.f32.mrb[0].mxu0
        %v6433 = vadd.f32 %v4953, %v6432
        %v6434 = vpop.f32.mrb[0].mxu0
        %v6435 = vadd.f32 %v4957, %v6434
        %v6436 = vpop.f32.mrb[0].mxu0
        %v6437 = vadd.f32 %v4953, %v6436
        %v6438 = vpop.f32.mrb[0].mxu0
        %v6439 = vadd.f32 %v4957, %v6438
        %6440 = vmatprep.mubr.bf16.mxu0 %v4721
        %6441 = vmatmul.mubr.bf16.gmra.mrb[0].mxu0 %v4720
        %v6442 = vpop.f32.mrb[0].mxu0
        %v6443 = vadd.f32 %v4953, %v6442
        %v6444 = vpop.f32.mrb[0].mxu0
        %v6445 = vadd.f32 %v4957, %v6444
        %v6446 = vpop.f32.mrb[0].mxu0
        %v6447 = vadd.f32 %v4953, %v6446
        %v6448 = vpop.f32.mrb[0].mxu0
        %v6449 = vadd.f32 %v4957, %v6448
        %6450 = vmatprep.mubr.bf16.mxu0 %v4725
        %6451 = vmatmul.mubr.bf16.gmra.mrb[0].mxu0 %v4724
        %v6452 = vpop.f32.mrb[0].mxu0
        %v6453 = vadd.f32 %v4953, %v6452
        %v6454 = vpop.f32.mrb[0].mxu0
        %v6455 = vadd.f32 %v4957, %v6454
        %v6456 = vpop.f32.mrb[0].mxu0
        %v6457 = vadd.f32 %v4953, %v6456
        %v6458 = vpop.f32.mrb[0].mxu0
        %v6459 = vadd.f32 %v4957, %v6458
        %6460 = vmatprep.mubr.bf16.mxu0 %v4729
        %6461 = vmatmul.mubr.bf16.gmra.mrb[0].mxu0 %v4728
        %v6462 = vpop.f32.mrb[0].mxu0
        %v6463 = vadd.f32 %v4953, %v6462
        %v6464 = vpop.f32.mrb[0].mxu0
        %v6465 = vadd.f32 %v4957, %v6464
        %v6466 = vpop.f32.mrb[0].mxu0
        %v6467 = vadd.f32 %v4953, %v6466
        %v6468 = vpop.f32.mrb[0].mxu0
        %v6469 = vadd.f32 %v4957, %v6468
        %6470 = vmatprep.mubr.bf16.mxu0 %v4733
        %6471 = vmatmul.mubr.bf16.gmra.mrb[0].mxu0 %v4732
        %v6472 = vpop.f32.mrb[0].mxu0
        %v6473 = vadd.f32 %v4953, %v6472
        %v6474 = vpop.f32.mrb[0].mxu0
        %v6475 = vadd.f32 %v4957, %v6474
        %v6476 = vpop.f32.mrb[0].mxu0
        %v6477 = vadd.f32 %v4953, %v6476
        %v6478 = vpop.f32.mrb[0].mxu0
        %v6479 = vadd.f32 %v4957, %v6478
        %6480 = vmatprep.mubr.bf16.mxu0 %v4737
        %6481 = vmatmul.mubr.bf16.gmra.mrb[0].mxu0 %v4736
        %v6482 = vpop.f32.mrb[0].mxu0
        %v6483 = vadd.f32 %v4953, %v6482
        %v6484 = vpop.f32.mrb[0].mxu0
        %v6485 = vadd.f32 %v4957, %v6484
        %v6486 = vpop.f32.mrb[0].mxu0
        %v6487 = vadd.f32 %v4953, %v6486
        %v6488 = vpop.f32.mrb[0].mxu0
        %v6489 = vadd.f32 %v4957, %v6488
        %6490 = vmatprep.mubr.bf16.mxu0 %v4741
        %6491 = vmatmul.mubr.bf16.gmra.mrb[0].mxu0 %v4740
        %v6492 = vpop.f32.mrb[0].mxu0
        %v6493 = vadd.f32 %v4953, %v6492
        %v6494 = vpop.f32.mrb[0].mxu0
        %v6495 = vadd.f32 %v4957, %v6494
        %v6496 = vpop.f32.mrb[0].mxu0
        %v6497 = vadd.f32 %v4953, %v6496
        %v6498 = vpop.f32.mrb[0].mxu0
        %v6499 = vadd.f32 %v4957, %v6498
        %6500 = vmatprep.mubr.bf16.mxu0 %v4745
        %6501 = vmatmul.mubr.bf16.gmra.mrb[0].mxu0 %v4744
        %v6502 = vpop.f32.mrb[0].mxu0
        %v6503 = vadd.f32 %v4953, %v6502
        %v6504 = vpop.f32.mrb[0].mxu0
        %v6505 = vadd.f32 %v4957, %v6504
        %v6506 = vpop.f32.mrb[0].mxu0
        %v6507 = vadd.f32 %v4953, %v6506
        %v6508 = vpop.f32.mrb[0].mxu0
        %v6509 = vadd.f32 %v4957, %v6508
        %6510 = vdwg.mxu0
        %6511 = vmatprep.subr.bf16.mxu0 %v5647
        %6512 = vmatpush1.bf16.msra.mxu0 %v5646
        %6513 = vmatprep.subr.bf16.mxu0 %v5653
        %6514 = vmatpush1.bf16.msra.mxu0 %v5652
        %6515 = vmatprep.subr.bf16.mxu0 %v5659
        %6516 = vmatpush1.bf16.msra.mxu0 %v5658
        %6517 = vmatprep.subr.bf16.mxu0 %v5665
        %6518 = vmatpush1.bf16.msra.mxu0 %v5664
        %6519 = vmatprep.subr.bf16.mxu0 %v5671
        %6520 = vmatpush1.bf16.msra.mxu0 %v5670
        %6521 = vmatprep.subr.bf16.mxu0 %v5677
        %6522 = vmatpush1.bf16.msra.mxu0 %v5676
        %6523 = vmatprep.subr.bf16.mxu0 %v5683
        %6524 = vmatpush1.bf16.msra.mxu0 %v5682
        %6525 = vmatprep.subr.bf16.mxu0 %v5689
        %6526 = vmatpush1.bf16.msra.mxu0 %v5688
        %6527 = vmatprep.subr.bf16.mxu0 %v5695
        %6528 = vmatpush1.bf16.msra.mxu0 %v5694
        %6529 = vmatprep.subr.bf16.mxu0 %v5701
        %6530 = vmatpush1.bf16.msra.mxu0 %v5700
        %6531 = vmatprep.subr.bf16.mxu0 %v5707
        %6532 = vmatpush1.bf16.msra.mxu0 %v5706
        %6533 = vmatprep.subr.bf16.mxu0 %v5713
        %6534 = vmatpush1.bf16.msra.mxu0 %v5712
        %6535 = vmatprep.subr.bf16.mxu0 %v5719
        %6536 = vmatpush1.bf16.msra.mxu0 %v5718
        %6537 = vmatprep.subr.bf16.mxu0 %v5725
        %6538 = vmatpush1.bf16.msra.mxu0 %v5724
        %6539 = vmatprep.subr.bf16.mxu0 %v5731
        %6540 = vmatpush1.bf16.msra.mxu0 %v5730
        %6541 = vmatprep.subr.bf16.mxu0 %v5737
        %6542 = vmatpush1.bf16.msra.mxu0 %v5736
        %6543 = vmatprep.mubr.bf16.mxu0 %v4687
        %6544 = vmatmul.mubr.bf16.gmra.mrb[0].mxu0 %v4686
        %v6545 = vpop.f32.mrb[0].mxu0
        %v6546 = vadd.f32 %v6353, %v6545
        %v6547 = vpop.f32.mrb[0].mxu0
        %v6548 = vadd.f32 %v6355, %v6547
        %v6549 = vpop.f32.mrb[0].mxu0
        %v6550 = vadd.f32 %v6357, %v6549
        %v6551 = vpop.f32.mrb[0].mxu0
        %v6552 = vadd.f32 %v6359, %v6551
        %6553 = vmatprep.mubr.bf16.mxu0 %v4691
        %6554 = vmatmul.mubr.bf16.gmra.mrb[0].mxu0 %v4690
        %v6555 = vpop.f32.mrb[0].mxu0
        %v6556 = vadd.f32 %v6363, %v6555
        %v6557 = vpop.f32.mrb[0].mxu0
        %v6558 = vadd.f32 %v6365, %v6557
        %v6559 = vpop.f32.mrb[0].mxu0
        %v6560 = vadd.f32 %v6367, %v6559
        %v6561 = vpop.f32.mrb[0].mxu0
        %v6562 = vadd.f32 %v6369, %v6561
        %6563 = vmatprep.mubr.bf16.mxu0 %v4695
        %6564 = vmatmul.mubr.bf16.gmra.mrb[0].mxu0 %v4694
        %v6565 = vpop.f32.mrb[0].mxu0
        %v6566 = vadd.f32 %v6373, %v6565
        %v6567 = vpop.f32.mrb[0].mxu0
        %v6568 = vadd.f32 %v6375, %v6567
        %v6569 = vpop.f32.mrb[0].mxu0
        %v6570 = vadd.f32 %v6377, %v6569
        %v6571 = vpop.f32.mrb[0].mxu0
        %v6572 = vadd.f32 %v6379, %v6571
        %6573 = vmatprep.mubr.bf16.mxu0 %v4699
        %6574 = vmatmul.mubr.bf16.gmra.mrb[0].mxu0 %v4698
        %v6575 = vpop.f32.mrb[0].mxu0
        %v6576 = vadd.f32 %v6383, %v6575
        %v6577 = vpop.f32.mrb[0].mxu0
        %v6578 = vadd.f32 %v6385, %v6577
        %v6579 = vpop.f32.mrb[0].mxu0
        %v6580 = vadd.f32 %v6387, %v6579
        %v6581 = vpop.f32.mrb[0].mxu0
        %v6582 = vadd.f32 %v6389, %v6581
        %6583 = vmatprep.mubr.bf16.mxu0 %v4703
        %6584 = vmatmul.mubr.bf16.gmra.mrb[0].mxu0 %v4702
        %v6585 = vpop.f32.mrb[0].mxu0
        %v6586 = vadd.f32 %v6393, %v6585
        %v6587 = vpop.f32.mrb[0].mxu0
        %v6588 = vadd.f32 %v6395, %v6587
        %v6589 = vpop.f32.mrb[0].mxu0
        %v6590 = vadd.f32 %v6397, %v6589
        %v6591 = vpop.f32.mrb[0].mxu0
        %v6592 = vadd.f32 %v6399, %v6591
        %6593 = vmatprep.mubr.bf16.mxu0 %v4707
        %6594 = vmatmul.mubr.bf16.gmra.mrb[0].mxu0 %v4706
        %v6595 = vpop.f32.mrb[0].mxu0
        %v6596 = vadd.f32 %v6403, %v6595
        %v6597 = vpop.f32.mrb[0].mxu0
        %v6598 = vadd.f32 %v6405, %v6597
        %v6599 = vpop.f32.mrb[0].mxu0
        %v6600 = vadd.f32 %v6407, %v6599
        %v6601 = vpop.f32.mrb[0].mxu0
        %v6602 = vadd.f32 %v6409, %v6601
        %6603 = vmatprep.mubr.bf16.mxu0 %v4711
        %6604 = vmatmul.mubr.bf16.gmra.mrb[0].mxu0 %v4710
        %v6605 = vpop.f32.mrb[0].mxu0
        %v6606 = vadd.f32 %v6413, %v6605
        %v6607 = vpop.f32.mrb[0].mxu0
        %v6608 = vadd.f32 %v6415, %v6607
        %v6609 = vpop.f32.mrb[0].mxu0
        %v6610 = vadd.f32 %v6417, %v6609
        %v6611 = vpop.f32.mrb[0].mxu0
        %v6612 = vadd.f32 %v6419, %v6611
        %6613 = vmatprep.mubr.bf16.mxu0 %v4715
        %6614 = vmatmul.mubr.bf16.gmra.mrb[0].mxu0 %v4714
        %v6615 = vpop.f32.mrb[0].mxu0
        %v6616 = vadd.f32 %v6423, %v6615
        %v6617 = vpop.f32.mrb[0].mxu0
        %v6618 = vadd.f32 %v6425, %v6617
        %v6619 = vpop.f32.mrb[0].mxu0
        %v6620 = vadd.f32 %v6427, %v6619
        %v6621 = vpop.f32.mrb[0].mxu0
        %v6622 = vadd.f32 %v6429, %v6621
        %6623 = vmatprep.mubr.bf16.mxu0 %v4719
        %6624 = vmatmul.mubr.bf16.gmra.mrb[0].mxu0 %v4718
        %v6625 = vpop.f32.mrb[0].mxu0
        %v6626 = vadd.f32 %v6433, %v6625
        %v6627 = vpop.f32.mrb[0].mxu0
        %v6628 = vadd.f32 %v6435, %v6627
        %v6629 = vpop.f32.mrb[0].mxu0
        %v6630 = vadd.f32 %v6437, %v6629
        %v6631 = vpop.f32.mrb[0].mxu0
        %v6632 = vadd.f32 %v6439, %v6631
        %6633 = vmatprep.mubr.bf16.mxu0 %v4723
        %6634 = vmatmul.mubr.bf16.gmra.mrb[0].mxu0 %v4722
        %v6635 = vpop.f32.mrb[0].mxu0
        %v6636 = vadd.f32 %v6443, %v6635
        %v6637 = vpop.f32.mrb[0].mxu0
        %v6638 = vadd.f32 %v6445, %v6637
        %v6639 = vpop.f32.mrb[0].mxu0
        %v6640 = vadd.f32 %v6447, %v6639
        %v6641 = vpop.f32.mrb[0].mxu0
        %v6642 = vadd.f32 %v6449, %v6641
        %6643 = vmatprep.mubr.bf16.mxu0 %v4727
        %6644 = vmatmul.mubr.bf16.gmra.mrb[0].mxu0 %v4726
        %v6645 = vpop.f32.mrb[0].mxu0
        %v6646 = vadd.f32 %v6453, %v6645
        %v6647 = vpop.f32.mrb[0].mxu0
        %v6648 = vadd.f32 %v6455, %v6647
        %v6649 = vpop.f32.mrb[0].mxu0
        %v6650 = vadd.f32 %v6457, %v6649
        %v6651 = vpop.f32.mrb[0].mxu0
        %v6652 = vadd.f32 %v6459, %v6651
        %6653 = vmatprep.mubr.bf16.mxu0 %v4731
        %6654 = vmatmul.mubr.bf16.gmra.mrb[0].mxu0 %v4730
        %v6655 = vpop.f32.mrb[0].mxu0
        %v6656 = vadd.f32 %v6463, %v6655
        %v6657 = vpop.f32.mrb[0].mxu0
        %v6658 = vadd.f32 %v6465, %v6657
        %v6659 = vpop.f32.mrb[0].mxu0
        %v6660 = vadd.f32 %v6467, %v6659
        %v6661 = vpop.f32.mrb[0].mxu0
        %v6662 = vadd.f32 %v6469, %v6661
        %6663 = vmatprep.mubr.bf16.mxu0 %v4735
        %6664 = vmatmul.mubr.bf16.gmra.mrb[0].mxu0 %v4734
        %v6665 = vpop.f32.mrb[0].mxu0
        %v6666 = vadd.f32 %v6473, %v6665
        %v6667 = vpop.f32.mrb[0].mxu0
        %v6668 = vadd.f32 %v6475, %v6667
        %v6669 = vpop.f32.mrb[0].mxu0
        %v6670 = vadd.f32 %v6477, %v6669
        %v6671 = vpop.f32.mrb[0].mxu0
        %v6672 = vadd.f32 %v6479, %v6671
        %6673 = vmatprep.mubr.bf16.mxu0 %v4739
        %6674 = vmatmul.mubr.bf16.gmra.mrb[0].mxu0 %v4738
        %v6675 = vpop.f32.mrb[0].mxu0
        %v6676 = vadd.f32 %v6483, %v6675
        %v6677 = vpop.f32.mrb[0].mxu0
        %v6678 = vadd.f32 %v6485, %v6677
        %v6679 = vpop.f32.mrb[0].mxu0
        %v6680 = vadd.f32 %v6487, %v6679
        %v6681 = vpop.f32.mrb[0].mxu0
        %v6682 = vadd.f32 %v6489, %v6681
        %6683 = vmatprep.mubr.bf16.mxu0 %v4743
        %6684 = vmatmul.mubr.bf16.gmra.mrb[0].mxu0 %v4742
        %v6685 = vpop.f32.mrb[0].mxu0
        %v6686 = vadd.f32 %v6493, %v6685
        %v6687 = vpop.f32.mrb[0].mxu0
        %v6688 = vadd.f32 %v6495, %v6687
        %v6689 = vpop.f32.mrb[0].mxu0
        %v6690 = vadd.f32 %v6497, %v6689
        %v6691 = vpop.f32.mrb[0].mxu0
        %v6692 = vadd.f32 %v6499, %v6691
        %6693 = vmatprep.mubr.bf16.mxu0 %v4747
        %6694 = vmatmul.mubr.bf16.gmra.mrb[0].mxu0 %v4746
        %v6695 = vpop.f32.mrb[0].mxu0
        %v6696 = vadd.f32 %v6503, %v6695
        %v6697 = vpop.f32.mrb[0].mxu0
        %v6698 = vadd.f32 %v6505, %v6697
        %v6699 = vpop.f32.mrb[0].mxu0
        %v6700 = vadd.f32 %v6507, %v6699
        %v6701 = vpop.f32.mrb[0].mxu0
        %v6702 = vadd.f32 %v6509, %v6701
        %6703 = vdwg.mxu0
        %6704 = vmatprep.subr.bf16.mxu0 %v5553
        %6705 = vmatpush1.bf16.msra.mxu0 %v5552
        %6706 = vmatprep.subr.bf16.mxu0 %v5559
        %6707 = vmatpush1.bf16.msra.mxu0 %v5558
        %6708 = vmatprep.subr.bf16.mxu0 %v5565
        %6709 = vmatpush1.bf16.msra.mxu0 %v5564
        %6710 = vmatprep.subr.bf16.mxu0 %v5571
        %6711 = vmatpush1.bf16.msra.mxu0 %v5570
        %6712 = vmatprep.subr.bf16.mxu0 %v5577
        %6713 = vmatpush1.bf16.msra.mxu0 %v5576
        %6714 = vmatprep.subr.bf16.mxu0 %v5583
        %6715 = vmatpush1.bf16.msra.mxu0 %v5582
        %6716 = vmatprep.subr.bf16.mxu0 %v5589
        %6717 = vmatpush1.bf16.msra.mxu0 %v5588
        %6718 = vmatprep.subr.bf16.mxu0 %v5595
        %6719 = vmatpush1.bf16.msra.mxu0 %v5594
        %6720 = vmatprep.subr.bf16.mxu0 %v5601
        %6721 = vmatpush1.bf16.msra.mxu0 %v5600
        %6722 = vmatprep.subr.bf16.mxu0 %v5607
        %6723 = vmatpush1.bf16.msra.mxu0 %v5606
        %6724 = vmatprep.subr.bf16.mxu0 %v5613
        %6725 = vmatpush1.bf16.msra.mxu0 %v5612
        %6726 = vmatprep.subr.bf16.mxu0 %v5619
        %6727 = vmatpush1.bf16.msra.mxu0 %v5618
        %6728 = vmatprep.subr.bf16.mxu0 %v5625
        %6729 = vmatpush1.bf16.msra.mxu0 %v5624
        %6730 = vmatprep.subr.bf16.mxu0 %v5631
        %6731 = vmatpush1.bf16.msra.mxu0 %v5630
        %6732 = vmatprep.subr.bf16.mxu0 %v5637
        %6733 = vmatpush1.bf16.msra.mxu0 %v5636
        %6734 = vmatprep.subr.bf16.mxu0 %v5643
        %6735 = vmatpush1.bf16.msra.mxu0 %v5642
        %6736 = vmatprep.mubr.bf16.mxu0 %v4685
        %6737 = vmatmul.mubr.bf16.gmra.mrb[0].mxu0 %v4684
        %v6738 = vpop.f32.mrb[0].mxu0
        %v6739 = vadd.f32 %v4961, %v6738
        %v6740 = vpop.f32.mrb[0].mxu0
        %v6741 = vadd.f32 %v4965, %v6740
        %v6742 = vpop.f32.mrb[0].mxu0
        %v6743 = vadd.f32 %v4961, %v6742
        %v6744 = vpop.f32.mrb[0].mxu0
        %v6745 = vadd.f32 %v4965, %v6744
        %6746 = vmatprep.mubr.bf16.mxu0 %v4689
        %6747 = vmatmul.mubr.bf16.gmra.mrb[0].mxu0 %v4688
        %v6748 = vpop.f32.mrb[0].mxu0
        %v6749 = vadd.f32 %v4961, %v6748
        %v6750 = vpop.f32.mrb[0].mxu0
        %v6751 = vadd.f32 %v4965, %v6750
        %v6752 = vpop.f32.mrb[0].mxu0
        %v6753 = vadd.f32 %v4961, %v6752
        %v6754 = vpop.f32.mrb[0].mxu0
        %v6755 = vadd.f32 %v4965, %v6754
        %6756 = vmatprep.mubr.bf16.mxu0 %v4693
        %6757 = vmatmul.mubr.bf16.gmra.mrb[0].mxu0 %v4692
        %v6758 = vpop.f32.mrb[0].mxu0
        %v6759 = vadd.f32 %v4961, %v6758
        %v6760 = vpop.f32.mrb[0].mxu0
        %v6761 = vadd.f32 %v4965, %v6760
        %v6762 = vpop.f32.mrb[0].mxu0
        %v6763 = vadd.f32 %v4961, %v6762
        %v6764 = vpop.f32.mrb[0].mxu0
        %v6765 = vadd.f32 %v4965, %v6764
        %6766 = vmatprep.mubr.bf16.mxu0 %v4697
        %6767 = vmatmul.mubr.bf16.gmra.mrb[0].mxu0 %v4696
        %v6768 = vpop.f32.mrb[0].mxu0
        %v6769 = vadd.f32 %v4961, %v6768
        %v6770 = vpop.f32.mrb[0].mxu0
        %v6771 = vadd.f32 %v4965, %v6770
        %v6772 = vpop.f32.mrb[0].mxu0
        %v6773 = vadd.f32 %v4961, %v6772
        %v6774 = vpop.f32.mrb[0].mxu0
        %v6775 = vadd.f32 %v4965, %v6774
        %6776 = vmatprep.mubr.bf16.mxu0 %v4701
        %6777 = vmatmul.mubr.bf16.gmra.mrb[0].mxu0 %v4700
        %v6778 = vpop.f32.mrb[0].mxu0
        %v6779 = vadd.f32 %v4961, %v6778
        %v6780 = vpop.f32.mrb[0].mxu0
        %v6781 = vadd.f32 %v4965, %v6780
        %v6782 = vpop.f32.mrb[0].mxu0
        %v6783 = vadd.f32 %v4961, %v6782
        %v6784 = vpop.f32.mrb[0].mxu0
        %v6785 = vadd.f32 %v4965, %v6784
        %6786 = vmatprep.mubr.bf16.mxu0 %v4705
        %6787 = vmatmul.mubr.bf16.gmra.mrb[0].mxu0 %v4704
        %v6788 = vpop.f32.mrb[0].mxu0
        %v6789 = vadd.f32 %v4961, %v6788
        %v6790 = vpop.f32.mrb[0].mxu0
        %v6791 = vadd.f32 %v4965, %v6790
        %v6792 = vpop.f32.mrb[0].mxu0
        %v6793 = vadd.f32 %v4961, %v6792
        %v6794 = vpop.f32.mrb[0].mxu0
        %v6795 = vadd.f32 %v4965, %v6794
        %6796 = vmatprep.mubr.bf16.mxu0 %v4709
        %6797 = vmatmul.mubr.bf16.gmra.mrb[0].mxu0 %v4708
        %v6798 = vpop.f32.mrb[0].mxu0
        %v6799 = vadd.f32 %v4961, %v6798
        %v6800 = vpop.f32.mrb[0].mxu0
        %v6801 = vadd.f32 %v4965, %v6800
        %v6802 = vpop.f32.mrb[0].mxu0
        %v6803 = vadd.f32 %v4961, %v6802
        %v6804 = vpop.f32.mrb[0].mxu0
        %v6805 = vadd.f32 %v4965, %v6804
        %6806 = vmatprep.mubr.bf16.mxu0 %v4713
        %6807 = vmatmul.mubr.bf16.gmra.mrb[0].mxu0 %v4712
        %v6808 = vpop.f32.mrb[0].mxu0
        %v6809 = vadd.f32 %v4961, %v6808
        %v6810 = vpop.f32.mrb[0].mxu0
        %v6811 = vadd.f32 %v4965, %v6810
        %v6812 = vpop.f32.mrb[0].mxu0
        %v6813 = vadd.f32 %v4961, %v6812
        %v6814 = vpop.f32.mrb[0].mxu0
        %v6815 = vadd.f32 %v4965, %v6814
        %6816 = vmatprep.mubr.bf16.mxu0 %v4717
        %6817 = vmatmul.mubr.bf16.gmra.mrb[0].mxu0 %v4716
        %v6818 = vpop.f32.mrb[0].mxu0
        %v6819 = vadd.f32 %v4961, %v6818
        %v6820 = vpop.f32.mrb[0].mxu0
        %v6821 = vadd.f32 %v4965, %v6820
        %v6822 = vpop.f32.mrb[0].mxu0
        %v6823 = vadd.f32 %v4961, %v6822
        %v6824 = vpop.f32.mrb[0].mxu0
        %v6825 = vadd.f32 %v4965, %v6824
        %6826 = vmatprep.mubr.bf16.mxu0 %v4721
        %6827 = vmatmul.mubr.bf16.gmra.mrb[0].mxu0 %v4720
        %v6828 = vpop.f32.mrb[0].mxu0
        %v6829 = vadd.f32 %v4961, %v6828
        %v6830 = vpop.f32.mrb[0].mxu0
        %v6831 = vadd.f32 %v4965, %v6830
        %v6832 = vpop.f32.mrb[0].mxu0
        %v6833 = vadd.f32 %v4961, %v6832
        %v6834 = vpop.f32.mrb[0].mxu0
        %v6835 = vadd.f32 %v4965, %v6834
        %6836 = vmatprep.mubr.bf16.mxu0 %v4725
        %6837 = vmatmul.mubr.bf16.gmra.mrb[0].mxu0 %v4724
        %v6838 = vpop.f32.mrb[0].mxu0
        %v6839 = vadd.f32 %v4961, %v6838
        %v6840 = vpop.f32.mrb[0].mxu0
        %v6841 = vadd.f32 %v4965, %v6840
        %v6842 = vpop.f32.mrb[0].mxu0
        %v6843 = vadd.f32 %v4961, %v6842
        %v6844 = vpop.f32.mrb[0].mxu0
        %v6845 = vadd.f32 %v4965, %v6844
        %6846 = vmatprep.mubr.bf16.mxu0 %v4729
        %6847 = vmatmul.mubr.bf16.gmra.mrb[0].mxu0 %v4728
        %v6848 = vpop.f32.mrb[0].mxu0
        %v6849 = vadd.f32 %v4961, %v6848
        %v6850 = vpop.f32.mrb[0].mxu0
        %v6851 = vadd.f32 %v4965, %v6850
        %v6852 = vpop.f32.mrb[0].mxu0
        %v6853 = vadd.f32 %v4961, %v6852
        %v6854 = vpop.f32.mrb[0].mxu0
        %v6855 = vadd.f32 %v4965, %v6854
        %6856 = vmatprep.mubr.bf16.mxu0 %v4733
        %6857 = vmatmul.mubr.bf16.gmra.mrb[0].mxu0 %v4732
        %v6858 = vpop.f32.mrb[0].mxu0
        %v6859 = vadd.f32 %v4961, %v6858
        %v6860 = vpop.f32.mrb[0].mxu0
        %v6861 = vadd.f32 %v4965, %v6860
        %v6862 = vpop.f32.mrb[0].mxu0
        %v6863 = vadd.f32 %v4961, %v6862
        %v6864 = vpop.f32.mrb[0].mxu0
        %v6865 = vadd.f32 %v4965, %v6864
        %6866 = vmatprep.mubr.bf16.mxu0 %v4737
        %6867 = vmatmul.mubr.bf16.gmra.mrb[0].mxu0 %v4736
        %v6868 = vpop.f32.mrb[0].mxu0
        %v6869 = vadd.f32 %v4961, %v6868
        %v6870 = vpop.f32.mrb[0].mxu0
        %v6871 = vadd.f32 %v4965, %v6870
        %v6872 = vpop.f32.mrb[0].mxu0
        %v6873 = vadd.f32 %v4961, %v6872
        %v6874 = vpop.f32.mrb[0].mxu0
        %v6875 = vadd.f32 %v4965, %v6874
        %6876 = vmatprep.mubr.bf16.mxu0 %v4741
        %6877 = vmatmul.mubr.bf16.gmra.mrb[0].mxu0 %v4740
        %v6878 = vpop.f32.mrb[0].mxu0
        %v6879 = vadd.f32 %v4961, %v6878
        %v6880 = vpop.f32.mrb[0].mxu0
        %v6881 = vadd.f32 %v4965, %v6880
        %v6882 = vpop.f32.mrb[0].mxu0
        %v6883 = vadd.f32 %v4961, %v6882
        %v6884 = vpop.f32.mrb[0].mxu0
        %v6885 = vadd.f32 %v4965, %v6884
        %6886 = vmatprep.mubr.bf16.mxu0 %v4745
        %6887 = vmatmul.mubr.bf16.gmra.mrb[0].mxu0 %v4744
        %v6888 = vpop.f32.mrb[0].mxu0
        %v6889 = vadd.f32 %v4961, %v6888
        %v6890 = vpop.f32.mrb[0].mxu0
        %v6891 = vadd.f32 %v4965, %v6890
        %v6892 = vpop.f32.mrb[0].mxu0
        %v6893 = vadd.f32 %v4961, %v6892
        %v6894 = vpop.f32.mrb[0].mxu0
        %v6895 = vadd.f32 %v4965, %v6894
        %6896 = vdwg.mxu0
        %6897 = vmatprep.subr.bf16.mxu0 %v5649
        %6898 = vmatpush1.bf16.msra.mxu0 %v5648
        %6899 = vmatprep.subr.bf16.mxu0 %v5655
        %6900 = vmatpush1.bf16.msra.mxu0 %v5654
        %6901 = vmatprep.subr.bf16.mxu0 %v5661
        %6902 = vmatpush1.bf16.msra.mxu0 %v5660
        %6903 = vmatprep.subr.bf16.mxu0 %v5667
        %6904 = vmatpush1.bf16.msra.mxu0 %v5666
        %6905 = vmatprep.subr.bf16.mxu0 %v5673
        %6906 = vmatpush1.bf16.msra.mxu0 %v5672
        %6907 = vmatprep.subr.bf16.mxu0 %v5679
        %6908 = vmatpush1.bf16.msra.mxu0 %v5678
        %6909 = vmatprep.subr.bf16.mxu0 %v5685
        %6910 = vmatpush1.bf16.msra.mxu0 %v5684
        %6911 = vmatprep.subr.bf16.mxu0 %v5691
        %6912 = vmatpush1.bf16.msra.mxu0 %v5690
        %6913 = vmatprep.subr.bf16.mxu0 %v5697
        %6914 = vmatpush1.bf16.msra.mxu0 %v5696
        %6915 = vmatprep.subr.bf16.mxu0 %v5703
        %6916 = vmatpush1.bf16.msra.mxu0 %v5702
        %6917 = vmatprep.subr.bf16.mxu0 %v5709
        %6918 = vmatpush1.bf16.msra.mxu0 %v5708
        %6919 = vmatprep.subr.bf16.mxu0 %v5715
        %6920 = vmatpush1.bf16.msra.mxu0 %v5714
        %6921 = vmatprep.subr.bf16.mxu0 %v5721
        %6922 = vmatpush1.bf16.msra.mxu0 %v5720
        %6923 = vmatprep.subr.bf16.mxu0 %v5727
        %6924 = vmatpush1.bf16.msra.mxu0 %v5726
        %6925 = vmatprep.subr.bf16.mxu0 %v5733
        %6926 = vmatpush1.bf16.msra.mxu0 %v5732
        %6927 = vmatprep.subr.bf16.mxu0 %v5739
        %6928 = vmatpush1.bf16.msra.mxu0 %v5738
        %6929 = vmatprep.mubr.bf16.mxu0 %v4687
        %6930 = vmatmul.mubr.bf16.gmra.mrb[0].mxu0 %v4686
        %v6931 = vpop.f32.mrb[0].mxu0
        %v6932 = vadd.f32 %v6739, %v6931
        %v6933 = vpop.f32.mrb[0].mxu0
        %v6934 = vadd.f32 %v6741, %v6933
        %v6935 = vpop.f32.mrb[0].mxu0
        %v6936 = vadd.f32 %v6743, %v6935
        %v6937 = vpop.f32.mrb[0].mxu0
        %v6938 = vadd.f32 %v6745, %v6937
        %6939 = vmatprep.mubr.bf16.mxu0 %v4691
        %6940 = vmatmul.mubr.bf16.gmra.mrb[0].mxu0 %v4690
        %v6941 = vpop.f32.mrb[0].mxu0
        %v6942 = vadd.f32 %v6749, %v6941
        %v6943 = vpop.f32.mrb[0].mxu0
        %v6944 = vadd.f32 %v6751, %v6943
        %v6945 = vpop.f32.mrb[0].mxu0
        %v6946 = vadd.f32 %v6753, %v6945
        %v6947 = vpop.f32.mrb[0].mxu0
        %v6948 = vadd.f32 %v6755, %v6947
        %6949 = vmatprep.mubr.bf16.mxu0 %v4695
        %6950 = vmatmul.mubr.bf16.gmra.mrb[0].mxu0 %v4694
        %v6951 = vpop.f32.mrb[0].mxu0
        %v6952 = vadd.f32 %v6759, %v6951
        %v6953 = vpop.f32.mrb[0].mxu0
        %v6954 = vadd.f32 %v6761, %v6953
        %v6955 = vpop.f32.mrb[0].mxu0
        %v6956 = vadd.f32 %v6763, %v6955
        %v6957 = vpop.f32.mrb[0].mxu0
        %v6958 = vadd.f32 %v6765, %v6957
        %6959 = vmatprep.mubr.bf16.mxu0 %v4699
        %6960 = vmatmul.mubr.bf16.gmra.mrb[0].mxu0 %v4698
        %v6961 = vpop.f32.mrb[0].mxu0
        %v6962 = vadd.f32 %v6769, %v6961
        %v6963 = vpop.f32.mrb[0].mxu0
        %v6964 = vadd.f32 %v6771, %v6963
        %v6965 = vpop.f32.mrb[0].mxu0
        %v6966 = vadd.f32 %v6773, %v6965
        %v6967 = vpop.f32.mrb[0].mxu0
        %v6968 = vadd.f32 %v6775, %v6967
        %6969 = vmatprep.mubr.bf16.mxu0 %v4703
        %6970 = vmatmul.mubr.bf16.gmra.mrb[0].mxu0 %v4702
        %v6971 = vpop.f32.mrb[0].mxu0
        %v6972 = vadd.f32 %v6779, %v6971
        %v6973 = vpop.f32.mrb[0].mxu0
        %v6974 = vadd.f32 %v6781, %v6973
        %v6975 = vpop.f32.mrb[0].mxu0
        %v6976 = vadd.f32 %v6783, %v6975
        %v6977 = vpop.f32.mrb[0].mxu0
        %v6978 = vadd.f32 %v6785, %v6977
        %6979 = vmatprep.mubr.bf16.mxu0 %v4707
        %6980 = vmatmul.mubr.bf16.gmra.mrb[0].mxu0 %v4706
        %v6981 = vpop.f32.mrb[0].mxu0
        %v6982 = vadd.f32 %v6789, %v6981
        %v6983 = vpop.f32.mrb[0].mxu0
        %v6984 = vadd.f32 %v6791, %v6983
        %v6985 = vpop.f32.mrb[0].mxu0
        %v6986 = vadd.f32 %v6793, %v6985
        %v6987 = vpop.f32.mrb[0].mxu0
        %v6988 = vadd.f32 %v6795, %v6987
        %6989 = vmatprep.mubr.bf16.mxu0 %v4711
        %6990 = vmatmul.mubr.bf16.gmra.mrb[0].mxu0 %v4710
        %v6991 = vpop.f32.mrb[0].mxu0
        %v6992 = vadd.f32 %v6799, %v6991
        %v6993 = vpop.f32.mrb[0].mxu0
        %v6994 = vadd.f32 %v6801, %v6993
        %v6995 = vpop.f32.mrb[0].mxu0
        %v6996 = vadd.f32 %v6803, %v6995
        %v6997 = vpop.f32.mrb[0].mxu0
        %v6998 = vadd.f32 %v6805, %v6997
        %6999 = vmatprep.mubr.bf16.mxu0 %v4715
        %7000 = vmatmul.mubr.bf16.gmra.mrb[0].mxu0 %v4714
        %v7001 = vpop.f32.mrb[0].mxu0
        %v7002 = vadd.f32 %v6809, %v7001
        %v7003 = vpop.f32.mrb[0].mxu0
        %v7004 = vadd.f32 %v6811, %v7003
        %v7005 = vpop.f32.mrb[0].mxu0
        %v7006 = vadd.f32 %v6813, %v7005
        %v7007 = vpop.f32.mrb[0].mxu0
        %v7008 = vadd.f32 %v6815, %v7007
        %7009 = vmatprep.mubr.bf16.mxu0 %v4719
        %7010 = vmatmul.mubr.bf16.gmra.mrb[0].mxu0 %v4718
        %v7011 = vpop.f32.mrb[0].mxu0
        %v7012 = vadd.f32 %v6819, %v7011
        %v7013 = vpop.f32.mrb[0].mxu0
        %v7014 = vadd.f32 %v6821, %v7013
        %v7015 = vpop.f32.mrb[0].mxu0
        %v7016 = vadd.f32 %v6823, %v7015
        %v7017 = vpop.f32.mrb[0].mxu0
        %v7018 = vadd.f32 %v6825, %v7017
        %7019 = vmatprep.mubr.bf16.mxu0 %v4723
        %7020 = vmatmul.mubr.bf16.gmra.mrb[0].mxu0 %v4722
        %v7021 = vpop.f32.mrb[0].mxu0
        %v7022 = vadd.f32 %v6829, %v7021
        %v7023 = vpop.f32.mrb[0].mxu0
        %v7024 = vadd.f32 %v6831, %v7023
        %v7025 = vpop.f32.mrb[0].mxu0
        %v7026 = vadd.f32 %v6833, %v7025
        %v7027 = vpop.f32.mrb[0].mxu0
        %v7028 = vadd.f32 %v6835, %v7027
        %7029 = vmatprep.mubr.bf16.mxu0 %v4727
        %7030 = vmatmul.mubr.bf16.gmra.mrb[0].mxu0 %v4726
        %v7031 = vpop.f32.mrb[0].mxu0
        %v7032 = vadd.f32 %v6839, %v7031
        %v7033 = vpop.f32.mrb[0].mxu0
        %v7034 = vadd.f32 %v6841, %v7033
        %v7035 = vpop.f32.mrb[0].mxu0
        %v7036 = vadd.f32 %v6843, %v7035
        %v7037 = vpop.f32.mrb[0].mxu0
        %v7038 = vadd.f32 %v6845, %v7037
        %7039 = vmatprep.mubr.bf16.mxu0 %v4731
        %7040 = vmatmul.mubr.bf16.gmra.mrb[0].mxu0 %v4730
        %v7041 = vpop.f32.mrb[0].mxu0
        %v7042 = vadd.f32 %v6849, %v7041
        %v7043 = vpop.f32.mrb[0].mxu0
        %v7044 = vadd.f32 %v6851, %v7043
        %v7045 = vpop.f32.mrb[0].mxu0
        %v7046 = vadd.f32 %v6853, %v7045
        %v7047 = vpop.f32.mrb[0].mxu0
        %v7048 = vadd.f32 %v6855, %v7047
        %7049 = vmatprep.mubr.bf16.mxu0 %v4735
        %7050 = vmatmul.mubr.bf16.gmra.mrb[0].mxu0 %v4734
        %v7051 = vpop.f32.mrb[0].mxu0
        %v7052 = vadd.f32 %v6859, %v7051
        %v7053 = vpop.f32.mrb[0].mxu0
        %v7054 = vadd.f32 %v6861, %v7053
        %v7055 = vpop.f32.mrb[0].mxu0
        %v7056 = vadd.f32 %v6863, %v7055
        %v7057 = vpop.f32.mrb[0].mxu0
        %v7058 = vadd.f32 %v6865, %v7057
        %7059 = vmatprep.mubr.bf16.mxu0 %v4739
        %7060 = vmatmul.mubr.bf16.gmra.mrb[0].mxu0 %v4738
        %v7061 = vpop.f32.mrb[0].mxu0
        %v7062 = vadd.f32 %v6869, %v7061
        %v7063 = vpop.f32.mrb[0].mxu0
        %v7064 = vadd.f32 %v6871, %v7063
        %v7065 = vpop.f32.mrb[0].mxu0
        %v7066 = vadd.f32 %v6873, %v7065
        %v7067 = vpop.f32.mrb[0].mxu0
        %v7068 = vadd.f32 %v6875, %v7067
        %7069 = vmatprep.mubr.bf16.mxu0 %v4743
        %7070 = vmatmul.mubr.bf16.gmra.mrb[0].mxu0 %v4742
        %v7071 = vpop.f32.mrb[0].mxu0
        %v7072 = vadd.f32 %v6879, %v7071
        %v7073 = vpop.f32.mrb[0].mxu0
        %v7074 = vadd.f32 %v6881, %v7073
        %v7075 = vpop.f32.mrb[0].mxu0
        %v7076 = vadd.f32 %v6883, %v7075
        %v7077 = vpop.f32.mrb[0].mxu0
        %v7078 = vadd.f32 %v6885, %v7077
        %7079 = vmatprep.mubr.bf16.mxu0 %v4747
        %7080 = vmatmul.mubr.bf16.gmra.mrb[0].mxu0 %v4746
        %v7081 = vpop.f32.mrb[0].mxu0
        %v7082 = vadd.f32 %v6889, %v7081
        %v7083 = vpop.f32.mrb[0].mxu0
        %v7084 = vadd.f32 %v6891, %v7083
        %v7085 = vpop.f32.mrb[0].mxu0
        %v7086 = vadd.f32 %v6893, %v7085
        %v7087 = vpop.f32.mrb[0].mxu0
        %v7088 = vadd.f32 %v6895, %v7087
        %7089 = vdwg.mxu0
        %v7090 = vtanh.pop %v6160
        %v7091 = vtanh.pop %v6162
        %v7092 = vtanh.pop %v6546
        %v7093 = vtanh.pop %v6164
        %v7094 = vtanh.pop %v6166
        %v7095 = vtanh.pop %v6550
        %v7096 = vtanh.pop %v6170
        %v7097 = vtanh.pop %v6172
        %v7098 = vtanh.pop %v6556
        %v7099 = vtanh.pop %v6174
        %v7100 = vtanh.pop %v6176
        %v7101 = vtanh.pop %v6560
        %v7102 = vtanh.pop %v6180
        %v7103 = vtanh.pop %v6182
        %v7104 = vtanh.pop %v6566
        %v7105 = vtanh.pop %v6184
        %v7106 = vtanh.pop %v6186
        %v7107 = vtanh.pop %v6570
        %v7108 = vtanh.pop %v6190
        %v7109 = vtanh.pop %v6192
        %v7110 = vtanh.pop %v6576
        %v7111 = vtanh.pop %v6194
        %v7112 = vtanh.pop %v6196
        %v7113 = vtanh.pop %v6580
        %v7114 = vtanh.pop %v6200
        %v7115 = vtanh.pop %v6202
        %v7116 = vtanh.pop %v6586
        %v7117 = vtanh.pop %v6204
        %v7118 = vtanh.pop %v6206
        %v7119 = vtanh.pop %v6590
        %v7120 = vtanh.pop %v6210
        %v7121 = vtanh.pop %v6212
        %v7122 = vtanh.pop %v6596
        %v7123 = vtanh.pop %v6214
        %v7124 = vtanh.pop %v6216
        %v7125 = vtanh.pop %v6600
        %v7126 = vtanh.pop %v6220
        %v7127 = vtanh.pop %v6222
        %v7128 = vtanh.pop %v6606
        %v7129 = vtanh.pop %v6224
        %v7130 = vtanh.pop %v6226
        %v7131 = vtanh.pop %v6610
        %v7132 = vtanh.pop %v6230
        %v7133 = vtanh.pop %v6232
        %v7134 = vtanh.pop %v6616
        %v7135 = vtanh.pop %v6234
        %v7136 = vtanh.pop %v6236
        %v7137 = vtanh.pop %v6620
        %v7138 = vtanh.pop %v6240
        %v7139 = vtanh.pop %v6242
        %v7140 = vtanh.pop %v6626
        %v7141 = vtanh.pop %v6244
        %v7142 = vtanh.pop %v6246
        %v7143 = vtanh.pop %v6630
        %v7144 = vtanh.pop %v6250
        %v7145 = vtanh.pop %v6252
        %v7146 = vtanh.pop %v6636
        %v7147 = vtanh.pop %v6254
        %v7148 = vtanh.pop %v6256
        %v7149 = vtanh.pop %v6640
        %v7150 = vtanh.pop %v6260
        %v7151 = vtanh.pop %v6262
        %v7152 = vtanh.pop %v6646
        %v7153 = vtanh.pop %v6264
        %v7154 = vtanh.pop %v6266
        %v7155 = vtanh.pop %v6650
        %v7156 = vtanh.pop %v6270
        %v7157 = vtanh.pop %v6272
        %v7158 = vtanh.pop %v6656
        %v7159 = vtanh.pop %v6274
        %v7160 = vtanh.pop %v6276
        %v7161 = vtanh.pop %v6660
        %v7162 = vtanh.pop %v6280
        %v7163 = vtanh.pop %v6282
        %v7164 = vtanh.pop %v6666
        %v7165 = vtanh.pop %v6284
        %v7166 = vtanh.pop %v6286
        %v7167 = vtanh.pop %v6670
        %v7168 = vtanh.pop %v6290
        %v7169 = vtanh.pop %v6292
        %v7170 = vtanh.pop %v6676
        %v7171 = vtanh.pop %v6294
        %v7172 = vtanh.pop %v6296
        %v7173 = vtanh.pop %v6680
        %v7174 = vtanh.pop %v6300
        %v7175 = vtanh.pop %v6302
        %v7176 = vtanh.pop %v6686
        %v7177 = vtanh.pop %v6304
        %v7178 = vtanh.pop %v6306
        %v7179 = vtanh.pop %v6690
        %v7180 = vtanh.pop %v6310
        %v7181 = vtanh.pop %v6312
        %v7182 = vtanh.pop %v6696
        %v7183 = vtanh.pop %v6314
        %v7184 = vtanh.pop %v6316
        %v7185 = vtanh.pop %v6700
        %v7186 = vsub.f32 0.0, %v6548
        %v7187 = vsub.f32 0.0, %v6932
        %v7188 = vsub.f32 0.0, %v6934
        %v7189 = vsub.f32 0.0, %v6552
        %v7190 = vsub.f32 0.0, %v6936
        %v7191 = vsub.f32 0.0, %v6938
        %v7192 = vsub.f32 0.0, %v6558
        %v7193 = vsub.f32 0.0, %v6942
        %v7194 = vsub.f32 0.0, %v6944
        %v7195 = vsub.f32 0.0, %v6562
        %v7196 = vsub.f32 0.0, %v6946
        %v7197 = vsub.f32 0.0, %v6948
        %v7198 = vsub.f32 0.0, %v6568
        %v7199 = vsub.f32 0.0, %v6952
        %v7200 = vsub.f32 0.0, %v6954
        %v7201 = vsub.f32 0.0, %v6572
        %v7202 = vsub.f32 0.0, %v6956
        %v7203 = vsub.f32 0.0, %v6958
        %v7204 = vsub.f32 0.0, %v6578
        %v7205 = vsub.f32 0.0, %v6962
        %v7206 = vsub.f32 0.0, %v6964
        %v7207 = vsub.f32 0.0, %v6582
        %v7208 = vsub.f32 0.0, %v6966
        %v7209 = vsub.f32 0.0, %v6968
        %v7210 = vsub.f32 0.0, %v6588
        %v7211 = vsub.f32 0.0, %v6972
        %v7212 = vsub.f32 0.0, %v6974
        %v7213 = vsub.f32 0.0, %v6592
        %v7214 = vsub.f32 0.0, %v6976
        %v7215 = vsub.f32 0.0, %v6978
        %v7216 = vsub.f32 0.0, %v6598
        %v7217 = vsub.f32 0.0, %v6982
        %v7218 = vsub.f32 0.0, %v6984
        %v7219 = vsub.f32 0.0, %v6602
        %v7220 = vsub.f32 0.0, %v6986
        %v7221 = vsub.f32 0.0, %v6988
        %v7222 = vsub.f32 0.0, %v6608
        %v7223 = vsub.f32 0.0, %v6992
        %v7224 = vsub.f32 0.0, %v6994
        %v7225 = vsub.f32 0.0, %v6612
        %v7226 = vsub.f32 0.0, %v6996
        %v7227 = vsub.f32 0.0, %v6998
        %v7228 = vsub.f32 0.0, %v6618
        %v7229 = vsub.f32 0.0, %v7002
        %v7230 = vsub.f32 0.0, %v7004
        %v7231 = vsub.f32 0.0, %v6622
        %v7232 = vsub.f32 0.0, %v7006
        %v7233 = vsub.f32 0.0, %v7008
        %v7234 = vsub.f32 0.0, %v6628
        %v7235 = vsub.f32 0.0, %v7012
        %v7236 = vsub.f32 0.0, %v7014
        %v7237 = vsub.f32 0.0, %v6632
        %v7238 = vsub.f32 0.0, %v7016
        %v7239 = vsub.f32 0.0, %v7018
        %v7240 = vsub.f32 0.0, %v6638
        %v7241 = vsub.f32 0.0, %v7022
        %v7242 = vsub.f32 0.0, %v7024
        %v7243 = vsub.f32 0.0, %v6642
        %v7244 = vsub.f32 0.0, %v7026
        %v7245 = vsub.f32 0.0, %v7028
        %v7246 = vsub.f32 0.0, %v6648
        %v7247 = vsub.f32 0.0, %v7032
        %v7248 = vsub.f32 0.0, %v7034
        %v7249 = vsub.f32 0.0, %v6652
        %v7250 = vsub.f32 0.0, %v7036
        %v7251 = vsub.f32 0.0, %v7038
        %v7252 = vsub.f32 0.0, %v6658
        %v7253 = vsub.f32 0.0, %v7042
        %v7254 = vsub.f32 0.0, %v7044
        %v7255 = vsub.f32 0.0, %v6662
        %v7256 = vsub.f32 0.0, %v7046
        %v7257 = vsub.f32 0.0, %v7048
        %v7258 = vsub.f32 0.0, %v6668
        %v7259 = vsub.f32 0.0, %v7052
        %v7260 = vsub.f32 0.0, %v7054
        %v7261 = vsub.f32 0.0, %v6672
        %v7262 = vsub.f32 0.0, %v7056
        %v7263 = vsub.f32 0.0, %v7058
        %v7264 = vsub.f32 0.0, %v6678
        %v7265 = vsub.f32 0.0, %v7062
        %v7266 = vsub.f32 0.0, %v7064
        %v7267 = vsub.f32 0.0, %v6682
        %v7268 = vsub.f32 0.0, %v7066
        %v7269 = vsub.f32 0.0, %v7068
        %v7270 = vsub.f32 0.0, %v6688
        %v7271 = vsub.f32 0.0, %v7072
        %v7272 = vsub.f32 0.0, %v7074
        %v7273 = vsub.f32 0.0, %v6692
        %v7274 = vsub.f32 0.0, %v7076
        %v7275 = vsub.f32 0.0, %v7078
        %v7276 = vsub.f32 0.0, %v6698
        %v7277 = vsub.f32 0.0, %v7082
        %v7278 = vsub.f32 0.0, %v7084
        %v7279 = vsub.f32 0.0, %v6702
        %v7280 = vsub.f32 0.0, %v7086
        %v7281 = vsub.f32 0.0, %v7088
        %v7282 = vmul.f32 %v7186, 1.442695
        %v7283 = vpow.pop %v7282
        %v7284 = vmul.f32 %v7187, 1.442695
        %v7285 = vpow.pop %v7284
        %v7286 = vmul.f32 %v7188, 1.442695
        %v7287 = vpow.pop %v7286
        %v7288 = vmul.f32 %v7189, 1.442695
        %v7289 = vpow.pop %v7288
        %v7290 = vmul.f32 %v7190, 1.442695
        %v7291 = vpow.pop %v7290
        %v7292 = vmul.f32 %v7191, 1.442695
        %v7293 = vpow.pop %v7292
        %v7294 = vmul.f32 %v7192, 1.442695
        %v7295 = vpow.pop %v7294
        %v7296 = vmul.f32 %v7193, 1.442695
        %v7297 = vpow.pop %v7296
        %v7298 = vmul.f32 %v7194, 1.442695
        %v7299 = vpow.pop %v7298
        %v7300 = vmul.f32 %v7195, 1.442695
        %v7301 = vpow.pop %v7300
        %v7302 = vmul.f32 %v7196, 1.442695
        %v7303 = vpow.pop %v7302
        %v7304 = vmul.f32 %v7197, 1.442695
        %v7305 = vpow.pop %v7304
        %v7306 = vmul.f32 %v7198, 1.442695
        %v7307 = vpow.pop %v7306
        %v7308 = vmul.f32 %v7199, 1.442695
        %v7309 = vpow.pop %v7308
        %v7310 = vmul.f32 %v7200, 1.442695
        %v7311 = vpow.pop %v7310
        %v7312 = vmul.f32 %v7201, 1.442695
        %v7313 = vpow.pop %v7312
        %v7314 = vmul.f32 %v7202, 1.442695
        %v7315 = vpow.pop %v7314
        %v7316 = vmul.f32 %v7203, 1.442695
        %v7317 = vpow.pop %v7316
        %v7318 = vmul.f32 %v7204, 1.442695
        %v7319 = vpow.pop %v7318
        %v7320 = vmul.f32 %v7205, 1.442695
        %v7321 = vpow.pop %v7320
        %v7322 = vmul.f32 %v7206, 1.442695
        %v7323 = vpow.pop %v7322
        %v7324 = vmul.f32 %v7207, 1.442695
        %v7325 = vpow.pop %v7324
        %v7326 = vmul.f32 %v7208, 1.442695
        %v7327 = vpow.pop %v7326
        %v7328 = vmul.f32 %v7209, 1.442695
        %v7329 = vpow.pop %v7328
        %v7330 = vmul.f32 %v7210, 1.442695
        %v7331 = vpow.pop %v7330
        %v7332 = vmul.f32 %v7211, 1.442695
        %v7333 = vpow.pop %v7332
        %v7334 = vmul.f32 %v7212, 1.442695
        %v7335 = vpow.pop %v7334
        %v7336 = vmul.f32 %v7213, 1.442695
        %v7337 = vpow.pop %v7336
        %v7338 = vmul.f32 %v7214, 1.442695
        %v7339 = vpow.pop %v7338
        %v7340 = vmul.f32 %v7215, 1.442695
        %v7341 = vpow.pop %v7340
        %v7342 = vmul.f32 %v7216, 1.442695
        %v7343 = vpow.pop %v7342
        %v7344 = vmul.f32 %v7217, 1.442695
        %v7345 = vpow.pop %v7344
        %v7346 = vmul.f32 %v7218, 1.442695
        %v7347 = vpow.pop %v7346
        %v7348 = vmul.f32 %v7219, 1.442695
        %v7349 = vpow.pop %v7348
        %v7350 = vmul.f32 %v7220, 1.442695
        %v7351 = vpow.pop %v7350
        %v7352 = vmul.f32 %v7221, 1.442695
        %v7353 = vpow.pop %v7352
        %v7354 = vmul.f32 %v7222, 1.442695
        %v7355 = vpow.pop %v7354
        %v7356 = vmul.f32 %v7223, 1.442695
        %v7357 = vpow.pop %v7356
        %v7358 = vmul.f32 %v7224, 1.442695
        %v7359 = vpow.pop %v7358
        %v7360 = vmul.f32 %v7225, 1.442695
        %v7361 = vpow.pop %v7360
        %v7362 = vmul.f32 %v7226, 1.442695
        %v7363 = vpow.pop %v7362
        %v7364 = vmul.f32 %v7227, 1.442695
        %v7365 = vpow.pop %v7364
        %v7366 = vmul.f32 %v7228, 1.442695
        %v7367 = vpow.pop %v7366
        %v7368 = vmul.f32 %v7229, 1.442695
        %v7369 = vpow.pop %v7368
        %v7370 = vmul.f32 %v7230, 1.442695
        %v7371 = vpow.pop %v7370
        %v7372 = vmul.f32 %v7231, 1.442695
        %v7373 = vpow.pop %v7372
        %v7374 = vmul.f32 %v7232, 1.442695
        %v7375 = vpow.pop %v7374
        %v7376 = vmul.f32 %v7233, 1.442695
        %v7377 = vpow.pop %v7376
        %v7378 = vmul.f32 %v7234, 1.442695
        %v7379 = vpow.pop %v7378
        %v7380 = vmul.f32 %v7235, 1.442695
        %v7381 = vpow.pop %v7380
        %v7382 = vmul.f32 %v7236, 1.442695
        %v7383 = vpow.pop %v7382
        %v7384 = vmul.f32 %v7237, 1.442695
        %v7385 = vpow.pop %v7384
        %v7386 = vmul.f32 %v7238, 1.442695
        %v7387 = vpow.pop %v7386
        %v7388 = vmul.f32 %v7239, 1.442695
        %v7389 = vpow.pop %v7388
        %v7390 = vmul.f32 %v7240, 1.442695
        %v7391 = vpow.pop %v7390
        %v7392 = vmul.f32 %v7241, 1.442695
        %v7393 = vpow.pop %v7392
        %v7394 = vmul.f32 %v7242, 1.442695
        %v7395 = vpow.pop %v7394
        %v7396 = vmul.f32 %v7243, 1.442695
        %v7397 = vpow.pop %v7396
        %v7398 = vmul.f32 %v7244, 1.442695
        %v7399 = vpow.pop %v7398
        %v7400 = vmul.f32 %v7245, 1.442695
        %v7401 = vpow.pop %v7400
        %v7402 = vmul.f32 %v7246, 1.442695
        %v7403 = vpow.pop %v7402
        %v7404 = vmul.f32 %v7247, 1.442695
        %v7405 = vpow.pop %v7404
        %v7406 = vmul.f32 %v7248, 1.442695
        %v7407 = vpow.pop %v7406
        %v7408 = vmul.f32 %v7249, 1.442695
        %v7409 = vpow.pop %v7408
        %v7410 = vmul.f32 %v7250, 1.442695
        %v7411 = vpow.pop %v7410
        %v7412 = vmul.f32 %v7251, 1.442695
        %v7413 = vpow.pop %v7412
        %v7414 = vmul.f32 %v7252, 1.442695
        %v7415 = vpow.pop %v7414
        %v7416 = vmul.f32 %v7253, 1.442695
        %v7417 = vpow.pop %v7416
        %v7418 = vmul.f32 %v7254, 1.442695
        %v7419 = vpow.pop %v7418
        %v7420 = vmul.f32 %v7255, 1.442695
        %v7421 = vpow.pop %v7420
        %v7422 = vmul.f32 %v7256, 1.442695
        %v7423 = vpow.pop %v7422
        %v7424 = vmul.f32 %v7257, 1.442695
        %v7425 = vpow.pop %v7424
        %v7426 = vmul.f32 %v7258, 1.442695
        %v7427 = vpow.pop %v7426
        %v7428 = vmul.f32 %v7259, 1.442695
        %v7429 = vpow.pop %v7428
        %v7430 = vmul.f32 %v7260, 1.442695
        %v7431 = vpow.pop %v7430
        %v7432 = vmul.f32 %v7261, 1.442695
        %v7433 = vpow.pop %v7432
        %v7434 = vmul.f32 %v7262, 1.442695
        %v7435 = vpow.pop %v7434
        %v7436 = vmul.f32 %v7263, 1.442695
        %v7437 = vpow.pop %v7436
        %v7438 = vmul.f32 %v7264, 1.442695
        %v7439 = vpow.pop %v7438
        %v7440 = vmul.f32 %v7265, 1.442695
        %v7441 = vpow.pop %v7440
        %v7442 = vmul.f32 %v7266, 1.442695
        %v7443 = vpow.pop %v7442
        %v7444 = vmul.f32 %v7267, 1.442695
        %v7445 = vpow.pop %v7444
        %v7446 = vmul.f32 %v7268, 1.442695
        %v7447 = vpow.pop %v7446
        %v7448 = vmul.f32 %v7269, 1.442695
        %v7449 = vpow.pop %v7448
        %v7450 = vmul.f32 %v7270, 1.442695
        %v7451 = vpow.pop %v7450
        %v7452 = vmul.f32 %v7271, 1.442695
        %v7453 = vpow.pop %v7452
        %v7454 = vmul.f32 %v7272, 1.442695
        %v7455 = vpow.pop %v7454
        %v7456 = vmul.f32 %v7273, 1.442695
        %v7457 = vpow.pop %v7456
        %v7458 = vmul.f32 %v7274, 1.442695
        %v7459 = vpow.pop %v7458
        %v7460 = vmul.f32 %v7275, 1.442695
        %v7461 = vpow.pop %v7460
        %v7462 = vmul.f32 %v7276, 1.442695
        %v7463 = vpow.pop %v7462
        %v7464 = vmul.f32 %v7277, 1.442695
        %v7465 = vpow.pop %v7464
        %v7466 = vmul.f32 %v7278, 1.442695
        %v7467 = vpow.pop %v7466
        %v7468 = vmul.f32 %v7279, 1.442695
        %v7469 = vpow.pop %v7468
        %v7470 = vmul.f32 %v7280, 1.442695
        %v7471 = vpow.pop %v7470
        %v7472 = vmul.f32 %v7281, 1.442695
        %v7473 = vpow.pop %v7472
        %v7474 = vadd.f32 %v7283, 1.0
        %v7475 = vadd.f32 %v7285, 1.0
        %v7476 = vadd.f32 %v7287, 1.0
        %v7477 = vadd.f32 %v7289, 1.0
        %v7478 = vadd.f32 %v7291, 1.0
        %v7479 = vadd.f32 %v7293, 1.0
        %v7480 = vadd.f32 %v7295, 1.0
        %v7481 = vadd.f32 %v7297, 1.0
        %v7482 = vadd.f32 %v7299, 1.0
        %v7483 = vadd.f32 %v7301, 1.0
        %v7484 = vadd.f32 %v7303, 1.0
        %v7485 = vadd.f32 %v7305, 1.0
        %v7486 = vadd.f32 %v7307, 1.0
        %v7487 = vadd.f32 %v7309, 1.0
        %v7488 = vadd.f32 %v7311, 1.0
        %v7489 = vadd.f32 %v7313, 1.0
        %v7490 = vadd.f32 %v7315, 1.0
        %v7491 = vadd.f32 %v7317, 1.0
        %v7492 = vadd.f32 %v7319, 1.0
        %v7493 = vadd.f32 %v7321, 1.0
        %v7494 = vadd.f32 %v7323, 1.0
        %v7495 = vadd.f32 %v7325, 1.0
        %v7496 = vadd.f32 %v7327, 1.0
        %v7497 = vadd.f32 %v7329, 1.0
        %v7498 = vadd.f32 %v7331, 1.0
        %v7499 = vadd.f32 %v7333, 1.0
        %v7500 = vadd.f32 %v7335, 1.0
        %v7501 = vadd.f32 %v7337, 1.0
        %v7502 = vadd.f32 %v7339, 1.0
        %v7503 = vadd.f32 %v7341, 1.0
        %v7504 = vadd.f32 %v7343, 1.0
        %v7505 = vadd.f32 %v7345, 1.0
        %v7506 = vadd.f32 %v7347, 1.0
        %v7507 = vadd.f32 %v7349, 1.0
        %v7508 = vadd.f32 %v7351, 1.0
        %v7509 = vadd.f32 %v7353, 1.0
        %v7510 = vadd.f32 %v7355, 1.0
        %v7511 = vadd.f32 %v7357, 1.0
        %v7512 = vadd.f32 %v7359, 1.0
        %v7513 = vadd.f32 %v7361, 1.0
        %v7514 = vadd.f32 %v7363, 1.0
        %v7515 = vadd.f32 %v7365, 1.0
        %v7516 = vadd.f32 %v7367, 1.0
        %v7517 = vadd.f32 %v7369, 1.0
        %v7518 = vadd.f32 %v7371, 1.0
        %v7519 = vadd.f32 %v7373, 1.0
        %v7520 = vadd.f32 %v7375, 1.0
        %v7521 = vadd.f32 %v7377, 1.0
        %v7522 = vadd.f32 %v7379, 1.0
        %v7523 = vadd.f32 %v7381, 1.0
        %v7524 = vadd.f32 %v7383, 1.0
        %v7525 = vadd.f32 %v7385, 1.0
        %v7526 = vadd.f32 %v7387, 1.0
        %v7527 = vadd.f32 %v7389, 1.0
        %v7528 = vadd.f32 %v7391, 1.0
        %v7529 = vadd.f32 %v7393, 1.0
        %v7530 = vadd.f32 %v7395, 1.0
        %v7531 = vadd.f32 %v7397, 1.0
        %v7532 = vadd.f32 %v7399, 1.0
        %v7533 = vadd.f32 %v7401, 1.0
        %v7534 = vadd.f32 %v7403, 1.0
        %v7535 = vadd.f32 %v7405, 1.0
        %v7536 = vadd.f32 %v7407, 1.0
        %v7537 = vadd.f32 %v7409, 1.0
        %v7538 = vadd.f32 %v7411, 1.0
        %v7539 = vadd.f32 %v7413, 1.0
        %v7540 = vadd.f32 %v7415, 1.0
        %v7541 = vadd.f32 %v7417, 1.0
        %v7542 = vadd.f32 %v7419, 1.0
        %v7543 = vadd.f32 %v7421, 1.0
        %v7544 = vadd.f32 %v7423, 1.0
        %v7545 = vadd.f32 %v7425, 1.0
        %v7546 = vadd.f32 %v7427, 1.0
        %v7547 = vadd.f32 %v7429, 1.0
        %v7548 = vadd.f32 %v7431, 1.0
        %v7549 = vadd.f32 %v7433, 1.0
        %v7550 = vadd.f32 %v7435, 1.0
        %v7551 = vadd.f32 %v7437, 1.0
        %v7552 = vadd.f32 %v7439, 1.0
        %v7553 = vadd.f32 %v7441, 1.0
        %v7554 = vadd.f32 %v7443, 1.0
        %v7555 = vadd.f32 %v7445, 1.0
        %v7556 = vadd.f32 %v7447, 1.0
        %v7557 = vadd.f32 %v7449, 1.0
        %v7558 = vadd.f32 %v7451, 1.0
        %v7559 = vadd.f32 %v7453, 1.0
        %v7560 = vadd.f32 %v7455, 1.0
        %v7561 = vadd.f32 %v7457, 1.0
        %v7562 = vadd.f32 %v7459, 1.0
        %v7563 = vadd.f32 %v7461, 1.0
        %v7564 = vadd.f32 %v7463, 1.0
        %v7565 = vadd.f32 %v7465, 1.0
        %v7566 = vadd.f32 %v7467, 1.0
        %v7567 = vadd.f32 %v7469, 1.0
        %v7568 = vadd.f32 %v7471, 1.0
        %v7569 = vadd.f32 %v7473, 1.0
        %v7570 = vrcp.pop %v7474
        %v7571 = vrcp.pop %v7475
        %v7572 = vrcp.pop %v7476
        %v7573 = vrcp.pop %v7477
        %v7574 = vrcp.pop %v7478
        %v7575 = vrcp.pop %v7479
        %v7576 = vrcp.pop %v7480
        %v7577 = vrcp.pop %v7481
        %v7578 = vrcp.pop %v7482
        %v7579 = vrcp.pop %v7483
        %v7580 = vrcp.pop %v7484
        %v7581 = vrcp.pop %v7485
        %v7582 = vrcp.pop %v7486
        %v7583 = vrcp.pop %v7487
        %v7584 = vrcp.pop %v7488
        %v7585 = vrcp.pop %v7489
        %v7586 = vrcp.pop %v7490
        %v7587 = vrcp.pop %v7491
        %v7588 = vrcp.pop %v7492
        %v7589 = vrcp.pop %v7493
        %v7590 = vrcp.pop %v7494
        %v7591 = vrcp.pop %v7495
        %v7592 = vrcp.pop %v7496
        %v7593 = vrcp.pop %v7497
        %v7594 = vrcp.pop %v7498
        %v7595 = vrcp.pop %v7499
        %v7596 = vrcp.pop %v7500
        %v7597 = vrcp.pop %v7501
        %v7598 = vrcp.pop %v7502
        %v7599 = vrcp.pop %v7503
        %v7600 = vrcp.pop %v7504
        %v7601 = vrcp.pop %v7505
        %v7602 = vrcp.pop %v7506
        %v7603 = vrcp.pop %v7507
        %v7604 = vrcp.pop %v7508
        %v7605 = vrcp.pop %v7509
        %v7606 = vrcp.pop %v7510
        %v7607 = vrcp.pop %v7511
        %v7608 = vrcp.pop %v7512
        %v7609 = vrcp.pop %v7513
        %v7610 = vrcp.pop %v7514
        %v7611 = vrcp.pop %v7515
        %v7612 = vrcp.pop %v7516
        %v7613 = vrcp.pop %v7517
        %v7614 = vrcp.pop %v7518
        %v7615 = vrcp.pop %v7519
        %v7616 = vrcp.pop %v7520
        %v7617 = vrcp.pop %v7521
        %v7618 = vrcp.pop %v7522
        %v7619 = vrcp.pop %v7523
        %v7620 = vrcp.pop %v7524
        %v7621 = vrcp.pop %v7525
        %v7622 = vrcp.pop %v7526
        %v7623 = vrcp.pop %v7527
        %v7624 = vrcp.pop %v7528
        %v7625 = vrcp.pop %v7529
        %v7626 = vrcp.pop %v7530
        %v7627 = vrcp.pop %v7531
        %v7628 = vrcp.pop %v7532
        %v7629 = vrcp.pop %v7533
        %v7630 = vrcp.pop %v7534
        %v7631 = vrcp.pop %v7535
        %v7632 = vrcp.pop %v7536
        %v7633 = vrcp.pop %v7537
        %v7634 = vrcp.pop %v7538
        %v7635 = vrcp.pop %v7539
        %v7636 = vrcp.pop %v7540
        %v7637 = vrcp.pop %v7541
        %v7638 = vrcp.pop %v7542
        %v7639 = vrcp.pop %v7543
        %v7640 = vrcp.pop %v7544
        %v7641 = vrcp.pop %v7545
        %v7642 = vrcp.pop %v7546
        %v7643 = vrcp.pop %v7547
        %v7644 = vrcp.pop %v7548
        %v7645 = vrcp.pop %v7549
        %v7646 = vrcp.pop %v7550
        %v7647 = vrcp.pop %v7551
        %v7648 = vrcp.pop %v7552
        %v7649 = vrcp.pop %v7553
        %v7650 = vrcp.pop %v7554
        %v7651 = vrcp.pop %v7555
        %v7652 = vrcp.pop %v7556
        %v7653 = vrcp.pop %v7557
        %v7654 = vrcp.pop %v7558
        %v7655 = vrcp.pop %v7559
        %v7656 = vrcp.pop %v7560
        %v7657 = vrcp.pop %v7561
        %v7658 = vrcp.pop %v7562
        %v7659 = vrcp.pop %v7563
        %v7660 = vrcp.pop %v7564
        %v7661 = vrcp.pop %v7565
        %v7662 = vrcp.pop %v7566
        %v7663 = vrcp.pop %v7567
        %v7664 = vrcp.pop %v7568
        %v7665 = vrcp.pop %v7569
        %v7666 = vmul.f32 %v7090, %v7570
        %v7667 = vmul.f32 %v7091, %v7571
        %v7668 = vmul.f32 %v7092, %v7572
        %v7669 = vmul.f32 %v7093, %v7573
        %v7670 = vmul.f32 %v7094, %v7574
        %v7671 = vmul.f32 %v7095, %v7575
        %v7672 = vmul.f32 %v7096, %v7576
        %v7673 = vmul.f32 %v7097, %v7577
        %v7674 = vmul.f32 %v7098, %v7578
        %v7675 = vmul.f32 %v7099, %v7579
        %v7676 = vmul.f32 %v7100, %v7580
        %v7677 = vmul.f32 %v7101, %v7581
        %v7678 = vmul.f32 %v7102, %v7582
        %v7679 = vmul.f32 %v7103, %v7583
        %v7680 = vmul.f32 %v7104, %v7584
        %v7681 = vmul.f32 %v7105, %v7585
        %v7682 = vmul.f32 %v7106, %v7586
        %v7683 = vmul.f32 %v7107, %v7587
        %v7684 = vmul.f32 %v7108, %v7588
        %v7685 = vmul.f32 %v7109, %v7589
        %v7686 = vmul.f32 %v7110, %v7590
        %v7687 = vmul.f32 %v7111, %v7591
        %v7688 = vmul.f32 %v7112, %v7592
        %v7689 = vmul.f32 %v7113, %v7593
        %v7690 = vmul.f32 %v7114, %v7594
        %v7691 = vmul.f32 %v7115, %v7595
        %v7692 = vmul.f32 %v7116, %v7596
        %v7693 = vmul.f32 %v7117, %v7597
        %v7694 = vmul.f32 %v7118, %v7598
        %v7695 = vmul.f32 %v7119, %v7599
        %v7696 = vmul.f32 %v7120, %v7600
        %v7697 = vmul.f32 %v7121, %v7601
        %v7698 = vmul.f32 %v7122, %v7602
        %v7699 = vmul.f32 %v7123, %v7603
        %v7700 = vmul.f32 %v7124, %v7604
        %v7701 = vmul.f32 %v7125, %v7605
        %v7702 = vmul.f32 %v7126, %v7606
        %v7703 = vmul.f32 %v7127, %v7607
        %v7704 = vmul.f32 %v7128, %v7608
        %v7705 = vmul.f32 %v7129, %v7609
        %v7706 = vmul.f32 %v7130, %v7610
        %v7707 = vmul.f32 %v7131, %v7611
        %v7708 = vmul.f32 %v7132, %v7612
        %v7709 = vmul.f32 %v7133, %v7613
        %v7710 = vmul.f32 %v7134, %v7614
        %v7711 = vmul.f32 %v7135, %v7615
        %v7712 = vmul.f32 %v7136, %v7616
        %v7713 = vmul.f32 %v7137, %v7617
        %v7714 = vmul.f32 %v7138, %v7618
        %v7715 = vmul.f32 %v7139, %v7619
        %v7716 = vmul.f32 %v7140, %v7620
        %v7717 = vmul.f32 %v7141, %v7621
        %v7718 = vmul.f32 %v7142, %v7622
        %v7719 = vmul.f32 %v7143, %v7623
        %v7720 = vmul.f32 %v7144, %v7624
        %v7721 = vmul.f32 %v7145, %v7625
        %v7722 = vmul.f32 %v7146, %v7626
        %v7723 = vmul.f32 %v7147, %v7627
        %v7724 = vmul.f32 %v7148, %v7628
        %v7725 = vmul.f32 %v7149, %v7629
        %v7726 = vmul.f32 %v7150, %v7630
        %v7727 = vmul.f32 %v7151, %v7631
        %v7728 = vmul.f32 %v7152, %v7632
        %v7729 = vmul.f32 %v7153, %v7633
        %v7730 = vmul.f32 %v7154, %v7634
        %v7731 = vmul.f32 %v7155, %v7635
        %v7732 = vmul.f32 %v7156, %v7636
        %v7733 = vmul.f32 %v7157, %v7637
        %v7734 = vmul.f32 %v7158, %v7638
        %v7735 = vmul.f32 %v7159, %v7639
        %v7736 = vmul.f32 %v7160, %v7640
        %v7737 = vmul.f32 %v7161, %v7641
        %v7738 = vmul.f32 %v7162, %v7642
        %v7739 = vmul.f32 %v7163, %v7643
        %v7740 = vmul.f32 %v7164, %v7644
        %v7741 = vmul.f32 %v7165, %v7645
        %v7742 = vmul.f32 %v7166, %v7646
        %v7743 = vmul.f32 %v7167, %v7647
        %v7744 = vmul.f32 %v7168, %v7648
        %v7745 = vmul.f32 %v7169, %v7649
        %v7746 = vmul.f32 %v7170, %v7650
        %v7747 = vmul.f32 %v7171, %v7651
        %v7748 = vmul.f32 %v7172, %v7652
        %v7749 = vmul.f32 %v7173, %v7653
        %v7750 = vmul.f32 %v7174, %v7654
        %v7751 = vmul.f32 %v7175, %v7655
        %v7752 = vmul.f32 %v7176, %v7656
        %v7753 = vmul.f32 %v7177, %v7657
        %v7754 = vmul.f32 %v7178, %v7658
        %v7755 = vmul.f32 %v7179, %v7659
        %v7756 = vmul.f32 %v7180, %v7660
        %v7757 = vmul.f32 %v7181, %v7661
        %v7758 = vmul.f32 %v7182, %v7662
        %v7759 = vmul.f32 %v7183, %v7663
        %v7760 = vmul.f32 %v7184, %v7664
        %v7761 = vmul.f32 %v7185, %v7665
        %v7762 = vld [vmem:[%s5] sm:$0x7]
        %v7764 = vlaneseq
        %v7765 = vshrl.u32 %v7764, 7
        %v7766 = vsub.s32 0, %v7765
        %v7767 = vrot.slane %v7762, %v7766
        %v7768 = vlaneseq
        %v7769 = vshrl.u32 %v7768, 7
        %v7770 = vsub.s32 1, %v7769
        %v7771 = vrot.slane %v7762, %v7770
        %v7772 = vlaneseq
        %v7773 = vshrl.u32 %v7772, 7
        %v7774 = vsub.s32 2, %v7773
        %v7775 = vrot.slane %v7762, %v7774
        %v7779 = vmul.f32 %v7666, %v7767
        %v7780 = vmul.f32 %v7667, %v7771
        %v7781 = vmul.f32 %v7668, %v7775
        %v7782 = vmul.f32 %v7669, %v7767
        %v7783 = vmul.f32 %v7670, %v7771
        %v7784 = vmul.f32 %v7671, %v7775
        %v7785 = vmul.f32 %v7672, %v7767
        %v7786 = vmul.f32 %v7673, %v7771
        %v7787 = vmul.f32 %v7674, %v7775
        %v7788 = vmul.f32 %v7675, %v7767
        %v7789 = vmul.f32 %v7676, %v7771
        %v7790 = vmul.f32 %v7677, %v7775
        %v7791 = vmul.f32 %v7678, %v7767
        %v7792 = vmul.f32 %v7679, %v7771
        %v7793 = vmul.f32 %v7680, %v7775
        %v7794 = vmul.f32 %v7681, %v7767
        %v7795 = vmul.f32 %v7682, %v7771
        %v7796 = vmul.f32 %v7683, %v7775
        %v7797 = vmul.f32 %v7684, %v7767
        %v7798 = vmul.f32 %v7685, %v7771
        %v7799 = vmul.f32 %v7686, %v7775
        %v7800 = vmul.f32 %v7687, %v7767
        %v7801 = vmul.f32 %v7688, %v7771
        %v7802 = vmul.f32 %v7689, %v7775
        %v7803 = vmul.f32 %v7690, %v7767
        %v7804 = vmul.f32 %v7691, %v7771
        %v7805 = vmul.f32 %v7692, %v7775
        %v7806 = vmul.f32 %v7693, %v7767
        %v7807 = vmul.f32 %v7694, %v7771
        %v7808 = vmul.f32 %v7695, %v7775
        %v7809 = vmul.f32 %v7696, %v7767
        %v7810 = vmul.f32 %v7697, %v7771
        %v7811 = vmul.f32 %v7698, %v7775
        %v7812 = vmul.f32 %v7699, %v7767
        %v7813 = vmul.f32 %v7700, %v7771
        %v7814 = vmul.f32 %v7701, %v7775
        %v7815 = vmul.f32 %v7702, %v7767
        %v7816 = vmul.f32 %v7703, %v7771
        %v7817 = vmul.f32 %v7704, %v7775
        %v7818 = vmul.f32 %v7705, %v7767
        %v7819 = vmul.f32 %v7706, %v7771
        %v7820 = vmul.f32 %v7707, %v7775
        %v7821 = vmul.f32 %v7708, %v7767
        %v7822 = vmul.f32 %v7709, %v7771
        %v7823 = vmul.f32 %v7710, %v7775
        %v7824 = vmul.f32 %v7711, %v7767
        %v7825 = vmul.f32 %v7712, %v7771
        %v7826 = vmul.f32 %v7713, %v7775
        %v7827 = vmul.f32 %v7714, %v7767
        %v7828 = vmul.f32 %v7715, %v7771
        %v7829 = vmul.f32 %v7716, %v7775
        %v7830 = vmul.f32 %v7717, %v7767
        %v7831 = vmul.f32 %v7718, %v7771
        %v7832 = vmul.f32 %v7719, %v7775
        %v7833 = vmul.f32 %v7720, %v7767
        %v7834 = vmul.f32 %v7721, %v7771
        %v7835 = vmul.f32 %v7722, %v7775
        %v7836 = vmul.f32 %v7723, %v7767
        %v7837 = vmul.f32 %v7724, %v7771
        %v7838 = vmul.f32 %v7725, %v7775
        %v7839 = vmul.f32 %v7726, %v7767
        %v7840 = vmul.f32 %v7727, %v7771
        %v7841 = vmul.f32 %v7728, %v7775
        %v7842 = vmul.f32 %v7729, %v7767
        %v7843 = vmul.f32 %v7730, %v7771
        %v7844 = vmul.f32 %v7731, %v7775
        %v7845 = vmul.f32 %v7732, %v7767
        %v7846 = vmul.f32 %v7733, %v7771
        %v7847 = vmul.f32 %v7734, %v7775
        %v7848 = vmul.f32 %v7735, %v7767
        %v7849 = vmul.f32 %v7736, %v7771
        %v7850 = vmul.f32 %v7737, %v7775
        %v7851 = vmul.f32 %v7738, %v7767
        %v7852 = vmul.f32 %v7739, %v7771
        %v7853 = vmul.f32 %v7740, %v7775
        %v7854 = vmul.f32 %v7741, %v7767
        %v7855 = vmul.f32 %v7742, %v7771
        %v7856 = vmul.f32 %v7743, %v7775
        %v7857 = vmul.f32 %v7744, %v7767
        %v7858 = vmul.f32 %v7745, %v7771
        %v7859 = vmul.f32 %v7746, %v7775
        %v7860 = vmul.f32 %v7747, %v7767
        %v7861 = vmul.f32 %v7748, %v7771
        %v7862 = vmul.f32 %v7749, %v7775
        %v7863 = vmul.f32 %v7750, %v7767
        %v7864 = vmul.f32 %v7751, %v7771
        %v7865 = vmul.f32 %v7752, %v7775
        %v7866 = vmul.f32 %v7753, %v7767
        %v7867 = vmul.f32 %v7754, %v7771
        %v7868 = vmul.f32 %v7755, %v7775
        %v7869 = vmul.f32 %v7756, %v7767
        %v7870 = vmul.f32 %v7757, %v7771
        %v7871 = vmul.f32 %v7758, %v7775
        %v7872 = vmul.f32 %v7759, %v7767
        %v7873 = vmul.f32 %v7760, %v7771
        %v7874 = vmul.f32 %v7761, %v7775
        %v7875 = vadd.f32 %v7779, %v7780
        %v7876 = vadd.f32 %v7875, %v7781
        %7877 = vadd.xlane.f32.xlu0 %v7876
        %v7878 = vpop.xlane.xlu0 %7877
        %v7879 = vadd.f32 %v7782, %v7783
        %v7880 = vadd.f32 %v7879, %v7784
        %7881 = vadd.xlane.f32.xlu0 %v7880
        %v7882 = vpop.xlane.xlu0 %7881
        %v7883 = vadd.f32 %v7785, %v7786
        %v7884 = vadd.f32 %v7883, %v7787
        %7885 = vadd.xlane.f32.xlu0 %v7884
        %v7886 = vpop.xlane.xlu0 %7885
        %v7887 = vadd.f32 %v7788, %v7789
        %v7888 = vadd.f32 %v7887, %v7790
        %7889 = vadd.xlane.f32.xlu0 %v7888
        %v7890 = vpop.xlane.xlu0 %7889
        %v7891 = vadd.f32 %v7791, %v7792
        %v7892 = vadd.f32 %v7891, %v7793
        %7893 = vadd.xlane.f32.xlu0 %v7892
        %v7894 = vpop.xlane.xlu0 %7893
        %v7895 = vadd.f32 %v7794, %v7795
        %v7896 = vadd.f32 %v7895, %v7796
        %7897 = vadd.xlane.f32.xlu0 %v7896
        %v7898 = vpop.xlane.xlu0 %7897
        %v7899 = vadd.f32 %v7797, %v7798
        %v7900 = vadd.f32 %v7899, %v7799
        %7901 = vadd.xlane.f32.xlu0 %v7900
        %v7902 = vpop.xlane.xlu0 %7901
        %v7903 = vadd.f32 %v7800, %v7801
        %v7904 = vadd.f32 %v7903, %v7802
        %7905 = vadd.xlane.f32.xlu0 %v7904
        %v7906 = vpop.xlane.xlu0 %7905
        %v7907 = vadd.f32 %v7803, %v7804
        %v7908 = vadd.f32 %v7907, %v7805
        %7909 = vadd.xlane.f32.xlu0 %v7908
        %v7910 = vpop.xlane.xlu0 %7909
        %v7911 = vadd.f32 %v7806, %v7807
        %v7912 = vadd.f32 %v7911, %v7808
        %7913 = vadd.xlane.f32.xlu0 %v7912
        %v7914 = vpop.xlane.xlu0 %7913
        %v7915 = vadd.f32 %v7809, %v7810
        %v7916 = vadd.f32 %v7915, %v7811
        %7917 = vadd.xlane.f32.xlu0 %v7916
        %v7918 = vpop.xlane.xlu0 %7917
        %v7919 = vadd.f32 %v7812, %v7813
        %v7920 = vadd.f32 %v7919, %v7814
        %7921 = vadd.xlane.f32.xlu0 %v7920
        %v7922 = vpop.xlane.xlu0 %7921
        %v7923 = vadd.f32 %v7815, %v7816
        %v7924 = vadd.f32 %v7923, %v7817
        %7925 = vadd.xlane.f32.xlu0 %v7924
        %v7926 = vpop.xlane.xlu0 %7925
        %v7927 = vadd.f32 %v7818, %v7819
        %v7928 = vadd.f32 %v7927, %v7820
        %7929 = vadd.xlane.f32.xlu0 %v7928
        %v7930 = vpop.xlane.xlu0 %7929
        %v7931 = vadd.f32 %v7821, %v7822
        %v7932 = vadd.f32 %v7931, %v7823
        %7933 = vadd.xlane.f32.xlu0 %v7932
        %v7934 = vpop.xlane.xlu0 %7933
        %v7935 = vadd.f32 %v7824, %v7825
        %v7936 = vadd.f32 %v7935, %v7826
        %7937 = vadd.xlane.f32.xlu0 %v7936
        %v7938 = vpop.xlane.xlu0 %7937
        %v7939 = vadd.f32 %v7827, %v7828
        %v7940 = vadd.f32 %v7939, %v7829
        %7941 = vadd.xlane.f32.xlu0 %v7940
        %v7942 = vpop.xlane.xlu0 %7941
        %v7943 = vadd.f32 %v7830, %v7831
        %v7944 = vadd.f32 %v7943, %v7832
        %7945 = vadd.xlane.f32.xlu0 %v7944
        %v7946 = vpop.xlane.xlu0 %7945
        %v7947 = vadd.f32 %v7833, %v7834
        %v7948 = vadd.f32 %v7947, %v7835
        %7949 = vadd.xlane.f32.xlu0 %v7948
        %v7950 = vpop.xlane.xlu0 %7949
        %v7951 = vadd.f32 %v7836, %v7837
        %v7952 = vadd.f32 %v7951, %v7838
        %7953 = vadd.xlane.f32.xlu0 %v7952
        %v7954 = vpop.xlane.xlu0 %7953
        %v7955 = vadd.f32 %v7839, %v7840
        %v7956 = vadd.f32 %v7955, %v7841
        %7957 = vadd.xlane.f32.xlu0 %v7956
        %v7958 = vpop.xlane.xlu0 %7957
        %v7959 = vadd.f32 %v7842, %v7843
        %v7960 = vadd.f32 %v7959, %v7844
        %7961 = vadd.xlane.f32.xlu0 %v7960
        %v7962 = vpop.xlane.xlu0 %7961
        %v7963 = vadd.f32 %v7845, %v7846
        %v7964 = vadd.f32 %v7963, %v7847
        %7965 = vadd.xlane.f32.xlu0 %v7964
        %v7966 = vpop.xlane.xlu0 %7965
        %v7967 = vadd.f32 %v7848, %v7849
        %v7968 = vadd.f32 %v7967, %v7850
        %7969 = vadd.xlane.f32.xlu0 %v7968
        %v7970 = vpop.xlane.xlu0 %7969
        %v7971 = vadd.f32 %v7851, %v7852
        %v7972 = vadd.f32 %v7971, %v7853
        %7973 = vadd.xlane.f32.xlu0 %v7972
        %v7974 = vpop.xlane.xlu0 %7973
        %v7975 = vadd.f32 %v7854, %v7855
        %v7976 = vadd.f32 %v7975, %v7856
        %7977 = vadd.xlane.f32.xlu0 %v7976
        %v7978 = vpop.xlane.xlu0 %7977
        %v7979 = vadd.f32 %v7857, %v7858
        %v7980 = vadd.f32 %v7979, %v7859
        %7981 = vadd.xlane.f32.xlu0 %v7980
        %v7982 = vpop.xlane.xlu0 %7981
        %v7983 = vadd.f32 %v7860, %v7861
        %v7984 = vadd.f32 %v7983, %v7862
        %7985 = vadd.xlane.f32.xlu0 %v7984
        %v7986 = vpop.xlane.xlu0 %7985
        %v7987 = vadd.f32 %v7863, %v7864
        %v7988 = vadd.f32 %v7987, %v7865
        %7989 = vadd.xlane.f32.xlu0 %v7988
        %v7990 = vpop.xlane.xlu0 %7989
        %v7991 = vadd.f32 %v7866, %v7867
        %v7992 = vadd.f32 %v7991, %v7868
        %7993 = vadd.xlane.f32.xlu0 %v7992
        %v7994 = vpop.xlane.xlu0 %7993
        %v7995 = vadd.f32 %v7869, %v7870
        %v7996 = vadd.f32 %v7995, %v7871
        %7997 = vadd.xlane.f32.xlu0 %v7996
        %v7998 = vpop.xlane.xlu0 %7997
        %v7999 = vadd.f32 %v7872, %v7873
        %v8000 = vadd.f32 %v7999, %v7874
        %8001 = vadd.xlane.f32.xlu0 %v8000
        %v8002 = vpop.xlane.xlu0 %8001
        %s8003 = sld [smem:[#allocation5]]
        %v8004 = vstv %s8003
        %v8005 = vadd.f32 %v7878, %v8004
        %v8006 = vadd.f32 %v7882, %v8004
        %v8007 = vadd.f32 %v7886, %v8004
        %v8008 = vadd.f32 %v7890, %v8004
        %v8009 = vadd.f32 %v7894, %v8004
        %v8010 = vadd.f32 %v7898, %v8004
        %v8011 = vadd.f32 %v7902, %v8004
        %v8012 = vadd.f32 %v7906, %v8004
        %v8013 = vadd.f32 %v7910, %v8004
        %v8014 = vadd.f32 %v7914, %v8004
        %v8015 = vadd.f32 %v7918, %v8004
        %v8016 = vadd.f32 %v7922, %v8004
        %v8017 = vadd.f32 %v7926, %v8004
        %v8018 = vadd.f32 %v7930, %v8004
        %v8019 = vadd.f32 %v7934, %v8004
        %v8020 = vadd.f32 %v7938, %v8004
        %v8021 = vadd.f32 %v7942, %v8004
        %v8022 = vadd.f32 %v7946, %v8004
        %v8023 = vadd.f32 %v7950, %v8004
        %v8024 = vadd.f32 %v7954, %v8004
        %v8025 = vadd.f32 %v7958, %v8004
        %v8026 = vadd.f32 %v7962, %v8004
        %v8027 = vadd.f32 %v7966, %v8004
        %v8028 = vadd.f32 %v7970, %v8004
        %v8029 = vadd.f32 %v7974, %v8004
        %v8030 = vadd.f32 %v7978, %v8004
        %v8031 = vadd.f32 %v7982, %v8004
        %v8032 = vadd.f32 %v7986, %v8004
        %v8033 = vadd.f32 %v7990, %v8004
        %v8034 = vadd.f32 %v7994, %v8004
        %v8035 = vadd.f32 %v7998, %v8004
        %v8036 = vadd.f32 %v8002, %v8004
        %v8037 = vsel %vm462, %v8005, -1e+30
        %v8038 = vsel %vm463, %v8006, -1e+30
        %v8039 = vsel %vm464, %v8007, -1e+30
        %v8040 = vsel %vm465, %v8008, -1e+30
        %v8041 = vsel %vm466, %v8009, -1e+30
        %v8042 = vsel %vm467, %v8010, -1e+30
        %v8043 = vsel %vm468, %v8011, -1e+30
        %v8044 = vsel %vm469, %v8012, -1e+30
        %v8045 = vsel %vm470, %v8013, -1e+30
        %v8046 = vsel %vm471, %v8014, -1e+30
        %v8047 = vsel %vm472, %v8015, -1e+30
        %v8048 = vsel %vm473, %v8016, -1e+30
        %v8049 = vsel %vm474, %v8017, -1e+30
        %v8050 = vsel %vm475, %v8018, -1e+30
        %v8051 = vsel %vm476, %v8019, -1e+30
        %v8052 = vsel %vm477, %v8020, -1e+30
        %v8053 = vsel %vm478, %v8021, -1e+30
        %v8054 = vsel %vm479, %v8022, -1e+30
        %v8055 = vsel %vm480, %v8023, -1e+30
        %v8056 = vsel %vm481, %v8024, -1e+30
        %v8057 = vsel %vm482, %v8025, -1e+30
        %v8058 = vsel %vm483, %v8026, -1e+30
        %v8059 = vsel %vm484, %v8027, -1e+30
        %v8060 = vsel %vm485, %v8028, -1e+30
        %v8061 = vsel %vm486, %v8029, -1e+30
        %v8062 = vsel %vm487, %v8030, -1e+30
        %v8063 = vsel %vm488, %v8031, -1e+30
        %v8064 = vsel %vm489, %v8032, -1e+30
        %v8065 = vsel %vm490, %v8033, -1e+30
        %v8066 = vsel %vm491, %v8034, -1e+30
        %v8067 = vsel %vm492, %v8035, -1e+30
        %v8068 = vsel %vm493, %v8036, -1e+30
        %v8069 = vld [vmem:[#allocation2] sm:$0x1]
        %v8070 = vmax.f32 %v8037, %v8041
        %v8071 = vmax.f32 %v8038, %v8042
        %v8072 = vmax.f32 %v8039, %v8043
        %v8073 = vmax.f32 %v8040, %v8044
        %v8074 = vmax.f32 %v8070, %v8045
        %v8075 = vmax.f32 %v8071, %v8046
        %v8076 = vmax.f32 %v8072, %v8047
        %v8077 = vmax.f32 %v8073, %v8048
        %v8078 = vmax.f32 %v8074, %v8049
        %v8079 = vmax.f32 %v8075, %v8050
        %v8080 = vmax.f32 %v8076, %v8051
        %v8081 = vmax.f32 %v8077, %v8052
        %v8082 = vmax.f32 %v8078, %v8053
        %v8083 = vmax.f32 %v8079, %v8054
        %v8084 = vmax.f32 %v8080, %v8055
        %v8085 = vmax.f32 %v8081, %v8056
        %v8086 = vmax.f32 %v8082, %v8057
        %v8087 = vmax.f32 %v8083, %v8058
        %v8088 = vmax.f32 %v8084, %v8059
        %v8089 = vmax.f32 %v8085, %v8060
        %v8090 = vmax.f32 %v8086, %v8061
        %v8091 = vmax.f32 %v8087, %v8062
        %v8092 = vmax.f32 %v8088, %v8063
        %v8093 = vmax.f32 %v8089, %v8064
        %v8094 = vmax.f32 %v8090, %v8065
        %v8095 = vmax.f32 %v8091, %v8066
        %v8096 = vmax.f32 %v8092, %v8067
        %v8097 = vmax.f32 %v8093, %v8068
        %v8098 = vmax.f32 %v8094, %v8095
        %v8099 = vmax.f32 %v8096, %v8097
        %v8100 = vmax.f32 %v8098, %v8099
        %v8101 = vrot.slane %v8100, 4
        %v8102 = vmax.f32 %v8100, %v8101
        %v8103 = vrot.slane %v8102, 2
        %v8104 = vmax.f32 %v8102, %v8103
        %v8105 = vrot.slane %v8104, 1
        %v8106 = vmax.f32 %v8104, %v8105
        %v8107 = vmax.f32 %v8069, %v8106
        %v8108 = vsub.f32 %v8069, %v8107
        %v8109 = vmul.f32 %v8108, 1.442695
        %v8110 = vpow.pop %v8109
        %v8112 = vlaneseq
        %v8113 = vshrl.u32 %v8112, 7
        %v8114 = vsub.s32 0, %v8113
        %v8115 = vrot.slane %v8107, %v8114
        %v8117 = vsub.f32 %v8037, %v8115
        %v8118 = vsub.f32 %v8038, %v8115
        %v8119 = vsub.f32 %v8039, %v8115
        %v8120 = vsub.f32 %v8040, %v8115
        %v8121 = vsub.f32 %v8041, %v8115
        %v8122 = vsub.f32 %v8042, %v8115
        %v8123 = vsub.f32 %v8043, %v8115
        %v8124 = vsub.f32 %v8044, %v8115
        %v8125 = vsub.f32 %v8045, %v8115
        %v8126 = vsub.f32 %v8046, %v8115
        %v8127 = vsub.f32 %v8047, %v8115
        %v8128 = vsub.f32 %v8048, %v8115
        %v8129 = vsub.f32 %v8049, %v8115
        %v8130 = vsub.f32 %v8050, %v8115
        %v8131 = vsub.f32 %v8051, %v8115
        %v8132 = vsub.f32 %v8052, %v8115
        %v8133 = vsub.f32 %v8053, %v8115
        %v8134 = vsub.f32 %v8054, %v8115
        %v8135 = vsub.f32 %v8055, %v8115
        %v8136 = vsub.f32 %v8056, %v8115
        %v8137 = vsub.f32 %v8057, %v8115
        %v8138 = vsub.f32 %v8058, %v8115
        %v8139 = vsub.f32 %v8059, %v8115
        %v8140 = vsub.f32 %v8060, %v8115
        %v8141 = vsub.f32 %v8061, %v8115
        %v8142 = vsub.f32 %v8062, %v8115
        %v8143 = vsub.f32 %v8063, %v8115
        %v8144 = vsub.f32 %v8064, %v8115
        %v8145 = vsub.f32 %v8065, %v8115
        %v8146 = vsub.f32 %v8066, %v8115
        %v8147 = vsub.f32 %v8067, %v8115
        %v8148 = vsub.f32 %v8068, %v8115
        %v8149 = vmul.f32 %v8117, 1.442695
        %v8150 = vpow.pop %v8149
        %v8151 = vmul.f32 %v8118, 1.442695
        %v8152 = vpow.pop %v8151
        %v8153 = vmul.f32 %v8119, 1.442695
        %v8154 = vpow.pop %v8153
        %v8155 = vmul.f32 %v8120, 1.442695
        %v8156 = vpow.pop %v8155
        %v8157 = vmul.f32 %v8121, 1.442695
        %v8158 = vpow.pop %v8157
        %v8159 = vmul.f32 %v8122, 1.442695
        %v8160 = vpow.pop %v8159
        %v8161 = vmul.f32 %v8123, 1.442695
        %v8162 = vpow.pop %v8161
        %v8163 = vmul.f32 %v8124, 1.442695
        %v8164 = vpow.pop %v8163
        %v8165 = vmul.f32 %v8125, 1.442695
        %v8166 = vpow.pop %v8165
        %v8167 = vmul.f32 %v8126, 1.442695
        %v8168 = vpow.pop %v8167
        %v8169 = vmul.f32 %v8127, 1.442695
        %v8170 = vpow.pop %v8169
        %v8171 = vmul.f32 %v8128, 1.442695
        %v8172 = vpow.pop %v8171
        %v8173 = vmul.f32 %v8129, 1.442695
        %v8174 = vpow.pop %v8173
        %v8175 = vmul.f32 %v8130, 1.442695
        %v8176 = vpow.pop %v8175
        %v8177 = vmul.f32 %v8131, 1.442695
        %v8178 = vpow.pop %v8177
        %v8179 = vmul.f32 %v8132, 1.442695
        %v8180 = vpow.pop %v8179
        %v8181 = vmul.f32 %v8133, 1.442695
        %v8182 = vpow.pop %v8181
        %v8183 = vmul.f32 %v8134, 1.442695
        %v8184 = vpow.pop %v8183
        %v8185 = vmul.f32 %v8135, 1.442695
        %v8186 = vpow.pop %v8185
        %v8187 = vmul.f32 %v8136, 1.442695
        %v8188 = vpow.pop %v8187
        %v8189 = vmul.f32 %v8137, 1.442695
        %v8190 = vpow.pop %v8189
        %v8191 = vmul.f32 %v8138, 1.442695
        %v8192 = vpow.pop %v8191
        %v8193 = vmul.f32 %v8139, 1.442695
        %v8194 = vpow.pop %v8193
        %v8195 = vmul.f32 %v8140, 1.442695
        %v8196 = vpow.pop %v8195
        %v8197 = vmul.f32 %v8141, 1.442695
        %v8198 = vpow.pop %v8197
        %v8199 = vmul.f32 %v8142, 1.442695
        %v8200 = vpow.pop %v8199
        %v8201 = vmul.f32 %v8143, 1.442695
        %v8202 = vpow.pop %v8201
        %v8203 = vmul.f32 %v8144, 1.442695
        %v8204 = vpow.pop %v8203
        %v8205 = vmul.f32 %v8145, 1.442695
        %v8206 = vpow.pop %v8205
        %v8207 = vmul.f32 %v8146, 1.442695
        %v8208 = vpow.pop %v8207
        %v8209 = vmul.f32 %v8147, 1.442695
        %v8210 = vpow.pop %v8209
        %v8211 = vmul.f32 %v8148, 1.442695
        %v8212 = vpow.pop %v8211
        %v8213 = vld [vmem:[#allocation3] sm:$0x1]
        %v8214 = vmul.f32 %v8110, %v8213
        %vm8215 = vcmask 7168
        %v8216 = vsel %vm8215, %v8150, 0.0
        %v8217 = vsel %vm8215, %v8152, 0.0
        %v8218 = vadd.f32 %v8216, %v8217
        %v8219 = vsel %vm8215, %v8154, 0.0
        %v8220 = vadd.f32 %v8218, %v8219
        %v8221 = vsel %vm8215, %v8156, 0.0
        %v8222 = vadd.f32 %v8220, %v8221
        %v8223 = vsel %vm8215, %v8158, 0.0
        %v8224 = vadd.f32 %v8222, %v8223
        %v8225 = vsel %vm8215, %v8160, 0.0
        %v8226 = vadd.f32 %v8224, %v8225
        %v8227 = vsel %vm8215, %v8162, 0.0
        %v8228 = vadd.f32 %v8226, %v8227
        %v8229 = vsel %vm8215, %v8164, 0.0
        %v8230 = vadd.f32 %v8228, %v8229
        %v8231 = vsel %vm8215, %v8166, 0.0
        %v8232 = vadd.f32 %v8230, %v8231
        %v8233 = vsel %vm8215, %v8168, 0.0
        %v8234 = vadd.f32 %v8232, %v8233
        %v8235 = vsel %vm8215, %v8170, 0.0
        %v8236 = vadd.f32 %v8234, %v8235
        %v8237 = vsel %vm8215, %v8172, 0.0
        %v8238 = vadd.f32 %v8236, %v8237
        %v8239 = vsel %vm8215, %v8174, 0.0
        %v8240 = vadd.f32 %v8238, %v8239
        %v8241 = vsel %vm8215, %v8176, 0.0
        %v8242 = vadd.f32 %v8240, %v8241
        %v8243 = vsel %vm8215, %v8178, 0.0
        %v8244 = vadd.f32 %v8242, %v8243
        %v8245 = vsel %vm8215, %v8180, 0.0
        %v8246 = vadd.f32 %v8244, %v8245
        %v8247 = vsel %vm8215, %v8182, 0.0
        %v8248 = vadd.f32 %v8246, %v8247
        %v8249 = vsel %vm8215, %v8184, 0.0
        %v8250 = vadd.f32 %v8248, %v8249
        %v8251 = vsel %vm8215, %v8186, 0.0
        %v8252 = vadd.f32 %v8250, %v8251
        %v8253 = vsel %vm8215, %v8188, 0.0
        %v8254 = vadd.f32 %v8252, %v8253
        %v8255 = vsel %vm8215, %v8190, 0.0
        %v8256 = vadd.f32 %v8254, %v8255
        %v8257 = vsel %vm8215, %v8192, 0.0
        %v8258 = vadd.f32 %v8256, %v8257
        %v8259 = vsel %vm8215, %v8194, 0.0
        %v8260 = vadd.f32 %v8258, %v8259
        %v8261 = vsel %vm8215, %v8196, 0.0
        %v8262 = vadd.f32 %v8260, %v8261
        %v8263 = vsel %vm8215, %v8198, 0.0
        %v8264 = vadd.f32 %v8262, %v8263
        %v8265 = vsel %vm8215, %v8200, 0.0
        %v8266 = vadd.f32 %v8264, %v8265
        %v8267 = vsel %vm8215, %v8202, 0.0
        %v8268 = vadd.f32 %v8266, %v8267
        %v8269 = vsel %vm8215, %v8204, 0.0
        %v8270 = vadd.f32 %v8268, %v8269
        %v8271 = vsel %vm8215, %v8206, 0.0
        %v8272 = vadd.f32 %v8270, %v8271
        %v8273 = vsel %vm8215, %v8208, 0.0
        %v8274 = vadd.f32 %v8272, %v8273
        %v8275 = vsel %vm8215, %v8210, 0.0
        %v8276 = vadd.f32 %v8274, %v8275
        %v8277 = vsel %vm8215, %v8212, 0.0
        %v8278 = vadd.f32 %v8276, %v8277
        %v8279 = vrot.slane %v8278, 4
        %v8280 = vadd.f32 %v8278, %v8279
        %v8281 = vrot.slane %v8280, 2
        %v8282 = vadd.f32 %v8280, %v8281
        %v8283 = vrot.slane %v8282, 1
        %v8284 = vadd.f32 %v8282, %v8283
        %v8285 = vadd.f32 %v8214, %v8284
        %vm8286 = vcmask 0
        %8287 = vst.msk [vmem:[#allocation3] sm:$0x1] %vm8286, %v8285
        %v8288 = vld [vmem:[#allocation4] sm:$0xf]
        %8290 = vset.pattern.permute.xlu0 0
        %8291 = vperm.xlu0 %8290, %v8110
        %v8292 = vpop.permute.xlu0 %8291
        %v8294 = vlaneseq
        %v8295 = vshrl.u32 %v8294, 7
        %v8296 = vsub.s32 0, %v8295
        %v8297 = vrot.slane %v8292, %v8296
        %v8298 = vmul.f32 %v8297, %v8288
        %8300 = vset.pattern.permute.xlu0 0
        %8301 = vperm.xlu0 %8300, %v8150
        %v8302 = vpop.permute.xlu0 %8301
        %8305 = vset.pattern.permute.xlu0 0
        %8306 = vperm.xlu0 %8305, %v8152
        %v8307 = vpop.permute.xlu0 %8306
        %8310 = vset.pattern.permute.xlu0 0
        %8311 = vperm.xlu0 %8310, %v8154
        %v8312 = vpop.permute.xlu0 %8311
        %8315 = vset.pattern.permute.xlu0 0
        %8316 = vperm.xlu0 %8315, %v8156
        %v8317 = vpop.permute.xlu0 %8316
        %8320 = vset.pattern.permute.xlu0 0
        %8321 = vperm.xlu0 %8320, %v8158
        %v8322 = vpop.permute.xlu0 %8321
        %8325 = vset.pattern.permute.xlu0 0
        %8326 = vperm.xlu0 %8325, %v8160
        %v8327 = vpop.permute.xlu0 %8326
        %8330 = vset.pattern.permute.xlu0 0
        %8331 = vperm.xlu0 %8330, %v8162
        %v8332 = vpop.permute.xlu0 %8331
        %8335 = vset.pattern.permute.xlu0 0
        %8336 = vperm.xlu0 %8335, %v8164
        %v8337 = vpop.permute.xlu0 %8336
        %8340 = vset.pattern.permute.xlu0 0
        %8341 = vperm.xlu0 %8340, %v8166
        %v8342 = vpop.permute.xlu0 %8341
        %8345 = vset.pattern.permute.xlu0 0
        %8346 = vperm.xlu0 %8345, %v8168
        %v8347 = vpop.permute.xlu0 %8346
        %8350 = vset.pattern.permute.xlu0 0
        %8351 = vperm.xlu0 %8350, %v8170
        %v8352 = vpop.permute.xlu0 %8351
        %8355 = vset.pattern.permute.xlu0 0
        %8356 = vperm.xlu0 %8355, %v8172
        %v8357 = vpop.permute.xlu0 %8356
        %8360 = vset.pattern.permute.xlu0 0
        %8361 = vperm.xlu0 %8360, %v8174
        %v8362 = vpop.permute.xlu0 %8361
        %8365 = vset.pattern.permute.xlu0 0
        %8366 = vperm.xlu0 %8365, %v8176
        %v8367 = vpop.permute.xlu0 %8366
        %8370 = vset.pattern.permute.xlu0 0
        %8371 = vperm.xlu0 %8370, %v8178
        %v8372 = vpop.permute.xlu0 %8371
        %8375 = vset.pattern.permute.xlu0 0
        %8376 = vperm.xlu0 %8375, %v8180
        %v8377 = vpop.permute.xlu0 %8376
        %8380 = vset.pattern.permute.xlu0 0
        %8381 = vperm.xlu0 %8380, %v8182
        %v8382 = vpop.permute.xlu0 %8381
        %8385 = vset.pattern.permute.xlu0 0
        %8386 = vperm.xlu0 %8385, %v8184
        %v8387 = vpop.permute.xlu0 %8386
        %8390 = vset.pattern.permute.xlu0 0
        %8391 = vperm.xlu0 %8390, %v8186
        %v8392 = vpop.permute.xlu0 %8391
        %8395 = vset.pattern.permute.xlu0 0
        %8396 = vperm.xlu0 %8395, %v8188
        %v8397 = vpop.permute.xlu0 %8396
        %8400 = vset.pattern.permute.xlu0 0
        %8401 = vperm.xlu0 %8400, %v8190
        %v8402 = vpop.permute.xlu0 %8401
        %8405 = vset.pattern.permute.xlu0 0
        %8406 = vperm.xlu0 %8405, %v8192
        %v8407 = vpop.permute.xlu0 %8406
        %8410 = vset.pattern.permute.xlu0 0
        %8411 = vperm.xlu0 %8410, %v8194
        %v8412 = vpop.permute.xlu0 %8411
        %8415 = vset.pattern.permute.xlu0 0
        %8416 = vperm.xlu0 %8415, %v8196
        %v8417 = vpop.permute.xlu0 %8416
        %8420 = vset.pattern.permute.xlu0 0
        %8421 = vperm.xlu0 %8420, %v8198
        %v8422 = vpop.permute.xlu0 %8421
        %8425 = vset.pattern.permute.xlu0 0
        %8426 = vperm.xlu0 %8425, %v8200
        %v8427 = vpop.permute.xlu0 %8426
        %8430 = vset.pattern.permute.xlu0 0
        %8431 = vperm.xlu0 %8430, %v8202
        %v8432 = vpop.permute.xlu0 %8431
        %8435 = vset.pattern.permute.xlu0 0
        %8436 = vperm.xlu0 %8435, %v8204
        %v8437 = vpop.permute.xlu0 %8436
        %8440 = vset.pattern.permute.xlu0 0
        %8441 = vperm.xlu0 %8440, %v8206
        %v8442 = vpop.permute.xlu0 %8441
        %8445 = vset.pattern.permute.xlu0 0
        %8446 = vperm.xlu0 %8445, %v8208
        %v8447 = vpop.permute.xlu0 %8446
        %8450 = vset.pattern.permute.xlu0 0
        %8451 = vperm.xlu0 %8450, %v8210
        %v8452 = vpop.permute.xlu0 %8451
        %8455 = vset.pattern.permute.xlu0 0
        %8456 = vperm.xlu0 %8455, %v8212
        %v8457 = vpop.permute.xlu0 %8456
        %v8459 = vmul.f32 %v8302, %v4556
        %v8460 = vmul.f32 %v8302, %v4557
        %v8461 = vmul.f32 %v8302, %v4558
        %v8462 = vmul.f32 %v8302, %v4559
        %v8463 = vmul.f32 %v8307, %v4560
        %v8464 = vmul.f32 %v8307, %v4561
        %v8465 = vmul.f32 %v8307, %v4562
        %v8466 = vmul.f32 %v8307, %v4563
        %v8467 = vmul.f32 %v8312, %v4564
        %v8468 = vmul.f32 %v8312, %v4565
        %v8469 = vmul.f32 %v8312, %v4566
        %v8470 = vmul.f32 %v8312, %v4567
        %v8471 = vmul.f32 %v8317, %v4568
        %v8472 = vmul.f32 %v8317, %v4569
        %v8473 = vmul.f32 %v8317, %v4570
        %v8474 = vmul.f32 %v8317, %v4571
        %v8475 = vmul.f32 %v8322, %v4572
        %v8476 = vmul.f32 %v8322, %v4573
        %v8477 = vmul.f32 %v8322, %v4574
        %v8478 = vmul.f32 %v8322, %v4575
        %v8479 = vmul.f32 %v8327, %v4576
        %v8480 = vmul.f32 %v8327, %v4577
        %v8481 = vmul.f32 %v8327, %v4578
        %v8482 = vmul.f32 %v8327, %v4579
        %v8483 = vmul.f32 %v8332, %v4580
        %v8484 = vmul.f32 %v8332, %v4581
        %v8485 = vmul.f32 %v8332, %v4582
        %v8486 = vmul.f32 %v8332, %v4583
        %v8487 = vmul.f32 %v8337, %v4584
        %v8488 = vmul.f32 %v8337, %v4585
        %v8489 = vmul.f32 %v8337, %v4586
        %v8490 = vmul.f32 %v8337, %v4587
        %v8491 = vmul.f32 %v8342, %v4588
        %v8492 = vmul.f32 %v8342, %v4589
        %v8493 = vmul.f32 %v8342, %v4590
        %v8494 = vmul.f32 %v8342, %v4591
        %v8495 = vmul.f32 %v8347, %v4592
        %v8496 = vmul.f32 %v8347, %v4593
        %v8497 = vmul.f32 %v8347, %v4594
        %v8498 = vmul.f32 %v8347, %v4595
        %v8499 = vmul.f32 %v8352, %v4596
        %v8500 = vmul.f32 %v8352, %v4597
        %v8501 = vmul.f32 %v8352, %v4598
        %v8502 = vmul.f32 %v8352, %v4599
        %v8503 = vmul.f32 %v8357, %v4600
        %v8504 = vmul.f32 %v8357, %v4601
        %v8505 = vmul.f32 %v8357, %v4602
        %v8506 = vmul.f32 %v8357, %v4603
        %v8507 = vmul.f32 %v8362, %v4604
        %v8508 = vmul.f32 %v8362, %v4605
        %v8509 = vmul.f32 %v8362, %v4606
        %v8510 = vmul.f32 %v8362, %v4607
        %v8511 = vmul.f32 %v8367, %v4608
        %v8512 = vmul.f32 %v8367, %v4609
        %v8513 = vmul.f32 %v8367, %v4610
        %v8514 = vmul.f32 %v8367, %v4611
        %v8515 = vmul.f32 %v8372, %v4612
        %v8516 = vmul.f32 %v8372, %v4613
        %v8517 = vmul.f32 %v8372, %v4614
        %v8518 = vmul.f32 %v8372, %v4615
        %v8519 = vmul.f32 %v8377, %v4616
        %v8520 = vmul.f32 %v8377, %v4617
        %v8521 = vmul.f32 %v8377, %v4618
        %v8522 = vmul.f32 %v8377, %v4619
        %v8523 = vmul.f32 %v8382, %v4620
        %v8524 = vmul.f32 %v8382, %v4621
        %v8525 = vmul.f32 %v8382, %v4622
        %v8526 = vmul.f32 %v8382, %v4623
        %v8527 = vmul.f32 %v8387, %v4624
        %v8528 = vmul.f32 %v8387, %v4625
        %v8529 = vmul.f32 %v8387, %v4626
        %v8530 = vmul.f32 %v8387, %v4627
        %v8531 = vmul.f32 %v8392, %v4628
        %v8532 = vmul.f32 %v8392, %v4629
        %v8533 = vmul.f32 %v8392, %v4630
        %v8534 = vmul.f32 %v8392, %v4631
        %v8535 = vmul.f32 %v8397, %v4632
        %v8536 = vmul.f32 %v8397, %v4633
        %v8537 = vmul.f32 %v8397, %v4634
        %v8538 = vmul.f32 %v8397, %v4635
        %v8539 = vmul.f32 %v8402, %v4636
        %v8540 = vmul.f32 %v8402, %v4637
        %v8541 = vmul.f32 %v8402, %v4638
        %v8542 = vmul.f32 %v8402, %v4639
        %v8543 = vmul.f32 %v8407, %v4640
        %v8544 = vmul.f32 %v8407, %v4641
        %v8545 = vmul.f32 %v8407, %v4642
        %v8546 = vmul.f32 %v8407, %v4643
        %v8547 = vmul.f32 %v8412, %v4644
        %v8548 = vmul.f32 %v8412, %v4645
        %v8549 = vmul.f32 %v8412, %v4646
        %v8550 = vmul.f32 %v8412, %v4647
        %v8551 = vmul.f32 %v8417, %v4648
        %v8552 = vmul.f32 %v8417, %v4649
        %v8553 = vmul.f32 %v8417, %v4650
        %v8554 = vmul.f32 %v8417, %v4651
        %v8555 = vmul.f32 %v8422, %v4652
        %v8556 = vmul.f32 %v8422, %v4653
        %v8557 = vmul.f32 %v8422, %v4654
        %v8558 = vmul.f32 %v8422, %v4655
        %v8559 = vmul.f32 %v8427, %v4656
        %v8560 = vmul.f32 %v8427, %v4657
        %v8561 = vmul.f32 %v8427, %v4658
        %v8562 = vmul.f32 %v8427, %v4659
        %v8563 = vmul.f32 %v8432, %v4660
        %v8564 = vmul.f32 %v8432, %v4661
        %v8565 = vmul.f32 %v8432, %v4662
        %v8566 = vmul.f32 %v8432, %v4663
        %v8567 = vmul.f32 %v8437, %v4664
        %v8568 = vmul.f32 %v8437, %v4665
        %v8569 = vmul.f32 %v8437, %v4666
        %v8570 = vmul.f32 %v8437, %v4667
        %v8571 = vmul.f32 %v8442, %v4668
        %v8572 = vmul.f32 %v8442, %v4669
        %v8573 = vmul.f32 %v8442, %v4670
        %v8574 = vmul.f32 %v8442, %v4671
        %v8575 = vmul.f32 %v8447, %v4672
        %v8576 = vmul.f32 %v8447, %v4673
        %v8577 = vmul.f32 %v8447, %v4674
        %v8578 = vmul.f32 %v8447, %v4675
        %v8579 = vmul.f32 %v8452, %v4676
        %v8580 = vmul.f32 %v8452, %v4677
        %v8581 = vmul.f32 %v8452, %v4678
        %v8582 = vmul.f32 %v8452, %v4679
        %v8583 = vmul.f32 %v8457, %v4680
        %v8584 = vmul.f32 %v8457, %v4681
        %v8585 = vmul.f32 %v8457, %v4682
        %v8586 = vmul.f32 %v8457, %v4683
        %v8587 = vadd.f32 %v8459, %v8463
        %v8588 = vadd.f32 %v8587, %v8467
        %v8589 = vadd.f32 %v8588, %v8471
        %v8590 = vadd.f32 %v8589, %v8475
        %v8591 = vadd.f32 %v8590, %v8479
        %v8592 = vadd.f32 %v8591, %v8483
        %v8593 = vadd.f32 %v8592, %v8487
        %v8594 = vadd.f32 %v8593, %v8491
        %v8595 = vadd.f32 %v8594, %v8495
        %v8596 = vadd.f32 %v8595, %v8499
        %v8597 = vadd.f32 %v8596, %v8503
        %v8598 = vadd.f32 %v8597, %v8507
        %v8599 = vadd.f32 %v8598, %v8511
        %v8600 = vadd.f32 %v8599, %v8515
        %v8601 = vadd.f32 %v8600, %v8519
        %v8602 = vadd.f32 %v8601, %v8523
        %v8603 = vadd.f32 %v8602, %v8527
        %v8604 = vadd.f32 %v8603, %v8531
        %v8605 = vadd.f32 %v8604, %v8535
        %v8606 = vadd.f32 %v8605, %v8539
        %v8607 = vadd.f32 %v8606, %v8543
        %v8608 = vadd.f32 %v8607, %v8547
        %v8609 = vadd.f32 %v8608, %v8551
        %v8610 = vadd.f32 %v8609, %v8555
        %v8611 = vadd.f32 %v8610, %v8559
        %v8612 = vadd.f32 %v8611, %v8563
        %v8613 = vadd.f32 %v8612, %v8567
        %v8614 = vadd.f32 %v8613, %v8571
        %v8615 = vadd.f32 %v8614, %v8575
        %v8616 = vadd.f32 %v8615, %v8579
        %v8617 = vadd.f32 %v8616, %v8583
        %v8618 = vrot.slane %v8617, 4
        %v8619 = vadd.f32 %v8617, %v8618
        %v8620 = vrot.slane %v8619, 2
        %v8621 = vadd.f32 %v8619, %v8620
        %v8622 = vrot.slane %v8621, 1
        %v8623 = vadd.f32 %v8621, %v8622
        %v8624 = vadd.f32 %v8460, %v8464
        %v8625 = vadd.f32 %v8624, %v8468
        %v8626 = vadd.f32 %v8625, %v8472
        %v8627 = vadd.f32 %v8626, %v8476
        %v8628 = vadd.f32 %v8627, %v8480
        %v8629 = vadd.f32 %v8628, %v8484
        %v8630 = vadd.f32 %v8629, %v8488
        %v8631 = vadd.f32 %v8630, %v8492
        %v8632 = vadd.f32 %v8631, %v8496
        %v8633 = vadd.f32 %v8632, %v8500
        %v8634 = vadd.f32 %v8633, %v8504
        %v8635 = vadd.f32 %v8634, %v8508
        %v8636 = vadd.f32 %v8635, %v8512
        %v8637 = vadd.f32 %v8636, %v8516
        %v8638 = vadd.f32 %v8637, %v8520
        %v8639 = vadd.f32 %v8638, %v8524
        %v8640 = vadd.f32 %v8639, %v8528
        %v8641 = vadd.f32 %v8640, %v8532
        %v8642 = vadd.f32 %v8641, %v8536
        %v8643 = vadd.f32 %v8642, %v8540
        %v8644 = vadd.f32 %v8643, %v8544
        %v8645 = vadd.f32 %v8644, %v8548
        %v8646 = vadd.f32 %v8645, %v8552
        %v8647 = vadd.f32 %v8646, %v8556
        %v8648 = vadd.f32 %v8647, %v8560
        %v8649 = vadd.f32 %v8648, %v8564
        %v8650 = vadd.f32 %v8649, %v8568
        %v8651 = vadd.f32 %v8650, %v8572
        %v8652 = vadd.f32 %v8651, %v8576
        %v8653 = vadd.f32 %v8652, %v8580
        %v8654 = vadd.f32 %v8653, %v8584
        %v8655 = vrot.slane %v8654, 4
        %v8656 = vadd.f32 %v8654, %v8655
        %v8657 = vrot.slane %v8656, 2
        %v8658 = vadd.f32 %v8656, %v8657
        %v8659 = vrot.slane %v8658, 1
        %v8660 = vadd.f32 %v8658, %v8659
        %v8661 = vadd.f32 %v8461, %v8465
        %v8662 = vadd.f32 %v8661, %v8469
        %v8663 = vadd.f32 %v8662, %v8473
        %v8664 = vadd.f32 %v8663, %v8477
        %v8665 = vadd.f32 %v8664, %v8481
        %v8666 = vadd.f32 %v8665, %v8485
        %v8667 = vadd.f32 %v8666, %v8489
        %v8668 = vadd.f32 %v8667, %v8493
        %v8669 = vadd.f32 %v8668, %v8497
        %v8670 = vadd.f32 %v8669, %v8501
        %v8671 = vadd.f32 %v8670, %v8505
        %v8672 = vadd.f32 %v8671, %v8509
        %v8673 = vadd.f32 %v8672, %v8513
        %v8674 = vadd.f32 %v8673, %v8517
        %v8675 = vadd.f32 %v8674, %v8521
        %v8676 = vadd.f32 %v8675, %v8525
        %v8677 = vadd.f32 %v8676, %v8529
        %v8678 = vadd.f32 %v8677, %v8533
        %v8679 = vadd.f32 %v8678, %v8537
        %v8680 = vadd.f32 %v8679, %v8541
        %v8681 = vadd.f32 %v8680, %v8545
        %v8682 = vadd.f32 %v8681, %v8549
        %v8683 = vadd.f32 %v8682, %v8553
        %v8684 = vadd.f32 %v8683, %v8557
        %v8685 = vadd.f32 %v8684, %v8561
        %v8686 = vadd.f32 %v8685, %v8565
        %v8687 = vadd.f32 %v8686, %v8569
        %v8688 = vadd.f32 %v8687, %v8573
        %v8689 = vadd.f32 %v8688, %v8577
        %v8690 = vadd.f32 %v8689, %v8581
        %v8691 = vadd.f32 %v8690, %v8585
        %v8692 = vrot.slane %v8691, 4
        %v8693 = vadd.f32 %v8691, %v8692
        %v8694 = vrot.slane %v8693, 2
        %v8695 = vadd.f32 %v8693, %v8694
        %v8696 = vrot.slane %v8695, 1
        %v8697 = vadd.f32 %v8695, %v8696
        %v8698 = vadd.f32 %v8462, %v8466
        %v8699 = vadd.f32 %v8698, %v8470
        %v8700 = vadd.f32 %v8699, %v8474
        %v8701 = vadd.f32 %v8700, %v8478
        %v8702 = vadd.f32 %v8701, %v8482
        %v8703 = vadd.f32 %v8702, %v8486
        %v8704 = vadd.f32 %v8703, %v8490
        %v8705 = vadd.f32 %v8704, %v8494
        %v8706 = vadd.f32 %v8705, %v8498
        %v8707 = vadd.f32 %v8706, %v8502
        %v8708 = vadd.f32 %v8707, %v8506
        %v8709 = vadd.f32 %v8708, %v8510
        %v8710 = vadd.f32 %v8709, %v8514
        %v8711 = vadd.f32 %v8710, %v8518
        %v8712 = vadd.f32 %v8711, %v8522
        %v8713 = vadd.f32 %v8712, %v8526
        %v8714 = vadd.f32 %v8713, %v8530
        %v8715 = vadd.f32 %v8714, %v8534
        %v8716 = vadd.f32 %v8715, %v8538
        %v8717 = vadd.f32 %v8716, %v8542
        %v8718 = vadd.f32 %v8717, %v8546
        %v8719 = vadd.f32 %v8718, %v8550
        %v8720 = vadd.f32 %v8719, %v8554
        %v8721 = vadd.f32 %v8720, %v8558
        %v8722 = vadd.f32 %v8721, %v8562
        %v8723 = vadd.f32 %v8722, %v8566
        %v8724 = vadd.f32 %v8723, %v8570
        %v8725 = vadd.f32 %v8724, %v8574
        %v8726 = vadd.f32 %v8725, %v8578
        %v8727 = vadd.f32 %v8726, %v8582
        %v8728 = vadd.f32 %v8727, %v8586
        %v8729 = vrot.slane %v8728, 4
        %v8730 = vadd.f32 %v8728, %v8729
        %v8731 = vrot.slane %v8730, 2
        %v8732 = vadd.f32 %v8730, %v8731
        %v8733 = vrot.slane %v8732, 1
        %v8734 = vadd.f32 %v8732, %v8733
        %v8739 = vcombine.low %v8623, %v8660
        %v8740 = vcombine.low %v8697, %v8734
        %v8742 = vunpack.c.l.s4 1966171168
        %v8743 = vunpack.c.0.s8 %v8742
        %v8744 = vlaneseq
        %v8745 = vshrl.u32 %v8744, 7
        %v8746 = vsub.s32 %v8743, %v8745
        %v8747 = vrot.slane %v8739, %v8746
        %v8749 = vunpack.c.l.s4 1966171168
        %v8750 = vunpack.c.0.s8 %v8749
        %v8751 = vlaneseq
        %v8752 = vshrl.u32 %v8751, 7
        %v8753 = vsub.s32 %v8750, %v8752
        %v8754 = vrot.slane %v8740, %v8753
        %v8755 = vcombine.low %v8747, %v8754
        %v8757 = vunpack.c.l.s4 1966171168
        %v8758 = vunpack.c.0.s8 %v8757
        %v8759 = vlaneseq
        %v8760 = vshrl.u32 %v8759, 7
        %v8761 = vsub.s32 %v8758, %v8760
        %v8762 = vrot.slane %v8755, %v8761
        %v8764 = vadd.f32 %v8298, %v8762
        %v8765 = vlaneseq
        %vm8766 = vcmp.ge.s32.totalorder %v8765, 0
        %vm8767 = vcmp.lt.s32.totalorder %v8765, 512
        %vm8768 = vmand %vm8766, %vm8767
        %8769 = vst.msk [vmem:[#allocation4] sm:$0xf] %vm8768, %v8764
        %8770 = vst.msk [vmem:[#allocation2] sm:$0x1] %vm8286, %v8107
        %p8771 = scmp.eq.s32.totalorder %s26, 1
        // Predicated region
        $region73: #{tpu_custom_call.1} parent=55 // pred_check
          %p8772 = pneg %p8771
        $region74: #{tpu_custom_call.1} parent=55 // pred_check_branch
          %8774 = sbr.rel (%p8772) target = $region76
        $region75: #{tpu_custom_call.1} parent=55 // pred_region
          %v8775 = vld [vmem:[#allocation4] sm:$0xf]
          %v8776 = vld [vmem:[#allocation3] sm:$0x1]
          %v8777 = vrcp.pop %v8776
          %8779 = vset.pattern.permute.xlu0 0
          %8780 = vperm.xlu0 %8779, %v8777
          %v8781 = vpop.permute.xlu0 %8780
          %v8783 = vlaneseq
          %v8784 = vshrl.u32 %v8783, 7
          %v8785 = vsub.s32 0, %v8784
          %v8786 = vrot.slane %v8781, %v8785
          %v8787 = vmul.f32 %v8775, %v8786
          %v8788 = vld [vmem:[%s7] sm:$0xff]
          %v8789 = vld [vmem:[%s7 + $0x8] sm:$0xff]
          %v8790 = vld [vmem:[%s7 + $0x10] sm:$0xff]
          %v8791 = vld [vmem:[%s7 + $0x18] sm:$0xff]
          %v8792 = vld [vmem:[%s7 + $0x20] sm:$0xff]
          %v8793 = vld [vmem:[%s7 + $0x28] sm:$0xff]
          %v8794 = vld [vmem:[%s7 + $0x30] sm:$0xff]
          %v8795 = vld [vmem:[%s7 + $0x38] sm:$0xff]
          %v8796 = vld [vmem:[%s7 + $0x40] sm:$0xff]
          %v8797 = vld [vmem:[%s7 + $0x48] sm:$0xff]
          %v8798 = vld [vmem:[%s7 + $0x50] sm:$0xff]
          %v8799 = vld [vmem:[%s7 + $0x58] sm:$0xff]
          %v8800 = vld [vmem:[%s7 + $0x60] sm:$0xff]
          %v8801 = vld [vmem:[%s7 + $0x68] sm:$0xff]
          %v8802 = vld [vmem:[%s7 + $0x70] sm:$0xff]
          %v8803 = vld [vmem:[%s7 + $0x78] sm:$0xff]
          %v8804 = vld [vmem:[%s7 + $0x80] sm:$0xff]
          %v8805 = vld [vmem:[%s7 + $0x88] sm:$0xff]
          %v8806 = vld [vmem:[%s7 + $0x90] sm:$0xff]
          %v8807 = vld [vmem:[%s7 + $0x98] sm:$0xff]
          %v8808 = vld [vmem:[%s7 + $0xa0] sm:$0xff]
          %v8809 = vld [vmem:[%s7 + $0xa8] sm:$0xff]
          %v8810 = vld [vmem:[%s7 + $0xb0] sm:$0xff]
          %v8811 = vld [vmem:[%s7 + $0xb8] sm:$0xff]
          %v8812 = vld [vmem:[%s7 + $0xc0] sm:$0xff]
          %v8813 = vld [vmem:[%s7 + $0xc8] sm:$0xff]
          %v8814 = vld [vmem:[%s7 + $0xd0] sm:$0xff]
          %v8815 = vld [vmem:[%s7 + $0xd8] sm:$0xff]
          %v8816 = vld [vmem:[%s7 + $0xe0] sm:$0xff]
          %v8817 = vld [vmem:[%s7 + $0xe8] sm:$0xff]
          %v8818 = vld [vmem:[%s7 + $0xf0] sm:$0xff]
          %v8819 = vld [vmem:[%s7 + $0xf8] sm:$0xff]
          %v8820 = vld [vmem:[%s7 + $0x100] sm:$0xff]
          %v8821 = vld [vmem:[%s7 + $0x108] sm:$0xff]
          %v8822 = vld [vmem:[%s7 + $0x110] sm:$0xff]
          %v8823 = vld [vmem:[%s7 + $0x118] sm:$0xff]
          %v8824 = vld [vmem:[%s7 + $0x120] sm:$0xff]
          %v8825 = vld [vmem:[%s7 + $0x128] sm:$0xff]
          %v8826 = vld [vmem:[%s7 + $0x130] sm:$0xff]
          %v8827 = vld [vmem:[%s7 + $0x138] sm:$0xff]
          %v8828 = vld [vmem:[%s7 + $0x140] sm:$0xff]
          %v8829 = vld [vmem:[%s7 + $0x148] sm:$0xff]
          %v8830 = vld [vmem:[%s7 + $0x150] sm:$0xff]
          %v8831 = vld [vmem:[%s7 + $0x158] sm:$0xff]
          %v8832 = vld [vmem:[%s7 + $0x160] sm:$0xff]
          %v8833 = vld [vmem:[%s7 + $0x168] sm:$0xff]
          %v8834 = vld [vmem:[%s7 + $0x170] sm:$0xff]
          %v8835 = vld [vmem:[%s7 + $0x178] sm:$0xff]
          %v8836 = vld [vmem:[%s7 + $0x180] sm:$0xff]
          %v8837 = vld [vmem:[%s7 + $0x188] sm:$0xff]
          %v8838 = vld [vmem:[%s7 + $0x190] sm:$0xff]
          %v8839 = vld [vmem:[%s7 + $0x198] sm:$0xff]
          %v8840 = vld [vmem:[%s7 + $0x1a0] sm:$0xff]
          %v8841 = vld [vmem:[%s7 + $0x1a8] sm:$0xff]
          %v8842 = vld [vmem:[%s7 + $0x1b0] sm:$0xff]
          %v8843 = vld [vmem:[%s7 + $0x1b8] sm:$0xff]
          %v8844 = vld [vmem:[%s7 + $0x1c0] sm:$0xff]
          %v8845 = vld [vmem:[%s7 + $0x1c8] sm:$0xff]
          %v8846 = vld [vmem:[%s7 + $0x1d0] sm:$0xff]
          %v8847 = vld [vmem:[%s7 + $0x1d8] sm:$0xff]
          %v8848 = vld [vmem:[%s7 + $0x1e0] sm:$0xff]
          %v8849 = vld [vmem:[%s7 + $0x1e8] sm:$0xff]
          %v8850 = vld [vmem:[%s7 + $0x1f0] sm:$0xff]
          %v8851 = vld [vmem:[%s7 + $0x1f8] sm:$0xff]
          %v8852 = vld [vmem:[%s8] sm:$0x1]
          %v8854 = vlaneseq
          %v8855 = vshrl.u32 %v8854, 7
          %v8856 = vsub.s32 0, %v8855
          %v8857 = vrot.slane %v8787, %v8856
          %v8858 = vlaneseq
          %v8859 = vshrl.u32 %v8858, 7
          %v8860 = vsub.s32 1, %v8859
          %v8861 = vrot.slane %v8787, %v8860
          %v8862 = vlaneseq
          %v8863 = vshrl.u32 %v8862, 7
          %v8864 = vsub.s32 2, %v8863
          %v8865 = vrot.slane %v8787, %v8864
          %v8866 = vlaneseq
          %v8867 = vshrl.u32 %v8866, 7
          %v8868 = vsub.s32 3, %v8867
          %v8869 = vrot.slane %v8787, %v8868
          %8874 = vmatprep.subr.mxu0 0.0
          %8875 = vmatpush1.msra.mxu0 %v8788
          %8876 = vmatprep.subr.mxu0 0.0
          %8877 = vmatpush1.msra.mxu0 %v8789
          %8878 = vmatprep.subr.mxu0 0.0
          %8879 = vmatpush1.msra.mxu0 %v8790
          %8880 = vmatprep.subr.mxu0 0.0
          %8881 = vmatpush1.msra.mxu0 %v8791
          %8882 = vmatprep.subr.mxu0 0.0
          %8883 = vmatpush1.msra.mxu0 %v8792
          %8884 = vmatprep.subr.mxu0 0.0
          %8885 = vmatpush1.msra.mxu0 %v8793
          %8886 = vmatprep.subr.mxu0 0.0
          %8887 = vmatpush1.msra.mxu0 %v8794
          %8888 = vmatprep.subr.mxu0 0.0
          %8889 = vmatpush1.msra.mxu0 %v8795
          %8890 = vmatprep.subr.mxu0 0.0
          %8891 = vmatpush1.msra.mxu0 %v8796
          %8892 = vmatprep.subr.mxu0 0.0
          %8893 = vmatpush1.msra.mxu0 %v8797
          %8894 = vmatprep.subr.mxu0 0.0
          %8895 = vmatpush1.msra.mxu0 %v8798
          %8896 = vmatprep.subr.mxu0 0.0
          %8897 = vmatpush1.msra.mxu0 %v8799
          %8898 = vmatprep.subr.mxu0 0.0
          %8899 = vmatpush1.msra.mxu0 %v8800
          %8900 = vmatprep.subr.mxu0 0.0
          %8901 = vmatpush1.msra.mxu0 %v8801
          %8902 = vmatprep.subr.mxu0 0.0
          %8903 = vmatpush1.msra.mxu0 %v8802
          %8904 = vmatprep.subr.mxu0 0.0
          %8905 = vmatpush1.msra.mxu0 %v8803
          %8906 = vmatprep.subr.mxu0 0.0
          %8907 = vmatpush1.msra.mxu0 %v8804
          %8908 = vmatprep.subr.mxu0 0.0
          %8909 = vmatpush1.msra.mxu0 %v8805
          %8910 = vmatprep.subr.mxu0 0.0
          %8911 = vmatpush1.msra.mxu0 %v8806
          %8912 = vmatprep.subr.mxu0 0.0
          %8913 = vmatpush1.msra.mxu0 %v8807
          %8914 = vmatprep.subr.mxu0 0.0
          %8915 = vmatpush1.msra.mxu0 %v8808
          %8916 = vmatprep.subr.mxu0 0.0
          %8917 = vmatpush1.msra.mxu0 %v8809
          %8918 = vmatprep.subr.mxu0 0.0
          %8919 = vmatpush1.msra.mxu0 %v8810
          %8920 = vmatprep.subr.mxu0 0.0
          %8921 = vmatpush1.msra.mxu0 %v8811
          %8922 = vmatprep.subr.mxu0 0.0
          %8923 = vmatpush1.msra.mxu0 %v8812
          %8924 = vmatprep.subr.mxu0 0.0
          %8925 = vmatpush1.msra.mxu0 %v8813
          %8926 = vmatprep.subr.mxu0 0.0
          %8927 = vmatpush1.msra.mxu0 %v8814
          %8928 = vmatprep.subr.mxu0 0.0
          %8929 = vmatpush1.msra.mxu0 %v8815
          %8930 = vmatprep.subr.mxu0 0.0
          %8931 = vmatpush1.msra.mxu0 %v8816
          %8932 = vmatprep.subr.mxu0 0.0
          %8933 = vmatpush1.msra.mxu0 %v8817
          %8934 = vmatprep.subr.mxu0 0.0
          %8935 = vmatpush1.msra.mxu0 %v8818
          %8936 = vmatprep.subr.mxu0 0.0
          %8937 = vmatpush1.msra.mxu0 %v8819
          %8938 = vmatprep.mubr.f32.mxu0 %v8861
          %8939 = vmatmul.mubr.f32.gmra.mrb[0].mxu0 %v8857
          %v8940 = vpop.f32.mrb[0].mxu0
          %v8941 = vadd.f32 %v8852, %v8940
          %v8942 = vpop.f32.mrb[0].mxu0
          %8943 = vdwg.mxu0
          %8944 = vmatprep.subr.mxu0 0.0
          %8945 = vmatpush1.msra.mxu0 %v8820
          %8946 = vmatprep.subr.mxu0 0.0
          %8947 = vmatpush1.msra.mxu0 %v8821
          %8948 = vmatprep.subr.mxu0 0.0
          %8949 = vmatpush1.msra.mxu0 %v8822
          %8950 = vmatprep.subr.mxu0 0.0
          %8951 = vmatpush1.msra.mxu0 %v8823
          %8952 = vmatprep.subr.mxu0 0.0
          %8953 = vmatpush1.msra.mxu0 %v8824
          %8954 = vmatprep.subr.mxu0 0.0
          %8955 = vmatpush1.msra.mxu0 %v8825
          %8956 = vmatprep.subr.mxu0 0.0
          %8957 = vmatpush1.msra.mxu0 %v8826
          %8958 = vmatprep.subr.mxu0 0.0
          %8959 = vmatpush1.msra.mxu0 %v8827
          %8960 = vmatprep.subr.mxu0 0.0
          %8961 = vmatpush1.msra.mxu0 %v8828
          %8962 = vmatprep.subr.mxu0 0.0
          %8963 = vmatpush1.msra.mxu0 %v8829
          %8964 = vmatprep.subr.mxu0 0.0
          %8965 = vmatpush1.msra.mxu0 %v8830
          %8966 = vmatprep.subr.mxu0 0.0
          %8967 = vmatpush1.msra.mxu0 %v8831
          %8968 = vmatprep.subr.mxu0 0.0
          %8969 = vmatpush1.msra.mxu0 %v8832
          %8970 = vmatprep.subr.mxu0 0.0
          %8971 = vmatpush1.msra.mxu0 %v8833
          %8972 = vmatprep.subr.mxu0 0.0
          %8973 = vmatpush1.msra.mxu0 %v8834
          %8974 = vmatprep.subr.mxu0 0.0
          %8975 = vmatpush1.msra.mxu0 %v8835
          %8976 = vmatprep.subr.mxu0 0.0
          %8977 = vmatpush1.msra.mxu0 %v8836
          %8978 = vmatprep.subr.mxu0 0.0
          %8979 = vmatpush1.msra.mxu0 %v8837
          %8980 = vmatprep.subr.mxu0 0.0
          %8981 = vmatpush1.msra.mxu0 %v8838
          %8982 = vmatprep.subr.mxu0 0.0
          %8983 = vmatpush1.msra.mxu0 %v8839
          %8984 = vmatprep.subr.mxu0 0.0
          %8985 = vmatpush1.msra.mxu0 %v8840
          %8986 = vmatprep.subr.mxu0 0.0
          %8987 = vmatpush1.msra.mxu0 %v8841
          %8988 = vmatprep.subr.mxu0 0.0
          %8989 = vmatpush1.msra.mxu0 %v8842
          %8990 = vmatprep.subr.mxu0 0.0
          %8991 = vmatpush1.msra.mxu0 %v8843
          %8992 = vmatprep.subr.mxu0 0.0
          %8993 = vmatpush1.msra.mxu0 %v8844
          %8994 = vmatprep.subr.mxu0 0.0
          %8995 = vmatpush1.msra.mxu0 %v8845
          %8996 = vmatprep.subr.mxu0 0.0
          %8997 = vmatpush1.msra.mxu0 %v8846
          %8998 = vmatprep.subr.mxu0 0.0
          %8999 = vmatpush1.msra.mxu0 %v8847
          %9000 = vmatprep.subr.mxu0 0.0
          %9001 = vmatpush1.msra.mxu0 %v8848
          %9002 = vmatprep.subr.mxu0 0.0
          %9003 = vmatpush1.msra.mxu0 %v8849
          %9004 = vmatprep.subr.mxu0 0.0
          %9005 = vmatpush1.msra.mxu0 %v8850
          %9006 = vmatprep.subr.mxu0 0.0
          %9007 = vmatpush1.msra.mxu0 %v8851
          %9008 = vmatprep.mubr.f32.mxu0 %v8869
          %9009 = vmatmul.mubr.f32.gmra.mrb[0].mxu0 %v8865
          %v9010 = vpop.f32.mrb[0].mxu0
          %v9011 = vadd.f32 %v8941, %v9010
          %v9012 = vpop.f32.mrb[0].mxu0
          %9013 = vdwg.mxu0
          %vm9014 = vcmask 8192
          %9015 = vst.msk [vmem:[#allocation12] sm:$0x1] %vm9014, %v9011
        $region76: #{tpu_custom_call.1} parent=55 // pred_fallthru
          _
        // Predicated region
        $region77: #{tpu_custom_call.1} parent=55 // pred_check
          %p9016 = pneg %p233
        $region78: #{tpu_custom_call.1} parent=55 // pred_check_branch
          %9018 = sbr.rel (%p9016) target = $region80
        $region79: #{tpu_custom_call.1} parent=55 // pred_region
          %s9020 = ssub.s32 16, 16
          %9021 = vsyncadd [#allocation8], %s9020
          %s9023 = sshll.u32 [#allocation12], 4
          %s9024 = int_to_ptr.vmem [resolvable:$true] %s9023
          %9026 = dma.vmem_to_hbm [thread:$0]  %s9024, 16, %s9, [#allocation8]
        $region80: #{tpu_custom_call.1} parent=55 // pred_fallthru
          _
        // Predicated region
        $region81: #{tpu_custom_call.1} parent=55 // pred_check
          %p9027 = pneg %p233
        $region82: #{tpu_custom_call.1} parent=55 // pred_check_branch
          %9029 = sbr.rel (%p9027) target = $region84
        $region83: #{tpu_custom_call.1} parent=55 // pred_region
          %9030 = dma.done [#allocation8], 16
        $region84: #{tpu_custom_call.1} parent=55 // pred_fallthru
          _
      $region56: #{tpu_custom_call.1} parent=5 // pred_fallthru
        _
      %p9031 = scmp.le.s32.totalorder 2, %s21
      // Predicated region
      $region85: #{tpu_custom_call.1} parent=5 // pred_check
        %p9032 = pneg %p9031
      $region86: #{tpu_custom_call.1} parent=5 // pred_check_branch
        %9034 = sbr.rel (%p9032) target = $region88
      $region87: #{tpu_custom_call.1} parent=5 // pred_region
        %s9035 = ssub.s32 %s21, 2
      $region88: #{tpu_custom_call.1} parent=5 // pred_fallthru
        _
    $region6: #{tpu_custom_call.1} parent=1 // loop_footer
      %s25 = sadd.s32 1, %s21
    $region7: #{tpu_custom_call.1} parent=1 // loop_footer_branch
      %20 = sbr.rel target = $region3
    $region8: #{tpu_custom_call.1} parent=1 // loop_exit
      _
    %9036 = vsyncpa [#allocation7], 1
    %s9037 = scalar_lea.sflag [#allocation7], 1
    %9038 = vsyncpa %s9037, 1
    %9039 = vsyncpa [#allocation10], 1
    %9040 = vsyncpa [#allocation8], 1
    %s9041 = scalar_lea.sflag [#allocation8], 1
    %9042 = vsyncpa %s9041, 1

</llo_original>
